<compile_context>
chip_gen: v7x
topology: tpu7x:2x2x1
jax: 0.10.0
libtpu: 0.0.40
codegen_flags: <defaults>
</compile_context>

<pallas_src>
import functools

import jax
import jax.numpy as jnp
import numpy as np
from jax.experimental import pallas as pl
from jax.experimental.pallas import tpu as pltpu

EPS = 1e-5       # nn.BatchNorm2d default eps
LANES = 128      # TPU lane width: channels are padded to a multiple of this


def _round_up(v, m):
    return (v + m - 1) // m * m


@functools.lru_cache(maxsize=None)
def _vmem_limit_bytes():
    """Generation-aware VMEM limit: ~96 MiB on v5e/v6e (128 MiB physical), ~48 MiB on v7x."""
    try:
        cap = pltpu.get_tpu_info().vmem_capacity_bytes
    except Exception:
        cap = 64 * 1024 * 1024
    return int(min(cap * 3 // 4, 96 * 1024 * 1024))


def _conv3x3(xp, w, per_tap):
    """3x3 / stride-1 conv of a spatially zero-padded (Hp, Wp, Cp) slab on the MXU.

    xp is cast to the MXU dtype ONCE before any tap slice is built (no-op when already
    that dtype), so the shifted-slice copies move half the bytes in the bf16 path.
    w: (9*Cp, Cp), rows ordered (dh, dw, cin). Returns (H*W, Cp) f32.

    per_tap=False: one deep im2col matmul (K = 9*Cp, best MXU feeding, larger VMEM).
    per_tap=True : 9 accumulated per-tap matmuls (no concat copy, much lower peak VMEM;
                   used automatically for large H*W, important under v7x's 64 MiB VMEM).
    """
    Hp, Wp, Cp = xp.shape
    H, W = Hp - 2, Wp - 2
    xp = xp.astype(w.dtype)
    if per_tap:
        acc = jnp.zeros((H * W, Cp), jnp.float32)
        t = 0
        for dh in range(3):
            for dw in range(3):
                tap = xp[dh:dh + H, dw:dw + W, :].reshape(H * W, Cp)
                acc = acc + jnp.dot(tap, w[t * Cp:(t + 1) * Cp, :],
                                    preferred_element_type=jnp.float32)
                t += 1
        return acc
    taps = [xp[dh:dh + H, dw:dw + W, :].reshape(H * W, Cp)
            for dh in range(3) for dw in range(3)]
    patches = jnp.concatenate(taps, axis=1)                            # already MXU dtype
    return jnp.dot(patches, w, preferred_element_type=jnp.float32)     # f32 accumulation


def _conv1_stats_kernel(xp_ref, w_ref, y1_ref, s_ref, ss_ref, *, per_tap):
    """Pass 1: y1 = conv1(x) written UNPADDED, plus per-image sum/sumsq of y1 (f32)."""
    _, Hp, Wp, Cp = xp_ref.shape
    H, W = Hp - 2, Wp - 2
    y = _conv3x3(xp_ref[0], w_ref[...], per_tap)                       # (H*W, Cp) f32
    y1_ref[0] = y.reshape(H, W, Cp).astype(y1_ref.dtype)               # bf16 in fast path
    s_ref[0] = jnp.broadcast_to(jnp.sum(y, axis=0, keepdims=True), (8, Cp))
    ss_ref[0] = jnp.broadcast_to(jnp.sum(y * y, axis=0, keepdims=True), (8, Cp))


def _bn_relu_conv2_stats_kernel(y1_ref, sc_ref, sh_ref, w_ref,
                                y2_ref, s_ref, ss_ref, apad_ref, *, per_tap):
    """Pass 2: a = relu(y1*scale1 + shift1); y2 = conv2(a); per-image sum/sumsq of y2."""
    _, H, W, Cp = y1_ref.shape
    Hp, Wp = H + 2, W + 2
    # Fused BN1 affine + ReLU on the interior only (f32 VPU math from bf16 storage).
    a = jnp.maximum(y1_ref[0].astype(jnp.float32) * sc_ref[...] + sh_ref[...], 0.0)
    # Assemble the halo-padded conv2 input in a persistent VMEM scratch: zero only the
    # 4 border strips (cheap; done every step so it is also safe under megacore grid
    # splitting), then write the interior. No full-slab zero, no iota/select masking.
    zdt = apad_ref.dtype
    zero_row = jnp.zeros((1, Wp, Cp), zdt)
    zero_col = jnp.zeros((Hp, 1, Cp), zdt)
    apad_ref[0:1, :, :] = zero_row
    apad_ref[Hp - 1:Hp, :, :] = zero_row
    apad_ref[:, 0:1, :] = zero_col
    apad_ref[:, Wp - 1:Wp, :] = zero_col
    apad_ref[1:H + 1, 1:W + 1, :] = a.astype(zdt)                      # MXU-dtype scratch
    y = _conv3x3(apad_ref[...], w_ref[...], per_tap)                   # (H*W, Cp) f32
    y2_ref[0] = y.reshape(H, W, Cp).astype(y2_ref.dtype)
    s_ref[0] = jnp.broadcast_to(jnp.sum(y, axis=0, keepdims=True), (8, Cp))
    ss_ref[0] = jnp.broadcast_to(jnp.sum(y * y, axis=0, keepdims=True), (8, Cp))


def _bn_residual_relu_kernel(y2_ref, x_ref, sc_ref, sh_ref, o_ref):
    """Pass 3 (several images per step): out = relu(y2*scale2 + shift2 + x)."""
    y2 = y2_ref[...].astype(jnp.float32)
    o_ref[...] = jnp.maximum(y2 * sc_ref[...] + sh_ref[...] + x_ref[...], 0.0
                             ).astype(o_ref.dtype)


def _bn_scale_shift(s, ss, gamma, beta, count):
    """Fold training-mode BatchNorm (biased batch stats) into per-channel scale/shift.

    Variance via E[x^2]-E[x]^2 from f32 sums; clamped at 0. (A centered/Welford pass would
    be more robust if activations ever have |mean| >> std.)
    """
    total = jnp.sum(s[:, 0, :], axis=0)
    total_sq = jnp.sum(ss[:, 0, :], axis=0)
    mean = total / count
    var = jnp.maximum(total_sq / count - mean * mean, 0.0)
    scale = gamma * jax.lax.rsqrt(var + EPS)
    shift = beta - mean * scale
    return scale.reshape(1, -1), shift.reshape(1, -1)


@functools.partial(jax.jit, static_argnames=("mxu_dtype",))
def residual_block(x_nchw, w1, g1, b1, w2, g2, b2, mxu_dtype=jnp.bfloat16):
    """x_nchw: (N,C,H,W) f32. w1/w2: (C,C,3,3) PyTorch OIHW conv weights. g*/b*: (C,) BN affine."""
    N, C, H, W = x_nchw.shape
    Cp = _round_up(C, LANES)
    Hp, Wp = H + 2, W + 2
    count = N * H * W
    store_dtype = jnp.dtype(mxu_dtype)          # inter-pass intermediates (bf16 in fast path)
    itemsize = jnp.dtype(mxu_dtype).itemsize

    # NCHW -> lane-dense NHWC with channels padded to Cp.
    # TODO(synk): if the surrounding model is kept channels-last these boundary transposes
    # vanish; likewise for genuinely small C a lane-repacking (taps+channels or images into
    # lanes) would avoid the Cp/C padding waste — kept simple here.
    x = jnp.transpose(x_nchw, (0, 2, 3, 1))
    x = jnp.pad(x, ((0, 0), (0, 0), (0, 0), (0, Cp - C)))
    # conv1 input: one spatial halo pad, pre-cast to the MXU dtype (halves pass-1 HBM read
    # in the bf16 path and makes every in-kernel tap slice bf16).
    xpad = jnp.pad(x, ((0, 0), (1, 1), (1, 1), (0, 0))).astype(mxu_dtype)

    def prep_w(w):                     # OIHW -> (9*Cp, Cp), rows ordered (dh, dw, cin)
        w = jnp.transpose(w, (2, 3, 1, 0))                              # HWIO
        w = jnp.pad(w, ((0, 0), (0, 0), (0, Cp - C), (0, Cp - C)))
        return w.reshape(9 * Cp, Cp).astype(mxu_dtype)

    w1m, w2m = prep_w(w1), prep_w(w2)
    pad_c = lambda v: jnp.pad(v, (0, Cp - C))
    g1p, b1p, g2p, b2p = pad_c(g1), pad_c(b1), pad_c(g2), pad_c(b2)

    # Deep-K concat im2col for small slabs; per-tap accumulation when the patches slab
    # would strain VMEM (notably v7x's 64 MiB budget).
    per_tap = H * W * 9 * Cp * itemsize > 12 * 1024 * 1024

    cparams = pltpu.CompilerParams(
        dimension_semantics=("parallel",),        # batch axis: dual-TC on v7x
        vmem_limit_bytes=_vmem_limit_bytes(),     # generation-aware (96 MiB v5e/v6e, 48 v7x)
    )
    # TODO(synk): for very large H*W a spatial (row-block + 1-row halo) grid axis would
    # bound per-step VMEM independently of image size; whole-image blocks are fine here.

    img_pad_spec = pl.BlockSpec((1, Hp, Wp, Cp), lambda n: (n, 0, 0, 0))
    img_spec = pl.BlockSpec((1, H, W, Cp), lambda n: (n, 0, 0, 0))
    stat_spec = pl.BlockSpec((1, 8, Cp), lambda n: (n, 0, 0))
    # TODO(synk): pipeline_mode=pl.Buffered(1) on w_spec would drop one redundant weight
    # buffer (constant index_map); omitted to keep lowering portable across jax versions.
    w_spec = pl.BlockSpec((9 * Cp, Cp), lambda n: (0, 0))
    vec_spec = pl.BlockSpec((1, Cp), lambda n: (0, 0))
    stat_shape = jax.ShapeDtypeStruct((N, 8, Cp), jnp.float32)

    # ---- pass 1: conv1 + partial BN1 stats (unpadded, MXU-dtype y1) ---------------------
    y1, s1, ss1 = pl.pallas_call(
        functools.partial(_conv1_stats_kernel, per_tap=per_tap),
        grid=(N,),
        in_specs=[img_pad_spec, w_spec],
        out_specs=(img_spec, stat_spec, stat_spec),
        out_shape=(jax.ShapeDtypeStruct((N, H, W, Cp), store_dtype), stat_shape, stat_shape),
        compiler_params=cparams,
    )(xpad, w1m)
    sc1, sh1 = _bn_scale_shift(s1, ss1, g1p, b1p, count)

    # ---- pass 2: BN1 + ReLU + conv2 + partial BN2 stats ---------------------------------
    y2, s2, ss2 = pl.pallas_call(
        functools.partial(_bn_relu_conv2_stats_kernel, per_tap=per_tap),
        grid=(N,),
        in_specs=[img_spec, vec_spec, vec_spec, w_spec],
        out_specs=(img_spec, stat_spec, stat_spec),
        out_shape=(jax.ShapeDtypeStruct((N, H, W, Cp), store_dtype), stat_shape, stat_shape),
        scratch_shapes=[pltpu.VMEM((Hp, Wp, Cp), jnp.dtype(mxu_dtype))],
        compiler_params=cparams,
    )(y1, sc1, sh1, w2m)
    sc2, sh2 = _bn_scale_shift(s2, ss2, g2p, b2p, count)

    # ---- pass 3: BN2 + residual add + ReLU, several images per grid step ----------------
    per_img_bytes = H * W * Cp * (4 + 4 + jnp.dtype(store_dtype).itemsize)
    nb = max(1, min(N, (8 * 1024 * 1024) // max(per_img_bytes, 1)))
    while N % nb:
        nb -= 1
    batch_spec = pl.BlockSpec((nb, H, W, Cp), lambda n: (n, 0, 0, 0))
    out = pl.pallas_call(
        _bn_residual_relu_kernel,
        grid=(N // nb,),
        in_specs=[batch_spec, batch_spec, vec_spec, vec_spec],
        out_specs=batch_spec,
        out_shape=jax.ShapeDtypeStruct((N, H, W, Cp), x_nchw.dtype),
        compiler_params=cparams,
    )(y2, x, sc2, sh2)

    # TODO(synk): this channel-slice + NCHW transpose is one extra HBM round trip of the
    # output; it disappears if the surrounding model is kept channels-last.
    return jnp.transpose(out[:, :, :, :C], (0, 3, 1, 2))


def _reference(x, w1, g1, b1, w2, g2, b2):
    """Pure-JAX f32 reference in NCHW, matching PyTorch training-mode forward."""
    def conv(a, w):
        return jax.lax.conv_general_dilated(
            a, w, (1, 1), [(1, 1), (1, 1)],
            dimension_numbers=('NCHW', 'OIHW', 'NCHW'),
            preferred_element_type=jnp.float32)

    def bn(y, g, b):
        m = y.mean(axis=(0, 2, 3), keepdims=True)
        v = ((y - m) ** 2).mean(axis=(0, 2, 3), keepdims=True)
        return (y - m) / jnp.sqrt(v + EPS) * g.reshape(1, -1, 1, 1) + b.reshape(1, -1, 1, 1)

    o = jax.nn.relu(bn(conv(x, w1), g1, b1))
    o = bn(conv(o, w2), g2, b2)
    return jax.nn.relu(o + x)


if __name__ == "__main__":
    # TODO(synk): running-stat (momentum) updates of nn.BatchNorm2d are stateful training
    # side effects and are not part of the forward output; they are intentionally omitted.
    key = jax.random.PRNGKey(0)
    k = jax.random.split(key, 6)
    N, C, H, W = 2, 4, 16, 16

    x = jax.random.normal(k[0], (N, C, H, W), jnp.float32)
    w1 = 0.1 * jax.random.normal(k[1], (C, C, 3, 3), jnp.float32)
    w2 = 0.1 * jax.random.normal(k[2], (C, C, 3, 3), jnp.float32)
    g1 = 1.0 + 0.1 * jax.random.normal(k[3], (C,), jnp.float32)
    b1 = 0.1 * jax.random.normal(k[4], (C,), jnp.float32)
    g2 = jnp.ones((C,), jnp.float32)    # nn.BatchNorm2d default affine init
    b2 = jnp.zeros((C,), jnp.float32)

    expected = _reference(x, w1, g1, b1, w2, g2, b2)

    # Default (optimized) path: bf16 MXU operands + bf16 intermediates -> loose tolerance.
    out = jax.block_until_ready(residual_block(x, w1, g1, b1, w2, g2, b2))
    np.testing.assert_allclose(np.asarray(out), np.asarray(expected), rtol=1e-1, atol=1e-1)

    # Full-precision path exercises the exact same kernel structure at tight tolerance.
    out_f32 = jax.block_until_ready(
        residual_block(x, w1, g1, b1, w2, g2, b2, mxu_dtype=jnp.float32))
    np.testing.assert_allclose(np.asarray(out_f32), np.asarray(expected), rtol=2e-4, atol=2e-4)

    print("KERNEL_OK")
</pallas_src>

<mosaic_0001>
module attributes {stable_mosaic.version = 11 : i64} {
  func.func @_conv1_stats_kernel(%arg0: i32, %arg1: memref<1x18x18x128xbf16, #tpu.memory_space<vmem>>, %arg2: memref<1152x128xbf16, #tpu.memory_space<vmem>>, %arg3: memref<1x16x16x128xbf16, #tpu.memory_space<vmem>>, %arg4: memref<1x8x128xf32, #tpu.memory_space<vmem>>, %arg5: memref<1x8x128xf32, #tpu.memory_space<vmem>>) attributes {dimension_semantics = [#tpu.dimension_semantics<parallel>], iteration_bounds = array<i64: 2>, scalar_prefetch = 0 : i64, scratch_operands = 0 : i64, tpu.core_type = #tpu.core_type<tc>, window_params = [{transform_indices = @transform_0, window_bounds = array<i64: 1, 18, 18, 128>}, {pipeline_mode = #tpu.pipeline_mode<synchronous>, transform_indices = @transform_1, window_bounds = array<i64: 1152, 128>}, {transform_indices = @transform_2, window_bounds = array<i64: 1, 16, 16, 128>}, {transform_indices = @transform_3, window_bounds = array<i64: 1, 8, 128>}, {transform_indices = @transform_4, window_bounds = array<i64: 1, 8, 128>}]} {
    %c0 = arith.constant 0 : index
    %c0_0 = arith.constant 0 : index
    %c0_1 = arith.constant 0 : index
    %c0_2 = arith.constant 0 : index
    %0 = vector.load %arg1[%c0, %c0_0, %c0_1, %c0_2] : memref<1x18x18x128xbf16, #tpu.memory_space<vmem>>, vector<1x18x18x128xbf16>
    %1 = vector.shape_cast %0 : vector<1x18x18x128xbf16> to vector<18x18x128xbf16>
    %c0_3 = arith.constant 0 : index
    %c0_4 = arith.constant 0 : index
    %2 = vector.load %arg2[%c0_3, %c0_4] : memref<1152x128xbf16, #tpu.memory_space<vmem>>, vector<1152x128xbf16>
    %3 = vector.extract_strided_slice %1 {offsets = [0, 0, 0], sizes = [16, 16, 128], strides = [1, 1, 1]} : vector<18x18x128xbf16> to vector<16x16x128xbf16>
    %4 = vector.shape_cast %3 : vector<16x16x128xbf16> to vector<256x128xbf16>
    %5 = vector.extract_strided_slice %1 {offsets = [0, 1, 0], sizes = [16, 16, 128], strides = [1, 1, 1]} : vector<18x18x128xbf16> to vector<16x16x128xbf16>
    %6 = vector.shape_cast %5 : vector<16x16x128xbf16> to vector<256x128xbf16>
    %7 = vector.extract_strided_slice %1 {offsets = [0, 2, 0], sizes = [16, 16, 128], strides = [1, 1, 1]} : vector<18x18x128xbf16> to vector<16x16x128xbf16>
    %8 = vector.shape_cast %7 : vector<16x16x128xbf16> to vector<256x128xbf16>
    %9 = vector.extract_strided_slice %1 {offsets = [1, 0, 0], sizes = [16, 16, 128], strides = [1, 1, 1]} : vector<18x18x128xbf16> to vector<16x16x128xbf16>
    %10 = vector.shape_cast %9 : vector<16x16x128xbf16> to vector<256x128xbf16>
    %11 = vector.extract_strided_slice %1 {offsets = [1, 1, 0], sizes = [16, 16, 128], strides = [1, 1, 1]} : vector<18x18x128xbf16> to vector<16x16x128xbf16>
    %12 = vector.shape_cast %11 : vector<16x16x128xbf16> to vector<256x128xbf16>
    %13 = vector.extract_strided_slice %1 {offsets = [1, 2, 0], sizes = [16, 16, 128], strides = [1, 1, 1]} : vector<18x18x128xbf16> to vector<16x16x128xbf16>
    %14 = vector.shape_cast %13 : vector<16x16x128xbf16> to vector<256x128xbf16>
    %15 = vector.extract_strided_slice %1 {offsets = [2, 0, 0], sizes = [16, 16, 128], strides = [1, 1, 1]} : vector<18x18x128xbf16> to vector<16x16x128xbf16>
    %16 = vector.shape_cast %15 : vector<16x16x128xbf16> to vector<256x128xbf16>
    %17 = vector.extract_strided_slice %1 {offsets = [2, 1, 0], sizes = [16, 16, 128], strides = [1, 1, 1]} : vector<18x18x128xbf16> to vector<16x16x128xbf16>
    %18 = vector.shape_cast %17 : vector<16x16x128xbf16> to vector<256x128xbf16>
    %19 = vector.extract_strided_slice %1 {offsets = [2, 2, 0], sizes = [16, 16, 128], strides = [1, 1, 1]} : vector<18x18x128xbf16> to vector<16x16x128xbf16>
    %20 = vector.shape_cast %19 : vector<16x16x128xbf16> to vector<256x128xbf16>
    %21 = tpu.concatenate %4, %6, %8, %10, %12, %14, %16, %18, %20 in 1 : vector<256x128xbf16>, vector<256x128xbf16>, vector<256x128xbf16>, vector<256x128xbf16>, vector<256x128xbf16>, vector<256x128xbf16>, vector<256x128xbf16>, vector<256x128xbf16>, vector<256x128xbf16> -> vector<256x1152xbf16>
    %cst = arith.constant dense<0.000000e+00> : vector<256x128xf32>
    %22 = tpu.matmul %21, %2, %cst {dimension_numbers = #tpu.dot_dimension_numbers<[1], [0], [0], [1], [0, 0, 1, 1], [], []>} : vector<256x1152xbf16>, vector<1152x128xbf16>, vector<256x128xf32> -> vector<256x128xf32>
    %23 = vector.shape_cast %22 : vector<256x128xf32> to vector<16x16x128xf32>
    %24 = arith.truncf %23 : vector<16x16x128xf32> to vector<16x16x128xbf16>
    %c0_5 = arith.constant 0 : index
    %c0_6 = arith.constant 0 : index
    %c0_7 = arith.constant 0 : index
    %c0_8 = arith.constant 0 : index
    %25 = vector.load %arg3[%c0_5, %c0_6, %c0_7, %c0_8] : memref<1x16x16x128xbf16, #tpu.memory_space<vmem>>, vector<1x16x16x128xbf16>
    %26 = vector.shape_cast %25 : vector<1x16x16x128xbf16> to vector<16x16x128xbf16>
    %27 = vector.shape_cast %24 : vector<16x16x128xbf16> to vector<1x16x16x128xbf16>
    tpu.vector_store %arg3[%c0_5, %c0_6, %c0_7, %c0_8], %27 {strides = array<i32>} : memref<1x16x16x128xbf16, #tpu.memory_space<vmem>>, vector<1x16x16x128xbf16>,
    %cst_9 = arith.constant dense<0.000000e+00> : vector<128xf32>
    %28 = vector.multi_reduction <add>, %22, %cst_9 [0] : vector<256x128xf32> to vector<128xf32>
    %29 = vector.shape_cast %28 : vector<128xf32> to vector<1x128xf32>
    %30 = vector.shape_cast %29 : vector<1x128xf32> to vector<1x128xf32>
    %31 = vector.broadcast %30 : vector<1x128xf32> to vector<8x128xf32>
    %c0_10 = arith.constant 0 : index
    %c0_11 = arith.constant 0 : index
    %c0_12 = arith.constant 0 : index
    %32 = vector.load %arg4[%c0_10, %c0_11, %c0_12] : memref<1x8x128xf32, #tpu.memory_space<vmem>>, vector<1x8x128xf32>
    %33 = vector.shape_cast %32 : vector<1x8x128xf32> to vector<8x128xf32>
    %34 = vector.shape_cast %31 : vector<8x128xf32> to vector<1x8x128xf32>
    tpu.vector_store %arg4[%c0_10, %c0_11, %c0_12], %34 {strides = array<i32>} : memref<1x8x128xf32, #tpu.memory_space<vmem>>, vector<1x8x128xf32>,
    %35 = arith.mulf %22, %22 : vector<256x128xf32>
    %cst_13 = arith.constant dense<0.000000e+00> : vector<128xf32>
    %36 = vector.multi_reduction <add>, %35, %cst_13 [0] : vector<256x128xf32> to vector<128xf32>
    %37 = vector.shape_cast %36 : vector<128xf32> to vector<1x128xf32>
    %38 = vector.shape_cast %37 : vector<1x128xf32> to vector<1x128xf32>
    %39 = vector.broadcast %38 : vector<1x128xf32> to vector<8x128xf32>
    %c0_14 = arith.constant 0 : index
    %c0_15 = arith.constant 0 : index
    %c0_16 = arith.constant 0 : index
    %40 = vector.load %arg5[%c0_14, %c0_15, %c0_16] : memref<1x8x128xf32, #tpu.memory_space<vmem>>, vector<1x8x128xf32>
    %41 = vector.shape_cast %40 : vector<1x8x128xf32> to vector<8x128xf32>
    %42 = vector.shape_cast %39 : vector<8x128xf32> to vector<1x8x128xf32>
    tpu.vector_store %arg5[%c0_14, %c0_15, %c0_16], %42 {strides = array<i32>} : memref<1x8x128xf32, #tpu.memory_space<vmem>>, vector<1x8x128xf32>,
    return
  }
  func.func @transform_0(%arg0: i32) -> (i32, i32, i32, i32) {
    %c0_i32 = arith.constant 0 : i32
    %c0_i32_0 = arith.constant 0 : i32
    %c0_i32_1 = arith.constant 0 : i32
    %c0_i32_2 = arith.constant 0 : i32
    return %arg0, %c0_i32, %c0_i32_0, %c0_i32_1 : i32, i32, i32, i32
  }
  func.func @transform_1(%arg0: i32) -> (i32, i32) {
    %c0_i32 = arith.constant 0 : i32
    %c0_i32_0 = arith.constant 0 : i32
    %c0_i32_1 = arith.constant 0 : i32
    return %c0_i32, %c0_i32_0 : i32, i32
  }
  func.func @transform_2(%arg0: i32) -> (i32, i32, i32, i32) {
    %c0_i32 = arith.constant 0 : i32
    %c0_i32_0 = arith.constant 0 : i32
    %c0_i32_1 = arith.constant 0 : i32
    %c0_i32_2 = arith.constant 0 : i32
    return %arg0, %c0_i32, %c0_i32_0, %c0_i32_1 : i32, i32, i32, i32
  }
  func.func @transform_3(%arg0: i32) -> (i32, i32, i32) {
    %c0_i32 = arith.constant 0 : i32
    %c0_i32_0 = arith.constant 0 : i32
    %c0_i32_1 = arith.constant 0 : i32
    return %arg0, %c0_i32, %c0_i32_0 : i32, i32, i32
  }
  func.func @transform_4(%arg0: i32) -> (i32, i32, i32) {
    %c0_i32 = arith.constant 0 : i32
    %c0_i32_0 = arith.constant 0 : i32
    %c0_i32_1 = arith.constant 0 : i32
    return %arg0, %c0_i32, %c0_i32_0 : i32, i32, i32
  }
}

module attributes {stable_mosaic.version = 11 : i64} {
  func.func @_bn_residual_relu_kernel(%arg0: i32, %arg1: memref<2x16x16x128xbf16, #tpu.memory_space<vmem>>, %arg2: memref<2x16x16x128xf32, #tpu.memory_space<vmem>>, %arg3: memref<1x128xf32, #tpu.memory_space<vmem>>, %arg4: memref<1x128xf32, #tpu.memory_space<vmem>>, %arg5: memref<2x16x16x128xf32, #tpu.memory_space<vmem>>) attributes {dimension_semantics = [#tpu.dimension_semantics<parallel>], iteration_bounds = array<i64: 1>, scalar_prefetch = 0 : i64, scratch_operands = 0 : i64, tpu.core_type = #tpu.core_type<tc>, window_params = [{transform_indices = @transform_0, window_bounds = array<i64: 2, 16, 16, 128>}, {transform_indices = @transform_1, window_bounds = array<i64: 2, 16, 16, 128>}, {pipeline_mode = #tpu.pipeline_mode<synchronous>, transform_indices = @transform_2, window_bounds = array<i64: 1, 128>}, {pipeline_mode = #tpu.pipeline_mode<synchronous>, transform_indices = @transform_3, window_bounds = array<i64: 1, 128>}, {transform_indices = @transform_4, window_bounds = array<i64: 2, 16, 16, 128>}]} {
    %c0 = arith.constant 0 : index
    %c0_0 = arith.constant 0 : index
    %c0_1 = arith.constant 0 : index
    %c0_2 = arith.constant 0 : index
    %0 = vector.load %arg1[%c0, %c0_0, %c0_1, %c0_2] : memref<2x16x16x128xbf16, #tpu.memory_space<vmem>>, vector<2x16x16x128xbf16>
    %1 = arith.extf %0 : vector<2x16x16x128xbf16> to vector<2x16x16x128xf32>
    %c0_3 = arith.constant 0 : index
    %c0_4 = arith.constant 0 : index
    %2 = vector.load %arg3[%c0_3, %c0_4] : memref<1x128xf32, #tpu.memory_space<vmem>>, vector<1x128xf32>
    %3 = vector.shape_cast %2 : vector<1x128xf32> to vector<1x1x1x128xf32>
    %4 = vector.broadcast %3 : vector<1x1x1x128xf32> to vector<2x16x16x128xf32>
    %5 = arith.mulf %1, %4 : vector<2x16x16x128xf32>
    %c0_5 = arith.constant 0 : index
    %c0_6 = arith.constant 0 : index
    %6 = vector.load %arg4[%c0_5, %c0_6] : memref<1x128xf32, #tpu.memory_space<vmem>>, vector<1x128xf32>
    %7 = vector.shape_cast %6 : vector<1x128xf32> to vector<1x1x1x128xf32>
    %8 = vector.broadcast %7 : vector<1x1x1x128xf32> to vector<2x16x16x128xf32>
    %9 = arith.addf %5, %8 : vector<2x16x16x128xf32>
    %c0_7 = arith.constant 0 : index
    %c0_8 = arith.constant 0 : index
    %c0_9 = arith.constant 0 : index
    %c0_10 = arith.constant 0 : index
    %10 = vector.load %arg2[%c0_7, %c0_8, %c0_9, %c0_10] : memref<2x16x16x128xf32, #tpu.memory_space<vmem>>, vector<2x16x16x128xf32>
    %11 = arith.addf %9, %10 : vector<2x16x16x128xf32>
    %cst = arith.constant 0.000000e+00 : f32
    %12 = vector.broadcast %cst : f32 to vector<2x16x16x128xf32>
    %13 = arith.maximumf %11, %12 : vector<2x16x16x128xf32>
    %c0_11 = arith.constant 0 : index
    %c0_12 = arith.constant 0 : index
    %c0_13 = arith.constant 0 : index
    %c0_14 = arith.constant 0 : index
    %14 = vector.load %arg5[%c0_11, %c0_12, %c0_13, %c0_14] : memref<2x16x16x128xf32, #tpu.memory_space<vmem>>, vector<2x16x16x128xf32>
    tpu.vector_store %arg5[%c0_11, %c0_12, %c0_13, %c0_14], %13 {strides = array<i32>} : memref<2x16x16x128xf32, #tpu.memory_space<vmem>>, vector<2x16x16x128xf32>,
    return
  }
  func.func @transform_0(%arg0: i32) -> (i32, i32, i32, i32) {
    %c0_i32 = arith.constant 0 : i32
    %c0_i32_0 = arith.constant 0 : i32
    %c0_i32_1 = arith.constant 0 : i32
    %c0_i32_2 = arith.constant 0 : i32
    return %arg0, %c0_i32, %c0_i32_0, %c0_i32_1 : i32, i32, i32, i32
  }
  func.func @transform_1(%arg0: i32) -> (i32, i32, i32, i32) {
    %c0_i32 = arith.constant 0 : i32
    %c0_i32_0 = arith.constant 0 : i32
    %c0_i32_1 = arith.constant 0 : i32
    %c0_i32_2 = arith.constant 0 : i32
    return %arg0, %c0_i32, %c0_i32_0, %c0_i32_1 : i32, i32, i32, i32
  }
  func.func @transform_2(%arg0: i32) -> (i32, i32) {
    %c0_i32 = arith.constant 0 : i32
    %c0_i32_0 = arith.constant 0 : i32
    %c0_i32_1 = arith.constant 0 : i32
    return %c0_i32, %c0_i32_0 : i32, i32
  }
  func.func @transform_3(%arg0: i32) -> (i32, i32) {
    %c0_i32 = arith.constant 0 : i32
    %c0_i32_0 = arith.constant 0 : i32
    %c0_i32_1 = arith.constant 0 : i32
    return %c0_i32, %c0_i32_0 : i32, i32
  }
  func.func @transform_4(%arg0: i32) -> (i32, i32, i32, i32) {
    %c0_i32 = arith.constant 0 : i32
    %c0_i32_0 = arith.constant 0 : i32
    %c0_i32_1 = arith.constant 0 : i32
    %c0_i32_2 = arith.constant 0 : i32
    return %arg0, %c0_i32, %c0_i32_0, %c0_i32_1 : i32, i32, i32, i32
  }
}

module attributes {stable_mosaic.version = 11 : i64} {
  func.func @_bn_relu_conv2_stats_kernel(%arg0: i32, %arg1: memref<1x16x16x128xbf16, #tpu.memory_space<vmem>>, %arg2: memref<1x128xf32, #tpu.memory_space<vmem>>, %arg3: memref<1x128xf32, #tpu.memory_space<vmem>>, %arg4: memref<1152x128xbf16, #tpu.memory_space<vmem>>, %arg5: memref<1x16x16x128xbf16, #tpu.memory_space<vmem>>, %arg6: memref<1x8x128xf32, #tpu.memory_space<vmem>>, %arg7: memref<1x8x128xf32, #tpu.memory_space<vmem>>, %arg8: memref<18x18x128xbf16, #tpu.memory_space<vmem>>) attributes {dimension_semantics = [#tpu.dimension_semantics<parallel>], iteration_bounds = array<i64: 2>, scalar_prefetch = 0 : i64, scratch_operands = 1 : i64, tpu.core_type = #tpu.core_type<tc>, window_params = [{transform_indices = @transform_0, window_bounds = array<i64: 1, 16, 16, 128>}, {pipeline_mode = #tpu.pipeline_mode<synchronous>, transform_indices = @transform_1, window_bounds = array<i64: 1, 128>}, {pipeline_mode = #tpu.pipeline_mode<synchronous>, transform_indices = @transform_2, window_bounds = array<i64: 1, 128>}, {pipeline_mode = #tpu.pipeline_mode<synchronous>, transform_indices = @transform_3, window_bounds = array<i64: 1152, 128>}, {transform_indices = @transform_4, window_bounds = array<i64: 1, 16, 16, 128>}, {transform_indices = @transform_5, window_bounds = array<i64: 1, 8, 128>}, {transform_indices = @transform_6, window_bounds = array<i64: 1, 8, 128>}]} {
    %c0 = arith.constant 0 : index
    %c0_0 = arith.constant 0 : index
    %c0_1 = arith.constant 0 : index
    %c0_2 = arith.constant 0 : index
    %0 = vector.load %arg1[%c0, %c0_0, %c0_1, %c0_2] : memref<1x16x16x128xbf16, #tpu.memory_space<vmem>>, vector<1x16x16x128xbf16>
    %1 = vector.shape_cast %0 : vector<1x16x16x128xbf16> to vector<16x16x128xbf16>
    %2 = arith.extf %1 : vector<16x16x128xbf16> to vector<16x16x128xf32>
    %c0_3 = arith.constant 0 : index
    %c0_4 = arith.constant 0 : index
    %3 = vector.load %arg2[%c0_3, %c0_4] : memref<1x128xf32, #tpu.memory_space<vmem>>, vector<1x128xf32>
    %4 = vector.shape_cast %3 : vector<1x128xf32> to vector<1x1x128xf32>
    %5 = vector.broadcast %4 : vector<1x1x128xf32> to vector<16x16x128xf32>
    %6 = arith.mulf %2, %5 : vector<16x16x128xf32>
    %c0_5 = arith.constant 0 : index
    %c0_6 = arith.constant 0 : index
    %7 = vector.load %arg3[%c0_5, %c0_6] : memref<1x128xf32, #tpu.memory_space<vmem>>, vector<1x128xf32>
    %8 = vector.shape_cast %7 : vector<1x128xf32> to vector<1x1x128xf32>
    %9 = vector.broadcast %8 : vector<1x1x128xf32> to vector<16x16x128xf32>
    %10 = arith.addf %6, %9 : vector<16x16x128xf32>
    %cst = arith.constant 0.000000e+00 : f32
    %11 = vector.broadcast %cst : f32 to vector<16x16x128xf32>
    %12 = arith.maximumf %10, %11 : vector<16x16x128xf32>
    %cst_7 = arith.constant 0.000000e+00 : bf16
    %13 = vector.broadcast %cst_7 : bf16 to vector<1x18x128xbf16>
    %cst_8 = arith.constant 0.000000e+00 : bf16
    %14 = vector.broadcast %cst_8 : bf16 to vector<18x1x128xbf16>
    %c0_9 = arith.constant 0 : index
    %c0_10 = arith.constant 0 : index
    %c0_11 = arith.constant 0 : index
    %15 = vector.load %arg8[%c0_9, %c0_10, %c0_11] : memref<18x18x128xbf16, #tpu.memory_space<vmem>>, vector<1x18x128xbf16>
    tpu.vector_store %arg8[%c0_9, %c0_10, %c0_11], %13 {strides = array<i32>} : memref<18x18x128xbf16, #tpu.memory_space<vmem>>, vector<1x18x128xbf16>,
    %c17 = arith.constant 17 : index
    %c0_12 = arith.constant 0 : index
    %c0_13 = arith.constant 0 : index
    %16 = vector.load %arg8[%c17, %c0_12, %c0_13] : memref<18x18x128xbf16, #tpu.memory_space<vmem>>, vector<1x18x128xbf16>
    tpu.vector_store %arg8[%c17, %c0_12, %c0_13], %13 {strides = array<i32>} : memref<18x18x128xbf16, #tpu.memory_space<vmem>>, vector<1x18x128xbf16>,
    %c0_14 = arith.constant 0 : index
    %c0_15 = arith.constant 0 : index
    %c0_16 = arith.constant 0 : index
    %17 = vector.load %arg8[%c0_14, %c0_15, %c0_16] : memref<18x18x128xbf16, #tpu.memory_space<vmem>>, vector<18x1x128xbf16>
    tpu.vector_store %arg8[%c0_14, %c0_15, %c0_16], %14 {strides = array<i32>} : memref<18x18x128xbf16, #tpu.memory_space<vmem>>, vector<18x1x128xbf16>,
    %c0_17 = arith.constant 0 : index
    %c17_18 = arith.constant 17 : index
    %c0_19 = arith.constant 0 : index
    %18 = vector.load %arg8[%c0_17, %c17_18, %c0_19] : memref<18x18x128xbf16, #tpu.memory_space<vmem>>, vector<18x1x128xbf16>
    tpu.vector_store %arg8[%c0_17, %c17_18, %c0_19], %14 {strides = array<i32>} : memref<18x18x128xbf16, #tpu.memory_space<vmem>>, vector<18x1x128xbf16>,
    %19 = arith.truncf %12 : vector<16x16x128xf32> to vector<16x16x128xbf16>
    %c1 = arith.constant 1 : index
    %c1_20 = arith.constant 1 : index
    %c0_21 = arith.constant 0 : index
    %20 = vector.load %arg8[%c1, %c1_20, %c0_21] : memref<18x18x128xbf16, #tpu.memory_space<vmem>>, vector<16x16x128xbf16>
    tpu.vector_store %arg8[%c1, %c1_20, %c0_21], %19 {strides = array<i32>} : memref<18x18x128xbf16, #tpu.memory_space<vmem>>, vector<16x16x128xbf16>,
    %c0_22 = arith.constant 0 : index
    %c0_23 = arith.constant 0 : index
    %c0_24 = arith.constant 0 : index
    %21 = vector.load %arg8[%c0_22, %c0_23, %c0_24] : memref<18x18x128xbf16, #tpu.memory_space<vmem>>, vector<18x18x128xbf16>
    %c0_25 = arith.constant 0 : index
    %c0_26 = arith.constant 0 : index
    %22 = vector.load %arg4[%c0_25, %c0_26] : memref<1152x128xbf16, #tpu.memory_space<vmem>>, vector<1152x128xbf16>
    %23 = vector.extract_strided_slice %21 {offsets = [0, 0, 0], sizes = [16, 16, 128], strides = [1, 1, 1]} : vector<18x18x128xbf16> to vector<16x16x128xbf16>
    %24 = vector.shape_cast %23 : vector<16x16x128xbf16> to vector<256x128xbf16>
    %25 = vector.extract_strided_slice %21 {offsets = [0, 1, 0], sizes = [16, 16, 128], strides = [1, 1, 1]} : vector<18x18x128xbf16> to vector<16x16x128xbf16>
    %26 = vector.shape_cast %25 : vector<16x16x128xbf16> to vector<256x128xbf16>
    %27 = vector.extract_strided_slice %21 {offsets = [0, 2, 0], sizes = [16, 16, 128], strides = [1, 1, 1]} : vector<18x18x128xbf16> to vector<16x16x128xbf16>
    %28 = vector.shape_cast %27 : vector<16x16x128xbf16> to vector<256x128xbf16>
    %29 = vector.extract_strided_slice %21 {offsets = [1, 0, 0], sizes = [16, 16, 128], strides = [1, 1, 1]} : vector<18x18x128xbf16> to vector<16x16x128xbf16>
    %30 = vector.shape_cast %29 : vector<16x16x128xbf16> to vector<256x128xbf16>
    %31 = vector.extract_strided_slice %21 {offsets = [1, 1, 0], sizes = [16, 16, 128], strides = [1, 1, 1]} : vector<18x18x128xbf16> to vector<16x16x128xbf16>
    %32 = vector.shape_cast %31 : vector<16x16x128xbf16> to vector<256x128xbf16>
    %33 = vector.extract_strided_slice %21 {offsets = [1, 2, 0], sizes = [16, 16, 128], strides = [1, 1, 1]} : vector<18x18x128xbf16> to vector<16x16x128xbf16>
    %34 = vector.shape_cast %33 : vector<16x16x128xbf16> to vector<256x128xbf16>
    %35 = vector.extract_strided_slice %21 {offsets = [2, 0, 0], sizes = [16, 16, 128], strides = [1, 1, 1]} : vector<18x18x128xbf16> to vector<16x16x128xbf16>
    %36 = vector.shape_cast %35 : vector<16x16x128xbf16> to vector<256x128xbf16>
    %37 = vector.extract_strided_slice %21 {offsets = [2, 1, 0], sizes = [16, 16, 128], strides = [1, 1, 1]} : vector<18x18x128xbf16> to vector<16x16x128xbf16>
    %38 = vector.shape_cast %37 : vector<16x16x128xbf16> to vector<256x128xbf16>
    %39 = vector.extract_strided_slice %21 {offsets = [2, 2, 0], sizes = [16, 16, 128], strides = [1, 1, 1]} : vector<18x18x128xbf16> to vector<16x16x128xbf16>
    %40 = vector.shape_cast %39 : vector<16x16x128xbf16> to vector<256x128xbf16>
    %41 = tpu.concatenate %24, %26, %28, %30, %32, %34, %36, %38, %40 in 1 : vector<256x128xbf16>, vector<256x128xbf16>, vector<256x128xbf16>, vector<256x128xbf16>, vector<256x128xbf16>, vector<256x128xbf16>, vector<256x128xbf16>, vector<256x128xbf16>, vector<256x128xbf16> -> vector<256x1152xbf16>
    %cst_27 = arith.constant dense<0.000000e+00> : vector<256x128xf32>
    %42 = tpu.matmul %41, %22, %cst_27 {dimension_numbers = #tpu.dot_dimension_numbers<[1], [0], [0], [1], [0, 0, 1, 1], [], []>} : vector<256x1152xbf16>, vector<1152x128xbf16>, vector<256x128xf32> -> vector<256x128xf32>
    %43 = vector.shape_cast %42 : vector<256x128xf32> to vector<16x16x128xf32>
    %44 = arith.truncf %43 : vector<16x16x128xf32> to vector<16x16x128xbf16>
    %c0_28 = arith.constant 0 : index
    %c0_29 = arith.constant 0 : index
    %c0_30 = arith.constant 0 : index
    %c0_31 = arith.constant 0 : index
    %45 = vector.load %arg5[%c0_28, %c0_29, %c0_30, %c0_31] : memref<1x16x16x128xbf16, #tpu.memory_space<vmem>>, vector<1x16x16x128xbf16>
    %46 = vector.shape_cast %45 : vector<1x16x16x128xbf16> to vector<16x16x128xbf16>
    %47 = vector.shape_cast %44 : vector<16x16x128xbf16> to vector<1x16x16x128xbf16>
    tpu.vector_store %arg5[%c0_28, %c0_29, %c0_30, %c0_31], %47 {strides = array<i32>} : memref<1x16x16x128xbf16, #tpu.memory_space<vmem>>, vector<1x16x16x128xbf16>,
    %cst_32 = arith.constant dense<0.000000e+00> : vector<128xf32>
    %48 = vector.multi_reduction <add>, %42, %cst_32 [0] : vector<256x128xf32> to vector<128xf32>
    %49 = vector.shape_cast %48 : vector<128xf32> to vector<1x128xf32>
    %50 = vector.shape_cast %49 : vector<1x128xf32> to vector<1x128xf32>
    %51 = vector.broadcast %50 : vector<1x128xf32> to vector<8x128xf32>
    %c0_33 = arith.constant 0 : index
    %c0_34 = arith.constant 0 : index
    %c0_35 = arith.constant 0 : index
    %52 = vector.load %arg6[%c0_33, %c0_34, %c0_35] : memref<1x8x128xf32, #tpu.memory_space<vmem>>, vector<1x8x128xf32>
    %53 = vector.shape_cast %52 : vector<1x8x128xf32> to vector<8x128xf32>
    %54 = vector.shape_cast %51 : vector<8x128xf32> to vector<1x8x128xf32>
    tpu.vector_store %arg6[%c0_33, %c0_34, %c0_35], %54 {strides = array<i32>} : memref<1x8x128xf32, #tpu.memory_space<vmem>>, vector<1x8x128xf32>,
    %55 = arith.mulf %42, %42 : vector<256x128xf32>
    %cst_36 = arith.constant dense<0.000000e+00> : vector<128xf32>
    %56 = vector.multi_reduction <add>, %55, %cst_36 [0] : vector<256x128xf32> to vector<128xf32>
    %57 = vector.shape_cast %56 : vector<128xf32> to vector<1x128xf32>
    %58 = vector.shape_cast %57 : vector<1x128xf32> to vector<1x128xf32>
    %59 = vector.broadcast %58 : vector<1x128xf32> to vector<8x128xf32>
    %c0_37 = arith.constant 0 : index
    %c0_38 = arith.constant 0 : index
    %c0_39 = arith.constant 0 : index
    %60 = vector.load %arg7[%c0_37, %c0_38, %c0_39] : memref<1x8x128xf32, #tpu.memory_space<vmem>>, vector<1x8x128xf32>
    %61 = vector.shape_cast %60 : vector<1x8x128xf32> to vector<8x128xf32>
    %62 = vector.shape_cast %59 : vector<8x128xf32> to vector<1x8x128xf32>
    tpu.vector_store %arg7[%c0_37, %c0_38, %c0_39], %62 {strides = array<i32>} : memref<1x8x128xf32, #tpu.memory_space<vmem>>, vector<1x8x128xf32>,
    return
  }
  func.func @transform_0(%arg0: i32) -> (i32, i32, i32, i32) {
    %c0_i32 = arith.constant 0 : i32
    %c0_i32_0 = arith.constant 0 : i32
    %c0_i32_1 = arith.constant 0 : i32
    %c0_i32_2 = arith.constant 0 : i32
    return %arg0, %c0_i32, %c0_i32_0, %c0_i32_1 : i32, i32, i32, i32
  }
  func.func @transform_1(%arg0: i32) -> (i32, i32) {
    %c0_i32 = arith.constant 0 : i32
    %c0_i32_0 = arith.constant 0 : i32
    %c0_i32_1 = arith.constant 0 : i32
    return %c0_i32, %c0_i32_0 : i32, i32
  }
  func.func @transform_2(%arg0: i32) -> (i32, i32) {
    %c0_i32 = arith.constant 0 : i32
    %c0_i32_0 = arith.constant 0 : i32
    %c0_i32_1 = arith.constant 0 : i32
    return %c0_i32, %c0_i32_0 : i32, i32
  }
  func.func @transform_3(%arg0: i32) -> (i32, i32) {
    %c0_i32 = arith.constant 0 : i32
    %c0_i32_0 = arith.constant 0 : i32
    %c0_i32_1 = arith.constant 0 : i32
    return %c0_i32, %c0_i32_0 : i32, i32
  }
  func.func @transform_4(%arg0: i32) -> (i32, i32, i32, i32) {
    %c0_i32 = arith.constant 0 : i32
    %c0_i32_0 = arith.constant 0 : i32
    %c0_i32_1 = arith.constant 0 : i32
    %c0_i32_2 = arith.constant 0 : i32
    return %arg0, %c0_i32, %c0_i32_0, %c0_i32_1 : i32, i32, i32, i32
  }
  func.func @transform_5(%arg0: i32) -> (i32, i32, i32) {
    %c0_i32 = arith.constant 0 : i32
    %c0_i32_0 = arith.constant 0 : i32
    %c0_i32_1 = arith.constant 0 : i32
    return %arg0, %c0_i32, %c0_i32_0 : i32, i32, i32
  }
  func.func @transform_6(%arg0: i32) -> (i32, i32, i32) {
    %c0_i32 = arith.constant 0 : i32
    %c0_i32_0 = arith.constant 0 : i32
    %c0_i32_1 = arith.constant 0 : i32
    return %arg0, %c0_i32, %c0_i32_0 : i32, i32, i32
  }
}

</mosaic_0001>

<llo_original>
// kernel: residual_block.5
$region0: #{residual_block.5}
  #allocation0 [shape = 'u32[]', space=smem, size = 0x4, offset = 0x4, fixed_abs, tag = 'smem constant byte address 0x4 - core index']
  #allocation1 [shape = 'u32[144,128]{1,0:T(1,128)}', space=vmem, size = 0x12000, scoped, tag = 'internal scratch']
  %s0 = inlined_call_operand.vmem [shape: bf16[2,16,16,128], index: 0, kind: input, shape index: {}]
  %s1 = inlined_call_operand.vmem [shape: f32[2,16,16,128], index: 1, kind: input, shape index: {}]
  %s2 = inlined_call_operand.vmem [shape: f32[1,128], index: 2, kind: input, shape index: {}]
  %s3 = inlined_call_operand.vmem [shape: f32[1,128], index: 3, kind: input, shape index: {}]
  %s4 = inlined_call_operand.vmem [shape: f32[2,16,16,128], index: 4, kind: output, shape index: {}]
  %s5 = sld [smem:[#allocation0]]
  $region26: #{residual_block.5} parent=0
    _
  %s7 = ssub.s32 1, %s5
  %s8 = scalar_select 0, %s7, %s5
  // Predicated region
  $region2: #{residual_block.5} parent=0 // pred_check
    _
  $region3: #{residual_block.5} parent=0 // pred_check_branch
    %10 = sbr.rel (0) target = $region5
  $region4: #{residual_block.5} parent=0 // pred_region
    _
  $region5: #{residual_block.5} parent=0 // pred_fallthru
    _
  // Predicated region
  $region6: #{residual_block.5} parent=0 // pred_check
    _
  $region7: #{residual_block.5} parent=0 // pred_check_branch
    %12 = sbr.rel (0) target = $region9
  $region8: #{residual_block.5} parent=0 // pred_region
    _
  $region9: #{residual_block.5} parent=0 // pred_fallthru
    _
  // Predicated region
  $region10: #{residual_block.5} parent=0 // pred_check
    _
  $region11: #{residual_block.5} parent=0 // pred_check_branch
    %14 = sbr.rel (0) target = $region13
  $region12: #{residual_block.5} parent=0 // pred_region
    _
  $region13: #{residual_block.5} parent=0 // pred_fallthru
    _
  // Predicated region
  $region14: #{residual_block.5} parent=0 // pred_check
    _
  $region15: #{residual_block.5} parent=0 // pred_check_branch
    %16 = sbr.rel (0) target = $region17
  $region16: #{residual_block.5} parent=0 // pred_region
    _
  $region17: #{residual_block.5} parent=0 // pred_fallthru
    _
  %v17 = vld [vmem:[%s0] sm:$0xf]
  %v18 = vld [vmem:[%s0 + $0x4] sm:$0xf]
  %v19 = vld [vmem:[%s0 + $0x8] sm:$0xf]
  %v20 = vld [vmem:[%s0 + $0xc] sm:$0xf]
  %v21 = vld [vmem:[%s0 + $0x10] sm:$0xf]
  %v22 = vld [vmem:[%s0 + $0x14] sm:$0xf]
  %v23 = vld [vmem:[%s0 + $0x18] sm:$0xf]
  %v24 = vld [vmem:[%s0 + $0x1c] sm:$0xf]
  %v25 = vld [vmem:[%s0 + $0x20] sm:$0xf]
  %v26 = vld [vmem:[%s0 + $0x24] sm:$0xf]
  %v27 = vld [vmem:[%s0 + $0x28] sm:$0xf]
  %v28 = vld [vmem:[%s0 + $0x2c] sm:$0xf]
  %v29 = vld [vmem:[%s0 + $0x30] sm:$0xf]
  %v30 = vld [vmem:[%s0 + $0x34] sm:$0xf]
  %v31 = vld [vmem:[%s0 + $0x38] sm:$0xf]
  %v32 = vld [vmem:[%s0 + $0x3c] sm:$0xf]
  %v33 = vld [vmem:[%s0 + $0x40] sm:$0xf]
  %v34 = vld [vmem:[%s0 + $0x44] sm:$0xf]
  %v35 = vld [vmem:[%s0 + $0x48] sm:$0xf]
  %v36 = vld [vmem:[%s0 + $0x4c] sm:$0xf]
  %v37 = vld [vmem:[%s0 + $0x50] sm:$0xf]
  %v38 = vld [vmem:[%s0 + $0x54] sm:$0xf]
  %v39 = vld [vmem:[%s0 + $0x58] sm:$0xf]
  %v40 = vld [vmem:[%s0 + $0x5c] sm:$0xf]
  %v41 = vld [vmem:[%s0 + $0x60] sm:$0xf]
  %v42 = vld [vmem:[%s0 + $0x64] sm:$0xf]
  %v43 = vld [vmem:[%s0 + $0x68] sm:$0xf]
  %v44 = vld [vmem:[%s0 + $0x6c] sm:$0xf]
  %v45 = vld [vmem:[%s0 + $0x70] sm:$0xf]
  %v46 = vld [vmem:[%s0 + $0x74] sm:$0xf]
  %v47 = vld [vmem:[%s0 + $0x78] sm:$0xf]
  %v48 = vld [vmem:[%s0 + $0x7c] sm:$0xf]
  %v49 = vld [vmem:[%s0 + $0x80] sm:$0xf]
  %v50 = vld [vmem:[%s0 + $0x84] sm:$0xf]
  %v51 = vld [vmem:[%s0 + $0x88] sm:$0xf]
  %v52 = vld [vmem:[%s0 + $0x8c] sm:$0xf]
  %v53 = vld [vmem:[%s0 + $0x90] sm:$0xf]
  %v54 = vld [vmem:[%s0 + $0x94] sm:$0xf]
  %v55 = vld [vmem:[%s0 + $0x98] sm:$0xf]
  %v56 = vld [vmem:[%s0 + $0x9c] sm:$0xf]
  %v57 = vld [vmem:[%s0 + $0xa0] sm:$0xf]
  %v58 = vld [vmem:[%s0 + $0xa4] sm:$0xf]
  %v59 = vld [vmem:[%s0 + $0xa8] sm:$0xf]
  %v60 = vld [vmem:[%s0 + $0xac] sm:$0xf]
  %v61 = vld [vmem:[%s0 + $0xb0] sm:$0xf]
  %v62 = vld [vmem:[%s0 + $0xb4] sm:$0xf]
  %v63 = vld [vmem:[%s0 + $0xb8] sm:$0xf]
  %v64 = vld [vmem:[%s0 + $0xbc] sm:$0xf]
  %v65 = vld [vmem:[%s0 + $0xc0] sm:$0xf]
  %v66 = vld [vmem:[%s0 + $0xc4] sm:$0xf]
  %v67 = vld [vmem:[%s0 + $0xc8] sm:$0xf]
  %v68 = vld [vmem:[%s0 + $0xcc] sm:$0xf]
  %v69 = vld [vmem:[%s0 + $0xd0] sm:$0xf]
  %v70 = vld [vmem:[%s0 + $0xd4] sm:$0xf]
  %v71 = vld [vmem:[%s0 + $0xd8] sm:$0xf]
  %v72 = vld [vmem:[%s0 + $0xdc] sm:$0xf]
  %v73 = vld [vmem:[%s0 + $0xe0] sm:$0xf]
  %v74 = vld [vmem:[%s0 + $0xe4] sm:$0xf]
  %v75 = vld [vmem:[%s0 + $0xe8] sm:$0xf]
  %v76 = vld [vmem:[%s0 + $0xec] sm:$0xf]
  %v77 = vld [vmem:[%s0 + $0xf0] sm:$0xf]
  %v78 = vld [vmem:[%s0 + $0xf4] sm:$0xf]
  %v79 = vld [vmem:[%s0 + $0xf8] sm:$0xf]
  %v80 = vld [vmem:[%s0 + $0xfc] sm:$0xf]
  %v81 = vunpack.c.l.bf16 %v17
  %v82 = vunpack.c.l.bf16 %v18
  %v83 = vunpack.c.l.bf16 %v19
  %v84 = vunpack.c.l.bf16 %v20
  %v85 = vunpack.c.l.bf16 %v21
  %v86 = vunpack.c.l.bf16 %v22
  %v87 = vunpack.c.l.bf16 %v23
  %v88 = vunpack.c.l.bf16 %v24
  %v89 = vunpack.c.l.bf16 %v25
  %v90 = vunpack.c.l.bf16 %v26
  %v91 = vunpack.c.l.bf16 %v27
  %v92 = vunpack.c.l.bf16 %v28
  %v93 = vunpack.c.l.bf16 %v29
  %v94 = vunpack.c.l.bf16 %v30
  %v95 = vunpack.c.l.bf16 %v31
  %v96 = vunpack.c.l.bf16 %v32
  %v97 = vunpack.c.l.bf16 %v33
  %v98 = vunpack.c.l.bf16 %v34
  %v99 = vunpack.c.l.bf16 %v35
  %v100 = vunpack.c.l.bf16 %v36
  %v101 = vunpack.c.l.bf16 %v37
  %v102 = vunpack.c.l.bf16 %v38
  %v103 = vunpack.c.l.bf16 %v39
  %v104 = vunpack.c.l.bf16 %v40
  %v105 = vunpack.c.l.bf16 %v41
  %v106 = vunpack.c.l.bf16 %v42
  %v107 = vunpack.c.l.bf16 %v43
  %v108 = vunpack.c.l.bf16 %v44
  %v109 = vunpack.c.l.bf16 %v45
  %v110 = vunpack.c.l.bf16 %v46
  %v111 = vunpack.c.l.bf16 %v47
  %v112 = vunpack.c.l.bf16 %v48
  %v113 = vunpack.c.l.bf16 %v49
  %v114 = vunpack.c.l.bf16 %v50
  %v115 = vunpack.c.l.bf16 %v51
  %v116 = vunpack.c.l.bf16 %v52
  %v117 = vunpack.c.l.bf16 %v53
  %v118 = vunpack.c.l.bf16 %v54
  %v119 = vunpack.c.l.bf16 %v55
  %v120 = vunpack.c.l.bf16 %v56
  %v121 = vunpack.c.l.bf16 %v57
  %v122 = vunpack.c.l.bf16 %v58
  %v123 = vunpack.c.l.bf16 %v59
  %v124 = vunpack.c.l.bf16 %v60
  %v125 = vunpack.c.l.bf16 %v61
  %v126 = vunpack.c.l.bf16 %v62
  %v127 = vunpack.c.l.bf16 %v63
  %v128 = vunpack.c.l.bf16 %v64
  %v129 = vunpack.c.l.bf16 %v65
  %v130 = vunpack.c.l.bf16 %v66
  %v131 = vunpack.c.l.bf16 %v67
  %v132 = vunpack.c.l.bf16 %v68
  %v133 = vunpack.c.l.bf16 %v69
  %v134 = vunpack.c.l.bf16 %v70
  %v135 = vunpack.c.l.bf16 %v71
  %v136 = vunpack.c.l.bf16 %v72
  %v137 = vunpack.c.l.bf16 %v73
  %v138 = vunpack.c.l.bf16 %v74
  %v139 = vunpack.c.l.bf16 %v75
  %v140 = vunpack.c.l.bf16 %v76
  %v141 = vunpack.c.l.bf16 %v77
  %v142 = vunpack.c.l.bf16 %v78
  %v143 = vunpack.c.l.bf16 %v79
  %v144 = vunpack.c.l.bf16 %v80
  %v145 = vld [vmem:[%s2] sm:$0x1]
  %v147 = vlaneseq
  %v148 = vshrl.u32 %v147, 7
  %v149 = vsub.s32 0, %v148
  %v150 = vrot.slane %v145, %v149
  %v152 = vmul.f32 %v81, %v150
  %v153 = vmul.f32 %v82, %v150
  %v154 = vmul.f32 %v83, %v150
  %v155 = vmul.f32 %v84, %v150
  %v156 = vmul.f32 %v85, %v150
  %v157 = vmul.f32 %v86, %v150
  %v158 = vmul.f32 %v87, %v150
  %v159 = vmul.f32 %v88, %v150
  %v160 = vmul.f32 %v89, %v150
  %v161 = vmul.f32 %v90, %v150
  %v162 = vmul.f32 %v91, %v150
  %v163 = vmul.f32 %v92, %v150
  %v164 = vmul.f32 %v93, %v150
  %v165 = vmul.f32 %v94, %v150
  %v166 = vmul.f32 %v95, %v150
  %v167 = vmul.f32 %v96, %v150
  %v168 = vmul.f32 %v97, %v150
  %v169 = vmul.f32 %v98, %v150
  %v170 = vmul.f32 %v99, %v150
  %v171 = vmul.f32 %v100, %v150
  %v172 = vmul.f32 %v101, %v150
  %v173 = vmul.f32 %v102, %v150
  %v174 = vmul.f32 %v103, %v150
  %v175 = vmul.f32 %v104, %v150
  %v176 = vmul.f32 %v105, %v150
  %v177 = vmul.f32 %v106, %v150
  %v178 = vmul.f32 %v107, %v150
  %v179 = vmul.f32 %v108, %v150
  %v180 = vmul.f32 %v109, %v150
  %v181 = vmul.f32 %v110, %v150
  %v182 = vmul.f32 %v111, %v150
  %v183 = vmul.f32 %v112, %v150
  %v184 = vmul.f32 %v113, %v150
  %v185 = vmul.f32 %v114, %v150
  %v186 = vmul.f32 %v115, %v150
  %v187 = vmul.f32 %v116, %v150
  %v188 = vmul.f32 %v117, %v150
  %v189 = vmul.f32 %v118, %v150
  %v190 = vmul.f32 %v119, %v150
  %v191 = vmul.f32 %v120, %v150
  %v192 = vmul.f32 %v121, %v150
  %v193 = vmul.f32 %v122, %v150
  %v194 = vmul.f32 %v123, %v150
  %v195 = vmul.f32 %v124, %v150
  %v196 = vmul.f32 %v125, %v150
  %v197 = vmul.f32 %v126, %v150
  %v198 = vmul.f32 %v127, %v150
  %v199 = vmul.f32 %v128, %v150
  %v200 = vmul.f32 %v129, %v150
  %v201 = vmul.f32 %v130, %v150
  %v202 = vmul.f32 %v131, %v150
  %v203 = vmul.f32 %v132, %v150
  %v204 = vmul.f32 %v133, %v150
  %v205 = vmul.f32 %v134, %v150
  %v206 = vmul.f32 %v135, %v150
  %v207 = vmul.f32 %v136, %v150
  %v208 = vmul.f32 %v137, %v150
  %v209 = vmul.f32 %v138, %v150
  %v210 = vmul.f32 %v139, %v150
  %v211 = vmul.f32 %v140, %v150
  %v212 = vmul.f32 %v141, %v150
  %v213 = vmul.f32 %v142, %v150
  %v214 = vmul.f32 %v143, %v150
  %v215 = vmul.f32 %v144, %v150
  %v216 = vld [vmem:[%s3] sm:$0x1]
  %v218 = vlaneseq
  %v219 = vshrl.u32 %v218, 7
  %v220 = vsub.s32 0, %v219
  %v221 = vrot.slane %v216, %v220
  %v223 = vadd.f32 %v152, %v221
  %v224 = vadd.f32 %v153, %v221
  %v225 = vadd.f32 %v154, %v221
  %v226 = vadd.f32 %v155, %v221
  %v227 = vadd.f32 %v156, %v221
  %v228 = vadd.f32 %v157, %v221
  %v229 = vadd.f32 %v158, %v221
  %v230 = vadd.f32 %v159, %v221
  %v231 = vadd.f32 %v160, %v221
  %v232 = vadd.f32 %v161, %v221
  %v233 = vadd.f32 %v162, %v221
  %v234 = vadd.f32 %v163, %v221
  %v235 = vadd.f32 %v164, %v221
  %v236 = vadd.f32 %v165, %v221
  %v237 = vadd.f32 %v166, %v221
  %v238 = vadd.f32 %v167, %v221
  %v239 = vadd.f32 %v168, %v221
  %v240 = vadd.f32 %v169, %v221
  %v241 = vadd.f32 %v170, %v221
  %v242 = vadd.f32 %v171, %v221
  %v243 = vadd.f32 %v172, %v221
  %v244 = vadd.f32 %v173, %v221
  %v245 = vadd.f32 %v174, %v221
  %v246 = vadd.f32 %v175, %v221
  %v247 = vadd.f32 %v176, %v221
  %v248 = vadd.f32 %v177, %v221
  %v249 = vadd.f32 %v178, %v221
  %v250 = vadd.f32 %v179, %v221
  %v251 = vadd.f32 %v180, %v221
  %v252 = vadd.f32 %v181, %v221
  %v253 = vadd.f32 %v182, %v221
  %v254 = vadd.f32 %v183, %v221
  %v255 = vadd.f32 %v184, %v221
  %v256 = vadd.f32 %v185, %v221
  %v257 = vadd.f32 %v186, %v221
  %v258 = vadd.f32 %v187, %v221
  %v259 = vadd.f32 %v188, %v221
  %v260 = vadd.f32 %v189, %v221
  %v261 = vadd.f32 %v190, %v221
  %v262 = vadd.f32 %v191, %v221
  %v263 = vadd.f32 %v192, %v221
  %v264 = vadd.f32 %v193, %v221
  %v265 = vadd.f32 %v194, %v221
  %v266 = vadd.f32 %v195, %v221
  %v267 = vadd.f32 %v196, %v221
  %v268 = vadd.f32 %v197, %v221
  %v269 = vadd.f32 %v198, %v221
  %v270 = vadd.f32 %v199, %v221
  %v271 = vadd.f32 %v200, %v221
  %v272 = vadd.f32 %v201, %v221
  %v273 = vadd.f32 %v202, %v221
  %v274 = vadd.f32 %v203, %v221
  %v275 = vadd.f32 %v204, %v221
  %v276 = vadd.f32 %v205, %v221
  %v277 = vadd.f32 %v206, %v221
  %v278 = vadd.f32 %v207, %v221
  %v279 = vadd.f32 %v208, %v221
  %v280 = vadd.f32 %v209, %v221
  %v281 = vadd.f32 %v210, %v221
  %v282 = vadd.f32 %v211, %v221
  %v283 = vadd.f32 %v212, %v221
  %v284 = vadd.f32 %v213, %v221
  %v285 = vadd.f32 %v214, %v221
  %v286 = vadd.f32 %v215, %v221
  %v287 = vld [vmem:[%s1] sm:$0xff]
  %v288 = vld [vmem:[%s1 + $0x8] sm:$0xff]
  %v289 = vld [vmem:[%s1 + $0x10] sm:$0xff]
  %v290 = vld [vmem:[%s1 + $0x18] sm:$0xff]
  %v291 = vld [vmem:[%s1 + $0x20] sm:$0xff]
  %v292 = vld [vmem:[%s1 + $0x28] sm:$0xff]
  %v293 = vld [vmem:[%s1 + $0x30] sm:$0xff]
  %v294 = vld [vmem:[%s1 + $0x38] sm:$0xff]
  %v295 = vld [vmem:[%s1 + $0x40] sm:$0xff]
  %v296 = vld [vmem:[%s1 + $0x48] sm:$0xff]
  %v297 = vld [vmem:[%s1 + $0x50] sm:$0xff]
  %v298 = vld [vmem:[%s1 + $0x58] sm:$0xff]
  %v299 = vld [vmem:[%s1 + $0x60] sm:$0xff]
  %v300 = vld [vmem:[%s1 + $0x68] sm:$0xff]
  %v301 = vld [vmem:[%s1 + $0x70] sm:$0xff]
  %v302 = vld [vmem:[%s1 + $0x78] sm:$0xff]
  %v303 = vld [vmem:[%s1 + $0x80] sm:$0xff]
  %v304 = vld [vmem:[%s1 + $0x88] sm:$0xff]
  %v305 = vld [vmem:[%s1 + $0x90] sm:$0xff]
  %v306 = vld [vmem:[%s1 + $0x98] sm:$0xff]
  %v307 = vld [vmem:[%s1 + $0xa0] sm:$0xff]
  %v308 = vld [vmem:[%s1 + $0xa8] sm:$0xff]
  %v309 = vld [vmem:[%s1 + $0xb0] sm:$0xff]
  %v310 = vld [vmem:[%s1 + $0xb8] sm:$0xff]
  %v311 = vld [vmem:[%s1 + $0xc0] sm:$0xff]
  %v312 = vld [vmem:[%s1 + $0xc8] sm:$0xff]
  %v313 = vld [vmem:[%s1 + $0xd0] sm:$0xff]
  %v314 = vld [vmem:[%s1 + $0xd8] sm:$0xff]
  %v315 = vld [vmem:[%s1 + $0xe0] sm:$0xff]
  %v316 = vld [vmem:[%s1 + $0xe8] sm:$0xff]
  %v317 = vld [vmem:[%s1 + $0xf0] sm:$0xff]
  %v318 = vld [vmem:[%s1 + $0xf8] sm:$0xff]
  %v319 = vld [vmem:[%s1 + $0x100] sm:$0xff]
  %v320 = vld [vmem:[%s1 + $0x108] sm:$0xff]
  %v321 = vld [vmem:[%s1 + $0x110] sm:$0xff]
  %v322 = vld [vmem:[%s1 + $0x118] sm:$0xff]
  %v323 = vld [vmem:[%s1 + $0x120] sm:$0xff]
  %v324 = vld [vmem:[%s1 + $0x128] sm:$0xff]
  %v325 = vld [vmem:[%s1 + $0x130] sm:$0xff]
  %v326 = vld [vmem:[%s1 + $0x138] sm:$0xff]
  %v327 = vld [vmem:[%s1 + $0x140] sm:$0xff]
  %v328 = vld [vmem:[%s1 + $0x148] sm:$0xff]
  %v329 = vld [vmem:[%s1 + $0x150] sm:$0xff]
  %v330 = vld [vmem:[%s1 + $0x158] sm:$0xff]
  %v331 = vld [vmem:[%s1 + $0x160] sm:$0xff]
  %v332 = vld [vmem:[%s1 + $0x168] sm:$0xff]
  %v333 = vld [vmem:[%s1 + $0x170] sm:$0xff]
  %v334 = vld [vmem:[%s1 + $0x178] sm:$0xff]
  %v335 = vld [vmem:[%s1 + $0x180] sm:$0xff]
  %v336 = vld [vmem:[%s1 + $0x188] sm:$0xff]
  %v337 = vld [vmem:[%s1 + $0x190] sm:$0xff]
  %v338 = vld [vmem:[%s1 + $0x198] sm:$0xff]
  %v339 = vld [vmem:[%s1 + $0x1a0] sm:$0xff]
  %v340 = vld [vmem:[%s1 + $0x1a8] sm:$0xff]
  %v341 = vld [vmem:[%s1 + $0x1b0] sm:$0xff]
  %v342 = vld [vmem:[%s1 + $0x1b8] sm:$0xff]
  %v343 = vld [vmem:[%s1 + $0x1c0] sm:$0xff]
  %v344 = vld [vmem:[%s1 + $0x1c8] sm:$0xff]
  %v345 = vld [vmem:[%s1 + $0x1d0] sm:$0xff]
  %v346 = vld [vmem:[%s1 + $0x1d8] sm:$0xff]
  %v347 = vld [vmem:[%s1 + $0x1e0] sm:$0xff]
  %v348 = vld [vmem:[%s1 + $0x1e8] sm:$0xff]
  %v349 = vld [vmem:[%s1 + $0x1f0] sm:$0xff]
  %v350 = vld [vmem:[%s1 + $0x1f8] sm:$0xff]
  %v351 = vadd.f32 %v223, %v287
  %v352 = vadd.f32 %v224, %v288
  %v353 = vadd.f32 %v225, %v289
  %v354 = vadd.f32 %v226, %v290
  %v355 = vadd.f32 %v227, %v291
  %v356 = vadd.f32 %v228, %v292
  %v357 = vadd.f32 %v229, %v293
  %v358 = vadd.f32 %v230, %v294
  %v359 = vadd.f32 %v231, %v295
  %v360 = vadd.f32 %v232, %v296
  %v361 = vadd.f32 %v233, %v297
  %v362 = vadd.f32 %v234, %v298
  %v363 = vadd.f32 %v235, %v299
  %v364 = vadd.f32 %v236, %v300
  %v365 = vadd.f32 %v237, %v301
  %v366 = vadd.f32 %v238, %v302
  %v367 = vadd.f32 %v239, %v303
  %v368 = vadd.f32 %v240, %v304
  %v369 = vadd.f32 %v241, %v305
  %v370 = vadd.f32 %v242, %v306
  %v371 = vadd.f32 %v243, %v307
  %v372 = vadd.f32 %v244, %v308
  %v373 = vadd.f32 %v245, %v309
  %v374 = vadd.f32 %v246, %v310
  %v375 = vadd.f32 %v247, %v311
  %v376 = vadd.f32 %v248, %v312
  %v377 = vadd.f32 %v249, %v313
  %v378 = vadd.f32 %v250, %v314
  %v379 = vadd.f32 %v251, %v315
  %v380 = vadd.f32 %v252, %v316
  %v381 = vadd.f32 %v253, %v317
  %v382 = vadd.f32 %v254, %v318
  %v383 = vadd.f32 %v255, %v319
  %v384 = vadd.f32 %v256, %v320
  %v385 = vadd.f32 %v257, %v321
  %v386 = vadd.f32 %v258, %v322
  %v387 = vadd.f32 %v259, %v323
  %v388 = vadd.f32 %v260, %v324
  %v389 = vadd.f32 %v261, %v325
  %v390 = vadd.f32 %v262, %v326
  %v391 = vadd.f32 %v263, %v327
  %v392 = vadd.f32 %v264, %v328
  %v393 = vadd.f32 %v265, %v329
  %v394 = vadd.f32 %v266, %v330
  %v395 = vadd.f32 %v267, %v331
  %v396 = vadd.f32 %v268, %v332
  %v397 = vadd.f32 %v269, %v333
  %v398 = vadd.f32 %v270, %v334
  %v399 = vadd.f32 %v271, %v335
  %v400 = vadd.f32 %v272, %v336
  %v401 = vadd.f32 %v273, %v337
  %v402 = vadd.f32 %v274, %v338
  %v403 = vadd.f32 %v275, %v339
  %v404 = vadd.f32 %v276, %v340
  %v405 = vadd.f32 %v277, %v341
  %v406 = vadd.f32 %v278, %v342
  %v407 = vadd.f32 %v279, %v343
  %v408 = vadd.f32 %v280, %v344
  %v409 = vadd.f32 %v281, %v345
  %v410 = vadd.f32 %v282, %v346
  %v411 = vadd.f32 %v283, %v347
  %v412 = vadd.f32 %v284, %v348
  %v413 = vadd.f32 %v285, %v349
  %v414 = vadd.f32 %v286, %v350
  %v415 = vmax.f32 %v351, 0.0
  %v416 = vmax.f32 %v352, 0.0
  %v417 = vmax.f32 %v353, 0.0
  %v418 = vmax.f32 %v354, 0.0
  %v419 = vmax.f32 %v355, 0.0
  %v420 = vmax.f32 %v356, 0.0
  %v421 = vmax.f32 %v357, 0.0
  %v422 = vmax.f32 %v358, 0.0
  %v423 = vmax.f32 %v359, 0.0
  %v424 = vmax.f32 %v360, 0.0
  %v425 = vmax.f32 %v361, 0.0
  %v426 = vmax.f32 %v362, 0.0
  %v427 = vmax.f32 %v363, 0.0
  %v428 = vmax.f32 %v364, 0.0
  %v429 = vmax.f32 %v365, 0.0
  %v430 = vmax.f32 %v366, 0.0
  %v431 = vmax.f32 %v367, 0.0
  %v432 = vmax.f32 %v368, 0.0
  %v433 = vmax.f32 %v369, 0.0
  %v434 = vmax.f32 %v370, 0.0
  %v435 = vmax.f32 %v371, 0.0
  %v436 = vmax.f32 %v372, 0.0
  %v437 = vmax.f32 %v373, 0.0
  %v438 = vmax.f32 %v374, 0.0
  %v439 = vmax.f32 %v375, 0.0
  %v440 = vmax.f32 %v376, 0.0
  %v441 = vmax.f32 %v377, 0.0
  %v442 = vmax.f32 %v378, 0.0
  %v443 = vmax.f32 %v379, 0.0
  %v444 = vmax.f32 %v380, 0.0
  %v445 = vmax.f32 %v381, 0.0
  %v446 = vmax.f32 %v382, 0.0
  %v447 = vmax.f32 %v383, 0.0
  %v448 = vmax.f32 %v384, 0.0
  %v449 = vmax.f32 %v385, 0.0
  %v450 = vmax.f32 %v386, 0.0
  %v451 = vmax.f32 %v387, 0.0
  %v452 = vmax.f32 %v388, 0.0
  %v453 = vmax.f32 %v389, 0.0
  %v454 = vmax.f32 %v390, 0.0
  %v455 = vmax.f32 %v391, 0.0
  %v456 = vmax.f32 %v392, 0.0
  %v457 = vmax.f32 %v393, 0.0
  %v458 = vmax.f32 %v394, 0.0
  %v459 = vmax.f32 %v395, 0.0
  %v460 = vmax.f32 %v396, 0.0
  %v461 = vmax.f32 %v397, 0.0
  %v462 = vmax.f32 %v398, 0.0
  %v463 = vmax.f32 %v399, 0.0
  %v464 = vmax.f32 %v400, 0.0
  %v465 = vmax.f32 %v401, 0.0
  %v466 = vmax.f32 %v402, 0.0
  %v467 = vmax.f32 %v403, 0.0
  %v468 = vmax.f32 %v404, 0.0
  %v469 = vmax.f32 %v405, 0.0
  %v470 = vmax.f32 %v406, 0.0
  %v471 = vmax.f32 %v407, 0.0
  %v472 = vmax.f32 %v408, 0.0
  %v473 = vmax.f32 %v409, 0.0
  %v474 = vmax.f32 %v410, 0.0
  %v475 = vmax.f32 %v411, 0.0
  %v476 = vmax.f32 %v412, 0.0
  %v477 = vmax.f32 %v413, 0.0
  %v478 = vmax.f32 %v414, 0.0
  %479 = vst [vmem:[%s4] sm:$0xff] %v415
  %480 = vst [vmem:[%s4 + $0x8] sm:$0xff] %v416
  %481 = vst [vmem:[%s4 + $0x10] sm:$0xff] %v417
  %482 = vst [vmem:[%s4 + $0x18] sm:$0xff] %v418
  %483 = vst [vmem:[%s4 + $0x20] sm:$0xff] %v419
  %484 = vst [vmem:[%s4 + $0x28] sm:$0xff] %v420
  %485 = vst [vmem:[%s4 + $0x30] sm:$0xff] %v421
  %486 = vst [vmem:[%s4 + $0x38] sm:$0xff] %v422
  %487 = vst [vmem:[%s4 + $0x40] sm:$0xff] %v423
  %488 = vst [vmem:[%s4 + $0x48] sm:$0xff] %v424
  %489 = vst [vmem:[%s4 + $0x50] sm:$0xff] %v425
  %490 = vst [vmem:[%s4 + $0x58] sm:$0xff] %v426
  %491 = vst [vmem:[%s4 + $0x60] sm:$0xff] %v427
  %492 = vst [vmem:[%s4 + $0x68] sm:$0xff] %v428
  %493 = vst [vmem:[%s4 + $0x70] sm:$0xff] %v429
  %494 = vst [vmem:[%s4 + $0x78] sm:$0xff] %v430
  %495 = vst [vmem:[%s4 + $0x80] sm:$0xff] %v431
  %496 = vst [vmem:[%s4 + $0x88] sm:$0xff] %v432
  %497 = vst [vmem:[%s4 + $0x90] sm:$0xff] %v433
  %498 = vst [vmem:[%s4 + $0x98] sm:$0xff] %v434
  %499 = vst [vmem:[%s4 + $0xa0] sm:$0xff] %v435
  %500 = vst [vmem:[%s4 + $0xa8] sm:$0xff] %v436
  %501 = vst [vmem:[%s4 + $0xb0] sm:$0xff] %v437
  %502 = vst [vmem:[%s4 + $0xb8] sm:$0xff] %v438
  %503 = vst [vmem:[%s4 + $0xc0] sm:$0xff] %v439
  %504 = vst [vmem:[%s4 + $0xc8] sm:$0xff] %v440
  %505 = vst [vmem:[%s4 + $0xd0] sm:$0xff] %v441
  %506 = vst [vmem:[%s4 + $0xd8] sm:$0xff] %v442
  %507 = vst [vmem:[%s4 + $0xe0] sm:$0xff] %v443
  %508 = vst [vmem:[%s4 + $0xe8] sm:$0xff] %v444
  %509 = vst [vmem:[%s4 + $0xf0] sm:$0xff] %v445
  %510 = vst [vmem:[%s4 + $0xf8] sm:$0xff] %v446
  %511 = vst [vmem:[%s4 + $0x100] sm:$0xff] %v447
  %512 = vst [vmem:[%s4 + $0x108] sm:$0xff] %v448
  %513 = vst [vmem:[%s4 + $0x110] sm:$0xff] %v449
  %514 = vst [vmem:[%s4 + $0x118] sm:$0xff] %v450
  %515 = vst [vmem:[%s4 + $0x120] sm:$0xff] %v451
  %516 = vst [vmem:[%s4 + $0x128] sm:$0xff] %v452
  %517 = vst [vmem:[%s4 + $0x130] sm:$0xff] %v453
  %518 = vst [vmem:[%s4 + $0x138] sm:$0xff] %v454
  %519 = vst [vmem:[%s4 + $0x140] sm:$0xff] %v455
  %520 = vst [vmem:[%s4 + $0x148] sm:$0xff] %v456
  %521 = vst [vmem:[%s4 + $0x150] sm:$0xff] %v457
  %522 = vst [vmem:[%s4 + $0x158] sm:$0xff] %v458
  %523 = vst [vmem:[%s4 + $0x160] sm:$0xff] %v459
  %524 = vst [vmem:[%s4 + $0x168] sm:$0xff] %v460
  %525 = vst [vmem:[%s4 + $0x170] sm:$0xff] %v461
  %526 = vst [vmem:[%s4 + $0x178] sm:$0xff] %v462
  %527 = vst [vmem:[%s4 + $0x180] sm:$0xff] %v463
  %528 = vst [vmem:[%s4 + $0x188] sm:$0xff] %v464
  %529 = vst [vmem:[%s4 + $0x190] sm:$0xff] %v465
  %530 = vst [vmem:[%s4 + $0x198] sm:$0xff] %v466
  %531 = vst [vmem:[%s4 + $0x1a0] sm:$0xff] %v467
  %532 = vst [vmem:[%s4 + $0x1a8] sm:$0xff] %v468
  %533 = vst [vmem:[%s4 + $0x1b0] sm:$0xff] %v469
  %534 = vst [vmem:[%s4 + $0x1b8] sm:$0xff] %v470
  %535 = vst [vmem:[%s4 + $0x1c0] sm:$0xff] %v471
  %536 = vst [vmem:[%s4 + $0x1c8] sm:$0xff] %v472
  %537 = vst [vmem:[%s4 + $0x1d0] sm:$0xff] %v473
  %538 = vst [vmem:[%s4 + $0x1d8] sm:$0xff] %v474
  %539 = vst [vmem:[%s4 + $0x1e0] sm:$0xff] %v475
  %540 = vst [vmem:[%s4 + $0x1e8] sm:$0xff] %v476
  %541 = vst [vmem:[%s4 + $0x1f0] sm:$0xff] %v477
  %542 = vst [vmem:[%s4 + $0x1f8] sm:$0xff] %v478
  // Predicated region
  $region18: #{residual_block.5} parent=0 // pred_check
    _
  $region19: #{residual_block.5} parent=0 // pred_check_branch
    %544 = sbr.rel (0) target = $region21
  $region20: #{residual_block.5} parent=0 // pred_region
    _
  $region21: #{residual_block.5} parent=0 // pred_fallthru
    _
  // Predicated region
  $region22: #{residual_block.5} parent=0 // pred_check
    _
  $region23: #{residual_block.5} parent=0 // pred_check_branch
    %546 = sbr.rel (0) target = $region25
  $region24: #{residual_block.5} parent=0 // pred_region
    _
  $region25: #{residual_block.5} parent=0 // pred_fallthru
    _

// kernel: residual_block.3
$region0: #{residual_block.3}
  #allocation0 [shape = 'u32[]', space=smem, size = 0x4, offset = 0x4, fixed_abs, tag = 'smem constant byte address 0x4 - core index']
  #allocation1 [shape = 'u32[144,128]{1,0:T(1,128)}', space=vmem, size = 0x12000, scoped, tag = 'internal scratch']
  %s0 = inlined_call_operand.vmem [shape: bf16[2,18,18,128], index: 0, kind: input, shape index: {}]
  %s1 = inlined_call_operand.vmem [shape: bf16[1152,128], index: 1, kind: input, shape index: {}]
  %s2 = inlined_call_operand.vmem [shape: bf16[2,16,16,128], index: 2, kind: output, shape index: {0}]
  %s3 = inlined_call_operand.vmem [shape: f32[2,8,128], index: 3, kind: output, shape index: {1}]
  %s4 = inlined_call_operand.vmem [shape: f32[2,8,128], index: 4, kind: output, shape index: {2}]
  %5 = xla_tuple %s2, %s3, %s4
  %s6 = sld [smem:[#allocation0]]
  $region57: #{residual_block.3} parent=0
    _
  %s8 = ssub.s32 1, %s6
  %s9 = scalar_select 0, %s8, %s6
  loop: start=0, step=1, limit=4
  $region2: #{residual_block.3} parent=0 // loop_pre_header
    _
  $region3: #{residual_block.3} parent=0 // loop_header
    %s11 = sphi 0, %s15
    %p12 = scmp.ge.s32.totalorder %s11, 4
    %s21 = sphi 0, %s23
    %s24 = sphi 0, %s21
    %s25 = sphi 0, %s24
    %s41 = sphi 0, %s25
    %s45 = sphi 0, %s45
    %s47 = sphi 0, %s45
    %s48 = sphi 0, %s47
    %s62 = sphi 0, %s48
    %s68 = sphi 0, %s70
    %s71 = sphi 0, %s68
    %s72 = sphi 0, %s71
    %s88 = sphi 0, %s72
    %s94 = sphi 0, %s96
    %s97 = sphi 0, %s94
    %s98 = sphi 0, %s97
    %s114 = sphi 0, %s98
    %s120 = sphi 0, %s122
    %s123 = sphi 0, %s120
    %s124 = sphi 0, %s123
    %s140 = sphi 0, %s124
  $region4: #{residual_block.3} parent=0 // loop_header_branch
    %14 = sbr.rel (%p12) target = $region8
  $region5: #{residual_block.3} parent=0 // loop_body
    %s16 = ssub.s32 %s11, 1
    %s17 = ssub.s32 %s11, 2
    %s18 = sadd.s32 %s11, 1
    %s19 = ssub.s32 %s11, %s18
    %p20 = scmp.eq.s32.totalorder %s19, 0
    %s22 = sadd.s32 %s21, 1
    %s23 = scalar_select %p20, %s21, %s22
    %p26 = pneg %p20
    %p27 = scmp.eq.s32.totalorder %s11, 1
    %p28 = por %p26, %p27
    %p29 = scmp.ne.s32.totalorder %s21, %s24
    %p30 = scmp.eq.s32.totalorder %s11, 0
    %p31 = por %p29, %p30
    %p32 = scmp.ne.s32.totalorder %s21, %s24
    %p33 = scmp.eq.s32.totalorder %s16, 1
    %p34 = por %p32, %p33
    %p35 = scmp.ne.s32.totalorder %s24, %s25
    %p36 = scmp.eq.s32.totalorder %s16, 0
    %p37 = por %p35, %p36
    %p38 = scmp.ne.s32.totalorder %s24, %s25
    %p39 = scmp.eq.s32.totalorder %s17, 1
    %p40 = por %p38, %p39
    %p42 = scmp.ne.s32.totalorder %s25, %s41
    %p43 = scmp.eq.s32.totalorder %s17, 0
    %p44 = por %p42, %p43
    %s46 = sadd.s32 %s45, 1
    %p49 = scmp.eq.s32.totalorder %s11, 1
    %p50 = scmp.ne.s32.totalorder %s45, %s47
    %p51 = scmp.eq.s32.totalorder %s11, 0
    %p52 = por %p50, %p51
    %p53 = scmp.ne.s32.totalorder %s45, %s47
    %p54 = scmp.eq.s32.totalorder %s16, 1
    %p55 = por %p53, %p54
    %p56 = scmp.ne.s32.totalorder %s47, %s48
    %p57 = scmp.eq.s32.totalorder %s16, 0
    %p58 = por %p56, %p57
    %p59 = scmp.ne.s32.totalorder %s47, %s48
    %p60 = scmp.eq.s32.totalorder %s17, 1
    %p61 = por %p59, %p60
    %p63 = scmp.ne.s32.totalorder %s48, %s62
    %p64 = scmp.eq.s32.totalorder %s17, 0
    %p65 = por %p63, %p64
    %s66 = ssub.s32 %s11, %s18
    %p67 = scmp.eq.s32.totalorder %s66, 0
    %s69 = sadd.s32 %s68, 1
    %s70 = scalar_select %p67, %s68, %s69
    %p73 = pneg %p67
    %p74 = scmp.eq.s32.totalorder %s11, 1
    %p75 = por %p73, %p74
    %p76 = scmp.ne.s32.totalorder %s68, %s71
    %p77 = scmp.eq.s32.totalorder %s11, 0
    %p78 = por %p76, %p77
    %p79 = scmp.ne.s32.totalorder %s68, %s71
    %p80 = scmp.eq.s32.totalorder %s16, 1
    %p81 = por %p79, %p80
    %p82 = scmp.ne.s32.totalorder %s71, %s72
    %p83 = scmp.eq.s32.totalorder %s16, 0
    %p84 = por %p82, %p83
    %p85 = scmp.ne.s32.totalorder %s71, %s72
    %p86 = scmp.eq.s32.totalorder %s17, 1
    %p87 = por %p85, %p86
    %p89 = scmp.ne.s32.totalorder %s72, %s88
    %p90 = scmp.eq.s32.totalorder %s17, 0
    %p91 = por %p89, %p90
    %s92 = ssub.s32 %s11, %s18
    %p93 = scmp.eq.s32.totalorder %s92, 0
    %s95 = sadd.s32 %s94, 1
    %s96 = scalar_select %p93, %s94, %s95
    %p99 = pneg %p93
    %p100 = scmp.eq.s32.totalorder %s11, 1
    %p101 = por %p99, %p100
    %p102 = scmp.ne.s32.totalorder %s94, %s97
    %p103 = scmp.eq.s32.totalorder %s11, 0
    %p104 = por %p102, %p103
    %p105 = scmp.ne.s32.totalorder %s94, %s97
    %p106 = scmp.eq.s32.totalorder %s16, 1
    %p107 = por %p105, %p106
    %p108 = scmp.ne.s32.totalorder %s97, %s98
    %p109 = scmp.eq.s32.totalorder %s16, 0
    %p110 = por %p108, %p109
    %p111 = scmp.ne.s32.totalorder %s97, %s98
    %p112 = scmp.eq.s32.totalorder %s17, 1
    %p113 = por %p111, %p112
    %p115 = scmp.ne.s32.totalorder %s98, %s114
    %p116 = scmp.eq.s32.totalorder %s17, 0
    %p117 = por %p115, %p116
    %s118 = ssub.s32 %s11, %s18
    %p119 = scmp.eq.s32.totalorder %s118, 0
    %s121 = sadd.s32 %s120, 1
    %s122 = scalar_select %p119, %s120, %s121
    %p125 = pneg %p119
    %p126 = scmp.eq.s32.totalorder %s11, 1
    %p127 = por %p125, %p126
    %p128 = scmp.ne.s32.totalorder %s120, %s123
    %p129 = scmp.eq.s32.totalorder %s11, 0
    %p130 = por %p128, %p129
    %p131 = scmp.ne.s32.totalorder %s120, %s123
    %p132 = scmp.eq.s32.totalorder %s16, 1
    %p133 = por %p131, %p132
    %p134 = scmp.ne.s32.totalorder %s123, %s124
    %p135 = scmp.eq.s32.totalorder %s16, 0
    %p136 = por %p134, %p135
    %p137 = scmp.ne.s32.totalorder %s123, %s124
    %p138 = scmp.eq.s32.totalorder %s17, 1
    %p139 = por %p137, %p138
    %p141 = scmp.ne.s32.totalorder %s124, %s140
    %p142 = scmp.eq.s32.totalorder %s17, 0
    %p143 = por %p141, %p142
    %p144 = scmp.le.s32.totalorder 1, %s11
    %p145 = scmp.lt.s32.totalorder %s11, 3
    %p146 = pnand %p144, %p145
    %p147 = pneg %p146
    // Predicated region
    $region9: #{residual_block.3} parent=5 // pred_check
      _
    $region10: #{residual_block.3} parent=5 // pred_check_branch
      %149 = sbr.rel (%p146) target = $region12
    $region11: #{residual_block.3} parent=5 // pred_region
      %s150 = ssub.s32 %s11, 1
      // Predicated region
      $region13: #{residual_block.3} parent=11 // pred_check
        %p151 = pneg %p58
      $region14: #{residual_block.3} parent=11 // pred_check_branch
        %153 = sbr.rel (%p151) target = $region16
      $region15: #{residual_block.3} parent=11 // pred_region
        _
      $region16: #{residual_block.3} parent=11 // pred_fallthru
        _
    $region12: #{residual_block.3} parent=5 // pred_fallthru
      _
    %p154 = scmp.lt.s32.totalorder %s11, 2
    // Predicated region
    $region17: #{residual_block.3} parent=5 // pred_check
      %p155 = pneg %p154
    $region18: #{residual_block.3} parent=5 // pred_check_branch
      %157 = sbr.rel (%p155) target = $region20
    $region19: #{residual_block.3} parent=5 // pred_region
      // Predicated region
      $region21: #{residual_block.3} parent=19 // pred_check
        %p158 = pneg %p31
      $region22: #{residual_block.3} parent=19 // pred_check_branch
        %160 = sbr.rel (%p158) target = $region24
      $region23: #{residual_block.3} parent=19 // pred_region
        %p161 = scmp.lt.s32.totalorder %s11, 1
        %s162 = scalar_select %p161, %s11, 1
        %s163 = smul.addr %s162, 54
        %s164 = smul.addr %s163, 4
        %s165 = scalar_lea.vmem %s0, %s164
      $region24: #{residual_block.3} parent=19 // pred_fallthru
        _
    $region20: #{residual_block.3} parent=5 // pred_fallthru
      _
    %p166 = scmp.le.s32.totalorder 1, %s11
    %p167 = scmp.lt.s32.totalorder %s11, 3
    %p168 = pnand %p166, %p167
    %p169 = pneg %p168
    // Predicated region
    $region25: #{residual_block.3} parent=5 // pred_check
      _
    $region26: #{residual_block.3} parent=5 // pred_check_branch
      %171 = sbr.rel (%p168) target = $region28
    $region27: #{residual_block.3} parent=5 // pred_region
      %s172 = ssub.s32 %s11, 1
      %p173 = scmp.lt.s32.totalorder %s16, 1
      %s174 = scalar_select %p173, %s16, 1
      %s175 = smul.addr %s174, 54
      %s176 = smul.addr %s175, 4
      %s177 = scalar_lea.vmem %s0, %s176
      %p178 = pneg %p37
      %p179 = pneg %p34
      %p180 = pneg %p58
      %p181 = pneg %p55
      %p182 = pneg %p84
      %p183 = pneg %p81
      %p184 = scmp.lt.s32.totalorder %s16, 1
      %s185 = scalar_select %p184, %s16, 1
      %s186 = smul.addr %s185, 32
      %s187 = smul.addr %s186, 4
      %s188 = scalar_lea.vmem %s2, %s187
      %p189 = pneg %p110
      %p190 = pneg %p107
      %p191 = scmp.lt.s32.totalorder %s16, 1
      %s192 = scalar_select %p191, %s16, 1
      %s193 = smul.addr %s192, 8
      %s194 = scalar_lea.vmem %s3, %s193
      %p195 = pneg %p136
      %p196 = pneg %p133
      %p197 = scmp.lt.s32.totalorder %s16, 1
      %s198 = scalar_select %p197, %s16, 1
      %s199 = smul.addr %s198, 8
      %s200 = scalar_lea.vmem %s4, %s199
      %p201 = scmp.lt.s32.totalorder %s16, 1
      %s202 = scalar_select %p201, %s16, 1
      %s203 = smul.addr %s202, 54
      %s204 = smul.addr %s203, 4
      %s205 = scalar_lea.vmem %s0, %s204
      %p206 = scmp.lt.s32.totalorder %s16, 1
      %s207 = scalar_select %p206, %s16, 1
      %s208 = smul.addr %s207, 32
      %s209 = smul.addr %s208, 4
      %s210 = scalar_lea.vmem %s2, %s209
      %p211 = scmp.lt.s32.totalorder %s16, 1
      %s212 = scalar_select %p211, %s16, 1
      %s213 = smul.addr %s212, 8
      %s214 = scalar_lea.vmem %s3, %s213
      %p215 = scmp.lt.s32.totalorder %s16, 1
      %s216 = scalar_select %p215, %s16, 1
      %s217 = smul.addr %s216, 8
      %s218 = scalar_lea.vmem %s4, %s217
      %v220 = vld [vmem:[%s205] sm:$0xf]
      %v221 = vld [vmem:[%s205 + $0x4] sm:$0xf]
      %v222 = vld [vmem:[%s205 + $0x8] sm:$0x1]
      %v223 = vld [vmem:[%s205 + $0xc] sm:$0xf]
      %v224 = vld [vmem:[%s205 + $0x10] sm:$0xf]
      %v225 = vld [vmem:[%s205 + $0x14] sm:$0x1]
      %v226 = vld [vmem:[%s205 + $0x18] sm:$0xf]
      %v227 = vld [vmem:[%s205 + $0x1c] sm:$0xf]
      %v228 = vld [vmem:[%s205 + $0x20] sm:$0x1]
      %v229 = vld [vmem:[%s205 + $0x24] sm:$0xf]
      %v230 = vld [vmem:[%s205 + $0x28] sm:$0xf]
      %v231 = vld [vmem:[%s205 + $0x2c] sm:$0x1]
      %v232 = vld [vmem:[%s205 + $0x30] sm:$0xf]
      %v233 = vld [vmem:[%s205 + $0x34] sm:$0xf]
      %v234 = vld [vmem:[%s205 + $0x38] sm:$0x1]
      %v235 = vld [vmem:[%s205 + $0x3c] sm:$0xf]
      %v236 = vld [vmem:[%s205 + $0x40] sm:$0xf]
      %v237 = vld [vmem:[%s205 + $0x44] sm:$0x1]
      %v238 = vld [vmem:[%s205 + $0x48] sm:$0xf]
      %v239 = vld [vmem:[%s205 + $0x4c] sm:$0xf]
      %v240 = vld [vmem:[%s205 + $0x50] sm:$0x1]
      %v241 = vld [vmem:[%s205 + $0x54] sm:$0xf]
      %v242 = vld [vmem:[%s205 + $0x58] sm:$0xf]
      %v243 = vld [vmem:[%s205 + $0x5c] sm:$0x1]
      %v244 = vld [vmem:[%s205 + $0x60] sm:$0xf]
      %v245 = vld [vmem:[%s205 + $0x64] sm:$0xf]
      %v246 = vld [vmem:[%s205 + $0x68] sm:$0x1]
      %v247 = vld [vmem:[%s205 + $0x6c] sm:$0xf]
      %v248 = vld [vmem:[%s205 + $0x70] sm:$0xf]
      %v249 = vld [vmem:[%s205 + $0x74] sm:$0x1]
      %v250 = vld [vmem:[%s205 + $0x78] sm:$0xf]
      %v251 = vld [vmem:[%s205 + $0x7c] sm:$0xf]
      %v252 = vld [vmem:[%s205 + $0x80] sm:$0x1]
      %v253 = vld [vmem:[%s205 + $0x84] sm:$0xf]
      %v254 = vld [vmem:[%s205 + $0x88] sm:$0xf]
      %v255 = vld [vmem:[%s205 + $0x8c] sm:$0x1]
      %v256 = vld [vmem:[%s205 + $0x90] sm:$0xf]
      %v257 = vld [vmem:[%s205 + $0x94] sm:$0xf]
      %v258 = vld [vmem:[%s205 + $0x98] sm:$0x1]
      %v259 = vld [vmem:[%s205 + $0x9c] sm:$0xf]
      %v260 = vld [vmem:[%s205 + $0xa0] sm:$0xf]
      %v261 = vld [vmem:[%s205 + $0xa4] sm:$0x1]
      %v262 = vld [vmem:[%s205 + $0xa8] sm:$0xf]
      %v263 = vld [vmem:[%s205 + $0xac] sm:$0xf]
      %v264 = vld [vmem:[%s205 + $0xb0] sm:$0x1]
      %v265 = vld [vmem:[%s205 + $0xb4] sm:$0xf]
      %v266 = vld [vmem:[%s205 + $0xb8] sm:$0xf]
      %v267 = vld [vmem:[%s205 + $0xbc] sm:$0x1]
      %v268 = vld [vmem:[%s205 + $0xc0] sm:$0xf]
      %v269 = vld [vmem:[%s205 + $0xc4] sm:$0xf]
      %v270 = vld [vmem:[%s205 + $0xc8] sm:$0x1]
      %v271 = vld [vmem:[%s205 + $0xcc] sm:$0xf]
      %v272 = vld [vmem:[%s205 + $0xd0] sm:$0xf]
      %v273 = vld [vmem:[%s205 + $0xd4] sm:$0x1]
      %v274 = vld [vmem:[%s1] sm:$0xf]
      %v275 = vld [vmem:[%s1 + $0x4] sm:$0xf]
      %v276 = vld [vmem:[%s1 + $0x8] sm:$0xf]
      %v277 = vld [vmem:[%s1 + $0xc] sm:$0xf]
      %v278 = vld [vmem:[%s1 + $0x10] sm:$0xf]
      %v279 = vld [vmem:[%s1 + $0x14] sm:$0xf]
      %v280 = vld [vmem:[%s1 + $0x18] sm:$0xf]
      %v281 = vld [vmem:[%s1 + $0x1c] sm:$0xf]
      %v282 = vld [vmem:[%s1 + $0x20] sm:$0xf]
      %v283 = vld [vmem:[%s1 + $0x24] sm:$0xf]
      %v284 = vld [vmem:[%s1 + $0x28] sm:$0xf]
      %v285 = vld [vmem:[%s1 + $0x2c] sm:$0xf]
      %v286 = vld [vmem:[%s1 + $0x30] sm:$0xf]
      %v287 = vld [vmem:[%s1 + $0x34] sm:$0xf]
      %v288 = vld [vmem:[%s1 + $0x38] sm:$0xf]
      %v289 = vld [vmem:[%s1 + $0x3c] sm:$0xf]
      %v290 = vld [vmem:[%s1 + $0x40] sm:$0xf]
      %v291 = vld [vmem:[%s1 + $0x44] sm:$0xf]
      %v292 = vld [vmem:[%s1 + $0x48] sm:$0xf]
      %v293 = vld [vmem:[%s1 + $0x4c] sm:$0xf]
      %v294 = vld [vmem:[%s1 + $0x50] sm:$0xf]
      %v295 = vld [vmem:[%s1 + $0x54] sm:$0xf]
      %v296 = vld [vmem:[%s1 + $0x58] sm:$0xf]
      %v297 = vld [vmem:[%s1 + $0x5c] sm:$0xf]
      %v298 = vld [vmem:[%s1 + $0x60] sm:$0xf]
      %v299 = vld [vmem:[%s1 + $0x64] sm:$0xf]
      %v300 = vld [vmem:[%s1 + $0x68] sm:$0xf]
      %v301 = vld [vmem:[%s1 + $0x6c] sm:$0xf]
      %v302 = vld [vmem:[%s1 + $0x70] sm:$0xf]
      %v303 = vld [vmem:[%s1 + $0x74] sm:$0xf]
      %v304 = vld [vmem:[%s1 + $0x78] sm:$0xf]
      %v305 = vld [vmem:[%s1 + $0x7c] sm:$0xf]
      %v306 = vld [vmem:[%s1 + $0x80] sm:$0xf]
      %v307 = vld [vmem:[%s1 + $0x84] sm:$0xf]
      %v308 = vld [vmem:[%s1 + $0x88] sm:$0xf]
      %v309 = vld [vmem:[%s1 + $0x8c] sm:$0xf]
      %v310 = vld [vmem:[%s1 + $0x90] sm:$0xf]
      %v311 = vld [vmem:[%s1 + $0x94] sm:$0xf]
      %v312 = vld [vmem:[%s1 + $0x98] sm:$0xf]
      %v313 = vld [vmem:[%s1 + $0x9c] sm:$0xf]
      %v314 = vld [vmem:[%s1 + $0xa0] sm:$0xf]
      %v315 = vld [vmem:[%s1 + $0xa4] sm:$0xf]
      %v316 = vld [vmem:[%s1 + $0xa8] sm:$0xf]
      %v317 = vld [vmem:[%s1 + $0xac] sm:$0xf]
      %v318 = vld [vmem:[%s1 + $0xb0] sm:$0xf]
      %v319 = vld [vmem:[%s1 + $0xb4] sm:$0xf]
      %v320 = vld [vmem:[%s1 + $0xb8] sm:$0xf]
      %v321 = vld [vmem:[%s1 + $0xbc] sm:$0xf]
      %v322 = vld [vmem:[%s1 + $0xc0] sm:$0xf]
      %v323 = vld [vmem:[%s1 + $0xc4] sm:$0xf]
      %v324 = vld [vmem:[%s1 + $0xc8] sm:$0xf]
      %v325 = vld [vmem:[%s1 + $0xcc] sm:$0xf]
      %v326 = vld [vmem:[%s1 + $0xd0] sm:$0xf]
      %v327 = vld [vmem:[%s1 + $0xd4] sm:$0xf]
      %v328 = vld [vmem:[%s1 + $0xd8] sm:$0xf]
      %v329 = vld [vmem:[%s1 + $0xdc] sm:$0xf]
      %v330 = vld [vmem:[%s1 + $0xe0] sm:$0xf]
      %v331 = vld [vmem:[%s1 + $0xe4] sm:$0xf]
      %v332 = vld [vmem:[%s1 + $0xe8] sm:$0xf]
      %v333 = vld [vmem:[%s1 + $0xec] sm:$0xf]
      %v334 = vld [vmem:[%s1 + $0xf0] sm:$0xf]
      %v335 = vld [vmem:[%s1 + $0xf4] sm:$0xf]
      %v336 = vld [vmem:[%s1 + $0xf8] sm:$0xf]
      %v337 = vld [vmem:[%s1 + $0xfc] sm:$0xf]
      %v338 = vld [vmem:[%s1 + $0x100] sm:$0xf]
      %v339 = vld [vmem:[%s1 + $0x104] sm:$0xf]
      %v340 = vld [vmem:[%s1 + $0x108] sm:$0xf]
      %v341 = vld [vmem:[%s1 + $0x10c] sm:$0xf]
      %v342 = vld [vmem:[%s1 + $0x110] sm:$0xf]
      %v343 = vld [vmem:[%s1 + $0x114] sm:$0xf]
      %v344 = vld [vmem:[%s1 + $0x118] sm:$0xf]
      %v345 = vld [vmem:[%s1 + $0x11c] sm:$0xf]
      %v346 = vld [vmem:[%s1 + $0x120] sm:$0xf]
      %v347 = vld [vmem:[%s1 + $0x124] sm:$0xf]
      %v348 = vld [vmem:[%s1 + $0x128] sm:$0xf]
      %v349 = vld [vmem:[%s1 + $0x12c] sm:$0xf]
      %v350 = vld [vmem:[%s1 + $0x130] sm:$0xf]
      %v351 = vld [vmem:[%s1 + $0x134] sm:$0xf]
      %v352 = vld [vmem:[%s1 + $0x138] sm:$0xf]
      %v353 = vld [vmem:[%s1 + $0x13c] sm:$0xf]
      %v354 = vld [vmem:[%s1 + $0x140] sm:$0xf]
      %v355 = vld [vmem:[%s1 + $0x144] sm:$0xf]
      %v356 = vld [vmem:[%s1 + $0x148] sm:$0xf]
      %v357 = vld [vmem:[%s1 + $0x14c] sm:$0xf]
      %v358 = vld [vmem:[%s1 + $0x150] sm:$0xf]
      %v359 = vld [vmem:[%s1 + $0x154] sm:$0xf]
      %v360 = vld [vmem:[%s1 + $0x158] sm:$0xf]
      %v361 = vld [vmem:[%s1 + $0x15c] sm:$0xf]
      %v362 = vld [vmem:[%s1 + $0x160] sm:$0xf]
      %v363 = vld [vmem:[%s1 + $0x164] sm:$0xf]
      %v364 = vld [vmem:[%s1 + $0x168] sm:$0xf]
      %v365 = vld [vmem:[%s1 + $0x16c] sm:$0xf]
      %v366 = vld [vmem:[%s1 + $0x170] sm:$0xf]
      %v367 = vld [vmem:[%s1 + $0x174] sm:$0xf]
      %v368 = vld [vmem:[%s1 + $0x178] sm:$0xf]
      %v369 = vld [vmem:[%s1 + $0x17c] sm:$0xf]
      %v370 = vld [vmem:[%s1 + $0x180] sm:$0xf]
      %v371 = vld [vmem:[%s1 + $0x184] sm:$0xf]
      %v372 = vld [vmem:[%s1 + $0x188] sm:$0xf]
      %v373 = vld [vmem:[%s1 + $0x18c] sm:$0xf]
      %v374 = vld [vmem:[%s1 + $0x190] sm:$0xf]
      %v375 = vld [vmem:[%s1 + $0x194] sm:$0xf]
      %v376 = vld [vmem:[%s1 + $0x198] sm:$0xf]
      %v377 = vld [vmem:[%s1 + $0x19c] sm:$0xf]
      %v378 = vld [vmem:[%s1 + $0x1a0] sm:$0xf]
      %v379 = vld [vmem:[%s1 + $0x1a4] sm:$0xf]
      %v380 = vld [vmem:[%s1 + $0x1a8] sm:$0xf]
      %v381 = vld [vmem:[%s1 + $0x1ac] sm:$0xf]
      %v382 = vld [vmem:[%s1 + $0x1b0] sm:$0xf]
      %v383 = vld [vmem:[%s1 + $0x1b4] sm:$0xf]
      %v384 = vld [vmem:[%s1 + $0x1b8] sm:$0xf]
      %v385 = vld [vmem:[%s1 + $0x1bc] sm:$0xf]
      %v386 = vld [vmem:[%s1 + $0x1c0] sm:$0xf]
      %v387 = vld [vmem:[%s1 + $0x1c4] sm:$0xf]
      %v388 = vld [vmem:[%s1 + $0x1c8] sm:$0xf]
      %v389 = vld [vmem:[%s1 + $0x1cc] sm:$0xf]
      %v390 = vld [vmem:[%s1 + $0x1d0] sm:$0xf]
      %v391 = vld [vmem:[%s1 + $0x1d4] sm:$0xf]
      %v392 = vld [vmem:[%s1 + $0x1d8] sm:$0xf]
      %v393 = vld [vmem:[%s1 + $0x1dc] sm:$0xf]
      %v394 = vld [vmem:[%s1 + $0x1e0] sm:$0xf]
      %v395 = vld [vmem:[%s1 + $0x1e4] sm:$0xf]
      %v396 = vld [vmem:[%s1 + $0x1e8] sm:$0xf]
      %v397 = vld [vmem:[%s1 + $0x1ec] sm:$0xf]
      %v398 = vld [vmem:[%s1 + $0x1f0] sm:$0xf]
      %v399 = vld [vmem:[%s1 + $0x1f4] sm:$0xf]
      %v400 = vld [vmem:[%s1 + $0x1f8] sm:$0xf]
      %v401 = vld [vmem:[%s1 + $0x1fc] sm:$0xf]
      %v402 = vld [vmem:[%s1 + $0x200] sm:$0xf]
      %v403 = vld [vmem:[%s1 + $0x204] sm:$0xf]
      %v404 = vld [vmem:[%s1 + $0x208] sm:$0xf]
      %v405 = vld [vmem:[%s1 + $0x20c] sm:$0xf]
      %v406 = vld [vmem:[%s1 + $0x210] sm:$0xf]
      %v407 = vld [vmem:[%s1 + $0x214] sm:$0xf]
      %v408 = vld [vmem:[%s1 + $0x218] sm:$0xf]
      %v409 = vld [vmem:[%s1 + $0x21c] sm:$0xf]
      %v410 = vld [vmem:[%s1 + $0x220] sm:$0xf]
      %v411 = vld [vmem:[%s1 + $0x224] sm:$0xf]
      %v412 = vld [vmem:[%s1 + $0x228] sm:$0xf]
      %v413 = vld [vmem:[%s1 + $0x22c] sm:$0xf]
      %v414 = vld [vmem:[%s1 + $0x230] sm:$0xf]
      %v415 = vld [vmem:[%s1 + $0x234] sm:$0xf]
      %v416 = vld [vmem:[%s1 + $0x238] sm:$0xf]
      %v417 = vld [vmem:[%s1 + $0x23c] sm:$0xf]
      %vm418 = vsmask.f32 3328
      %vm419 = vsmask.f32 7440
      %vm420 = vmor %vm418, %vm419
      %v422 = vshrl.u32 %v220, 16
      %v424 = vrot.slane %v422, 4
      %v425 = vshll.u32 %v220, 16
      %v427 = vrot.slane %v425, 5
      %v428 = vor.u32 %v424, %v427
      %v429 = vrot.slane %v428, 4
      %v431 = vshll.u32 %v221, 16
      %v433 = vrot.slane %v431, 5
      %v434 = vsel %vm420, %v429, %v433
      %v435 = vshrl.u32 %v221, 16
      %v437 = vrot.slane %v435, 4
      %v438 = vor.u32 %v437, %v433
      %v439 = vrot.slane %v438, 4
      %v441 = vshll.u32 %v222, 16
      %v443 = vrot.slane %v441, 5
      %v444 = vsel %vm420, %v439, %v443
      %v446 = vshrl.u32 %v223, 16
      %v448 = vrot.slane %v446, 4
      %v449 = vshll.u32 %v223, 16
      %v451 = vrot.slane %v449, 5
      %v452 = vor.u32 %v448, %v451
      %v453 = vrot.slane %v452, 4
      %v455 = vshll.u32 %v224, 16
      %v457 = vrot.slane %v455, 5
      %v458 = vsel %vm420, %v453, %v457
      %v459 = vshrl.u32 %v224, 16
      %v461 = vrot.slane %v459, 4
      %v462 = vor.u32 %v461, %v457
      %v463 = vrot.slane %v462, 4
      %v465 = vshll.u32 %v225, 16
      %v467 = vrot.slane %v465, 5
      %v468 = vsel %vm420, %v463, %v467
      %v470 = vshrl.u32 %v226, 16
      %v472 = vrot.slane %v470, 4
      %v473 = vshll.u32 %v226, 16
      %v475 = vrot.slane %v473, 5
      %v476 = vor.u32 %v472, %v475
      %v477 = vrot.slane %v476, 4
      %v479 = vshll.u32 %v227, 16
      %v481 = vrot.slane %v479, 5
      %v482 = vsel %vm420, %v477, %v481
      %v483 = vshrl.u32 %v227, 16
      %v485 = vrot.slane %v483, 4
      %v486 = vor.u32 %v485, %v481
      %v487 = vrot.slane %v486, 4
      %v489 = vshll.u32 %v228, 16
      %v491 = vrot.slane %v489, 5
      %v492 = vsel %vm420, %v487, %v491
      %v494 = vshrl.u32 %v229, 16
      %v496 = vrot.slane %v494, 4
      %v497 = vshll.u32 %v229, 16
      %v499 = vrot.slane %v497, 5
      %v500 = vor.u32 %v496, %v499
      %v501 = vrot.slane %v500, 4
      %v503 = vshll.u32 %v230, 16
      %v505 = vrot.slane %v503, 5
      %v506 = vsel %vm420, %v501, %v505
      %v507 = vshrl.u32 %v230, 16
      %v509 = vrot.slane %v507, 4
      %v510 = vor.u32 %v509, %v505
      %v511 = vrot.slane %v510, 4
      %v513 = vshll.u32 %v231, 16
      %v515 = vrot.slane %v513, 5
      %v516 = vsel %vm420, %v511, %v515
      %v518 = vshrl.u32 %v232, 16
      %v520 = vrot.slane %v518, 4
      %v521 = vshll.u32 %v232, 16
      %v523 = vrot.slane %v521, 5
      %v524 = vor.u32 %v520, %v523
      %v525 = vrot.slane %v524, 4
      %v527 = vshll.u32 %v233, 16
      %v529 = vrot.slane %v527, 5
      %v530 = vsel %vm420, %v525, %v529
      %v531 = vshrl.u32 %v233, 16
      %v533 = vrot.slane %v531, 4
      %v534 = vor.u32 %v533, %v529
      %v535 = vrot.slane %v534, 4
      %v537 = vshll.u32 %v234, 16
      %v539 = vrot.slane %v537, 5
      %v540 = vsel %vm420, %v535, %v539
      %v542 = vshrl.u32 %v235, 16
      %v544 = vrot.slane %v542, 4
      %v545 = vshll.u32 %v235, 16
      %v547 = vrot.slane %v545, 5
      %v548 = vor.u32 %v544, %v547
      %v549 = vrot.slane %v548, 4
      %v551 = vshll.u32 %v236, 16
      %v553 = vrot.slane %v551, 5
      %v554 = vsel %vm420, %v549, %v553
      %v555 = vshrl.u32 %v236, 16
      %v557 = vrot.slane %v555, 4
      %v558 = vor.u32 %v557, %v553
      %v559 = vrot.slane %v558, 4
      %v561 = vshll.u32 %v237, 16
      %v563 = vrot.slane %v561, 5
      %v564 = vsel %vm420, %v559, %v563
      %v566 = vshrl.u32 %v238, 16
      %v568 = vrot.slane %v566, 4
      %v569 = vshll.u32 %v238, 16
      %v571 = vrot.slane %v569, 5
      %v572 = vor.u32 %v568, %v571
      %v573 = vrot.slane %v572, 4
      %v575 = vshll.u32 %v239, 16
      %v577 = vrot.slane %v575, 5
      %v578 = vsel %vm420, %v573, %v577
      %v579 = vshrl.u32 %v239, 16
      %v581 = vrot.slane %v579, 4
      %v582 = vor.u32 %v581, %v577
      %v583 = vrot.slane %v582, 4
      %v585 = vshll.u32 %v240, 16
      %v587 = vrot.slane %v585, 5
      %v588 = vsel %vm420, %v583, %v587
      %v590 = vshrl.u32 %v241, 16
      %v592 = vrot.slane %v590, 4
      %v593 = vshll.u32 %v241, 16
      %v595 = vrot.slane %v593, 5
      %v596 = vor.u32 %v592, %v595
      %v597 = vrot.slane %v596, 4
      %v599 = vshll.u32 %v242, 16
      %v601 = vrot.slane %v599, 5
      %v602 = vsel %vm420, %v597, %v601
      %v603 = vshrl.u32 %v242, 16
      %v605 = vrot.slane %v603, 4
      %v606 = vor.u32 %v605, %v601
      %v607 = vrot.slane %v606, 4
      %v609 = vshll.u32 %v243, 16
      %v611 = vrot.slane %v609, 5
      %v612 = vsel %vm420, %v607, %v611
      %v614 = vshrl.u32 %v244, 16
      %v616 = vrot.slane %v614, 4
      %v617 = vshll.u32 %v244, 16
      %v619 = vrot.slane %v617, 5
      %v620 = vor.u32 %v616, %v619
      %v621 = vrot.slane %v620, 4
      %v623 = vshll.u32 %v245, 16
      %v625 = vrot.slane %v623, 5
      %v626 = vsel %vm420, %v621, %v625
      %v627 = vshrl.u32 %v245, 16
      %v629 = vrot.slane %v627, 4
      %v630 = vor.u32 %v629, %v625
      %v631 = vrot.slane %v630, 4
      %v633 = vshll.u32 %v246, 16
      %v635 = vrot.slane %v633, 5
      %v636 = vsel %vm420, %v631, %v635
      %v638 = vshrl.u32 %v247, 16
      %v640 = vrot.slane %v638, 4
      %v641 = vshll.u32 %v247, 16
      %v643 = vrot.slane %v641, 5
      %v644 = vor.u32 %v640, %v643
      %v645 = vrot.slane %v644, 4
      %v647 = vshll.u32 %v248, 16
      %v649 = vrot.slane %v647, 5
      %v650 = vsel %vm420, %v645, %v649
      %v651 = vshrl.u32 %v248, 16
      %v653 = vrot.slane %v651, 4
      %v654 = vor.u32 %v653, %v649
      %v655 = vrot.slane %v654, 4
      %v657 = vshll.u32 %v249, 16
      %v659 = vrot.slane %v657, 5
      %v660 = vsel %vm420, %v655, %v659
      %v662 = vshrl.u32 %v250, 16
      %v664 = vrot.slane %v662, 4
      %v665 = vshll.u32 %v250, 16
      %v667 = vrot.slane %v665, 5
      %v668 = vor.u32 %v664, %v667
      %v669 = vrot.slane %v668, 4
      %v671 = vshll.u32 %v251, 16
      %v673 = vrot.slane %v671, 5
      %v674 = vsel %vm420, %v669, %v673
      %v675 = vshrl.u32 %v251, 16
      %v677 = vrot.slane %v675, 4
      %v678 = vor.u32 %v677, %v673
      %v679 = vrot.slane %v678, 4
      %v681 = vshll.u32 %v252, 16
      %v683 = vrot.slane %v681, 5
      %v684 = vsel %vm420, %v679, %v683
      %v686 = vshrl.u32 %v253, 16
      %v688 = vrot.slane %v686, 4
      %v689 = vshll.u32 %v253, 16
      %v691 = vrot.slane %v689, 5
      %v692 = vor.u32 %v688, %v691
      %v693 = vrot.slane %v692, 4
      %v695 = vshll.u32 %v254, 16
      %v697 = vrot.slane %v695, 5
      %v698 = vsel %vm420, %v693, %v697
      %v699 = vshrl.u32 %v254, 16
      %v701 = vrot.slane %v699, 4
      %v702 = vor.u32 %v701, %v697
      %v703 = vrot.slane %v702, 4
      %v705 = vshll.u32 %v255, 16
      %v707 = vrot.slane %v705, 5
      %v708 = vsel %vm420, %v703, %v707
      %v710 = vshrl.u32 %v256, 16
      %v712 = vrot.slane %v710, 4
      %v713 = vshll.u32 %v256, 16
      %v715 = vrot.slane %v713, 5
      %v716 = vor.u32 %v712, %v715
      %v717 = vrot.slane %v716, 4
      %v719 = vshll.u32 %v257, 16
      %v721 = vrot.slane %v719, 5
      %v722 = vsel %vm420, %v717, %v721
      %v723 = vshrl.u32 %v257, 16
      %v725 = vrot.slane %v723, 4
      %v726 = vor.u32 %v725, %v721
      %v727 = vrot.slane %v726, 4
      %v729 = vshll.u32 %v258, 16
      %v731 = vrot.slane %v729, 5
      %v732 = vsel %vm420, %v727, %v731
      %v734 = vshrl.u32 %v259, 16
      %v736 = vrot.slane %v734, 4
      %v737 = vshll.u32 %v259, 16
      %v739 = vrot.slane %v737, 5
      %v740 = vor.u32 %v736, %v739
      %v741 = vrot.slane %v740, 4
      %v743 = vshll.u32 %v260, 16
      %v745 = vrot.slane %v743, 5
      %v746 = vsel %vm420, %v741, %v745
      %v747 = vshrl.u32 %v260, 16
      %v749 = vrot.slane %v747, 4
      %v750 = vor.u32 %v749, %v745
      %v751 = vrot.slane %v750, 4
      %v753 = vshll.u32 %v261, 16
      %v755 = vrot.slane %v753, 5
      %v756 = vsel %vm420, %v751, %v755
      %v758 = vshrl.u32 %v262, 16
      %v760 = vrot.slane %v758, 4
      %v761 = vshll.u32 %v262, 16
      %v763 = vrot.slane %v761, 5
      %v764 = vor.u32 %v760, %v763
      %v765 = vrot.slane %v764, 4
      %v767 = vshll.u32 %v263, 16
      %v769 = vrot.slane %v767, 5
      %v770 = vsel %vm420, %v765, %v769
      %v771 = vshrl.u32 %v263, 16
      %v773 = vrot.slane %v771, 4
      %v774 = vor.u32 %v773, %v769
      %v775 = vrot.slane %v774, 4
      %v777 = vshll.u32 %v264, 16
      %v779 = vrot.slane %v777, 5
      %v780 = vsel %vm420, %v775, %v779
      %v782 = vshrl.u32 %v265, 16
      %v784 = vrot.slane %v782, 4
      %v785 = vshll.u32 %v265, 16
      %v787 = vrot.slane %v785, 5
      %v788 = vor.u32 %v784, %v787
      %v789 = vrot.slane %v788, 4
      %v791 = vshll.u32 %v266, 16
      %v793 = vrot.slane %v791, 5
      %v794 = vsel %vm420, %v789, %v793
      %v795 = vshrl.u32 %v266, 16
      %v797 = vrot.slane %v795, 4
      %v798 = vor.u32 %v797, %v793
      %v799 = vrot.slane %v798, 4
      %v801 = vshll.u32 %v267, 16
      %v803 = vrot.slane %v801, 5
      %v804 = vsel %vm420, %v799, %v803
      %vm853 = vcmask 1042432
      %vm854 = vcmask 1046532
      %vm855 = vmor %vm853, %vm854
      %v856 = vrot.slane %v220, 5
      %v857 = vrot.slane %v856, 4
      %v858 = vrot.slane %v221, 5
      %v859 = vsel %vm855, %v857, %v858
      %v860 = vrot.slane %v858, 4
      %v861 = vrot.slane %v222, 5
      %v862 = vsel %vm855, %v860, %v861
      %v863 = vrot.slane %v223, 5
      %v864 = vrot.slane %v863, 4
      %v865 = vrot.slane %v224, 5
      %v866 = vsel %vm855, %v864, %v865
      %v867 = vrot.slane %v865, 4
      %v868 = vrot.slane %v225, 5
      %v869 = vsel %vm855, %v867, %v868
      %v870 = vrot.slane %v226, 5
      %v871 = vrot.slane %v870, 4
      %v872 = vrot.slane %v227, 5
      %v873 = vsel %vm855, %v871, %v872
      %v874 = vrot.slane %v872, 4
      %v875 = vrot.slane %v228, 5
      %v876 = vsel %vm855, %v874, %v875
      %v877 = vrot.slane %v229, 5
      %v878 = vrot.slane %v877, 4
      %v879 = vrot.slane %v230, 5
      %v880 = vsel %vm855, %v878, %v879
      %v881 = vrot.slane %v879, 4
      %v882 = vrot.slane %v231, 5
      %v883 = vsel %vm855, %v881, %v882
      %v884 = vrot.slane %v232, 5
      %v885 = vrot.slane %v884, 4
      %v886 = vrot.slane %v233, 5
      %v887 = vsel %vm855, %v885, %v886
      %v888 = vrot.slane %v886, 4
      %v889 = vrot.slane %v234, 5
      %v890 = vsel %vm855, %v888, %v889
      %v891 = vrot.slane %v235, 5
      %v892 = vrot.slane %v891, 4
      %v893 = vrot.slane %v236, 5
      %v894 = vsel %vm855, %v892, %v893
      %v895 = vrot.slane %v893, 4
      %v896 = vrot.slane %v237, 5
      %v897 = vsel %vm855, %v895, %v896
      %v898 = vrot.slane %v238, 5
      %v899 = vrot.slane %v898, 4
      %v900 = vrot.slane %v239, 5
      %v901 = vsel %vm855, %v899, %v900
      %v902 = vrot.slane %v900, 4
      %v903 = vrot.slane %v240, 5
      %v904 = vsel %vm855, %v902, %v903
      %v905 = vrot.slane %v241, 5
      %v906 = vrot.slane %v905, 4
      %v907 = vrot.slane %v242, 5
      %v908 = vsel %vm855, %v906, %v907
      %v909 = vrot.slane %v907, 4
      %v910 = vrot.slane %v243, 5
      %v911 = vsel %vm855, %v909, %v910
      %v912 = vrot.slane %v244, 5
      %v913 = vrot.slane %v912, 4
      %v914 = vrot.slane %v245, 5
      %v915 = vsel %vm855, %v913, %v914
      %v916 = vrot.slane %v914, 4
      %v917 = vrot.slane %v246, 5
      %v918 = vsel %vm855, %v916, %v917
      %v919 = vrot.slane %v247, 5
      %v920 = vrot.slane %v919, 4
      %v921 = vrot.slane %v248, 5
      %v922 = vsel %vm855, %v920, %v921
      %v923 = vrot.slane %v921, 4
      %v924 = vrot.slane %v249, 5
      %v925 = vsel %vm855, %v923, %v924
      %v926 = vrot.slane %v250, 5
      %v927 = vrot.slane %v926, 4
      %v928 = vrot.slane %v251, 5
      %v929 = vsel %vm855, %v927, %v928
      %v930 = vrot.slane %v928, 4
      %v931 = vrot.slane %v252, 5
      %v932 = vsel %vm855, %v930, %v931
      %v933 = vrot.slane %v253, 5
      %v934 = vrot.slane %v933, 4
      %v935 = vrot.slane %v254, 5
      %v936 = vsel %vm855, %v934, %v935
      %v937 = vrot.slane %v935, 4
      %v938 = vrot.slane %v255, 5
      %v939 = vsel %vm855, %v937, %v938
      %v940 = vrot.slane %v256, 5
      %v941 = vrot.slane %v940, 4
      %v942 = vrot.slane %v257, 5
      %v943 = vsel %vm855, %v941, %v942
      %v944 = vrot.slane %v942, 4
      %v945 = vrot.slane %v258, 5
      %v946 = vsel %vm855, %v944, %v945
      %v947 = vrot.slane %v259, 5
      %v948 = vrot.slane %v947, 4
      %v949 = vrot.slane %v260, 5
      %v950 = vsel %vm855, %v948, %v949
      %v951 = vrot.slane %v949, 4
      %v952 = vrot.slane %v261, 5
      %v953 = vsel %vm855, %v951, %v952
      %v954 = vrot.slane %v262, 5
      %v955 = vrot.slane %v954, 4
      %v956 = vrot.slane %v263, 5
      %v957 = vsel %vm855, %v955, %v956
      %v958 = vrot.slane %v956, 4
      %v959 = vrot.slane %v264, 5
      %v960 = vsel %vm855, %v958, %v959
      %v961 = vrot.slane %v265, 5
      %v962 = vrot.slane %v961, 4
      %v963 = vrot.slane %v266, 5
      %v964 = vsel %vm855, %v962, %v963
      %v965 = vrot.slane %v963, 4
      %v966 = vrot.slane %v267, 5
      %v967 = vsel %vm855, %v965, %v966
      %v969 = vshrl.u32 %v268, 16
      %v971 = vrot.slane %v969, 4
      %v972 = vshll.u32 %v268, 16
      %v974 = vrot.slane %v972, 5
      %v975 = vor.u32 %v971, %v974
      %v976 = vrot.slane %v975, 4
      %v978 = vshll.u32 %v269, 16
      %v980 = vrot.slane %v978, 5
      %v981 = vsel %vm420, %v976, %v980
      %v982 = vshrl.u32 %v269, 16
      %v984 = vrot.slane %v982, 4
      %v985 = vor.u32 %v984, %v980
      %v986 = vrot.slane %v985, 4
      %v988 = vshll.u32 %v270, 16
      %v990 = vrot.slane %v988, 5
      %v991 = vsel %vm420, %v986, %v990
      %v995 = vrot.slane %v268, 5
      %v996 = vrot.slane %v995, 4
      %v997 = vrot.slane %v269, 5
      %v998 = vsel %vm855, %v996, %v997
      %v999 = vrot.slane %v997, 4
      %v1000 = vrot.slane %v270, 5
      %v1001 = vsel %vm855, %v999, %v1000
      %v1003 = vshrl.u32 %v271, 16
      %v1005 = vrot.slane %v1003, 4
      %v1006 = vshll.u32 %v271, 16
      %v1008 = vrot.slane %v1006, 5
      %v1009 = vor.u32 %v1005, %v1008
      %v1010 = vrot.slane %v1009, 4
      %v1012 = vshll.u32 %v272, 16
      %v1014 = vrot.slane %v1012, 5
      %v1015 = vsel %vm420, %v1010, %v1014
      %v1016 = vshrl.u32 %v272, 16
      %v1018 = vrot.slane %v1016, 4
      %v1019 = vor.u32 %v1018, %v1014
      %v1020 = vrot.slane %v1019, 4
      %v1022 = vshll.u32 %v273, 16
      %v1024 = vrot.slane %v1022, 5
      %v1025 = vsel %vm420, %v1020, %v1024
      %v1029 = vrot.slane %v271, 5
      %v1030 = vrot.slane %v1029, 4
      %v1031 = vrot.slane %v272, 5
      %v1032 = vsel %vm855, %v1030, %v1031
      %v1033 = vrot.slane %v1031, 4
      %v1034 = vrot.slane %v273, 5
      %v1035 = vsel %vm855, %v1033, %v1034
      %v1036 = vunpack.c.l.b16 %v220
      %v1037 = vunpack.c.l.b16 %v221
      %v1038 = vunpack.c.l.b16 %v223
      %v1039 = vunpack.c.l.b16 %v224
      %v1040 = vunpack.c.l.b16 %v226
      %v1041 = vunpack.c.l.b16 %v227
      %v1042 = vunpack.c.l.b16 %v229
      %v1043 = vunpack.c.l.b16 %v230
      %v1044 = vunpack.c.l.b16 %v232
      %v1045 = vunpack.c.l.b16 %v233
      %v1046 = vunpack.c.l.b16 %v235
      %v1047 = vunpack.c.l.b16 %v236
      %v1048 = vunpack.c.l.b16 %v238
      %v1049 = vunpack.c.l.b16 %v239
      %v1050 = vunpack.c.l.b16 %v241
      %v1051 = vunpack.c.l.b16 %v242
      %v1052 = vunpack.c.l.b16 %v244
      %v1053 = vunpack.c.l.b16 %v245
      %v1054 = vunpack.c.l.b16 %v247
      %v1055 = vunpack.c.l.b16 %v248
      %v1056 = vunpack.c.l.b16 %v250
      %v1057 = vunpack.c.l.b16 %v251
      %v1058 = vunpack.c.l.b16 %v253
      %v1059 = vunpack.c.l.b16 %v254
      %v1060 = vunpack.c.l.b16 %v256
      %v1061 = vunpack.c.l.b16 %v257
      %v1062 = vunpack.c.l.b16 %v259
      %v1063 = vunpack.c.l.b16 %v260
      %v1064 = vunpack.c.l.b16 %v262
      %v1065 = vunpack.c.l.b16 %v263
      %v1066 = vunpack.c.l.b16 %v265
      %v1067 = vunpack.c.l.b16 %v266
      %v1068 = vpack.c.b16 %v1037, %v1036
      %v1069 = vpack.c.b16 %v1039, %v1038
      %v1070 = vpack.c.b16 %v1041, %v1040
      %v1071 = vpack.c.b16 %v1043, %v1042
      %v1072 = vpack.c.b16 %v1045, %v1044
      %v1073 = vpack.c.b16 %v1047, %v1046
      %v1074 = vpack.c.b16 %v1049, %v1048
      %v1075 = vpack.c.b16 %v1051, %v1050
      %v1076 = vpack.c.b16 %v1053, %v1052
      %v1077 = vpack.c.b16 %v1055, %v1054
      %v1078 = vpack.c.b16 %v1057, %v1056
      %v1079 = vpack.c.b16 %v1059, %v1058
      %v1080 = vpack.c.b16 %v1061, %v1060
      %v1081 = vpack.c.b16 %v1063, %v1062
      %v1082 = vpack.c.b16 %v1065, %v1064
      %v1083 = vpack.c.b16 %v1067, %v1066
      %v1100 = vunpack.c.l.b16 %v434
      %v1101 = vunpack.c.l.b16 %v444
      %v1102 = vunpack.c.l.b16 %v458
      %v1103 = vunpack.c.l.b16 %v468
      %v1104 = vunpack.c.l.b16 %v482
      %v1105 = vunpack.c.l.b16 %v492
      %v1106 = vunpack.c.l.b16 %v506
      %v1107 = vunpack.c.l.b16 %v516
      %v1108 = vunpack.c.l.b16 %v530
      %v1109 = vunpack.c.l.b16 %v540
      %v1110 = vunpack.c.l.b16 %v554
      %v1111 = vunpack.c.l.b16 %v564
      %v1112 = vunpack.c.l.b16 %v578
      %v1113 = vunpack.c.l.b16 %v588
      %v1114 = vunpack.c.l.b16 %v602
      %v1115 = vunpack.c.l.b16 %v612
      %v1116 = vunpack.c.l.b16 %v626
      %v1117 = vunpack.c.l.b16 %v636
      %v1118 = vunpack.c.l.b16 %v650
      %v1119 = vunpack.c.l.b16 %v660
      %v1120 = vunpack.c.l.b16 %v674
      %v1121 = vunpack.c.l.b16 %v684
      %v1122 = vunpack.c.l.b16 %v698
      %v1123 = vunpack.c.l.b16 %v708
      %v1124 = vunpack.c.l.b16 %v722
      %v1125 = vunpack.c.l.b16 %v732
      %v1126 = vunpack.c.l.b16 %v746
      %v1127 = vunpack.c.l.b16 %v756
      %v1128 = vunpack.c.l.b16 %v770
      %v1129 = vunpack.c.l.b16 %v780
      %v1130 = vunpack.c.l.b16 %v794
      %v1131 = vunpack.c.l.b16 %v804
      %v1132 = vpack.c.b16 %v1101, %v1100
      %v1133 = vpack.c.b16 %v1103, %v1102
      %v1134 = vpack.c.b16 %v1105, %v1104
      %v1135 = vpack.c.b16 %v1107, %v1106
      %v1136 = vpack.c.b16 %v1109, %v1108
      %v1137 = vpack.c.b16 %v1111, %v1110
      %v1138 = vpack.c.b16 %v1113, %v1112
      %v1139 = vpack.c.b16 %v1115, %v1114
      %v1140 = vpack.c.b16 %v1117, %v1116
      %v1141 = vpack.c.b16 %v1119, %v1118
      %v1142 = vpack.c.b16 %v1121, %v1120
      %v1143 = vpack.c.b16 %v1123, %v1122
      %v1144 = vpack.c.b16 %v1125, %v1124
      %v1145 = vpack.c.b16 %v1127, %v1126
      %v1146 = vpack.c.b16 %v1129, %v1128
      %v1147 = vpack.c.b16 %v1131, %v1130
      %v1164 = vunpack.c.l.b16 %v859
      %v1165 = vunpack.c.l.b16 %v862
      %v1166 = vunpack.c.l.b16 %v866
      %v1167 = vunpack.c.l.b16 %v869
      %v1168 = vunpack.c.l.b16 %v873
      %v1169 = vunpack.c.l.b16 %v876
      %v1170 = vunpack.c.l.b16 %v880
      %v1171 = vunpack.c.l.b16 %v883
      %v1172 = vunpack.c.l.b16 %v887
      %v1173 = vunpack.c.l.b16 %v890
      %v1174 = vunpack.c.l.b16 %v894
      %v1175 = vunpack.c.l.b16 %v897
      %v1176 = vunpack.c.l.b16 %v901
      %v1177 = vunpack.c.l.b16 %v904
      %v1178 = vunpack.c.l.b16 %v908
      %v1179 = vunpack.c.l.b16 %v911
      %v1180 = vunpack.c.l.b16 %v915
      %v1181 = vunpack.c.l.b16 %v918
      %v1182 = vunpack.c.l.b16 %v922
      %v1183 = vunpack.c.l.b16 %v925
      %v1184 = vunpack.c.l.b16 %v929
      %v1185 = vunpack.c.l.b16 %v932
      %v1186 = vunpack.c.l.b16 %v936
      %v1187 = vunpack.c.l.b16 %v939
      %v1188 = vunpack.c.l.b16 %v943
      %v1189 = vunpack.c.l.b16 %v946
      %v1190 = vunpack.c.l.b16 %v950
      %v1191 = vunpack.c.l.b16 %v953
      %v1192 = vunpack.c.l.b16 %v957
      %v1193 = vunpack.c.l.b16 %v960
      %v1194 = vunpack.c.l.b16 %v964
      %v1195 = vunpack.c.l.b16 %v967
      %v1196 = vpack.c.b16 %v1165, %v1164
      %v1197 = vpack.c.b16 %v1167, %v1166
      %v1198 = vpack.c.b16 %v1169, %v1168
      %v1199 = vpack.c.b16 %v1171, %v1170
      %v1200 = vpack.c.b16 %v1173, %v1172
      %v1201 = vpack.c.b16 %v1175, %v1174
      %v1202 = vpack.c.b16 %v1177, %v1176
      %v1203 = vpack.c.b16 %v1179, %v1178
      %v1204 = vpack.c.b16 %v1181, %v1180
      %v1205 = vpack.c.b16 %v1183, %v1182
      %v1206 = vpack.c.b16 %v1185, %v1184
      %v1207 = vpack.c.b16 %v1187, %v1186
      %v1208 = vpack.c.b16 %v1189, %v1188
      %v1209 = vpack.c.b16 %v1191, %v1190
      %v1210 = vpack.c.b16 %v1193, %v1192
      %v1211 = vpack.c.b16 %v1195, %v1194
      %v1228 = vunpack.c.l.b16 %v268
      %v1229 = vunpack.c.l.b16 %v269
      %v1230 = vpack.c.b16 %v1229, %v1228
      %v1232 = vunpack.c.l.b16 %v981
      %v1233 = vunpack.c.l.b16 %v991
      %v1234 = vpack.c.b16 %v1233, %v1232
      %v1236 = vunpack.c.l.b16 %v998
      %v1237 = vunpack.c.l.b16 %v1001
      %v1238 = vpack.c.b16 %v1237, %v1236
      %v1240 = vunpack.c.l.b16 %v271
      %v1241 = vunpack.c.l.b16 %v272
      %v1242 = vpack.c.b16 %v1241, %v1240
      %v1244 = vunpack.c.l.b16 %v1015
      %v1245 = vunpack.c.l.b16 %v1025
      %v1246 = vpack.c.b16 %v1245, %v1244
      %v1248 = vunpack.c.l.b16 %v1032
      %v1249 = vunpack.c.l.b16 %v1035
      %v1250 = vpack.c.b16 %v1249, %v1248
      %v1396 = vunpack.c.l.b16 %v274
      %v1397 = vunpack.c.l.b16 %v275
      %v1398 = vunpack.c.l.b16 %v276
      %v1399 = vunpack.c.l.b16 %v277
      %v1400 = vunpack.c.l.b16 %v278
      %v1401 = vunpack.c.l.b16 %v279
      %v1402 = vunpack.c.l.b16 %v280
      %v1403 = vunpack.c.l.b16 %v281
      %v1404 = vunpack.c.l.b16 %v282
      %v1405 = vunpack.c.l.b16 %v283
      %v1406 = vunpack.c.l.b16 %v284
      %v1407 = vunpack.c.l.b16 %v285
      %v1408 = vunpack.c.l.b16 %v286
      %v1409 = vunpack.c.l.b16 %v287
      %v1410 = vunpack.c.l.b16 %v288
      %v1411 = vunpack.c.l.b16 %v289
      %v1412 = vunpack.c.l.b16 %v290
      %v1413 = vunpack.c.l.b16 %v291
      %v1414 = vunpack.c.l.b16 %v292
      %v1415 = vunpack.c.l.b16 %v293
      %v1416 = vunpack.c.l.b16 %v294
      %v1417 = vunpack.c.l.b16 %v295
      %v1418 = vunpack.c.l.b16 %v296
      %v1419 = vunpack.c.l.b16 %v297
      %v1420 = vunpack.c.l.b16 %v298
      %v1421 = vunpack.c.l.b16 %v299
      %v1422 = vunpack.c.l.b16 %v300
      %v1423 = vunpack.c.l.b16 %v301
      %v1424 = vunpack.c.l.b16 %v302
      %v1425 = vunpack.c.l.b16 %v303
      %v1426 = vunpack.c.l.b16 %v304
      %v1427 = vunpack.c.l.b16 %v305
      %v1428 = vunpack.c.l.b16 %v306
      %v1429 = vunpack.c.l.b16 %v307
      %v1430 = vunpack.c.l.b16 %v308
      %v1431 = vunpack.c.l.b16 %v309
      %v1432 = vunpack.c.l.b16 %v310
      %v1433 = vunpack.c.l.b16 %v311
      %v1434 = vunpack.c.l.b16 %v312
      %v1435 = vunpack.c.l.b16 %v313
      %v1436 = vunpack.c.l.b16 %v314
      %v1437 = vunpack.c.l.b16 %v315
      %v1438 = vunpack.c.l.b16 %v316
      %v1439 = vunpack.c.l.b16 %v317
      %v1440 = vunpack.c.l.b16 %v318
      %v1441 = vunpack.c.l.b16 %v319
      %v1442 = vunpack.c.l.b16 %v320
      %v1443 = vunpack.c.l.b16 %v321
      %v1444 = vunpack.c.l.b16 %v322
      %v1445 = vunpack.c.l.b16 %v323
      %v1446 = vunpack.c.l.b16 %v324
      %v1447 = vunpack.c.l.b16 %v325
      %v1448 = vunpack.c.l.b16 %v326
      %v1449 = vunpack.c.l.b16 %v327
      %v1450 = vunpack.c.l.b16 %v328
      %v1451 = vunpack.c.l.b16 %v329
      %v1452 = vunpack.c.l.b16 %v330
      %v1453 = vunpack.c.l.b16 %v331
      %v1454 = vunpack.c.l.b16 %v332
      %v1455 = vunpack.c.l.b16 %v333
      %v1456 = vunpack.c.l.b16 %v334
      %v1457 = vunpack.c.l.b16 %v335
      %v1458 = vunpack.c.l.b16 %v336
      %v1459 = vunpack.c.l.b16 %v337
      %v1460 = vunpack.c.l.b16 %v338
      %v1461 = vunpack.c.l.b16 %v339
      %v1462 = vunpack.c.l.b16 %v340
      %v1463 = vunpack.c.l.b16 %v341
      %v1464 = vunpack.c.l.b16 %v342
      %v1465 = vunpack.c.l.b16 %v343
      %v1466 = vunpack.c.l.b16 %v344
      %v1467 = vunpack.c.l.b16 %v345
      %v1468 = vunpack.c.l.b16 %v346
      %v1469 = vunpack.c.l.b16 %v347
      %v1470 = vunpack.c.l.b16 %v348
      %v1471 = vunpack.c.l.b16 %v349
      %v1472 = vunpack.c.l.b16 %v350
      %v1473 = vunpack.c.l.b16 %v351
      %v1474 = vunpack.c.l.b16 %v352
      %v1475 = vunpack.c.l.b16 %v353
      %v1476 = vunpack.c.l.b16 %v354
      %v1477 = vunpack.c.l.b16 %v355
      %v1478 = vunpack.c.l.b16 %v356
      %v1479 = vunpack.c.l.b16 %v357
      %v1480 = vunpack.c.l.b16 %v358
      %v1481 = vunpack.c.l.b16 %v359
      %v1482 = vunpack.c.l.b16 %v360
      %v1483 = vunpack.c.l.b16 %v361
      %v1484 = vunpack.c.l.b16 %v362
      %v1485 = vunpack.c.l.b16 %v363
      %v1486 = vunpack.c.l.b16 %v364
      %v1487 = vunpack.c.l.b16 %v365
      %v1488 = vunpack.c.l.b16 %v366
      %v1489 = vunpack.c.l.b16 %v367
      %v1490 = vunpack.c.l.b16 %v368
      %v1491 = vunpack.c.l.b16 %v369
      %v1492 = vunpack.c.l.b16 %v370
      %v1493 = vunpack.c.l.b16 %v371
      %v1494 = vunpack.c.l.b16 %v372
      %v1495 = vunpack.c.l.b16 %v373
      %v1496 = vunpack.c.l.b16 %v374
      %v1497 = vunpack.c.l.b16 %v375
      %v1498 = vunpack.c.l.b16 %v376
      %v1499 = vunpack.c.l.b16 %v377
      %v1500 = vunpack.c.l.b16 %v378
      %v1501 = vunpack.c.l.b16 %v379
      %v1502 = vunpack.c.l.b16 %v380
      %v1503 = vunpack.c.l.b16 %v381
      %v1504 = vunpack.c.l.b16 %v382
      %v1505 = vunpack.c.l.b16 %v383
      %v1506 = vunpack.c.l.b16 %v384
      %v1507 = vunpack.c.l.b16 %v385
      %v1508 = vunpack.c.l.b16 %v386
      %v1509 = vunpack.c.l.b16 %v387
      %v1510 = vunpack.c.l.b16 %v388
      %v1511 = vunpack.c.l.b16 %v389
      %v1512 = vunpack.c.l.b16 %v390
      %v1513 = vunpack.c.l.b16 %v391
      %v1514 = vunpack.c.l.b16 %v392
      %v1515 = vunpack.c.l.b16 %v393
      %v1516 = vunpack.c.l.b16 %v394
      %v1517 = vunpack.c.l.b16 %v395
      %v1518 = vunpack.c.l.b16 %v396
      %v1519 = vunpack.c.l.b16 %v397
      %v1520 = vunpack.c.l.b16 %v398
      %v1521 = vunpack.c.l.b16 %v399
      %v1522 = vunpack.c.l.b16 %v400
      %v1523 = vunpack.c.l.b16 %v401
      %v1524 = vunpack.c.l.b16 %v402
      %v1525 = vunpack.c.l.b16 %v403
      %v1526 = vunpack.c.l.b16 %v404
      %v1527 = vunpack.c.l.b16 %v405
      %v1528 = vunpack.c.l.b16 %v406
      %v1529 = vunpack.c.l.b16 %v407
      %v1530 = vunpack.c.l.b16 %v408
      %v1531 = vunpack.c.l.b16 %v409
      %v1532 = vunpack.c.l.b16 %v410
      %v1533 = vunpack.c.l.b16 %v411
      %v1534 = vunpack.c.l.b16 %v412
      %v1535 = vunpack.c.l.b16 %v413
      %v1536 = vunpack.c.l.b16 %v414
      %v1537 = vunpack.c.l.b16 %v415
      %v1538 = vunpack.c.l.b16 %v416
      %v1539 = vunpack.c.l.b16 %v417
      %v1540 = vpack.c.b16 %v1397, %v1396
      %v1541 = vpack.c.b16 %v1399, %v1398
      %v1542 = vpack.c.b16 %v1401, %v1400
      %v1543 = vpack.c.b16 %v1403, %v1402
      %v1544 = vpack.c.b16 %v1405, %v1404
      %v1545 = vpack.c.b16 %v1407, %v1406
      %v1546 = vpack.c.b16 %v1409, %v1408
      %v1547 = vpack.c.b16 %v1411, %v1410
      %v1548 = vpack.c.b16 %v1413, %v1412
      %v1549 = vpack.c.b16 %v1415, %v1414
      %v1550 = vpack.c.b16 %v1417, %v1416
      %v1551 = vpack.c.b16 %v1419, %v1418
      %v1552 = vpack.c.b16 %v1421, %v1420
      %v1553 = vpack.c.b16 %v1423, %v1422
      %v1554 = vpack.c.b16 %v1425, %v1424
      %v1555 = vpack.c.b16 %v1427, %v1426
      %v1556 = vpack.c.b16 %v1429, %v1428
      %v1557 = vpack.c.b16 %v1431, %v1430
      %v1558 = vpack.c.b16 %v1433, %v1432
      %v1559 = vpack.c.b16 %v1435, %v1434
      %v1560 = vpack.c.b16 %v1437, %v1436
      %v1561 = vpack.c.b16 %v1439, %v1438
      %v1562 = vpack.c.b16 %v1441, %v1440
      %v1563 = vpack.c.b16 %v1443, %v1442
      %v1564 = vpack.c.b16 %v1445, %v1444
      %v1565 = vpack.c.b16 %v1447, %v1446
      %v1566 = vpack.c.b16 %v1449, %v1448
      %v1567 = vpack.c.b16 %v1451, %v1450
      %v1568 = vpack.c.b16 %v1453, %v1452
      %v1569 = vpack.c.b16 %v1455, %v1454
      %v1570 = vpack.c.b16 %v1457, %v1456
      %v1571 = vpack.c.b16 %v1459, %v1458
      %v1572 = vpack.c.b16 %v1461, %v1460
      %v1573 = vpack.c.b16 %v1463, %v1462
      %v1574 = vpack.c.b16 %v1465, %v1464
      %v1575 = vpack.c.b16 %v1467, %v1466
      %v1576 = vpack.c.b16 %v1469, %v1468
      %v1577 = vpack.c.b16 %v1471, %v1470
      %v1578 = vpack.c.b16 %v1473, %v1472
      %v1579 = vpack.c.b16 %v1475, %v1474
      %v1580 = vpack.c.b16 %v1477, %v1476
      %v1581 = vpack.c.b16 %v1479, %v1478
      %v1582 = vpack.c.b16 %v1481, %v1480
      %v1583 = vpack.c.b16 %v1483, %v1482
      %v1584 = vpack.c.b16 %v1485, %v1484
      %v1585 = vpack.c.b16 %v1487, %v1486
      %v1586 = vpack.c.b16 %v1489, %v1488
      %v1587 = vpack.c.b16 %v1491, %v1490
      %v1588 = vpack.c.b16 %v1493, %v1492
      %v1589 = vpack.c.b16 %v1495, %v1494
      %v1590 = vpack.c.b16 %v1497, %v1496
      %v1591 = vpack.c.b16 %v1499, %v1498
      %v1592 = vpack.c.b16 %v1501, %v1500
      %v1593 = vpack.c.b16 %v1503, %v1502
      %v1594 = vpack.c.b16 %v1505, %v1504
      %v1595 = vpack.c.b16 %v1507, %v1506
      %v1596 = vpack.c.b16 %v1509, %v1508
      %v1597 = vpack.c.b16 %v1511, %v1510
      %v1598 = vpack.c.b16 %v1513, %v1512
      %v1599 = vpack.c.b16 %v1515, %v1514
      %v1600 = vpack.c.b16 %v1517, %v1516
      %v1601 = vpack.c.b16 %v1519, %v1518
      %v1602 = vpack.c.b16 %v1521, %v1520
      %v1603 = vpack.c.b16 %v1523, %v1522
      %v1604 = vpack.c.b16 %v1525, %v1524
      %v1605 = vpack.c.b16 %v1527, %v1526
      %v1606 = vpack.c.b16 %v1529, %v1528
      %v1607 = vpack.c.b16 %v1531, %v1530
      %v1608 = vpack.c.b16 %v1533, %v1532
      %v1609 = vpack.c.b16 %v1535, %v1534
      %v1610 = vpack.c.b16 %v1537, %v1536
      %v1611 = vpack.c.b16 %v1539, %v1538
      %1684 = vmatprep.subr.bf16.mxu0 0
      %1685 = vmatpush1.bf16.msra.mxu0 %v1540
      %1686 = vmatprep.subr.bf16.mxu0 0
      %1687 = vmatpush1.bf16.msra.mxu0 %v1541
      %1688 = vmatprep.subr.bf16.mxu0 0
      %1689 = vmatpush1.bf16.msra.mxu0 %v1542
      %1690 = vmatprep.subr.bf16.mxu0 0
      %1691 = vmatpush1.bf16.msra.mxu0 %v1543
      %1692 = vmatprep.subr.bf16.mxu0 0
      %1693 = vmatpush1.bf16.msra.mxu0 %v1544
      %1694 = vmatprep.subr.bf16.mxu0 0
      %1695 = vmatpush1.bf16.msra.mxu0 %v1545
      %1696 = vmatprep.subr.bf16.mxu0 0
      %1697 = vmatpush1.bf16.msra.mxu0 %v1546
      %1698 = vmatprep.subr.bf16.mxu0 0
      %1699 = vmatpush1.bf16.msra.mxu0 %v1547
      %1700 = vmatprep.subr.bf16.mxu0 0
      %1701 = vmatpush1.bf16.msra.mxu0 %v1548
      %1702 = vmatprep.subr.bf16.mxu0 0
      %1703 = vmatpush1.bf16.msra.mxu0 %v1549
      %1704 = vmatprep.subr.bf16.mxu0 0
      %1705 = vmatpush1.bf16.msra.mxu0 %v1550
      %1706 = vmatprep.subr.bf16.mxu0 0
      %1707 = vmatpush1.bf16.msra.mxu0 %v1551
      %1708 = vmatprep.subr.bf16.mxu0 0
      %1709 = vmatpush1.bf16.msra.mxu0 %v1552
      %1710 = vmatprep.subr.bf16.mxu0 0
      %1711 = vmatpush1.bf16.msra.mxu0 %v1553
      %1712 = vmatprep.subr.bf16.mxu0 0
      %1713 = vmatpush1.bf16.msra.mxu0 %v1554
      %1714 = vmatprep.subr.bf16.mxu0 0
      %1715 = vmatpush1.bf16.msra.mxu0 %v1555
      %1716 = vmatprep.mubr.bf16.mxu0 %v1132
      %1717 = vmatmul.mubr.bf16.gmra.mrb[0].mxu0 %v1068
      %v1718 = vpop.f32.mrb[0].mxu0
      %v1719 = vadd.f32 0.0, %v1718
      %v1720 = vpop.f32.mrb[0].mxu0
      %v1721 = vpop.f32.mrb[0].mxu0
      %v1722 = vadd.f32 0.0, %v1721
      %v1723 = vpop.f32.mrb[0].mxu0
      %1724 = vmatprep.mubr.bf16.mxu0 %v1133
      %1725 = vmatmul.mubr.bf16.gmra.mrb[0].mxu0 %v1069
      %v1726 = vpop.f32.mrb[0].mxu0
      %v1727 = vadd.f32 0.0, %v1726
      %v1728 = vpop.f32.mrb[0].mxu0
      %v1729 = vpop.f32.mrb[0].mxu0
      %v1730 = vadd.f32 0.0, %v1729
      %v1731 = vpop.f32.mrb[0].mxu0
      %1732 = vmatprep.mubr.bf16.mxu0 %v1134
      %1733 = vmatmul.mubr.bf16.gmra.mrb[0].mxu0 %v1070
      %v1734 = vpop.f32.mrb[0].mxu0
      %v1735 = vadd.f32 0.0, %v1734
      %v1736 = vpop.f32.mrb[0].mxu0
      %v1737 = vpop.f32.mrb[0].mxu0
      %v1738 = vadd.f32 0.0, %v1737
      %v1739 = vpop.f32.mrb[0].mxu0
      %1740 = vmatprep.mubr.bf16.mxu0 %v1135
      %1741 = vmatmul.mubr.bf16.gmra.mrb[0].mxu0 %v1071
      %v1742 = vpop.f32.mrb[0].mxu0
      %v1743 = vadd.f32 0.0, %v1742
      %v1744 = vpop.f32.mrb[0].mxu0
      %v1745 = vpop.f32.mrb[0].mxu0
      %v1746 = vadd.f32 0.0, %v1745
      %v1747 = vpop.f32.mrb[0].mxu0
      %1748 = vmatprep.mubr.bf16.mxu0 %v1136
      %1749 = vmatmul.mubr.bf16.gmra.mrb[0].mxu0 %v1072
      %v1750 = vpop.f32.mrb[0].mxu0
      %v1751 = vadd.f32 0.0, %v1750
      %v1752 = vpop.f32.mrb[0].mxu0
      %v1753 = vpop.f32.mrb[0].mxu0
      %v1754 = vadd.f32 0.0, %v1753
      %v1755 = vpop.f32.mrb[0].mxu0
      %1756 = vmatprep.mubr.bf16.mxu0 %v1137
      %1757 = vmatmul.mubr.bf16.gmra.mrb[0].mxu0 %v1073
      %v1758 = vpop.f32.mrb[0].mxu0
      %v1759 = vadd.f32 0.0, %v1758
      %v1760 = vpop.f32.mrb[0].mxu0
      %v1761 = vpop.f32.mrb[0].mxu0
      %v1762 = vadd.f32 0.0, %v1761
      %v1763 = vpop.f32.mrb[0].mxu0
      %1764 = vmatprep.mubr.bf16.mxu0 %v1138
      %1765 = vmatmul.mubr.bf16.gmra.mrb[0].mxu0 %v1074
      %v1766 = vpop.f32.mrb[0].mxu0
      %v1767 = vadd.f32 0.0, %v1766
      %v1768 = vpop.f32.mrb[0].mxu0
      %v1769 = vpop.f32.mrb[0].mxu0
      %v1770 = vadd.f32 0.0, %v1769
      %v1771 = vpop.f32.mrb[0].mxu0
      %1772 = vmatprep.mubr.bf16.mxu0 %v1139
      %1773 = vmatmul.mubr.bf16.gmra.mrb[0].mxu0 %v1075
      %v1774 = vpop.f32.mrb[0].mxu0
      %v1775 = vadd.f32 0.0, %v1774
      %v1776 = vpop.f32.mrb[0].mxu0
      %v1777 = vpop.f32.mrb[0].mxu0
      %v1778 = vadd.f32 0.0, %v1777
      %v1779 = vpop.f32.mrb[0].mxu0
      %1780 = vmatprep.mubr.bf16.mxu0 %v1140
      %1781 = vmatmul.mubr.bf16.gmra.mrb[0].mxu0 %v1076
      %v1782 = vpop.f32.mrb[0].mxu0
      %v1783 = vadd.f32 0.0, %v1782
      %v1784 = vpop.f32.mrb[0].mxu0
      %v1785 = vpop.f32.mrb[0].mxu0
      %v1786 = vadd.f32 0.0, %v1785
      %v1787 = vpop.f32.mrb[0].mxu0
      %1788 = vmatprep.mubr.bf16.mxu0 %v1141
      %1789 = vmatmul.mubr.bf16.gmra.mrb[0].mxu0 %v1077
      %v1790 = vpop.f32.mrb[0].mxu0
      %v1791 = vadd.f32 0.0, %v1790
      %v1792 = vpop.f32.mrb[0].mxu0
      %v1793 = vpop.f32.mrb[0].mxu0
      %v1794 = vadd.f32 0.0, %v1793
      %v1795 = vpop.f32.mrb[0].mxu0
      %1796 = vmatprep.mubr.bf16.mxu0 %v1142
      %1797 = vmatmul.mubr.bf16.gmra.mrb[0].mxu0 %v1078
      %v1798 = vpop.f32.mrb[0].mxu0
      %v1799 = vadd.f32 0.0, %v1798
      %v1800 = vpop.f32.mrb[0].mxu0
      %v1801 = vpop.f32.mrb[0].mxu0
      %v1802 = vadd.f32 0.0, %v1801
      %v1803 = vpop.f32.mrb[0].mxu0
      %1804 = vmatprep.mubr.bf16.mxu0 %v1143
      %1805 = vmatmul.mubr.bf16.gmra.mrb[0].mxu0 %v1079
      %v1806 = vpop.f32.mrb[0].mxu0
      %v1807 = vadd.f32 0.0, %v1806
      %v1808 = vpop.f32.mrb[0].mxu0
      %v1809 = vpop.f32.mrb[0].mxu0
      %v1810 = vadd.f32 0.0, %v1809
      %v1811 = vpop.f32.mrb[0].mxu0
      %1812 = vmatprep.mubr.bf16.mxu0 %v1144
      %1813 = vmatmul.mubr.bf16.gmra.mrb[0].mxu0 %v1080
      %v1814 = vpop.f32.mrb[0].mxu0
      %v1815 = vadd.f32 0.0, %v1814
      %v1816 = vpop.f32.mrb[0].mxu0
      %v1817 = vpop.f32.mrb[0].mxu0
      %v1818 = vadd.f32 0.0, %v1817
      %v1819 = vpop.f32.mrb[0].mxu0
      %1820 = vmatprep.mubr.bf16.mxu0 %v1145
      %1821 = vmatmul.mubr.bf16.gmra.mrb[0].mxu0 %v1081
      %v1822 = vpop.f32.mrb[0].mxu0
      %v1823 = vadd.f32 0.0, %v1822
      %v1824 = vpop.f32.mrb[0].mxu0
      %v1825 = vpop.f32.mrb[0].mxu0
      %v1826 = vadd.f32 0.0, %v1825
      %v1827 = vpop.f32.mrb[0].mxu0
      %1828 = vmatprep.mubr.bf16.mxu0 %v1146
      %1829 = vmatmul.mubr.bf16.gmra.mrb[0].mxu0 %v1082
      %v1830 = vpop.f32.mrb[0].mxu0
      %v1831 = vadd.f32 0.0, %v1830
      %v1832 = vpop.f32.mrb[0].mxu0
      %v1833 = vpop.f32.mrb[0].mxu0
      %v1834 = vadd.f32 0.0, %v1833
      %v1835 = vpop.f32.mrb[0].mxu0
      %1836 = vmatprep.mubr.bf16.mxu0 %v1147
      %1837 = vmatmul.mubr.bf16.gmra.mrb[0].mxu0 %v1083
      %v1838 = vpop.f32.mrb[0].mxu0
      %v1839 = vadd.f32 0.0, %v1838
      %v1840 = vpop.f32.mrb[0].mxu0
      %v1841 = vpop.f32.mrb[0].mxu0
      %v1842 = vadd.f32 0.0, %v1841
      %v1843 = vpop.f32.mrb[0].mxu0
      %1844 = vdwg.mxu0
      %1845 = vmatprep.subr.bf16.mxu0 0
      %1846 = vmatpush1.bf16.msra.mxu0 %v1556
      %1847 = vmatprep.subr.bf16.mxu0 0
      %1848 = vmatpush1.bf16.msra.mxu0 %v1557
      %1849 = vmatprep.subr.bf16.mxu0 0
      %1850 = vmatpush1.bf16.msra.mxu0 %v1558
      %1851 = vmatprep.subr.bf16.mxu0 0
      %1852 = vmatpush1.bf16.msra.mxu0 %v1559
      %1853 = vmatprep.subr.bf16.mxu0 0
      %1854 = vmatpush1.bf16.msra.mxu0 %v1560
      %1855 = vmatprep.subr.bf16.mxu0 0
      %1856 = vmatpush1.bf16.msra.mxu0 %v1561
      %1857 = vmatprep.subr.bf16.mxu0 0
      %1858 = vmatpush1.bf16.msra.mxu0 %v1562
      %1859 = vmatprep.subr.bf16.mxu0 0
      %1860 = vmatpush1.bf16.msra.mxu0 %v1563
      %1861 = vmatprep.subr.bf16.mxu0 0
      %1862 = vmatpush1.bf16.msra.mxu0 %v1564
      %1863 = vmatprep.subr.bf16.mxu0 0
      %1864 = vmatpush1.bf16.msra.mxu0 %v1565
      %1865 = vmatprep.subr.bf16.mxu0 0
      %1866 = vmatpush1.bf16.msra.mxu0 %v1566
      %1867 = vmatprep.subr.bf16.mxu0 0
      %1868 = vmatpush1.bf16.msra.mxu0 %v1567
      %1869 = vmatprep.subr.bf16.mxu0 0
      %1870 = vmatpush1.bf16.msra.mxu0 %v1568
      %1871 = vmatprep.subr.bf16.mxu0 0
      %1872 = vmatpush1.bf16.msra.mxu0 %v1569
      %1873 = vmatprep.subr.bf16.mxu0 0
      %1874 = vmatpush1.bf16.msra.mxu0 %v1570
      %1875 = vmatprep.subr.bf16.mxu0 0
      %1876 = vmatpush1.bf16.msra.mxu0 %v1571
      %1877 = vmatprep.mubr.bf16.mxu0 %v1069
      %1878 = vmatmul.mubr.bf16.gmra.mrb[0].mxu0 %v1196
      %v1879 = vpop.f32.mrb[0].mxu0
      %v1880 = vadd.f32 %v1719, %v1879
      %v1881 = vpop.f32.mrb[0].mxu0
      %v1882 = vpop.f32.mrb[0].mxu0
      %v1883 = vadd.f32 %v1722, %v1882
      %v1884 = vpop.f32.mrb[0].mxu0
      %1885 = vmatprep.mubr.bf16.mxu0 %v1070
      %1886 = vmatmul.mubr.bf16.gmra.mrb[0].mxu0 %v1197
      %v1887 = vpop.f32.mrb[0].mxu0
      %v1888 = vadd.f32 %v1727, %v1887
      %v1889 = vpop.f32.mrb[0].mxu0
      %v1890 = vpop.f32.mrb[0].mxu0
      %v1891 = vadd.f32 %v1730, %v1890
      %v1892 = vpop.f32.mrb[0].mxu0
      %1893 = vmatprep.mubr.bf16.mxu0 %v1071
      %1894 = vmatmul.mubr.bf16.gmra.mrb[0].mxu0 %v1198
      %v1895 = vpop.f32.mrb[0].mxu0
      %v1896 = vadd.f32 %v1735, %v1895
      %v1897 = vpop.f32.mrb[0].mxu0
      %v1898 = vpop.f32.mrb[0].mxu0
      %v1899 = vadd.f32 %v1738, %v1898
      %v1900 = vpop.f32.mrb[0].mxu0
      %1901 = vmatprep.mubr.bf16.mxu0 %v1072
      %1902 = vmatmul.mubr.bf16.gmra.mrb[0].mxu0 %v1199
      %v1903 = vpop.f32.mrb[0].mxu0
      %v1904 = vadd.f32 %v1743, %v1903
      %v1905 = vpop.f32.mrb[0].mxu0
      %v1906 = vpop.f32.mrb[0].mxu0
      %v1907 = vadd.f32 %v1746, %v1906
      %v1908 = vpop.f32.mrb[0].mxu0
      %1909 = vmatprep.mubr.bf16.mxu0 %v1073
      %1910 = vmatmul.mubr.bf16.gmra.mrb[0].mxu0 %v1200
      %v1911 = vpop.f32.mrb[0].mxu0
      %v1912 = vadd.f32 %v1751, %v1911
      %v1913 = vpop.f32.mrb[0].mxu0
      %v1914 = vpop.f32.mrb[0].mxu0
      %v1915 = vadd.f32 %v1754, %v1914
      %v1916 = vpop.f32.mrb[0].mxu0
      %1917 = vmatprep.mubr.bf16.mxu0 %v1074
      %1918 = vmatmul.mubr.bf16.gmra.mrb[0].mxu0 %v1201
      %v1919 = vpop.f32.mrb[0].mxu0
      %v1920 = vadd.f32 %v1759, %v1919
      %v1921 = vpop.f32.mrb[0].mxu0
      %v1922 = vpop.f32.mrb[0].mxu0
      %v1923 = vadd.f32 %v1762, %v1922
      %v1924 = vpop.f32.mrb[0].mxu0
      %1925 = vmatprep.mubr.bf16.mxu0 %v1075
      %1926 = vmatmul.mubr.bf16.gmra.mrb[0].mxu0 %v1202
      %v1927 = vpop.f32.mrb[0].mxu0
      %v1928 = vadd.f32 %v1767, %v1927
      %v1929 = vpop.f32.mrb[0].mxu0
      %v1930 = vpop.f32.mrb[0].mxu0
      %v1931 = vadd.f32 %v1770, %v1930
      %v1932 = vpop.f32.mrb[0].mxu0
      %1933 = vmatprep.mubr.bf16.mxu0 %v1076
      %1934 = vmatmul.mubr.bf16.gmra.mrb[0].mxu0 %v1203
      %v1935 = vpop.f32.mrb[0].mxu0
      %v1936 = vadd.f32 %v1775, %v1935
      %v1937 = vpop.f32.mrb[0].mxu0
      %v1938 = vpop.f32.mrb[0].mxu0
      %v1939 = vadd.f32 %v1778, %v1938
      %v1940 = vpop.f32.mrb[0].mxu0
      %1941 = vmatprep.mubr.bf16.mxu0 %v1077
      %1942 = vmatmul.mubr.bf16.gmra.mrb[0].mxu0 %v1204
      %v1943 = vpop.f32.mrb[0].mxu0
      %v1944 = vadd.f32 %v1783, %v1943
      %v1945 = vpop.f32.mrb[0].mxu0
      %v1946 = vpop.f32.mrb[0].mxu0
      %v1947 = vadd.f32 %v1786, %v1946
      %v1948 = vpop.f32.mrb[0].mxu0
      %1949 = vmatprep.mubr.bf16.mxu0 %v1078
      %1950 = vmatmul.mubr.bf16.gmra.mrb[0].mxu0 %v1205
      %v1951 = vpop.f32.mrb[0].mxu0
      %v1952 = vadd.f32 %v1791, %v1951
      %v1953 = vpop.f32.mrb[0].mxu0
      %v1954 = vpop.f32.mrb[0].mxu0
      %v1955 = vadd.f32 %v1794, %v1954
      %v1956 = vpop.f32.mrb[0].mxu0
      %1957 = vmatprep.mubr.bf16.mxu0 %v1079
      %1958 = vmatmul.mubr.bf16.gmra.mrb[0].mxu0 %v1206
      %v1959 = vpop.f32.mrb[0].mxu0
      %v1960 = vadd.f32 %v1799, %v1959
      %v1961 = vpop.f32.mrb[0].mxu0
      %v1962 = vpop.f32.mrb[0].mxu0
      %v1963 = vadd.f32 %v1802, %v1962
      %v1964 = vpop.f32.mrb[0].mxu0
      %1965 = vmatprep.mubr.bf16.mxu0 %v1080
      %1966 = vmatmul.mubr.bf16.gmra.mrb[0].mxu0 %v1207
      %v1967 = vpop.f32.mrb[0].mxu0
      %v1968 = vadd.f32 %v1807, %v1967
      %v1969 = vpop.f32.mrb[0].mxu0
      %v1970 = vpop.f32.mrb[0].mxu0
      %v1971 = vadd.f32 %v1810, %v1970
      %v1972 = vpop.f32.mrb[0].mxu0
      %1973 = vmatprep.mubr.bf16.mxu0 %v1081
      %1974 = vmatmul.mubr.bf16.gmra.mrb[0].mxu0 %v1208
      %v1975 = vpop.f32.mrb[0].mxu0
      %v1976 = vadd.f32 %v1815, %v1975
      %v1977 = vpop.f32.mrb[0].mxu0
      %v1978 = vpop.f32.mrb[0].mxu0
      %v1979 = vadd.f32 %v1818, %v1978
      %v1980 = vpop.f32.mrb[0].mxu0
      %1981 = vmatprep.mubr.bf16.mxu0 %v1082
      %1982 = vmatmul.mubr.bf16.gmra.mrb[0].mxu0 %v1209
      %v1983 = vpop.f32.mrb[0].mxu0
      %v1984 = vadd.f32 %v1823, %v1983
      %v1985 = vpop.f32.mrb[0].mxu0
      %v1986 = vpop.f32.mrb[0].mxu0
      %v1987 = vadd.f32 %v1826, %v1986
      %v1988 = vpop.f32.mrb[0].mxu0
      %1989 = vmatprep.mubr.bf16.mxu0 %v1083
      %1990 = vmatmul.mubr.bf16.gmra.mrb[0].mxu0 %v1210
      %v1991 = vpop.f32.mrb[0].mxu0
      %v1992 = vadd.f32 %v1831, %v1991
      %v1993 = vpop.f32.mrb[0].mxu0
      %v1994 = vpop.f32.mrb[0].mxu0
      %v1995 = vadd.f32 %v1834, %v1994
      %v1996 = vpop.f32.mrb[0].mxu0
      %1997 = vmatprep.mubr.bf16.mxu0 %v1230
      %1998 = vmatmul.mubr.bf16.gmra.mrb[0].mxu0 %v1211
      %v1999 = vpop.f32.mrb[0].mxu0
      %v2000 = vadd.f32 %v1839, %v1999
      %v2001 = vpop.f32.mrb[0].mxu0
      %v2002 = vpop.f32.mrb[0].mxu0
      %v2003 = vadd.f32 %v1842, %v2002
      %v2004 = vpop.f32.mrb[0].mxu0
      %2005 = vdwg.mxu0
      %2006 = vmatprep.subr.bf16.mxu0 0
      %2007 = vmatpush1.bf16.msra.mxu0 %v1572
      %2008 = vmatprep.subr.bf16.mxu0 0
      %2009 = vmatpush1.bf16.msra.mxu0 %v1573
      %2010 = vmatprep.subr.bf16.mxu0 0
      %2011 = vmatpush1.bf16.msra.mxu0 %v1574
      %2012 = vmatprep.subr.bf16.mxu0 0
      %2013 = vmatpush1.bf16.msra.mxu0 %v1575
      %2014 = vmatprep.subr.bf16.mxu0 0
      %2015 = vmatpush1.bf16.msra.mxu0 %v1576
      %2016 = vmatprep.subr.bf16.mxu0 0
      %2017 = vmatpush1.bf16.msra.mxu0 %v1577
      %2018 = vmatprep.subr.bf16.mxu0 0
      %2019 = vmatpush1.bf16.msra.mxu0 %v1578
      %2020 = vmatprep.subr.bf16.mxu0 0
      %2021 = vmatpush1.bf16.msra.mxu0 %v1579
      %2022 = vmatprep.subr.bf16.mxu0 0
      %2023 = vmatpush1.bf16.msra.mxu0 %v1580
      %2024 = vmatprep.subr.bf16.mxu0 0
      %2025 = vmatpush1.bf16.msra.mxu0 %v1581
      %2026 = vmatprep.subr.bf16.mxu0 0
      %2027 = vmatpush1.bf16.msra.mxu0 %v1582
      %2028 = vmatprep.subr.bf16.mxu0 0
      %2029 = vmatpush1.bf16.msra.mxu0 %v1583
      %2030 = vmatprep.subr.bf16.mxu0 0
      %2031 = vmatpush1.bf16.msra.mxu0 %v1584
      %2032 = vmatprep.subr.bf16.mxu0 0
      %2033 = vmatpush1.bf16.msra.mxu0 %v1585
      %2034 = vmatprep.subr.bf16.mxu0 0
      %2035 = vmatpush1.bf16.msra.mxu0 %v1586
      %2036 = vmatprep.subr.bf16.mxu0 0
      %2037 = vmatpush1.bf16.msra.mxu0 %v1587
      %2038 = vmatprep.mubr.bf16.mxu0 %v1197
      %2039 = vmatmul.mubr.bf16.gmra.mrb[0].mxu0 %v1133
      %v2040 = vpop.f32.mrb[0].mxu0
      %v2041 = vadd.f32 %v1880, %v2040
      %v2042 = vpop.f32.mrb[0].mxu0
      %v2043 = vpop.f32.mrb[0].mxu0
      %v2044 = vadd.f32 %v1883, %v2043
      %v2045 = vpop.f32.mrb[0].mxu0
      %2046 = vmatprep.mubr.bf16.mxu0 %v1198
      %2047 = vmatmul.mubr.bf16.gmra.mrb[0].mxu0 %v1134
      %v2048 = vpop.f32.mrb[0].mxu0
      %v2049 = vadd.f32 %v1888, %v2048
      %v2050 = vpop.f32.mrb[0].mxu0
      %v2051 = vpop.f32.mrb[0].mxu0
      %v2052 = vadd.f32 %v1891, %v2051
      %v2053 = vpop.f32.mrb[0].mxu0
      %2054 = vmatprep.mubr.bf16.mxu0 %v1199
      %2055 = vmatmul.mubr.bf16.gmra.mrb[0].mxu0 %v1135
      %v2056 = vpop.f32.mrb[0].mxu0
      %v2057 = vadd.f32 %v1896, %v2056
      %v2058 = vpop.f32.mrb[0].mxu0
      %v2059 = vpop.f32.mrb[0].mxu0
      %v2060 = vadd.f32 %v1899, %v2059
      %v2061 = vpop.f32.mrb[0].mxu0
      %2062 = vmatprep.mubr.bf16.mxu0 %v1200
      %2063 = vmatmul.mubr.bf16.gmra.mrb[0].mxu0 %v1136
      %v2064 = vpop.f32.mrb[0].mxu0
      %v2065 = vadd.f32 %v1904, %v2064
      %v2066 = vpop.f32.mrb[0].mxu0
      %v2067 = vpop.f32.mrb[0].mxu0
      %v2068 = vadd.f32 %v1907, %v2067
      %v2069 = vpop.f32.mrb[0].mxu0
      %2070 = vmatprep.mubr.bf16.mxu0 %v1201
      %2071 = vmatmul.mubr.bf16.gmra.mrb[0].mxu0 %v1137
      %v2072 = vpop.f32.mrb[0].mxu0
      %v2073 = vadd.f32 %v1912, %v2072
      %v2074 = vpop.f32.mrb[0].mxu0
      %v2075 = vpop.f32.mrb[0].mxu0
      %v2076 = vadd.f32 %v1915, %v2075
      %v2077 = vpop.f32.mrb[0].mxu0
      %2078 = vmatprep.mubr.bf16.mxu0 %v1202
      %2079 = vmatmul.mubr.bf16.gmra.mrb[0].mxu0 %v1138
      %v2080 = vpop.f32.mrb[0].mxu0
      %v2081 = vadd.f32 %v1920, %v2080
      %v2082 = vpop.f32.mrb[0].mxu0
      %v2083 = vpop.f32.mrb[0].mxu0
      %v2084 = vadd.f32 %v1923, %v2083
      %v2085 = vpop.f32.mrb[0].mxu0
      %2086 = vmatprep.mubr.bf16.mxu0 %v1203
      %2087 = vmatmul.mubr.bf16.gmra.mrb[0].mxu0 %v1139
      %v2088 = vpop.f32.mrb[0].mxu0
      %v2089 = vadd.f32 %v1928, %v2088
      %v2090 = vpop.f32.mrb[0].mxu0
      %v2091 = vpop.f32.mrb[0].mxu0
      %v2092 = vadd.f32 %v1931, %v2091
      %v2093 = vpop.f32.mrb[0].mxu0
      %2094 = vmatprep.mubr.bf16.mxu0 %v1204
      %2095 = vmatmul.mubr.bf16.gmra.mrb[0].mxu0 %v1140
      %v2096 = vpop.f32.mrb[0].mxu0
      %v2097 = vadd.f32 %v1936, %v2096
      %v2098 = vpop.f32.mrb[0].mxu0
      %v2099 = vpop.f32.mrb[0].mxu0
      %v2100 = vadd.f32 %v1939, %v2099
      %v2101 = vpop.f32.mrb[0].mxu0
      %2102 = vmatprep.mubr.bf16.mxu0 %v1205
      %2103 = vmatmul.mubr.bf16.gmra.mrb[0].mxu0 %v1141
      %v2104 = vpop.f32.mrb[0].mxu0
      %v2105 = vadd.f32 %v1944, %v2104
      %v2106 = vpop.f32.mrb[0].mxu0
      %v2107 = vpop.f32.mrb[0].mxu0
      %v2108 = vadd.f32 %v1947, %v2107
      %v2109 = vpop.f32.mrb[0].mxu0
      %2110 = vmatprep.mubr.bf16.mxu0 %v1206
      %2111 = vmatmul.mubr.bf16.gmra.mrb[0].mxu0 %v1142
      %v2112 = vpop.f32.mrb[0].mxu0
      %v2113 = vadd.f32 %v1952, %v2112
      %v2114 = vpop.f32.mrb[0].mxu0
      %v2115 = vpop.f32.mrb[0].mxu0
      %v2116 = vadd.f32 %v1955, %v2115
      %v2117 = vpop.f32.mrb[0].mxu0
      %2118 = vmatprep.mubr.bf16.mxu0 %v1207
      %2119 = vmatmul.mubr.bf16.gmra.mrb[0].mxu0 %v1143
      %v2120 = vpop.f32.mrb[0].mxu0
      %v2121 = vadd.f32 %v1960, %v2120
      %v2122 = vpop.f32.mrb[0].mxu0
      %v2123 = vpop.f32.mrb[0].mxu0
      %v2124 = vadd.f32 %v1963, %v2123
      %v2125 = vpop.f32.mrb[0].mxu0
      %2126 = vmatprep.mubr.bf16.mxu0 %v1208
      %2127 = vmatmul.mubr.bf16.gmra.mrb[0].mxu0 %v1144
      %v2128 = vpop.f32.mrb[0].mxu0
      %v2129 = vadd.f32 %v1968, %v2128
      %v2130 = vpop.f32.mrb[0].mxu0
      %v2131 = vpop.f32.mrb[0].mxu0
      %v2132 = vadd.f32 %v1971, %v2131
      %v2133 = vpop.f32.mrb[0].mxu0
      %2134 = vmatprep.mubr.bf16.mxu0 %v1209
      %2135 = vmatmul.mubr.bf16.gmra.mrb[0].mxu0 %v1145
      %v2136 = vpop.f32.mrb[0].mxu0
      %v2137 = vadd.f32 %v1976, %v2136
      %v2138 = vpop.f32.mrb[0].mxu0
      %v2139 = vpop.f32.mrb[0].mxu0
      %v2140 = vadd.f32 %v1979, %v2139
      %v2141 = vpop.f32.mrb[0].mxu0
      %2142 = vmatprep.mubr.bf16.mxu0 %v1210
      %2143 = vmatmul.mubr.bf16.gmra.mrb[0].mxu0 %v1146
      %v2144 = vpop.f32.mrb[0].mxu0
      %v2145 = vadd.f32 %v1984, %v2144
      %v2146 = vpop.f32.mrb[0].mxu0
      %v2147 = vpop.f32.mrb[0].mxu0
      %v2148 = vadd.f32 %v1987, %v2147
      %v2149 = vpop.f32.mrb[0].mxu0
      %2150 = vmatprep.mubr.bf16.mxu0 %v1211
      %2151 = vmatmul.mubr.bf16.gmra.mrb[0].mxu0 %v1147
      %v2152 = vpop.f32.mrb[0].mxu0
      %v2153 = vadd.f32 %v1992, %v2152
      %v2154 = vpop.f32.mrb[0].mxu0
      %v2155 = vpop.f32.mrb[0].mxu0
      %v2156 = vadd.f32 %v1995, %v2155
      %v2157 = vpop.f32.mrb[0].mxu0
      %2158 = vmatprep.mubr.bf16.mxu0 %v1238
      %2159 = vmatmul.mubr.bf16.gmra.mrb[0].mxu0 %v1234
      %v2160 = vpop.f32.mrb[0].mxu0
      %v2161 = vadd.f32 %v2000, %v2160
      %v2162 = vpop.f32.mrb[0].mxu0
      %v2163 = vpop.f32.mrb[0].mxu0
      %v2164 = vadd.f32 %v2003, %v2163
      %v2165 = vpop.f32.mrb[0].mxu0
      %2166 = vdwg.mxu0
      %2167 = vmatprep.subr.bf16.mxu0 0
      %2168 = vmatpush1.bf16.msra.mxu0 %v1588
      %2169 = vmatprep.subr.bf16.mxu0 0
      %2170 = vmatpush1.bf16.msra.mxu0 %v1589
      %2171 = vmatprep.subr.bf16.mxu0 0
      %2172 = vmatpush1.bf16.msra.mxu0 %v1590
      %2173 = vmatprep.subr.bf16.mxu0 0
      %2174 = vmatpush1.bf16.msra.mxu0 %v1591
      %2175 = vmatprep.subr.bf16.mxu0 0
      %2176 = vmatpush1.bf16.msra.mxu0 %v1592
      %2177 = vmatprep.subr.bf16.mxu0 0
      %2178 = vmatpush1.bf16.msra.mxu0 %v1593
      %2179 = vmatprep.subr.bf16.mxu0 0
      %2180 = vmatpush1.bf16.msra.mxu0 %v1594
      %2181 = vmatprep.subr.bf16.mxu0 0
      %2182 = vmatpush1.bf16.msra.mxu0 %v1595
      %2183 = vmatprep.subr.bf16.mxu0 0
      %2184 = vmatpush1.bf16.msra.mxu0 %v1596
      %2185 = vmatprep.subr.bf16.mxu0 0
      %2186 = vmatpush1.bf16.msra.mxu0 %v1597
      %2187 = vmatprep.subr.bf16.mxu0 0
      %2188 = vmatpush1.bf16.msra.mxu0 %v1598
      %2189 = vmatprep.subr.bf16.mxu0 0
      %2190 = vmatpush1.bf16.msra.mxu0 %v1599
      %2191 = vmatprep.subr.bf16.mxu0 0
      %2192 = vmatpush1.bf16.msra.mxu0 %v1600
      %2193 = vmatprep.subr.bf16.mxu0 0
      %2194 = vmatpush1.bf16.msra.mxu0 %v1601
      %2195 = vmatprep.subr.bf16.mxu0 0
      %2196 = vmatpush1.bf16.msra.mxu0 %v1602
      %2197 = vmatprep.subr.bf16.mxu0 0
      %2198 = vmatpush1.bf16.msra.mxu0 %v1603
      %2199 = vmatprep.mubr.bf16.mxu0 %v1134
      %2200 = vmatmul.mubr.bf16.gmra.mrb[0].mxu0 %v1070
      %v2201 = vpop.f32.mrb[0].mxu0
      %v2202 = vadd.f32 %v2041, %v2201
      %v2203 = vpop.f32.mrb[0].mxu0
      %v2204 = vpop.f32.mrb[0].mxu0
      %v2205 = vadd.f32 %v2044, %v2204
      %v2206 = vpop.f32.mrb[0].mxu0
      %2207 = vmatprep.mubr.bf16.mxu0 %v1135
      %2208 = vmatmul.mubr.bf16.gmra.mrb[0].mxu0 %v1071
      %v2209 = vpop.f32.mrb[0].mxu0
      %v2210 = vadd.f32 %v2049, %v2209
      %v2211 = vpop.f32.mrb[0].mxu0
      %v2212 = vpop.f32.mrb[0].mxu0
      %v2213 = vadd.f32 %v2052, %v2212
      %v2214 = vpop.f32.mrb[0].mxu0
      %2215 = vmatprep.mubr.bf16.mxu0 %v1136
      %2216 = vmatmul.mubr.bf16.gmra.mrb[0].mxu0 %v1072
      %v2217 = vpop.f32.mrb[0].mxu0
      %v2218 = vadd.f32 %v2057, %v2217
      %v2219 = vpop.f32.mrb[0].mxu0
      %v2220 = vpop.f32.mrb[0].mxu0
      %v2221 = vadd.f32 %v2060, %v2220
      %v2222 = vpop.f32.mrb[0].mxu0
      %2223 = vmatprep.mubr.bf16.mxu0 %v1137
      %2224 = vmatmul.mubr.bf16.gmra.mrb[0].mxu0 %v1073
      %v2225 = vpop.f32.mrb[0].mxu0
      %v2226 = vadd.f32 %v2065, %v2225
      %v2227 = vpop.f32.mrb[0].mxu0
      %v2228 = vpop.f32.mrb[0].mxu0
      %v2229 = vadd.f32 %v2068, %v2228
      %v2230 = vpop.f32.mrb[0].mxu0
      %2231 = vmatprep.mubr.bf16.mxu0 %v1138
      %2232 = vmatmul.mubr.bf16.gmra.mrb[0].mxu0 %v1074
      %v2233 = vpop.f32.mrb[0].mxu0
      %v2234 = vadd.f32 %v2073, %v2233
      %v2235 = vpop.f32.mrb[0].mxu0
      %v2236 = vpop.f32.mrb[0].mxu0
      %v2237 = vadd.f32 %v2076, %v2236
      %v2238 = vpop.f32.mrb[0].mxu0
      %2239 = vmatprep.mubr.bf16.mxu0 %v1139
      %2240 = vmatmul.mubr.bf16.gmra.mrb[0].mxu0 %v1075
      %v2241 = vpop.f32.mrb[0].mxu0
      %v2242 = vadd.f32 %v2081, %v2241
      %v2243 = vpop.f32.mrb[0].mxu0
      %v2244 = vpop.f32.mrb[0].mxu0
      %v2245 = vadd.f32 %v2084, %v2244
      %v2246 = vpop.f32.mrb[0].mxu0
      %2247 = vmatprep.mubr.bf16.mxu0 %v1140
      %2248 = vmatmul.mubr.bf16.gmra.mrb[0].mxu0 %v1076
      %v2249 = vpop.f32.mrb[0].mxu0
      %v2250 = vadd.f32 %v2089, %v2249
      %v2251 = vpop.f32.mrb[0].mxu0
      %v2252 = vpop.f32.mrb[0].mxu0
      %v2253 = vadd.f32 %v2092, %v2252
      %v2254 = vpop.f32.mrb[0].mxu0
      %2255 = vmatprep.mubr.bf16.mxu0 %v1141
      %2256 = vmatmul.mubr.bf16.gmra.mrb[0].mxu0 %v1077
      %v2257 = vpop.f32.mrb[0].mxu0
      %v2258 = vadd.f32 %v2097, %v2257
      %v2259 = vpop.f32.mrb[0].mxu0
      %v2260 = vpop.f32.mrb[0].mxu0
      %v2261 = vadd.f32 %v2100, %v2260
      %v2262 = vpop.f32.mrb[0].mxu0
      %2263 = vmatprep.mubr.bf16.mxu0 %v1142
      %2264 = vmatmul.mubr.bf16.gmra.mrb[0].mxu0 %v1078
      %v2265 = vpop.f32.mrb[0].mxu0
      %v2266 = vadd.f32 %v2105, %v2265
      %v2267 = vpop.f32.mrb[0].mxu0
      %v2268 = vpop.f32.mrb[0].mxu0
      %v2269 = vadd.f32 %v2108, %v2268
      %v2270 = vpop.f32.mrb[0].mxu0
      %2271 = vmatprep.mubr.bf16.mxu0 %v1143
      %2272 = vmatmul.mubr.bf16.gmra.mrb[0].mxu0 %v1079
      %v2273 = vpop.f32.mrb[0].mxu0
      %v2274 = vadd.f32 %v2113, %v2273
      %v2275 = vpop.f32.mrb[0].mxu0
      %v2276 = vpop.f32.mrb[0].mxu0
      %v2277 = vadd.f32 %v2116, %v2276
      %v2278 = vpop.f32.mrb[0].mxu0
      %2279 = vmatprep.mubr.bf16.mxu0 %v1144
      %2280 = vmatmul.mubr.bf16.gmra.mrb[0].mxu0 %v1080
      %v2281 = vpop.f32.mrb[0].mxu0
      %v2282 = vadd.f32 %v2121, %v2281
      %v2283 = vpop.f32.mrb[0].mxu0
      %v2284 = vpop.f32.mrb[0].mxu0
      %v2285 = vadd.f32 %v2124, %v2284
      %v2286 = vpop.f32.mrb[0].mxu0
      %2287 = vmatprep.mubr.bf16.mxu0 %v1145
      %2288 = vmatmul.mubr.bf16.gmra.mrb[0].mxu0 %v1081
      %v2289 = vpop.f32.mrb[0].mxu0
      %v2290 = vadd.f32 %v2129, %v2289
      %v2291 = vpop.f32.mrb[0].mxu0
      %v2292 = vpop.f32.mrb[0].mxu0
      %v2293 = vadd.f32 %v2132, %v2292
      %v2294 = vpop.f32.mrb[0].mxu0
      %2295 = vmatprep.mubr.bf16.mxu0 %v1146
      %2296 = vmatmul.mubr.bf16.gmra.mrb[0].mxu0 %v1082
      %v2297 = vpop.f32.mrb[0].mxu0
      %v2298 = vadd.f32 %v2137, %v2297
      %v2299 = vpop.f32.mrb[0].mxu0
      %v2300 = vpop.f32.mrb[0].mxu0
      %v2301 = vadd.f32 %v2140, %v2300
      %v2302 = vpop.f32.mrb[0].mxu0
      %2303 = vmatprep.mubr.bf16.mxu0 %v1147
      %2304 = vmatmul.mubr.bf16.gmra.mrb[0].mxu0 %v1083
      %v2305 = vpop.f32.mrb[0].mxu0
      %v2306 = vadd.f32 %v2145, %v2305
      %v2307 = vpop.f32.mrb[0].mxu0
      %v2308 = vpop.f32.mrb[0].mxu0
      %v2309 = vadd.f32 %v2148, %v2308
      %v2310 = vpop.f32.mrb[0].mxu0
      %2311 = vmatprep.mubr.bf16.mxu0 %v1234
      %2312 = vmatmul.mubr.bf16.gmra.mrb[0].mxu0 %v1230
      %v2313 = vpop.f32.mrb[0].mxu0
      %v2314 = vadd.f32 %v2153, %v2313
      %v2315 = vpop.f32.mrb[0].mxu0
      %v2316 = vpop.f32.mrb[0].mxu0
      %v2317 = vadd.f32 %v2156, %v2316
      %v2318 = vpop.f32.mrb[0].mxu0
      %2319 = vmatprep.mubr.bf16.mxu0 %v1246
      %2320 = vmatmul.mubr.bf16.gmra.mrb[0].mxu0 %v1242
      %v2321 = vpop.f32.mrb[0].mxu0
      %v2322 = vadd.f32 %v2161, %v2321
      %v2323 = vpop.f32.mrb[0].mxu0
      %v2324 = vpop.f32.mrb[0].mxu0
      %v2325 = vadd.f32 %v2164, %v2324
      %v2326 = vpop.f32.mrb[0].mxu0
      %2327 = vdwg.mxu0
      %2328 = vmatprep.subr.bf16.mxu0 0
      %2329 = vmatpush1.bf16.msra.mxu0 %v1604
      %2330 = vmatprep.subr.bf16.mxu0 0
      %2331 = vmatpush1.bf16.msra.mxu0 %v1605
      %2332 = vmatprep.subr.bf16.mxu0 0
      %2333 = vmatpush1.bf16.msra.mxu0 %v1606
      %2334 = vmatprep.subr.bf16.mxu0 0
      %2335 = vmatpush1.bf16.msra.mxu0 %v1607
      %2336 = vmatprep.subr.bf16.mxu0 0
      %2337 = vmatpush1.bf16.msra.mxu0 %v1608
      %2338 = vmatprep.subr.bf16.mxu0 0
      %2339 = vmatpush1.bf16.msra.mxu0 %v1609
      %2340 = vmatprep.subr.bf16.mxu0 0
      %2341 = vmatpush1.bf16.msra.mxu0 %v1610
      %2342 = vmatprep.subr.bf16.mxu0 0
      %2343 = vmatpush1.bf16.msra.mxu0 %v1611
      %2344 = vmatprep.subr.bf16.mxu0 0
      %2345 = vmatpush1.bf16.msra.mxu0 0
      %2346 = vmatprep.subr.bf16.mxu0 0
      %2347 = vmatpush1.bf16.msra.mxu0 0
      %2348 = vmatprep.subr.bf16.mxu0 0
      %2349 = vmatpush1.bf16.msra.mxu0 0
      %2350 = vmatprep.subr.bf16.mxu0 0
      %2351 = vmatpush1.bf16.msra.mxu0 0
      %2352 = vmatprep.subr.bf16.mxu0 0
      %2353 = vmatpush1.bf16.msra.mxu0 0
      %2354 = vmatprep.subr.bf16.mxu0 0
      %2355 = vmatpush1.bf16.msra.mxu0 0
      %2356 = vmatprep.subr.bf16.mxu0 0
      %2357 = vmatpush1.bf16.msra.mxu0 0
      %2358 = vmatprep.subr.bf16.mxu0 0
      %2359 = vmatpush1.bf16.msra.mxu0 0
      %2360 = vmatprep.mubr.bf16.mxu0 0
      %2361 = vmatmul.mubr.bf16.gmra.mrb[0].mxu0 %v1198
      %v2362 = vpop.f32.mrb[0].mxu0
      %v2363 = vadd.f32 %v2202, %v2362
      %v2364 = vpop.f32.mrb[0].mxu0
      %v2365 = vpop.f32.mrb[0].mxu0
      %v2366 = vadd.f32 %v2205, %v2365
      %v2367 = vpop.f32.mrb[0].mxu0
      %2368 = vmatprep.mubr.bf16.mxu0 0
      %2369 = vmatmul.mubr.bf16.gmra.mrb[0].mxu0 %v1199
      %v2370 = vpop.f32.mrb[0].mxu0
      %v2371 = vadd.f32 %v2210, %v2370
      %v2372 = vpop.f32.mrb[0].mxu0
      %v2373 = vpop.f32.mrb[0].mxu0
      %v2374 = vadd.f32 %v2213, %v2373
      %v2375 = vpop.f32.mrb[0].mxu0
      %2376 = vmatprep.mubr.bf16.mxu0 0
      %2377 = vmatmul.mubr.bf16.gmra.mrb[0].mxu0 %v1200
      %v2378 = vpop.f32.mrb[0].mxu0
      %v2379 = vadd.f32 %v2218, %v2378
      %v2380 = vpop.f32.mrb[0].mxu0
      %v2381 = vpop.f32.mrb[0].mxu0
      %v2382 = vadd.f32 %v2221, %v2381
      %v2383 = vpop.f32.mrb[0].mxu0
      %2384 = vmatprep.mubr.bf16.mxu0 0
      %2385 = vmatmul.mubr.bf16.gmra.mrb[0].mxu0 %v1201
      %v2386 = vpop.f32.mrb[0].mxu0
      %v2387 = vadd.f32 %v2226, %v2386
      %v2388 = vpop.f32.mrb[0].mxu0
      %v2389 = vpop.f32.mrb[0].mxu0
      %v2390 = vadd.f32 %v2229, %v2389
      %v2391 = vpop.f32.mrb[0].mxu0
      %2392 = vmatprep.mubr.bf16.mxu0 0
      %2393 = vmatmul.mubr.bf16.gmra.mrb[0].mxu0 %v1202
      %v2394 = vpop.f32.mrb[0].mxu0
      %v2395 = vadd.f32 %v2234, %v2394
      %v2396 = vpop.f32.mrb[0].mxu0
      %v2397 = vpop.f32.mrb[0].mxu0
      %v2398 = vadd.f32 %v2237, %v2397
      %v2399 = vpop.f32.mrb[0].mxu0
      %2400 = vmatprep.mubr.bf16.mxu0 0
      %2401 = vmatmul.mubr.bf16.gmra.mrb[0].mxu0 %v1203
      %v2402 = vpop.f32.mrb[0].mxu0
      %v2403 = vadd.f32 %v2242, %v2402
      %v2404 = vpop.f32.mrb[0].mxu0
      %v2405 = vpop.f32.mrb[0].mxu0
      %v2406 = vadd.f32 %v2245, %v2405
      %v2407 = vpop.f32.mrb[0].mxu0
      %2408 = vmatprep.mubr.bf16.mxu0 0
      %2409 = vmatmul.mubr.bf16.gmra.mrb[0].mxu0 %v1204
      %v2410 = vpop.f32.mrb[0].mxu0
      %v2411 = vadd.f32 %v2250, %v2410
      %v2412 = vpop.f32.mrb[0].mxu0
      %v2413 = vpop.f32.mrb[0].mxu0
      %v2414 = vadd.f32 %v2253, %v2413
      %v2415 = vpop.f32.mrb[0].mxu0
      %2416 = vmatprep.mubr.bf16.mxu0 0
      %2417 = vmatmul.mubr.bf16.gmra.mrb[0].mxu0 %v1205
      %v2418 = vpop.f32.mrb[0].mxu0
      %v2419 = vadd.f32 %v2258, %v2418
      %v2420 = vpop.f32.mrb[0].mxu0
      %v2421 = vpop.f32.mrb[0].mxu0
      %v2422 = vadd.f32 %v2261, %v2421
      %v2423 = vpop.f32.mrb[0].mxu0
      %2424 = vmatprep.mubr.bf16.mxu0 0
      %2425 = vmatmul.mubr.bf16.gmra.mrb[0].mxu0 %v1206
      %v2426 = vpop.f32.mrb[0].mxu0
      %v2427 = vadd.f32 %v2266, %v2426
      %v2428 = vpop.f32.mrb[0].mxu0
      %v2429 = vpop.f32.mrb[0].mxu0
      %v2430 = vadd.f32 %v2269, %v2429
      %v2431 = vpop.f32.mrb[0].mxu0
      %2432 = vmatprep.mubr.bf16.mxu0 0
      %2433 = vmatmul.mubr.bf16.gmra.mrb[0].mxu0 %v1207
      %v2434 = vpop.f32.mrb[0].mxu0
      %v2435 = vadd.f32 %v2274, %v2434
      %v2436 = vpop.f32.mrb[0].mxu0
      %v2437 = vpop.f32.mrb[0].mxu0
      %v2438 = vadd.f32 %v2277, %v2437
      %v2439 = vpop.f32.mrb[0].mxu0
      %2440 = vmatprep.mubr.bf16.mxu0 0
      %2441 = vmatmul.mubr.bf16.gmra.mrb[0].mxu0 %v1208
      %v2442 = vpop.f32.mrb[0].mxu0
      %v2443 = vadd.f32 %v2282, %v2442
      %v2444 = vpop.f32.mrb[0].mxu0
      %v2445 = vpop.f32.mrb[0].mxu0
      %v2446 = vadd.f32 %v2285, %v2445
      %v2447 = vpop.f32.mrb[0].mxu0
      %2448 = vmatprep.mubr.bf16.mxu0 0
      %2449 = vmatmul.mubr.bf16.gmra.mrb[0].mxu0 %v1209
      %v2450 = vpop.f32.mrb[0].mxu0
      %v2451 = vadd.f32 %v2290, %v2450
      %v2452 = vpop.f32.mrb[0].mxu0
      %v2453 = vpop.f32.mrb[0].mxu0
      %v2454 = vadd.f32 %v2293, %v2453
      %v2455 = vpop.f32.mrb[0].mxu0
      %2456 = vmatprep.mubr.bf16.mxu0 0
      %2457 = vmatmul.mubr.bf16.gmra.mrb[0].mxu0 %v1210
      %v2458 = vpop.f32.mrb[0].mxu0
      %v2459 = vadd.f32 %v2298, %v2458
      %v2460 = vpop.f32.mrb[0].mxu0
      %v2461 = vpop.f32.mrb[0].mxu0
      %v2462 = vadd.f32 %v2301, %v2461
      %v2463 = vpop.f32.mrb[0].mxu0
      %2464 = vmatprep.mubr.bf16.mxu0 0
      %2465 = vmatmul.mubr.bf16.gmra.mrb[0].mxu0 %v1211
      %v2466 = vpop.f32.mrb[0].mxu0
      %v2467 = vadd.f32 %v2306, %v2466
      %v2468 = vpop.f32.mrb[0].mxu0
      %v2469 = vpop.f32.mrb[0].mxu0
      %v2470 = vadd.f32 %v2309, %v2469
      %v2471 = vpop.f32.mrb[0].mxu0
      %2472 = vmatprep.mubr.bf16.mxu0 0
      %2473 = vmatmul.mubr.bf16.gmra.mrb[0].mxu0 %v1238
      %v2474 = vpop.f32.mrb[0].mxu0
      %v2475 = vadd.f32 %v2314, %v2474
      %v2476 = vpop.f32.mrb[0].mxu0
      %v2477 = vpop.f32.mrb[0].mxu0
      %v2478 = vadd.f32 %v2317, %v2477
      %v2479 = vpop.f32.mrb[0].mxu0
      %2480 = vmatprep.mubr.bf16.mxu0 0
      %2481 = vmatmul.mubr.bf16.gmra.mrb[0].mxu0 %v1250
      %v2482 = vpop.f32.mrb[0].mxu0
      %v2483 = vadd.f32 %v2322, %v2482
      %v2484 = vpop.f32.mrb[0].mxu0
      %v2485 = vpop.f32.mrb[0].mxu0
      %v2486 = vadd.f32 %v2325, %v2485
      %v2487 = vpop.f32.mrb[0].mxu0
      %2488 = vdwg.mxu0
      %v2489 = vpack.c.bf16 %v2366, %v2363
      %v2490 = vpack.c.bf16 %v2374, %v2371
      %v2491 = vpack.c.bf16 %v2382, %v2379
      %v2492 = vpack.c.bf16 %v2390, %v2387
      %v2493 = vpack.c.bf16 %v2398, %v2395
      %v2494 = vpack.c.bf16 %v2406, %v2403
      %v2495 = vpack.c.bf16 %v2414, %v2411
      %v2496 = vpack.c.bf16 %v2422, %v2419
      %v2497 = vpack.c.bf16 %v2430, %v2427
      %v2498 = vpack.c.bf16 %v2438, %v2435
      %v2499 = vpack.c.bf16 %v2446, %v2443
      %v2500 = vpack.c.bf16 %v2454, %v2451
      %v2501 = vpack.c.bf16 %v2462, %v2459
      %v2502 = vpack.c.bf16 %v2470, %v2467
      %v2503 = vpack.c.bf16 %v2478, %v2475
      %v2504 = vpack.c.bf16 %v2486, %v2483
      %v2521 = vunpack.c.l.b16 %v2489
      %v2522 = vunpack.c.h.b16 %v2489
      %v2523 = vunpack.c.l.b16 %v2490
      %v2524 = vunpack.c.h.b16 %v2490
      %v2525 = vunpack.c.l.b16 %v2491
      %v2526 = vunpack.c.h.b16 %v2491
      %v2527 = vunpack.c.l.b16 %v2492
      %v2528 = vunpack.c.h.b16 %v2492
      %v2529 = vunpack.c.l.b16 %v2493
      %v2530 = vunpack.c.h.b16 %v2493
      %v2531 = vunpack.c.l.b16 %v2494
      %v2532 = vunpack.c.h.b16 %v2494
      %v2533 = vunpack.c.l.b16 %v2495
      %v2534 = vunpack.c.h.b16 %v2495
      %v2535 = vunpack.c.l.b16 %v2496
      %v2536 = vunpack.c.h.b16 %v2496
      %v2537 = vunpack.c.l.b16 %v2497
      %v2538 = vunpack.c.h.b16 %v2497
      %v2539 = vunpack.c.l.b16 %v2498
      %v2540 = vunpack.c.h.b16 %v2498
      %v2541 = vunpack.c.l.b16 %v2499
      %v2542 = vunpack.c.h.b16 %v2499
      %v2543 = vunpack.c.l.b16 %v2500
      %v2544 = vunpack.c.h.b16 %v2500
      %v2545 = vunpack.c.l.b16 %v2501
      %v2546 = vunpack.c.h.b16 %v2501
      %v2547 = vunpack.c.l.b16 %v2502
      %v2548 = vunpack.c.h.b16 %v2502
      %v2549 = vunpack.c.l.b16 %v2503
      %v2550 = vunpack.c.h.b16 %v2503
      %v2551 = vunpack.c.l.b16 %v2504
      %v2552 = vunpack.c.h.b16 %v2504
      %v2553 = vpack.c.b16 %v2521, %v2521
      %v2554 = vpack.c.b16 %v2522, %v2522
      %v2555 = vpack.c.b16 %v2523, %v2523
      %v2556 = vpack.c.b16 %v2524, %v2524
      %v2557 = vpack.c.b16 %v2525, %v2525
      %v2558 = vpack.c.b16 %v2526, %v2526
      %v2559 = vpack.c.b16 %v2527, %v2527
      %v2560 = vpack.c.b16 %v2528, %v2528
      %v2561 = vpack.c.b16 %v2529, %v2529
      %v2562 = vpack.c.b16 %v2530, %v2530
      %v2563 = vpack.c.b16 %v2531, %v2531
      %v2564 = vpack.c.b16 %v2532, %v2532
      %v2565 = vpack.c.b16 %v2533, %v2533
      %v2566 = vpack.c.b16 %v2534, %v2534
      %v2567 = vpack.c.b16 %v2535, %v2535
      %v2568 = vpack.c.b16 %v2536, %v2536
      %v2569 = vpack.c.b16 %v2537, %v2537
      %v2570 = vpack.c.b16 %v2538, %v2538
      %v2571 = vpack.c.b16 %v2539, %v2539
      %v2572 = vpack.c.b16 %v2540, %v2540
      %v2573 = vpack.c.b16 %v2541, %v2541
      %v2574 = vpack.c.b16 %v2542, %v2542
      %v2575 = vpack.c.b16 %v2543, %v2543
      %v2576 = vpack.c.b16 %v2544, %v2544
      %v2577 = vpack.c.b16 %v2545, %v2545
      %v2578 = vpack.c.b16 %v2546, %v2546
      %v2579 = vpack.c.b16 %v2547, %v2547
      %v2580 = vpack.c.b16 %v2548, %v2548
      %v2581 = vpack.c.b16 %v2549, %v2549
      %v2582 = vpack.c.b16 %v2550, %v2550
      %v2583 = vpack.c.b16 %v2551, %v2551
      %v2584 = vpack.c.b16 %v2552, %v2552
      %2617 = vst [vmem:[%s210] sm:$0xf] %v2553
      %2618 = vst [vmem:[%s210 + $0x4] sm:$0xf] %v2554
      %2619 = vst [vmem:[%s210 + $0x8] sm:$0xf] %v2555
      %2620 = vst [vmem:[%s210 + $0xc] sm:$0xf] %v2556
      %2621 = vst [vmem:[%s210 + $0x10] sm:$0xf] %v2557
      %2622 = vst [vmem:[%s210 + $0x14] sm:$0xf] %v2558
      %2623 = vst [vmem:[%s210 + $0x18] sm:$0xf] %v2559
      %2624 = vst [vmem:[%s210 + $0x1c] sm:$0xf] %v2560
      %2625 = vst [vmem:[%s210 + $0x20] sm:$0xf] %v2561
      %2626 = vst [vmem:[%s210 + $0x24] sm:$0xf] %v2562
      %2627 = vst [vmem:[%s210 + $0x28] sm:$0xf] %v2563
      %2628 = vst [vmem:[%s210 + $0x2c] sm:$0xf] %v2564
      %2629 = vst [vmem:[%s210 + $0x30] sm:$0xf] %v2565
      %2630 = vst [vmem:[%s210 + $0x34] sm:$0xf] %v2566
      %2631 = vst [vmem:[%s210 + $0x38] sm:$0xf] %v2567
      %2632 = vst [vmem:[%s210 + $0x3c] sm:$0xf] %v2568
      %2633 = vst [vmem:[%s210 + $0x40] sm:$0xf] %v2569
      %2634 = vst [vmem:[%s210 + $0x44] sm:$0xf] %v2570
      %2635 = vst [vmem:[%s210 + $0x48] sm:$0xf] %v2571
      %2636 = vst [vmem:[%s210 + $0x4c] sm:$0xf] %v2572
      %2637 = vst [vmem:[%s210 + $0x50] sm:$0xf] %v2573
      %2638 = vst [vmem:[%s210 + $0x54] sm:$0xf] %v2574
      %2639 = vst [vmem:[%s210 + $0x58] sm:$0xf] %v2575
      %2640 = vst [vmem:[%s210 + $0x5c] sm:$0xf] %v2576
      %2641 = vst [vmem:[%s210 + $0x60] sm:$0xf] %v2577
      %2642 = vst [vmem:[%s210 + $0x64] sm:$0xf] %v2578
      %2643 = vst [vmem:[%s210 + $0x68] sm:$0xf] %v2579
      %2644 = vst [vmem:[%s210 + $0x6c] sm:$0xf] %v2580
      %2645 = vst [vmem:[%s210 + $0x70] sm:$0xf] %v2581
      %2646 = vst [vmem:[%s210 + $0x74] sm:$0xf] %v2582
      %2647 = vst [vmem:[%s210 + $0x78] sm:$0xf] %v2583
      %2648 = vst [vmem:[%s210 + $0x7c] sm:$0xf] %v2584
      %v2649 = vadd.f32 %v2363, %v2366
      %v2650 = vadd.f32 %v2649, %v2371
      %v2651 = vadd.f32 %v2650, %v2374
      %v2652 = vadd.f32 %v2651, %v2379
      %v2653 = vadd.f32 %v2652, %v2382
      %v2654 = vadd.f32 %v2653, %v2387
      %v2655 = vadd.f32 %v2654, %v2390
      %v2656 = vadd.f32 %v2655, %v2395
      %v2657 = vadd.f32 %v2656, %v2398
      %v2658 = vadd.f32 %v2657, %v2403
      %v2659 = vadd.f32 %v2658, %v2406
      %v2660 = vadd.f32 %v2659, %v2411
      %v2661 = vadd.f32 %v2660, %v2414
      %v2662 = vadd.f32 %v2661, %v2419
      %v2663 = vadd.f32 %v2662, %v2422
      %v2664 = vadd.f32 %v2663, %v2427
      %v2665 = vadd.f32 %v2664, %v2430
      %v2666 = vadd.f32 %v2665, %v2435
      %v2667 = vadd.f32 %v2666, %v2438
      %v2668 = vadd.f32 %v2667, %v2443
      %v2669 = vadd.f32 %v2668, %v2446
      %v2670 = vadd.f32 %v2669, %v2451
      %v2671 = vadd.f32 %v2670, %v2454
      %v2672 = vadd.f32 %v2671, %v2459
      %v2673 = vadd.f32 %v2672, %v2462
      %v2674 = vadd.f32 %v2673, %v2467
      %v2675 = vadd.f32 %v2674, %v2470
      %v2676 = vadd.f32 %v2675, %v2475
      %v2677 = vadd.f32 %v2676, %v2478
      %v2678 = vadd.f32 %v2677, %v2483
      %v2679 = vadd.f32 %v2678, %v2486
      %v2680 = vrot.slane %v2679, 4
      %v2681 = vadd.f32 %v2679, %v2680
      %v2682 = vrot.slane %v2681, 2
      %v2683 = vadd.f32 %v2681, %v2682
      %v2684 = vrot.slane %v2683, 1
      %v2685 = vadd.f32 %v2683, %v2684
      %2686 = vst [vmem:[%s214] sm:$0xff] %v2685
      %v2687 = vmul.f32 %v2363, %v2363
      %v2688 = vmul.f32 %v2366, %v2366
      %v2689 = vmul.f32 %v2371, %v2371
      %v2690 = vmul.f32 %v2374, %v2374
      %v2691 = vmul.f32 %v2379, %v2379
      %v2692 = vmul.f32 %v2382, %v2382
      %v2693 = vmul.f32 %v2387, %v2387
      %v2694 = vmul.f32 %v2390, %v2390
      %v2695 = vmul.f32 %v2395, %v2395
      %v2696 = vmul.f32 %v2398, %v2398
      %v2697 = vmul.f32 %v2403, %v2403
      %v2698 = vmul.f32 %v2406, %v2406
      %v2699 = vmul.f32 %v2411, %v2411
      %v2700 = vmul.f32 %v2414, %v2414
      %v2701 = vmul.f32 %v2419, %v2419
      %v2702 = vmul.f32 %v2422, %v2422
      %v2703 = vmul.f32 %v2427, %v2427
      %v2704 = vmul.f32 %v2430, %v2430
      %v2705 = vmul.f32 %v2435, %v2435
      %v2706 = vmul.f32 %v2438, %v2438
      %v2707 = vmul.f32 %v2443, %v2443
      %v2708 = vmul.f32 %v2446, %v2446
      %v2709 = vmul.f32 %v2451, %v2451
      %v2710 = vmul.f32 %v2454, %v2454
      %v2711 = vmul.f32 %v2459, %v2459
      %v2712 = vmul.f32 %v2462, %v2462
      %v2713 = vmul.f32 %v2467, %v2467
      %v2714 = vmul.f32 %v2470, %v2470
      %v2715 = vmul.f32 %v2475, %v2475
      %v2716 = vmul.f32 %v2478, %v2478
      %v2717 = vmul.f32 %v2483, %v2483
      %v2718 = vmul.f32 %v2486, %v2486
      %v2719 = vadd.f32 %v2687, %v2688
      %v2720 = vadd.f32 %v2719, %v2689
      %v2721 = vadd.f32 %v2720, %v2690
      %v2722 = vadd.f32 %v2721, %v2691
      %v2723 = vadd.f32 %v2722, %v2692
      %v2724 = vadd.f32 %v2723, %v2693
      %v2725 = vadd.f32 %v2724, %v2694
      %v2726 = vadd.f32 %v2725, %v2695
      %v2727 = vadd.f32 %v2726, %v2696
      %v2728 = vadd.f32 %v2727, %v2697
      %v2729 = vadd.f32 %v2728, %v2698
      %v2730 = vadd.f32 %v2729, %v2699
      %v2731 = vadd.f32 %v2730, %v2700
      %v2732 = vadd.f32 %v2731, %v2701
      %v2733 = vadd.f32 %v2732, %v2702
      %v2734 = vadd.f32 %v2733, %v2703
      %v2735 = vadd.f32 %v2734, %v2704
      %v2736 = vadd.f32 %v2735, %v2705
      %v2737 = vadd.f32 %v2736, %v2706
      %v2738 = vadd.f32 %v2737, %v2707
      %v2739 = vadd.f32 %v2738, %v2708
      %v2740 = vadd.f32 %v2739, %v2709
      %v2741 = vadd.f32 %v2740, %v2710
      %v2742 = vadd.f32 %v2741, %v2711
      %v2743 = vadd.f32 %v2742, %v2712
      %v2744 = vadd.f32 %v2743, %v2713
      %v2745 = vadd.f32 %v2744, %v2714
      %v2746 = vadd.f32 %v2745, %v2715
      %v2747 = vadd.f32 %v2746, %v2716
      %v2748 = vadd.f32 %v2747, %v2717
      %v2749 = vadd.f32 %v2748, %v2718
      %v2750 = vrot.slane %v2749, 4
      %v2751 = vadd.f32 %v2749, %v2750
      %v2752 = vrot.slane %v2751, 2
      %v2753 = vadd.f32 %v2751, %v2752
      %v2754 = vrot.slane %v2753, 1
      %v2755 = vadd.f32 %v2753, %v2754
      %2756 = vst [vmem:[%s218] sm:$0xff] %v2755
      %p2757 = scmp.lt.s32.totalorder %s16, 1
      %s2758 = scalar_select %p2757, %s16, 1
      %s2759 = smul.addr %s2758, 32
      %s2760 = smul.addr %s2759, 4
      %s2761 = scalar_lea.vmem %s2, %s2760
      %p2762 = scmp.lt.s32.totalorder %s16, 1
      %s2763 = scalar_select %p2762, %s16, 1
      %s2764 = smul.addr %s2763, 8
      %s2765 = scalar_lea.vmem %s3, %s2764
      %p2766 = scmp.lt.s32.totalorder %s16, 1
      %s2767 = scalar_select %p2766, %s16, 1
      %s2768 = smul.addr %s2767, 8
      %s2769 = scalar_lea.vmem %s4, %s2768
      // Predicated region
      $region29: #{residual_block.3} parent=27 // pred_check
        %p2770 = pneg %p81
      $region30: #{residual_block.3} parent=27 // pred_check_branch
        %2772 = sbr.rel (%p2770) target = $region32
      $region31: #{residual_block.3} parent=27 // pred_region
        _
      $region32: #{residual_block.3} parent=27 // pred_fallthru
        _
      // Predicated region
      $region33: #{residual_block.3} parent=27 // pred_check
        %p2773 = pneg %p107
      $region34: #{residual_block.3} parent=27 // pred_check_branch
        %2775 = sbr.rel (%p2773) target = $region36
      $region35: #{residual_block.3} parent=27 // pred_region
        _
      $region36: #{residual_block.3} parent=27 // pred_fallthru
        _
      // Predicated region
      $region37: #{residual_block.3} parent=27 // pred_check
        %p2776 = pneg %p133
      $region38: #{residual_block.3} parent=27 // pred_check_branch
        %2778 = sbr.rel (%p2776) target = $region40
      $region39: #{residual_block.3} parent=27 // pred_region
        _
      $region40: #{residual_block.3} parent=27 // pred_fallthru
        _
    $region28: #{residual_block.3} parent=5 // pred_fallthru
      _
    %p2779 = scmp.le.s32.totalorder 2, %s11
    // Predicated region
    $region41: #{residual_block.3} parent=5 // pred_check
      %p2780 = pneg %p2779
    $region42: #{residual_block.3} parent=5 // pred_check_branch
      %2782 = sbr.rel (%p2780) target = $region44
    $region43: #{residual_block.3} parent=5 // pred_region
      %s2783 = ssub.s32 %s11, 2
      // Predicated region
      $region45: #{residual_block.3} parent=43 // pred_check
        %p2784 = pneg %p87
      $region46: #{residual_block.3} parent=43 // pred_check_branch
        %2786 = sbr.rel (%p2784) target = $region48
      $region47: #{residual_block.3} parent=43 // pred_region
        %p2787 = scmp.lt.s32.totalorder %s17, 1
        %s2788 = scalar_select %p2787, %s17, 1
        %s2789 = smul.addr %s2788, 32
        %s2790 = smul.addr %s2789, 4
        %s2791 = scalar_lea.vmem %s2, %s2790
      $region48: #{residual_block.3} parent=43 // pred_fallthru
        _
      // Predicated region
      $region49: #{residual_block.3} parent=43 // pred_check
        %p2792 = pneg %p113
      $region50: #{residual_block.3} parent=43 // pred_check_branch
        %2794 = sbr.rel (%p2792) target = $region52
      $region51: #{residual_block.3} parent=43 // pred_region
        %p2795 = scmp.lt.s32.totalorder %s17, 1
        %s2796 = scalar_select %p2795, %s17, 1
        %s2797 = smul.addr %s2796, 8
        %s2798 = scalar_lea.vmem %s3, %s2797
      $region52: #{residual_block.3} parent=43 // pred_fallthru
        _
      // Predicated region
      $region53: #{residual_block.3} parent=43 // pred_check
        %p2799 = pneg %p139
      $region54: #{residual_block.3} parent=43 // pred_check_branch
        %2801 = sbr.rel (%p2799) target = $region56
      $region55: #{residual_block.3} parent=43 // pred_region
        %p2802 = scmp.lt.s32.totalorder %s17, 1
        %s2803 = scalar_select %p2802, %s17, 1
        %s2804 = smul.addr %s2803, 8
        %s2805 = scalar_lea.vmem %s4, %s2804
      $region56: #{residual_block.3} parent=43 // pred_fallthru
        _
    $region44: #{residual_block.3} parent=5 // pred_fallthru
      _
  $region6: #{residual_block.3} parent=0 // loop_footer
    %s15 = sadd.s32 1, %s11
  $region7: #{residual_block.3} parent=0 // loop_footer_branch
    %10 = sbr.rel target = $region3
  $region8: #{residual_block.3} parent=0 // loop_exit
    _

// kernel: residual_block.4
$region0: #{residual_block.4}
  #allocation0 [shape = 'u32[]', space=smem, size = 0x4, offset = 0x4, fixed_abs, tag = 'smem constant byte address 0x4 - core index']
  #allocation1 [shape = 'u32[144,128]{1,0:T(1,128)}', space=vmem, size = 0x12000, scoped, tag = 'internal scratch']
  #allocation2 [shape = 'bf16[18,18,128]{2,1,0:T(8,128)(2,1)}', space=vmem, size = 0x1b000, scoped, tag = 'scratch operand']
  %s0 = inlined_call_operand.vmem [shape: bf16[2,16,16,128], index: 0, kind: input, shape index: {}]
  %s1 = inlined_call_operand.vmem [shape: f32[1,128], index: 1, kind: input, shape index: {}]
  %s2 = inlined_call_operand.vmem [shape: f32[1,128], index: 2, kind: input, shape index: {}]
  %s3 = inlined_call_operand.vmem [shape: bf16[1152,128], index: 3, kind: input, shape index: {}]
  %s4 = inlined_call_operand.vmem [shape: bf16[2,16,16,128], index: 4, kind: output, shape index: {0}]
  %s5 = inlined_call_operand.vmem [shape: f32[2,8,128], index: 5, kind: output, shape index: {1}]
  %s6 = inlined_call_operand.vmem [shape: f32[2,8,128], index: 6, kind: output, shape index: {2}]
  %7 = xla_tuple %s4, %s5, %s6
  %s8 = sld [smem:[#allocation0]]
  $region65: #{residual_block.4} parent=0
    _
  %s10 = ssub.s32 1, %s8
  %s11 = scalar_select 0, %s10, %s8
  loop: start=0, step=1, limit=4
  $region2: #{residual_block.4} parent=0 // loop_pre_header
    _
  $region3: #{residual_block.4} parent=0 // loop_header
    %s13 = sphi 0, %s17
    %p14 = scmp.ge.s32.totalorder %s13, 4
    %s23 = sphi 0, %s25
    %s26 = sphi 0, %s23
    %s27 = sphi 0, %s26
    %s43 = sphi 0, %s27
    %s47 = sphi 0, %s47
    %s49 = sphi 0, %s47
    %s50 = sphi 0, %s49
    %s64 = sphi 0, %s50
    %s68 = sphi 0, %s68
    %s70 = sphi 0, %s68
    %s71 = sphi 0, %s70
    %s85 = sphi 0, %s71
    %s89 = sphi 0, %s89
    %s91 = sphi 0, %s89
    %s92 = sphi 0, %s91
    %s106 = sphi 0, %s92
    %s112 = sphi 0, %s114
    %s115 = sphi 0, %s112
    %s116 = sphi 0, %s115
    %s132 = sphi 0, %s116
    %s138 = sphi 0, %s140
    %s141 = sphi 0, %s138
    %s142 = sphi 0, %s141
    %s158 = sphi 0, %s142
    %s164 = sphi 0, %s166
    %s167 = sphi 0, %s164
    %s168 = sphi 0, %s167
    %s184 = sphi 0, %s168
  $region4: #{residual_block.4} parent=0 // loop_header_branch
    %16 = sbr.rel (%p14) target = $region8
  $region5: #{residual_block.4} parent=0 // loop_body
    %s18 = ssub.s32 %s13, 1
    %s19 = ssub.s32 %s13, 2
    %s20 = sadd.s32 %s13, 1
    %s21 = ssub.s32 %s13, %s20
    %p22 = scmp.eq.s32.totalorder %s21, 0
    %s24 = sadd.s32 %s23, 1
    %s25 = scalar_select %p22, %s23, %s24
    %p28 = pneg %p22
    %p29 = scmp.eq.s32.totalorder %s13, 1
    %p30 = por %p28, %p29
    %p31 = scmp.ne.s32.totalorder %s23, %s26
    %p32 = scmp.eq.s32.totalorder %s13, 0
    %p33 = por %p31, %p32
    %p34 = scmp.ne.s32.totalorder %s23, %s26
    %p35 = scmp.eq.s32.totalorder %s18, 1
    %p36 = por %p34, %p35
    %p37 = scmp.ne.s32.totalorder %s26, %s27
    %p38 = scmp.eq.s32.totalorder %s18, 0
    %p39 = por %p37, %p38
    %p40 = scmp.ne.s32.totalorder %s26, %s27
    %p41 = scmp.eq.s32.totalorder %s19, 1
    %p42 = por %p40, %p41
    %p44 = scmp.ne.s32.totalorder %s27, %s43
    %p45 = scmp.eq.s32.totalorder %s19, 0
    %p46 = por %p44, %p45
    %s48 = sadd.s32 %s47, 1
    %p51 = scmp.eq.s32.totalorder %s13, 1
    %p52 = scmp.ne.s32.totalorder %s47, %s49
    %p53 = scmp.eq.s32.totalorder %s13, 0
    %p54 = por %p52, %p53
    %p55 = scmp.ne.s32.totalorder %s47, %s49
    %p56 = scmp.eq.s32.totalorder %s18, 1
    %p57 = por %p55, %p56
    %p58 = scmp.ne.s32.totalorder %s49, %s50
    %p59 = scmp.eq.s32.totalorder %s18, 0
    %p60 = por %p58, %p59
    %p61 = scmp.ne.s32.totalorder %s49, %s50
    %p62 = scmp.eq.s32.totalorder %s19, 1
    %p63 = por %p61, %p62
    %p65 = scmp.ne.s32.totalorder %s50, %s64
    %p66 = scmp.eq.s32.totalorder %s19, 0
    %p67 = por %p65, %p66
    %s69 = sadd.s32 %s68, 1
    %p72 = scmp.eq.s32.totalorder %s13, 1
    %p73 = scmp.ne.s32.totalorder %s68, %s70
    %p74 = scmp.eq.s32.totalorder %s13, 0
    %p75 = por %p73, %p74
    %p76 = scmp.ne.s32.totalorder %s68, %s70
    %p77 = scmp.eq.s32.totalorder %s18, 1
    %p78 = por %p76, %p77
    %p79 = scmp.ne.s32.totalorder %s70, %s71
    %p80 = scmp.eq.s32.totalorder %s18, 0
    %p81 = por %p79, %p80
    %p82 = scmp.ne.s32.totalorder %s70, %s71
    %p83 = scmp.eq.s32.totalorder %s19, 1
    %p84 = por %p82, %p83
    %p86 = scmp.ne.s32.totalorder %s71, %s85
    %p87 = scmp.eq.s32.totalorder %s19, 0
    %p88 = por %p86, %p87
    %s90 = sadd.s32 %s89, 1
    %p93 = scmp.eq.s32.totalorder %s13, 1
    %p94 = scmp.ne.s32.totalorder %s89, %s91
    %p95 = scmp.eq.s32.totalorder %s13, 0
    %p96 = por %p94, %p95
    %p97 = scmp.ne.s32.totalorder %s89, %s91
    %p98 = scmp.eq.s32.totalorder %s18, 1
    %p99 = por %p97, %p98
    %p100 = scmp.ne.s32.totalorder %s91, %s92
    %p101 = scmp.eq.s32.totalorder %s18, 0
    %p102 = por %p100, %p101
    %p103 = scmp.ne.s32.totalorder %s91, %s92
    %p104 = scmp.eq.s32.totalorder %s19, 1
    %p105 = por %p103, %p104
    %p107 = scmp.ne.s32.totalorder %s92, %s106
    %p108 = scmp.eq.s32.totalorder %s19, 0
    %p109 = por %p107, %p108
    %s110 = ssub.s32 %s13, %s20
    %p111 = scmp.eq.s32.totalorder %s110, 0
    %s113 = sadd.s32 %s112, 1
    %s114 = scalar_select %p111, %s112, %s113
    %p117 = pneg %p111
    %p118 = scmp.eq.s32.totalorder %s13, 1
    %p119 = por %p117, %p118
    %p120 = scmp.ne.s32.totalorder %s112, %s115
    %p121 = scmp.eq.s32.totalorder %s13, 0
    %p122 = por %p120, %p121
    %p123 = scmp.ne.s32.totalorder %s112, %s115
    %p124 = scmp.eq.s32.totalorder %s18, 1
    %p125 = por %p123, %p124
    %p126 = scmp.ne.s32.totalorder %s115, %s116
    %p127 = scmp.eq.s32.totalorder %s18, 0
    %p128 = por %p126, %p127
    %p129 = scmp.ne.s32.totalorder %s115, %s116
    %p130 = scmp.eq.s32.totalorder %s19, 1
    %p131 = por %p129, %p130
    %p133 = scmp.ne.s32.totalorder %s116, %s132
    %p134 = scmp.eq.s32.totalorder %s19, 0
    %p135 = por %p133, %p134
    %s136 = ssub.s32 %s13, %s20
    %p137 = scmp.eq.s32.totalorder %s136, 0
    %s139 = sadd.s32 %s138, 1
    %s140 = scalar_select %p137, %s138, %s139
    %p143 = pneg %p137
    %p144 = scmp.eq.s32.totalorder %s13, 1
    %p145 = por %p143, %p144
    %p146 = scmp.ne.s32.totalorder %s138, %s141
    %p147 = scmp.eq.s32.totalorder %s13, 0
    %p148 = por %p146, %p147
    %p149 = scmp.ne.s32.totalorder %s138, %s141
    %p150 = scmp.eq.s32.totalorder %s18, 1
    %p151 = por %p149, %p150
    %p152 = scmp.ne.s32.totalorder %s141, %s142
    %p153 = scmp.eq.s32.totalorder %s18, 0
    %p154 = por %p152, %p153
    %p155 = scmp.ne.s32.totalorder %s141, %s142
    %p156 = scmp.eq.s32.totalorder %s19, 1
    %p157 = por %p155, %p156
    %p159 = scmp.ne.s32.totalorder %s142, %s158
    %p160 = scmp.eq.s32.totalorder %s19, 0
    %p161 = por %p159, %p160
    %s162 = ssub.s32 %s13, %s20
    %p163 = scmp.eq.s32.totalorder %s162, 0
    %s165 = sadd.s32 %s164, 1
    %s166 = scalar_select %p163, %s164, %s165
    %p169 = pneg %p163
    %p170 = scmp.eq.s32.totalorder %s13, 1
    %p171 = por %p169, %p170
    %p172 = scmp.ne.s32.totalorder %s164, %s167
    %p173 = scmp.eq.s32.totalorder %s13, 0
    %p174 = por %p172, %p173
    %p175 = scmp.ne.s32.totalorder %s164, %s167
    %p176 = scmp.eq.s32.totalorder %s18, 1
    %p177 = por %p175, %p176
    %p178 = scmp.ne.s32.totalorder %s167, %s168
    %p179 = scmp.eq.s32.totalorder %s18, 0
    %p180 = por %p178, %p179
    %p181 = scmp.ne.s32.totalorder %s167, %s168
    %p182 = scmp.eq.s32.totalorder %s19, 1
    %p183 = por %p181, %p182
    %p185 = scmp.ne.s32.totalorder %s168, %s184
    %p186 = scmp.eq.s32.totalorder %s19, 0
    %p187 = por %p185, %p186
    %p188 = scmp.le.s32.totalorder 1, %s13
    %p189 = scmp.lt.s32.totalorder %s13, 3
    %p190 = pnand %p188, %p189
    %p191 = pneg %p190
    // Predicated region
    $region9: #{residual_block.4} parent=5 // pred_check
      _
    $region10: #{residual_block.4} parent=5 // pred_check_branch
      %193 = sbr.rel (%p190) target = $region12
    $region11: #{residual_block.4} parent=5 // pred_region
      %s194 = ssub.s32 %s13, 1
      // Predicated region
      $region13: #{residual_block.4} parent=11 // pred_check
        %p195 = pneg %p60
      $region14: #{residual_block.4} parent=11 // pred_check_branch
        %197 = sbr.rel (%p195) target = $region16
      $region15: #{residual_block.4} parent=11 // pred_region
        _
      $region16: #{residual_block.4} parent=11 // pred_fallthru
        _
      // Predicated region
      $region17: #{residual_block.4} parent=11 // pred_check
        %p198 = pneg %p81
      $region18: #{residual_block.4} parent=11 // pred_check_branch
        %200 = sbr.rel (%p198) target = $region20
      $region19: #{residual_block.4} parent=11 // pred_region
        _
      $region20: #{residual_block.4} parent=11 // pred_fallthru
        _
      // Predicated region
      $region21: #{residual_block.4} parent=11 // pred_check
        %p201 = pneg %p102
      $region22: #{residual_block.4} parent=11 // pred_check_branch
        %203 = sbr.rel (%p201) target = $region24
      $region23: #{residual_block.4} parent=11 // pred_region
        _
      $region24: #{residual_block.4} parent=11 // pred_fallthru
        _
    $region12: #{residual_block.4} parent=5 // pred_fallthru
      _
    %p204 = scmp.lt.s32.totalorder %s13, 2
    // Predicated region
    $region25: #{residual_block.4} parent=5 // pred_check
      %p205 = pneg %p204
    $region26: #{residual_block.4} parent=5 // pred_check_branch
      %207 = sbr.rel (%p205) target = $region28
    $region27: #{residual_block.4} parent=5 // pred_region
      // Predicated region
      $region29: #{residual_block.4} parent=27 // pred_check
        %p208 = pneg %p33
      $region30: #{residual_block.4} parent=27 // pred_check_branch
        %210 = sbr.rel (%p208) target = $region32
      $region31: #{residual_block.4} parent=27 // pred_region
        %p211 = scmp.lt.s32.totalorder %s13, 1
        %s212 = scalar_select %p211, %s13, 1
        %s213 = smul.addr %s212, 32
        %s214 = smul.addr %s213, 4
        %s215 = scalar_lea.vmem %s0, %s214
      $region32: #{residual_block.4} parent=27 // pred_fallthru
        _
    $region28: #{residual_block.4} parent=5 // pred_fallthru
      _
    %p216 = scmp.le.s32.totalorder 1, %s13
    %p217 = scmp.lt.s32.totalorder %s13, 3
    %p218 = pnand %p216, %p217
    %p219 = pneg %p218
    // Predicated region
    $region33: #{residual_block.4} parent=5 // pred_check
      _
    $region34: #{residual_block.4} parent=5 // pred_check_branch
      %221 = sbr.rel (%p218) target = $region36
    $region35: #{residual_block.4} parent=5 // pred_region
      %s222 = ssub.s32 %s13, 1
      %p223 = scmp.lt.s32.totalorder %s18, 1
      %s224 = scalar_select %p223, %s18, 1
      %s225 = smul.addr %s224, 32
      %s226 = smul.addr %s225, 4
      %s227 = scalar_lea.vmem %s0, %s226
      %p228 = pneg %p39
      %p229 = pneg %p36
      %p230 = pneg %p60
      %p231 = pneg %p57
      %p232 = pneg %p81
      %p233 = pneg %p78
      %p234 = pneg %p102
      %p235 = pneg %p99
      %p236 = pneg %p128
      %p237 = pneg %p125
      %p238 = scmp.lt.s32.totalorder %s18, 1
      %s239 = scalar_select %p238, %s18, 1
      %s240 = smul.addr %s239, 32
      %s241 = smul.addr %s240, 4
      %s242 = scalar_lea.vmem %s4, %s241
      %p243 = pneg %p154
      %p244 = pneg %p151
      %p245 = scmp.lt.s32.totalorder %s18, 1
      %s246 = scalar_select %p245, %s18, 1
      %s247 = smul.addr %s246, 8
      %s248 = scalar_lea.vmem %s5, %s247
      %p249 = pneg %p180
      %p250 = pneg %p177
      %p251 = scmp.lt.s32.totalorder %s18, 1
      %s252 = scalar_select %p251, %s18, 1
      %s253 = smul.addr %s252, 8
      %s254 = scalar_lea.vmem %s6, %s253
      %p255 = scmp.lt.s32.totalorder %s18, 1
      %s256 = scalar_select %p255, %s18, 1
      %s257 = smul.addr %s256, 32
      %s258 = smul.addr %s257, 4
      %s259 = scalar_lea.vmem %s0, %s258
      %p260 = scmp.lt.s32.totalorder %s18, 1
      %s261 = scalar_select %p260, %s18, 1
      %s262 = smul.addr %s261, 32
      %s263 = smul.addr %s262, 4
      %s264 = scalar_lea.vmem %s4, %s263
      %p265 = scmp.lt.s32.totalorder %s18, 1
      %s266 = scalar_select %p265, %s18, 1
      %s267 = smul.addr %s266, 8
      %s268 = scalar_lea.vmem %s5, %s267
      %p269 = scmp.lt.s32.totalorder %s18, 1
      %s270 = scalar_select %p269, %s18, 1
      %s271 = smul.addr %s270, 8
      %s272 = scalar_lea.vmem %s6, %s271
      %v274 = vld [vmem:[%s259] sm:$0xf]
      %v275 = vld [vmem:[%s259 + $0x4] sm:$0xf]
      %v276 = vld [vmem:[%s259 + $0x8] sm:$0xf]
      %v277 = vld [vmem:[%s259 + $0xc] sm:$0xf]
      %v278 = vld [vmem:[%s259 + $0x10] sm:$0xf]
      %v279 = vld [vmem:[%s259 + $0x14] sm:$0xf]
      %v280 = vld [vmem:[%s259 + $0x18] sm:$0xf]
      %v281 = vld [vmem:[%s259 + $0x1c] sm:$0xf]
      %v282 = vld [vmem:[%s259 + $0x20] sm:$0xf]
      %v283 = vld [vmem:[%s259 + $0x24] sm:$0xf]
      %v284 = vld [vmem:[%s259 + $0x28] sm:$0xf]
      %v285 = vld [vmem:[%s259 + $0x2c] sm:$0xf]
      %v286 = vld [vmem:[%s259 + $0x30] sm:$0xf]
      %v287 = vld [vmem:[%s259 + $0x34] sm:$0xf]
      %v288 = vld [vmem:[%s259 + $0x38] sm:$0xf]
      %v289 = vld [vmem:[%s259 + $0x3c] sm:$0xf]
      %v290 = vld [vmem:[%s259 + $0x40] sm:$0xf]
      %v291 = vld [vmem:[%s259 + $0x44] sm:$0xf]
      %v292 = vld [vmem:[%s259 + $0x48] sm:$0xf]
      %v293 = vld [vmem:[%s259 + $0x4c] sm:$0xf]
      %v294 = vld [vmem:[%s259 + $0x50] sm:$0xf]
      %v295 = vld [vmem:[%s259 + $0x54] sm:$0xf]
      %v296 = vld [vmem:[%s259 + $0x58] sm:$0xf]
      %v297 = vld [vmem:[%s259 + $0x5c] sm:$0xf]
      %v298 = vld [vmem:[%s259 + $0x60] sm:$0xf]
      %v299 = vld [vmem:[%s259 + $0x64] sm:$0xf]
      %v300 = vld [vmem:[%s259 + $0x68] sm:$0xf]
      %v301 = vld [vmem:[%s259 + $0x6c] sm:$0xf]
      %v302 = vld [vmem:[%s259 + $0x70] sm:$0xf]
      %v303 = vld [vmem:[%s259 + $0x74] sm:$0xf]
      %v304 = vld [vmem:[%s259 + $0x78] sm:$0xf]
      %v305 = vld [vmem:[%s259 + $0x7c] sm:$0xf]
      %v306 = vunpack.c.l.bf16 %v274
      %v307 = vunpack.c.l.bf16 %v275
      %v308 = vunpack.c.l.bf16 %v276
      %v309 = vunpack.c.l.bf16 %v277
      %v310 = vunpack.c.l.bf16 %v278
      %v311 = vunpack.c.l.bf16 %v279
      %v312 = vunpack.c.l.bf16 %v280
      %v313 = vunpack.c.l.bf16 %v281
      %v314 = vunpack.c.l.bf16 %v282
      %v315 = vunpack.c.l.bf16 %v283
      %v316 = vunpack.c.l.bf16 %v284
      %v317 = vunpack.c.l.bf16 %v285
      %v318 = vunpack.c.l.bf16 %v286
      %v319 = vunpack.c.l.bf16 %v287
      %v320 = vunpack.c.l.bf16 %v288
      %v321 = vunpack.c.l.bf16 %v289
      %v322 = vunpack.c.l.bf16 %v290
      %v323 = vunpack.c.l.bf16 %v291
      %v324 = vunpack.c.l.bf16 %v292
      %v325 = vunpack.c.l.bf16 %v293
      %v326 = vunpack.c.l.bf16 %v294
      %v327 = vunpack.c.l.bf16 %v295
      %v328 = vunpack.c.l.bf16 %v296
      %v329 = vunpack.c.l.bf16 %v297
      %v330 = vunpack.c.l.bf16 %v298
      %v331 = vunpack.c.l.bf16 %v299
      %v332 = vunpack.c.l.bf16 %v300
      %v333 = vunpack.c.l.bf16 %v301
      %v334 = vunpack.c.l.bf16 %v302
      %v335 = vunpack.c.l.bf16 %v303
      %v336 = vunpack.c.l.bf16 %v304
      %v337 = vunpack.c.l.bf16 %v305
      %v338 = vld [vmem:[%s1] sm:$0x1]
      %v340 = vlaneseq
      %v341 = vshrl.u32 %v340, 7
      %v342 = vsub.s32 0, %v341
      %v343 = vrot.slane %v338, %v342
      %v345 = vmul.f32 %v306, %v343
      %v346 = vmul.f32 %v307, %v343
      %v347 = vmul.f32 %v308, %v343
      %v348 = vmul.f32 %v309, %v343
      %v349 = vmul.f32 %v310, %v343
      %v350 = vmul.f32 %v311, %v343
      %v351 = vmul.f32 %v312, %v343
      %v352 = vmul.f32 %v313, %v343
      %v353 = vmul.f32 %v314, %v343
      %v354 = vmul.f32 %v315, %v343
      %v355 = vmul.f32 %v316, %v343
      %v356 = vmul.f32 %v317, %v343
      %v357 = vmul.f32 %v318, %v343
      %v358 = vmul.f32 %v319, %v343
      %v359 = vmul.f32 %v320, %v343
      %v360 = vmul.f32 %v321, %v343
      %v361 = vmul.f32 %v322, %v343
      %v362 = vmul.f32 %v323, %v343
      %v363 = vmul.f32 %v324, %v343
      %v364 = vmul.f32 %v325, %v343
      %v365 = vmul.f32 %v326, %v343
      %v366 = vmul.f32 %v327, %v343
      %v367 = vmul.f32 %v328, %v343
      %v368 = vmul.f32 %v329, %v343
      %v369 = vmul.f32 %v330, %v343
      %v370 = vmul.f32 %v331, %v343
      %v371 = vmul.f32 %v332, %v343
      %v372 = vmul.f32 %v333, %v343
      %v373 = vmul.f32 %v334, %v343
      %v374 = vmul.f32 %v335, %v343
      %v375 = vmul.f32 %v336, %v343
      %v376 = vmul.f32 %v337, %v343
      %v377 = vld [vmem:[%s2] sm:$0x1]
      %v379 = vlaneseq
      %v380 = vshrl.u32 %v379, 7
      %v381 = vsub.s32 0, %v380
      %v382 = vrot.slane %v377, %v381
      %v384 = vadd.f32 %v345, %v382
      %v385 = vadd.f32 %v346, %v382
      %v386 = vadd.f32 %v347, %v382
      %v387 = vadd.f32 %v348, %v382
      %v388 = vadd.f32 %v349, %v382
      %v389 = vadd.f32 %v350, %v382
      %v390 = vadd.f32 %v351, %v382
      %v391 = vadd.f32 %v352, %v382
      %v392 = vadd.f32 %v353, %v382
      %v393 = vadd.f32 %v354, %v382
      %v394 = vadd.f32 %v355, %v382
      %v395 = vadd.f32 %v356, %v382
      %v396 = vadd.f32 %v357, %v382
      %v397 = vadd.f32 %v358, %v382
      %v398 = vadd.f32 %v359, %v382
      %v399 = vadd.f32 %v360, %v382
      %v400 = vadd.f32 %v361, %v382
      %v401 = vadd.f32 %v362, %v382
      %v402 = vadd.f32 %v363, %v382
      %v403 = vadd.f32 %v364, %v382
      %v404 = vadd.f32 %v365, %v382
      %v405 = vadd.f32 %v366, %v382
      %v406 = vadd.f32 %v367, %v382
      %v407 = vadd.f32 %v368, %v382
      %v408 = vadd.f32 %v369, %v382
      %v409 = vadd.f32 %v370, %v382
      %v410 = vadd.f32 %v371, %v382
      %v411 = vadd.f32 %v372, %v382
      %v412 = vadd.f32 %v373, %v382
      %v413 = vadd.f32 %v374, %v382
      %v414 = vadd.f32 %v375, %v382
      %v415 = vadd.f32 %v376, %v382
      %v416 = vmax.f32 %v384, 0.0
      %v417 = vmax.f32 %v385, 0.0
      %v418 = vmax.f32 %v386, 0.0
      %v419 = vmax.f32 %v387, 0.0
      %v420 = vmax.f32 %v388, 0.0
      %v421 = vmax.f32 %v389, 0.0
      %v422 = vmax.f32 %v390, 0.0
      %v423 = vmax.f32 %v391, 0.0
      %v424 = vmax.f32 %v392, 0.0
      %v425 = vmax.f32 %v393, 0.0
      %v426 = vmax.f32 %v394, 0.0
      %v427 = vmax.f32 %v395, 0.0
      %v428 = vmax.f32 %v396, 0.0
      %v429 = vmax.f32 %v397, 0.0
      %v430 = vmax.f32 %v398, 0.0
      %v431 = vmax.f32 %v399, 0.0
      %v432 = vmax.f32 %v400, 0.0
      %v433 = vmax.f32 %v401, 0.0
      %v434 = vmax.f32 %v402, 0.0
      %v435 = vmax.f32 %v403, 0.0
      %v436 = vmax.f32 %v404, 0.0
      %v437 = vmax.f32 %v405, 0.0
      %v438 = vmax.f32 %v406, 0.0
      %v439 = vmax.f32 %v407, 0.0
      %v440 = vmax.f32 %v408, 0.0
      %v441 = vmax.f32 %v409, 0.0
      %v442 = vmax.f32 %v410, 0.0
      %v443 = vmax.f32 %v411, 0.0
      %v444 = vmax.f32 %v412, 0.0
      %v445 = vmax.f32 %v413, 0.0
      %v446 = vmax.f32 %v414, 0.0
      %v447 = vmax.f32 %v415, 0.0
      %448 = vst [vmem:[#allocation2] sm:$0xf] 0
      %449 = vst [vmem:[#allocation2 + $0x4] sm:$0xf] 0
      %450 = vst [vmem:[#allocation2 + $0x8] sm:$0x1] 0
      %s451 = scalar_lea.vmem [#allocation2], 204
      %452 = vst [vmem:[%s451] sm:$0xf] 0
      %453 = vst [vmem:[%s451 + $0x4] sm:$0xf] 0
      %454 = vst [vmem:[%s451 + $0x8] sm:$0x1] 0
      %vm455 = vcmask 1040384
      %vm456 = vsmask.f32 256
      %vm457 = vmand %vm455, %vm456
      %v458 = vld [vmem:[#allocation2] sm:$0x1]
      %v459 = vsel %vm457, 0, %v458
      %460 = vst [vmem:[#allocation2] sm:$0x1] %v459
      %v461 = vld [vmem:[#allocation2 + $0xc] sm:$0x1]
      %v462 = vsel %vm457, 0, %v461
      %463 = vst [vmem:[#allocation2 + $0xc] sm:$0x1] %v462
      %v464 = vld [vmem:[#allocation2 + $0x18] sm:$0x1]
      %v465 = vsel %vm457, 0, %v464
      %466 = vst [vmem:[#allocation2 + $0x18] sm:$0x1] %v465
      %v467 = vld [vmem:[#allocation2 + $0x24] sm:$0x1]
      %v468 = vsel %vm457, 0, %v467
      %469 = vst [vmem:[#allocation2 + $0x24] sm:$0x1] %v468
      %v470 = vld [vmem:[#allocation2 + $0x30] sm:$0x1]
      %v471 = vsel %vm457, 0, %v470
      %472 = vst [vmem:[#allocation2 + $0x30] sm:$0x1] %v471
      %v473 = vld [vmem:[#allocation2 + $0x3c] sm:$0x1]
      %v474 = vsel %vm457, 0, %v473
      %475 = vst [vmem:[#allocation2 + $0x3c] sm:$0x1] %v474
      %v476 = vld [vmem:[#allocation2 + $0x48] sm:$0x1]
      %v477 = vsel %vm457, 0, %v476
      %478 = vst [vmem:[#allocation2 + $0x48] sm:$0x1] %v477
      %v479 = vld [vmem:[#allocation2 + $0x54] sm:$0x1]
      %v480 = vsel %vm457, 0, %v479
      %481 = vst [vmem:[#allocation2 + $0x54] sm:$0x1] %v480
      %v482 = vld [vmem:[#allocation2 + $0x60] sm:$0x1]
      %v483 = vsel %vm457, 0, %v482
      %484 = vst [vmem:[#allocation2 + $0x60] sm:$0x1] %v483
      %v485 = vld [vmem:[#allocation2 + $0x6c] sm:$0x1]
      %v486 = vsel %vm457, 0, %v485
      %487 = vst [vmem:[#allocation2 + $0x6c] sm:$0x1] %v486
      %v488 = vld [vmem:[#allocation2 + $0x78] sm:$0x1]
      %v489 = vsel %vm457, 0, %v488
      %490 = vst [vmem:[#allocation2 + $0x78] sm:$0x1] %v489
      %v491 = vld [vmem:[#allocation2 + $0x84] sm:$0x1]
      %v492 = vsel %vm457, 0, %v491
      %493 = vst [vmem:[#allocation2 + $0x84] sm:$0x1] %v492
      %v494 = vld [vmem:[#allocation2 + $0x90] sm:$0x1]
      %v495 = vsel %vm457, 0, %v494
      %496 = vst [vmem:[#allocation2 + $0x90] sm:$0x1] %v495
      %v497 = vld [vmem:[#allocation2 + $0x9c] sm:$0x1]
      %v498 = vsel %vm457, 0, %v497
      %499 = vst [vmem:[#allocation2 + $0x9c] sm:$0x1] %v498
      %v500 = vld [vmem:[#allocation2 + $0xa8] sm:$0x1]
      %v501 = vsel %vm457, 0, %v500
      %502 = vst [vmem:[#allocation2 + $0xa8] sm:$0x1] %v501
      %v503 = vld [vmem:[#allocation2 + $0xb4] sm:$0x1]
      %v504 = vsel %vm457, 0, %v503
      %505 = vst [vmem:[#allocation2 + $0xb4] sm:$0x1] %v504
      %v506 = vld [vmem:[#allocation2 + $0xc0] sm:$0x1]
      %v507 = vsel %vm457, 0, %v506
      %508 = vst [vmem:[#allocation2 + $0xc0] sm:$0x1] %v507
      %v509 = vld [vmem:[#allocation2 + $0xcc] sm:$0x1]
      %v510 = vsel %vm457, 0, %v509
      %511 = vst [vmem:[#allocation2 + $0xcc] sm:$0x1] %v510
      %vm512 = vsmask.f32 7938
      %vm513 = vmand %vm455, %vm512
      %v514 = vld [vmem:[#allocation2 + $0x8] sm:$0x1]
      %v515 = vsel %vm513, 0, %v514
      %516 = vst [vmem:[#allocation2 + $0x8] sm:$0x1] %v515
      %v517 = vld [vmem:[#allocation2 + $0x14] sm:$0x1]
      %v518 = vsel %vm513, 0, %v517
      %519 = vst [vmem:[#allocation2 + $0x14] sm:$0x1] %v518
      %v520 = vld [vmem:[#allocation2 + $0x20] sm:$0x1]
      %v521 = vsel %vm513, 0, %v520
      %522 = vst [vmem:[#allocation2 + $0x20] sm:$0x1] %v521
      %v523 = vld [vmem:[#allocation2 + $0x2c] sm:$0x1]
      %v524 = vsel %vm513, 0, %v523
      %525 = vst [vmem:[#allocation2 + $0x2c] sm:$0x1] %v524
      %v526 = vld [vmem:[#allocation2 + $0x38] sm:$0x1]
      %v527 = vsel %vm513, 0, %v526
      %528 = vst [vmem:[#allocation2 + $0x38] sm:$0x1] %v527
      %v529 = vld [vmem:[#allocation2 + $0x44] sm:$0x1]
      %v530 = vsel %vm513, 0, %v529
      %531 = vst [vmem:[#allocation2 + $0x44] sm:$0x1] %v530
      %v532 = vld [vmem:[#allocation2 + $0x50] sm:$0x1]
      %v533 = vsel %vm513, 0, %v532
      %534 = vst [vmem:[#allocation2 + $0x50] sm:$0x1] %v533
      %v535 = vld [vmem:[#allocation2 + $0x5c] sm:$0x1]
      %v536 = vsel %vm513, 0, %v535
      %537 = vst [vmem:[#allocation2 + $0x5c] sm:$0x1] %v536
      %v538 = vld [vmem:[#allocation2 + $0x68] sm:$0x1]
      %v539 = vsel %vm513, 0, %v538
      %540 = vst [vmem:[#allocation2 + $0x68] sm:$0x1] %v539
      %v541 = vld [vmem:[#allocation2 + $0x74] sm:$0x1]
      %v542 = vsel %vm513, 0, %v541
      %543 = vst [vmem:[#allocation2 + $0x74] sm:$0x1] %v542
      %v544 = vld [vmem:[#allocation2 + $0x80] sm:$0x1]
      %v545 = vsel %vm513, 0, %v544
      %546 = vst [vmem:[#allocation2 + $0x80] sm:$0x1] %v545
      %v547 = vld [vmem:[#allocation2 + $0x8c] sm:$0x1]
      %v548 = vsel %vm513, 0, %v547
      %549 = vst [vmem:[#allocation2 + $0x8c] sm:$0x1] %v548
      %v550 = vld [vmem:[#allocation2 + $0x98] sm:$0x1]
      %v551 = vsel %vm513, 0, %v550
      %552 = vst [vmem:[#allocation2 + $0x98] sm:$0x1] %v551
      %v553 = vld [vmem:[#allocation2 + $0xa4] sm:$0x1]
      %v554 = vsel %vm513, 0, %v553
      %555 = vst [vmem:[#allocation2 + $0xa4] sm:$0x1] %v554
      %v556 = vld [vmem:[#allocation2 + $0xb0] sm:$0x1]
      %v557 = vsel %vm513, 0, %v556
      %558 = vst [vmem:[#allocation2 + $0xb0] sm:$0x1] %v557
      %v559 = vld [vmem:[#allocation2 + $0xbc] sm:$0x1]
      %v560 = vsel %vm513, 0, %v559
      %561 = vst [vmem:[#allocation2 + $0xbc] sm:$0x1] %v560
      %v562 = vld [vmem:[#allocation2 + $0xc8] sm:$0x1]
      %v563 = vsel %vm513, 0, %v562
      %564 = vst [vmem:[#allocation2 + $0xc8] sm:$0x1] %v563
      %v565 = vld [vmem:[#allocation2 + $0xd4] sm:$0x1]
      %v566 = vsel %vm513, 0, %v565
      %567 = vst [vmem:[#allocation2 + $0xd4] sm:$0x1] %v566
      %v568 = vpack.c.bf16 %v417, %v416
      %v569 = vpack.c.bf16 %v419, %v418
      %v570 = vpack.c.bf16 %v421, %v420
      %v571 = vpack.c.bf16 %v423, %v422
      %v572 = vpack.c.bf16 %v425, %v424
      %v573 = vpack.c.bf16 %v427, %v426
      %v574 = vpack.c.bf16 %v429, %v428
      %v575 = vpack.c.bf16 %v431, %v430
      %v576 = vpack.c.bf16 %v433, %v432
      %v577 = vpack.c.bf16 %v435, %v434
      %v578 = vpack.c.bf16 %v437, %v436
      %v579 = vpack.c.bf16 %v439, %v438
      %v580 = vpack.c.bf16 %v441, %v440
      %v581 = vpack.c.bf16 %v443, %v442
      %v582 = vpack.c.bf16 %v445, %v444
      %v583 = vpack.c.bf16 %v447, %v446
      %v600 = vunpack.c.l.b16 %v568
      %v601 = vunpack.c.h.b16 %v568
      %v602 = vunpack.c.l.b16 %v569
      %v603 = vunpack.c.h.b16 %v569
      %v604 = vunpack.c.l.b16 %v570
      %v605 = vunpack.c.h.b16 %v570
      %v606 = vunpack.c.l.b16 %v571
      %v607 = vunpack.c.h.b16 %v571
      %v608 = vunpack.c.l.b16 %v572
      %v609 = vunpack.c.h.b16 %v572
      %v610 = vunpack.c.l.b16 %v573
      %v611 = vunpack.c.h.b16 %v573
      %v612 = vunpack.c.l.b16 %v574
      %v613 = vunpack.c.h.b16 %v574
      %v614 = vunpack.c.l.b16 %v575
      %v615 = vunpack.c.h.b16 %v575
      %v616 = vunpack.c.l.b16 %v576
      %v617 = vunpack.c.h.b16 %v576
      %v618 = vunpack.c.l.b16 %v577
      %v619 = vunpack.c.h.b16 %v577
      %v620 = vunpack.c.l.b16 %v578
      %v621 = vunpack.c.h.b16 %v578
      %v622 = vunpack.c.l.b16 %v579
      %v623 = vunpack.c.h.b16 %v579
      %v624 = vunpack.c.l.b16 %v580
      %v625 = vunpack.c.h.b16 %v580
      %v626 = vunpack.c.l.b16 %v581
      %v627 = vunpack.c.h.b16 %v581
      %v628 = vunpack.c.l.b16 %v582
      %v629 = vunpack.c.h.b16 %v582
      %v630 = vunpack.c.l.b16 %v583
      %v631 = vunpack.c.h.b16 %v583
      %v632 = vpack.c.b16 %v600, %v600
      %v633 = vpack.c.b16 %v601, %v601
      %v634 = vpack.c.b16 %v602, %v602
      %v635 = vpack.c.b16 %v603, %v603
      %v636 = vpack.c.b16 %v604, %v604
      %v637 = vpack.c.b16 %v605, %v605
      %v638 = vpack.c.b16 %v606, %v606
      %v639 = vpack.c.b16 %v607, %v607
      %v640 = vpack.c.b16 %v608, %v608
      %v641 = vpack.c.b16 %v609, %v609
      %v642 = vpack.c.b16 %v610, %v610
      %v643 = vpack.c.b16 %v611, %v611
      %v644 = vpack.c.b16 %v612, %v612
      %v645 = vpack.c.b16 %v613, %v613
      %v646 = vpack.c.b16 %v614, %v614
      %v647 = vpack.c.b16 %v615, %v615
      %v648 = vpack.c.b16 %v616, %v616
      %v649 = vpack.c.b16 %v617, %v617
      %v650 = vpack.c.b16 %v618, %v618
      %v651 = vpack.c.b16 %v619, %v619
      %v652 = vpack.c.b16 %v620, %v620
      %v653 = vpack.c.b16 %v621, %v621
      %v654 = vpack.c.b16 %v622, %v622
      %v655 = vpack.c.b16 %v623, %v623
      %v656 = vpack.c.b16 %v624, %v624
      %v657 = vpack.c.b16 %v625, %v625
      %v658 = vpack.c.b16 %v626, %v626
      %v659 = vpack.c.b16 %v627, %v627
      %v660 = vpack.c.b16 %v628, %v628
      %v661 = vpack.c.b16 %v629, %v629
      %v662 = vpack.c.b16 %v630, %v630
      %v663 = vpack.c.b16 %v631, %v631
      %vm664 = vsmask.f32 4368
      %vm665 = vmor %vm456, %vm664
      %v667 = vshrl.u32 %v632, 16
      %v669 = vrot.slane %v667, 7
      %v670 = vshll.u32 %v632, 16
      %v672 = vor.u32 %v669, %v670
      %v673 = vrot.slane %v669, 4
      %v675 = vshrl.u32 %v633, 16
      %v677 = vrot.slane %v675, 7
      %v678 = vshll.u32 %v633, 16
      %v680 = vor.u32 %v677, %v678
      %v681 = vsel %vm665, %v673, %v680
      %v682 = vrot.slane %v677, 4
      %v684 = vshrl.u32 %v634, 16
      %v686 = vrot.slane %v684, 7
      %v687 = vshll.u32 %v634, 16
      %v689 = vor.u32 %v686, %v687
      %v690 = vrot.slane %v686, 4
      %v692 = vshrl.u32 %v635, 16
      %v694 = vrot.slane %v692, 7
      %v695 = vshll.u32 %v635, 16
      %v697 = vor.u32 %v694, %v695
      %v698 = vsel %vm665, %v690, %v697
      %v699 = vrot.slane %v694, 4
      %v701 = vshrl.u32 %v636, 16
      %v703 = vrot.slane %v701, 7
      %v704 = vshll.u32 %v636, 16
      %v706 = vor.u32 %v703, %v704
      %v707 = vrot.slane %v703, 4
      %v709 = vshrl.u32 %v637, 16
      %v711 = vrot.slane %v709, 7
      %v712 = vshll.u32 %v637, 16
      %v714 = vor.u32 %v711, %v712
      %v715 = vsel %vm665, %v707, %v714
      %v716 = vrot.slane %v711, 4
      %v718 = vshrl.u32 %v638, 16
      %v720 = vrot.slane %v718, 7
      %v721 = vshll.u32 %v638, 16
      %v723 = vor.u32 %v720, %v721
      %v724 = vrot.slane %v720, 4
      %v726 = vshrl.u32 %v639, 16
      %v728 = vrot.slane %v726, 7
      %v729 = vshll.u32 %v639, 16
      %v731 = vor.u32 %v728, %v729
      %v732 = vsel %vm665, %v724, %v731
      %v733 = vrot.slane %v728, 4
      %v735 = vshrl.u32 %v640, 16
      %v737 = vrot.slane %v735, 7
      %v738 = vshll.u32 %v640, 16
      %v740 = vor.u32 %v737, %v738
      %v741 = vrot.slane %v737, 4
      %v743 = vshrl.u32 %v641, 16
      %v745 = vrot.slane %v743, 7
      %v746 = vshll.u32 %v641, 16
      %v748 = vor.u32 %v745, %v746
      %v749 = vsel %vm665, %v741, %v748
      %v750 = vrot.slane %v745, 4
      %v752 = vshrl.u32 %v642, 16
      %v754 = vrot.slane %v752, 7
      %v755 = vshll.u32 %v642, 16
      %v757 = vor.u32 %v754, %v755
      %v758 = vrot.slane %v754, 4
      %v760 = vshrl.u32 %v643, 16
      %v762 = vrot.slane %v760, 7
      %v763 = vshll.u32 %v643, 16
      %v765 = vor.u32 %v762, %v763
      %v766 = vsel %vm665, %v758, %v765
      %v767 = vrot.slane %v762, 4
      %v769 = vshrl.u32 %v644, 16
      %v771 = vrot.slane %v769, 7
      %v772 = vshll.u32 %v644, 16
      %v774 = vor.u32 %v771, %v772
      %v775 = vrot.slane %v771, 4
      %v777 = vshrl.u32 %v645, 16
      %v779 = vrot.slane %v777, 7
      %v780 = vshll.u32 %v645, 16
      %v782 = vor.u32 %v779, %v780
      %v783 = vsel %vm665, %v775, %v782
      %v784 = vrot.slane %v779, 4
      %v786 = vshrl.u32 %v646, 16
      %v788 = vrot.slane %v786, 7
      %v789 = vshll.u32 %v646, 16
      %v791 = vor.u32 %v788, %v789
      %v792 = vrot.slane %v788, 4
      %v794 = vshrl.u32 %v647, 16
      %v796 = vrot.slane %v794, 7
      %v797 = vshll.u32 %v647, 16
      %v799 = vor.u32 %v796, %v797
      %v800 = vsel %vm665, %v792, %v799
      %v801 = vrot.slane %v796, 4
      %v803 = vshrl.u32 %v648, 16
      %v805 = vrot.slane %v803, 7
      %v806 = vshll.u32 %v648, 16
      %v808 = vor.u32 %v805, %v806
      %v809 = vrot.slane %v805, 4
      %v811 = vshrl.u32 %v649, 16
      %v813 = vrot.slane %v811, 7
      %v814 = vshll.u32 %v649, 16
      %v816 = vor.u32 %v813, %v814
      %v817 = vsel %vm665, %v809, %v816
      %v818 = vrot.slane %v813, 4
      %v820 = vshrl.u32 %v650, 16
      %v822 = vrot.slane %v820, 7
      %v823 = vshll.u32 %v650, 16
      %v825 = vor.u32 %v822, %v823
      %v826 = vrot.slane %v822, 4
      %v828 = vshrl.u32 %v651, 16
      %v830 = vrot.slane %v828, 7
      %v831 = vshll.u32 %v651, 16
      %v833 = vor.u32 %v830, %v831
      %v834 = vsel %vm665, %v826, %v833
      %v835 = vrot.slane %v830, 4
      %v837 = vshrl.u32 %v652, 16
      %v839 = vrot.slane %v837, 7
      %v840 = vshll.u32 %v652, 16
      %v842 = vor.u32 %v839, %v840
      %v843 = vrot.slane %v839, 4
      %v845 = vshrl.u32 %v653, 16
      %v847 = vrot.slane %v845, 7
      %v848 = vshll.u32 %v653, 16
      %v850 = vor.u32 %v847, %v848
      %v851 = vsel %vm665, %v843, %v850
      %v852 = vrot.slane %v847, 4
      %v854 = vshrl.u32 %v654, 16
      %v856 = vrot.slane %v854, 7
      %v857 = vshll.u32 %v654, 16
      %v859 = vor.u32 %v856, %v857
      %v860 = vrot.slane %v856, 4
      %v862 = vshrl.u32 %v655, 16
      %v864 = vrot.slane %v862, 7
      %v865 = vshll.u32 %v655, 16
      %v867 = vor.u32 %v864, %v865
      %v868 = vsel %vm665, %v860, %v867
      %v869 = vrot.slane %v864, 4
      %v871 = vshrl.u32 %v656, 16
      %v873 = vrot.slane %v871, 7
      %v874 = vshll.u32 %v656, 16
      %v876 = vor.u32 %v873, %v874
      %v877 = vrot.slane %v873, 4
      %v879 = vshrl.u32 %v657, 16
      %v881 = vrot.slane %v879, 7
      %v882 = vshll.u32 %v657, 16
      %v884 = vor.u32 %v881, %v882
      %v885 = vsel %vm665, %v877, %v884
      %v886 = vrot.slane %v881, 4
      %v888 = vshrl.u32 %v658, 16
      %v890 = vrot.slane %v888, 7
      %v891 = vshll.u32 %v658, 16
      %v893 = vor.u32 %v890, %v891
      %v894 = vrot.slane %v890, 4
      %v896 = vshrl.u32 %v659, 16
      %v898 = vrot.slane %v896, 7
      %v899 = vshll.u32 %v659, 16
      %v901 = vor.u32 %v898, %v899
      %v902 = vsel %vm665, %v894, %v901
      %v903 = vrot.slane %v898, 4
      %v905 = vshrl.u32 %v660, 16
      %v907 = vrot.slane %v905, 7
      %v908 = vshll.u32 %v660, 16
      %v910 = vor.u32 %v907, %v908
      %v911 = vrot.slane %v907, 4
      %v913 = vshrl.u32 %v661, 16
      %v915 = vrot.slane %v913, 7
      %v916 = vshll.u32 %v661, 16
      %v918 = vor.u32 %v915, %v916
      %v919 = vsel %vm665, %v911, %v918
      %v920 = vrot.slane %v915, 4
      %v922 = vshrl.u32 %v662, 16
      %v924 = vrot.slane %v922, 7
      %v925 = vshll.u32 %v662, 16
      %v927 = vor.u32 %v924, %v925
      %v928 = vrot.slane %v924, 4
      %v930 = vshrl.u32 %v663, 16
      %v932 = vrot.slane %v930, 7
      %v933 = vshll.u32 %v663, 16
      %v935 = vor.u32 %v932, %v933
      %v936 = vsel %vm665, %v928, %v935
      %v937 = vrot.slane %v932, 4
      %s986 = scalar_lea.vmem [#allocation2], 12
      %vm987 = vcmask 1043456
      %vm988 = vmand %vm987, %vm512
      %v989 = vld [vmem:[%s986] sm:$0xf]
      %v990 = vsel %vm988, %v672, %v989
      %991 = vst [vmem:[%s986] sm:$0xf] %v990
      %992 = vst [vmem:[%s986 + $0x4] sm:$0xf] %v681
      %v993 = vld [vmem:[%s986 + $0x8] sm:$0x1]
      %v994 = vsel %vm457, %v682, %v993
      %995 = vst [vmem:[%s986 + $0x8] sm:$0x1] %v994
      %v996 = vld [vmem:[%s986 + $0xc] sm:$0xf]
      %v997 = vsel %vm988, %v689, %v996
      %998 = vst [vmem:[%s986 + $0xc] sm:$0xf] %v997
      %999 = vst [vmem:[%s986 + $0x10] sm:$0xf] %v698
      %v1000 = vld [vmem:[%s986 + $0x14] sm:$0x1]
      %v1001 = vsel %vm457, %v699, %v1000
      %1002 = vst [vmem:[%s986 + $0x14] sm:$0x1] %v1001
      %v1003 = vld [vmem:[%s986 + $0x18] sm:$0xf]
      %v1004 = vsel %vm988, %v706, %v1003
      %1005 = vst [vmem:[%s986 + $0x18] sm:$0xf] %v1004
      %1006 = vst [vmem:[%s986 + $0x1c] sm:$0xf] %v715
      %v1007 = vld [vmem:[%s986 + $0x20] sm:$0x1]
      %v1008 = vsel %vm457, %v716, %v1007
      %1009 = vst [vmem:[%s986 + $0x20] sm:$0x1] %v1008
      %v1010 = vld [vmem:[%s986 + $0x24] sm:$0xf]
      %v1011 = vsel %vm988, %v723, %v1010
      %1012 = vst [vmem:[%s986 + $0x24] sm:$0xf] %v1011
      %1013 = vst [vmem:[%s986 + $0x28] sm:$0xf] %v732
      %v1014 = vld [vmem:[%s986 + $0x2c] sm:$0x1]
      %v1015 = vsel %vm457, %v733, %v1014
      %1016 = vst [vmem:[%s986 + $0x2c] sm:$0x1] %v1015
      %v1017 = vld [vmem:[%s986 + $0x30] sm:$0xf]
      %v1018 = vsel %vm988, %v740, %v1017
      %1019 = vst [vmem:[%s986 + $0x30] sm:$0xf] %v1018
      %1020 = vst [vmem:[%s986 + $0x34] sm:$0xf] %v749
      %v1021 = vld [vmem:[%s986 + $0x38] sm:$0x1]
      %v1022 = vsel %vm457, %v750, %v1021
      %1023 = vst [vmem:[%s986 + $0x38] sm:$0x1] %v1022
      %v1024 = vld [vmem:[%s986 + $0x3c] sm:$0xf]
      %v1025 = vsel %vm988, %v757, %v1024
      %1026 = vst [vmem:[%s986 + $0x3c] sm:$0xf] %v1025
      %1027 = vst [vmem:[%s986 + $0x40] sm:$0xf] %v766
      %v1028 = vld [vmem:[%s986 + $0x44] sm:$0x1]
      %v1029 = vsel %vm457, %v767, %v1028
      %1030 = vst [vmem:[%s986 + $0x44] sm:$0x1] %v1029
      %v1031 = vld [vmem:[%s986 + $0x48] sm:$0xf]
      %v1032 = vsel %vm988, %v774, %v1031
      %1033 = vst [vmem:[%s986 + $0x48] sm:$0xf] %v1032
      %1034 = vst [vmem:[%s986 + $0x4c] sm:$0xf] %v783
      %v1035 = vld [vmem:[%s986 + $0x50] sm:$0x1]
      %v1036 = vsel %vm457, %v784, %v1035
      %1037 = vst [vmem:[%s986 + $0x50] sm:$0x1] %v1036
      %v1038 = vld [vmem:[%s986 + $0x54] sm:$0xf]
      %v1039 = vsel %vm988, %v791, %v1038
      %1040 = vst [vmem:[%s986 + $0x54] sm:$0xf] %v1039
      %1041 = vst [vmem:[%s986 + $0x58] sm:$0xf] %v800
      %v1042 = vld [vmem:[%s986 + $0x5c] sm:$0x1]
      %v1043 = vsel %vm457, %v801, %v1042
      %1044 = vst [vmem:[%s986 + $0x5c] sm:$0x1] %v1043
      %v1045 = vld [vmem:[%s986 + $0x60] sm:$0xf]
      %v1046 = vsel %vm988, %v808, %v1045
      %1047 = vst [vmem:[%s986 + $0x60] sm:$0xf] %v1046
      %1048 = vst [vmem:[%s986 + $0x64] sm:$0xf] %v817
      %v1049 = vld [vmem:[%s986 + $0x68] sm:$0x1]
      %v1050 = vsel %vm457, %v818, %v1049
      %1051 = vst [vmem:[%s986 + $0x68] sm:$0x1] %v1050
      %v1052 = vld [vmem:[%s986 + $0x6c] sm:$0xf]
      %v1053 = vsel %vm988, %v825, %v1052
      %1054 = vst [vmem:[%s986 + $0x6c] sm:$0xf] %v1053
      %1055 = vst [vmem:[%s986 + $0x70] sm:$0xf] %v834
      %v1056 = vld [vmem:[%s986 + $0x74] sm:$0x1]
      %v1057 = vsel %vm457, %v835, %v1056
      %1058 = vst [vmem:[%s986 + $0x74] sm:$0x1] %v1057
      %v1059 = vld [vmem:[%s986 + $0x78] sm:$0xf]
      %v1060 = vsel %vm988, %v842, %v1059
      %1061 = vst [vmem:[%s986 + $0x78] sm:$0xf] %v1060
      %1062 = vst [vmem:[%s986 + $0x7c] sm:$0xf] %v851
      %v1063 = vld [vmem:[%s986 + $0x80] sm:$0x1]
      %v1064 = vsel %vm457, %v852, %v1063
      %1065 = vst [vmem:[%s986 + $0x80] sm:$0x1] %v1064
      %v1066 = vld [vmem:[%s986 + $0x84] sm:$0xf]
      %v1067 = vsel %vm988, %v859, %v1066
      %1068 = vst [vmem:[%s986 + $0x84] sm:$0xf] %v1067
      %1069 = vst [vmem:[%s986 + $0x88] sm:$0xf] %v868
      %v1070 = vld [vmem:[%s986 + $0x8c] sm:$0x1]
      %v1071 = vsel %vm457, %v869, %v1070
      %1072 = vst [vmem:[%s986 + $0x8c] sm:$0x1] %v1071
      %v1073 = vld [vmem:[%s986 + $0x90] sm:$0xf]
      %v1074 = vsel %vm988, %v876, %v1073
      %1075 = vst [vmem:[%s986 + $0x90] sm:$0xf] %v1074
      %1076 = vst [vmem:[%s986 + $0x94] sm:$0xf] %v885
      %v1077 = vld [vmem:[%s986 + $0x98] sm:$0x1]
      %v1078 = vsel %vm457, %v886, %v1077
      %1079 = vst [vmem:[%s986 + $0x98] sm:$0x1] %v1078
      %v1080 = vld [vmem:[%s986 + $0x9c] sm:$0xf]
      %v1081 = vsel %vm988, %v893, %v1080
      %1082 = vst [vmem:[%s986 + $0x9c] sm:$0xf] %v1081
      %1083 = vst [vmem:[%s986 + $0xa0] sm:$0xf] %v902
      %v1084 = vld [vmem:[%s986 + $0xa4] sm:$0x1]
      %v1085 = vsel %vm457, %v903, %v1084
      %1086 = vst [vmem:[%s986 + $0xa4] sm:$0x1] %v1085
      %v1087 = vld [vmem:[%s986 + $0xa8] sm:$0xf]
      %v1088 = vsel %vm988, %v910, %v1087
      %1089 = vst [vmem:[%s986 + $0xa8] sm:$0xf] %v1088
      %1090 = vst [vmem:[%s986 + $0xac] sm:$0xf] %v919
      %v1091 = vld [vmem:[%s986 + $0xb0] sm:$0x1]
      %v1092 = vsel %vm457, %v920, %v1091
      %1093 = vst [vmem:[%s986 + $0xb0] sm:$0x1] %v1092
      %v1094 = vld [vmem:[%s986 + $0xb4] sm:$0xf]
      %v1095 = vsel %vm988, %v927, %v1094
      %1096 = vst [vmem:[%s986 + $0xb4] sm:$0xf] %v1095
      %1097 = vst [vmem:[%s986 + $0xb8] sm:$0xf] %v936
      %v1098 = vld [vmem:[%s986 + $0xbc] sm:$0x1]
      %v1099 = vsel %vm457, %v937, %v1098
      %1100 = vst [vmem:[%s986 + $0xbc] sm:$0x1] %v1099
      %v1101 = vld [vmem:[#allocation2] sm:$0xf]
      %v1102 = vld [vmem:[#allocation2 + $0x4] sm:$0xf]
      %v1103 = vld [vmem:[#allocation2 + $0x8] sm:$0x1]
      %v1104 = vld [vmem:[#allocation2 + $0xc] sm:$0xf]
      %v1105 = vld [vmem:[#allocation2 + $0x10] sm:$0xf]
      %v1106 = vld [vmem:[#allocation2 + $0x14] sm:$0x1]
      %v1107 = vld [vmem:[#allocation2 + $0x18] sm:$0xf]
      %v1108 = vld [vmem:[#allocation2 + $0x1c] sm:$0xf]
      %v1109 = vld [vmem:[#allocation2 + $0x20] sm:$0x1]
      %v1110 = vld [vmem:[#allocation2 + $0x24] sm:$0xf]
      %v1111 = vld [vmem:[#allocation2 + $0x28] sm:$0xf]
      %v1112 = vld [vmem:[#allocation2 + $0x2c] sm:$0x1]
      %v1113 = vld [vmem:[#allocation2 + $0x30] sm:$0xf]
      %v1114 = vld [vmem:[#allocation2 + $0x34] sm:$0xf]
      %v1115 = vld [vmem:[#allocation2 + $0x38] sm:$0x1]
      %v1116 = vld [vmem:[#allocation2 + $0x3c] sm:$0xf]
      %v1117 = vld [vmem:[#allocation2 + $0x40] sm:$0xf]
      %v1118 = vld [vmem:[#allocation2 + $0x44] sm:$0x1]
      %v1119 = vld [vmem:[#allocation2 + $0x48] sm:$0xf]
      %v1120 = vld [vmem:[#allocation2 + $0x4c] sm:$0xf]
      %v1121 = vld [vmem:[#allocation2 + $0x50] sm:$0x1]
      %v1122 = vld [vmem:[#allocation2 + $0x54] sm:$0xf]
      %v1123 = vld [vmem:[#allocation2 + $0x58] sm:$0xf]
      %v1124 = vld [vmem:[#allocation2 + $0x5c] sm:$0x1]
      %v1125 = vld [vmem:[#allocation2 + $0x60] sm:$0xf]
      %v1126 = vld [vmem:[#allocation2 + $0x64] sm:$0xf]
      %v1127 = vld [vmem:[#allocation2 + $0x68] sm:$0x1]
      %v1128 = vld [vmem:[#allocation2 + $0x6c] sm:$0xf]
      %v1129 = vld [vmem:[#allocation2 + $0x70] sm:$0xf]
      %v1130 = vld [vmem:[#allocation2 + $0x74] sm:$0x1]
      %v1131 = vld [vmem:[#allocation2 + $0x78] sm:$0xf]
      %v1132 = vld [vmem:[#allocation2 + $0x7c] sm:$0xf]
      %v1133 = vld [vmem:[#allocation2 + $0x80] sm:$0x1]
      %v1134 = vld [vmem:[#allocation2 + $0x84] sm:$0xf]
      %v1135 = vld [vmem:[#allocation2 + $0x88] sm:$0xf]
      %v1136 = vld [vmem:[#allocation2 + $0x8c] sm:$0x1]
      %v1137 = vld [vmem:[#allocation2 + $0x90] sm:$0xf]
      %v1138 = vld [vmem:[#allocation2 + $0x94] sm:$0xf]
      %v1139 = vld [vmem:[#allocation2 + $0x98] sm:$0x1]
      %v1140 = vld [vmem:[#allocation2 + $0x9c] sm:$0xf]
      %v1141 = vld [vmem:[#allocation2 + $0xa0] sm:$0xf]
      %v1142 = vld [vmem:[#allocation2 + $0xa4] sm:$0x1]
      %v1143 = vld [vmem:[#allocation2 + $0xa8] sm:$0xf]
      %v1144 = vld [vmem:[#allocation2 + $0xac] sm:$0xf]
      %v1145 = vld [vmem:[#allocation2 + $0xb0] sm:$0x1]
      %v1146 = vld [vmem:[#allocation2 + $0xb4] sm:$0xf]
      %v1147 = vld [vmem:[#allocation2 + $0xb8] sm:$0xf]
      %v1148 = vld [vmem:[#allocation2 + $0xbc] sm:$0x1]
      %v1149 = vld [vmem:[#allocation2 + $0xc0] sm:$0xf]
      %v1150 = vld [vmem:[#allocation2 + $0xc4] sm:$0xf]
      %v1151 = vld [vmem:[#allocation2 + $0xc8] sm:$0x1]
      %v1152 = vld [vmem:[#allocation2 + $0xcc] sm:$0xf]
      %v1153 = vld [vmem:[#allocation2 + $0xd0] sm:$0xf]
      %v1154 = vld [vmem:[#allocation2 + $0xd4] sm:$0x1]
      %v1155 = vld [vmem:[%s3] sm:$0xf]
      %v1156 = vld [vmem:[%s3 + $0x4] sm:$0xf]
      %v1157 = vld [vmem:[%s3 + $0x8] sm:$0xf]
      %v1158 = vld [vmem:[%s3 + $0xc] sm:$0xf]
      %v1159 = vld [vmem:[%s3 + $0x10] sm:$0xf]
      %v1160 = vld [vmem:[%s3 + $0x14] sm:$0xf]
      %v1161 = vld [vmem:[%s3 + $0x18] sm:$0xf]
      %v1162 = vld [vmem:[%s3 + $0x1c] sm:$0xf]
      %v1163 = vld [vmem:[%s3 + $0x20] sm:$0xf]
      %v1164 = vld [vmem:[%s3 + $0x24] sm:$0xf]
      %v1165 = vld [vmem:[%s3 + $0x28] sm:$0xf]
      %v1166 = vld [vmem:[%s3 + $0x2c] sm:$0xf]
      %v1167 = vld [vmem:[%s3 + $0x30] sm:$0xf]
      %v1168 = vld [vmem:[%s3 + $0x34] sm:$0xf]
      %v1169 = vld [vmem:[%s3 + $0x38] sm:$0xf]
      %v1170 = vld [vmem:[%s3 + $0x3c] sm:$0xf]
      %v1171 = vld [vmem:[%s3 + $0x40] sm:$0xf]
      %v1172 = vld [vmem:[%s3 + $0x44] sm:$0xf]
      %v1173 = vld [vmem:[%s3 + $0x48] sm:$0xf]
      %v1174 = vld [vmem:[%s3 + $0x4c] sm:$0xf]
      %v1175 = vld [vmem:[%s3 + $0x50] sm:$0xf]
      %v1176 = vld [vmem:[%s3 + $0x54] sm:$0xf]
      %v1177 = vld [vmem:[%s3 + $0x58] sm:$0xf]
      %v1178 = vld [vmem:[%s3 + $0x5c] sm:$0xf]
      %v1179 = vld [vmem:[%s3 + $0x60] sm:$0xf]
      %v1180 = vld [vmem:[%s3 + $0x64] sm:$0xf]
      %v1181 = vld [vmem:[%s3 + $0x68] sm:$0xf]
      %v1182 = vld [vmem:[%s3 + $0x6c] sm:$0xf]
      %v1183 = vld [vmem:[%s3 + $0x70] sm:$0xf]
      %v1184 = vld [vmem:[%s3 + $0x74] sm:$0xf]
      %v1185 = vld [vmem:[%s3 + $0x78] sm:$0xf]
      %v1186 = vld [vmem:[%s3 + $0x7c] sm:$0xf]
      %v1187 = vld [vmem:[%s3 + $0x80] sm:$0xf]
      %v1188 = vld [vmem:[%s3 + $0x84] sm:$0xf]
      %v1189 = vld [vmem:[%s3 + $0x88] sm:$0xf]
      %v1190 = vld [vmem:[%s3 + $0x8c] sm:$0xf]
      %v1191 = vld [vmem:[%s3 + $0x90] sm:$0xf]
      %v1192 = vld [vmem:[%s3 + $0x94] sm:$0xf]
      %v1193 = vld [vmem:[%s3 + $0x98] sm:$0xf]
      %v1194 = vld [vmem:[%s3 + $0x9c] sm:$0xf]
      %v1195 = vld [vmem:[%s3 + $0xa0] sm:$0xf]
      %v1196 = vld [vmem:[%s3 + $0xa4] sm:$0xf]
      %v1197 = vld [vmem:[%s3 + $0xa8] sm:$0xf]
      %v1198 = vld [vmem:[%s3 + $0xac] sm:$0xf]
      %v1199 = vld [vmem:[%s3 + $0xb0] sm:$0xf]
      %v1200 = vld [vmem:[%s3 + $0xb4] sm:$0xf]
      %v1201 = vld [vmem:[%s3 + $0xb8] sm:$0xf]
      %v1202 = vld [vmem:[%s3 + $0xbc] sm:$0xf]
      %v1203 = vld [vmem:[%s3 + $0xc0] sm:$0xf]
      %v1204 = vld [vmem:[%s3 + $0xc4] sm:$0xf]
      %v1205 = vld [vmem:[%s3 + $0xc8] sm:$0xf]
      %v1206 = vld [vmem:[%s3 + $0xcc] sm:$0xf]
      %v1207 = vld [vmem:[%s3 + $0xd0] sm:$0xf]
      %v1208 = vld [vmem:[%s3 + $0xd4] sm:$0xf]
      %v1209 = vld [vmem:[%s3 + $0xd8] sm:$0xf]
      %v1210 = vld [vmem:[%s3 + $0xdc] sm:$0xf]
      %v1211 = vld [vmem:[%s3 + $0xe0] sm:$0xf]
      %v1212 = vld [vmem:[%s3 + $0xe4] sm:$0xf]
      %v1213 = vld [vmem:[%s3 + $0xe8] sm:$0xf]
      %v1214 = vld [vmem:[%s3 + $0xec] sm:$0xf]
      %v1215 = vld [vmem:[%s3 + $0xf0] sm:$0xf]
      %v1216 = vld [vmem:[%s3 + $0xf4] sm:$0xf]
      %v1217 = vld [vmem:[%s3 + $0xf8] sm:$0xf]
      %v1218 = vld [vmem:[%s3 + $0xfc] sm:$0xf]
      %v1219 = vld [vmem:[%s3 + $0x100] sm:$0xf]
      %v1220 = vld [vmem:[%s3 + $0x104] sm:$0xf]
      %v1221 = vld [vmem:[%s3 + $0x108] sm:$0xf]
      %v1222 = vld [vmem:[%s3 + $0x10c] sm:$0xf]
      %v1223 = vld [vmem:[%s3 + $0x110] sm:$0xf]
      %v1224 = vld [vmem:[%s3 + $0x114] sm:$0xf]
      %v1225 = vld [vmem:[%s3 + $0x118] sm:$0xf]
      %v1226 = vld [vmem:[%s3 + $0x11c] sm:$0xf]
      %v1227 = vld [vmem:[%s3 + $0x120] sm:$0xf]
      %v1228 = vld [vmem:[%s3 + $0x124] sm:$0xf]
      %v1229 = vld [vmem:[%s3 + $0x128] sm:$0xf]
      %v1230 = vld [vmem:[%s3 + $0x12c] sm:$0xf]
      %v1231 = vld [vmem:[%s3 + $0x130] sm:$0xf]
      %v1232 = vld [vmem:[%s3 + $0x134] sm:$0xf]
      %v1233 = vld [vmem:[%s3 + $0x138] sm:$0xf]
      %v1234 = vld [vmem:[%s3 + $0x13c] sm:$0xf]
      %v1235 = vld [vmem:[%s3 + $0x140] sm:$0xf]
      %v1236 = vld [vmem:[%s3 + $0x144] sm:$0xf]
      %v1237 = vld [vmem:[%s3 + $0x148] sm:$0xf]
      %v1238 = vld [vmem:[%s3 + $0x14c] sm:$0xf]
      %v1239 = vld [vmem:[%s3 + $0x150] sm:$0xf]
      %v1240 = vld [vmem:[%s3 + $0x154] sm:$0xf]
      %v1241 = vld [vmem:[%s3 + $0x158] sm:$0xf]
      %v1242 = vld [vmem:[%s3 + $0x15c] sm:$0xf]
      %v1243 = vld [vmem:[%s3 + $0x160] sm:$0xf]
      %v1244 = vld [vmem:[%s3 + $0x164] sm:$0xf]
      %v1245 = vld [vmem:[%s3 + $0x168] sm:$0xf]
      %v1246 = vld [vmem:[%s3 + $0x16c] sm:$0xf]
      %v1247 = vld [vmem:[%s3 + $0x170] sm:$0xf]
      %v1248 = vld [vmem:[%s3 + $0x174] sm:$0xf]
      %v1249 = vld [vmem:[%s3 + $0x178] sm:$0xf]
      %v1250 = vld [vmem:[%s3 + $0x17c] sm:$0xf]
      %v1251 = vld [vmem:[%s3 + $0x180] sm:$0xf]
      %v1252 = vld [vmem:[%s3 + $0x184] sm:$0xf]
      %v1253 = vld [vmem:[%s3 + $0x188] sm:$0xf]
      %v1254 = vld [vmem:[%s3 + $0x18c] sm:$0xf]
      %v1255 = vld [vmem:[%s3 + $0x190] sm:$0xf]
      %v1256 = vld [vmem:[%s3 + $0x194] sm:$0xf]
      %v1257 = vld [vmem:[%s3 + $0x198] sm:$0xf]
      %v1258 = vld [vmem:[%s3 + $0x19c] sm:$0xf]
      %v1259 = vld [vmem:[%s3 + $0x1a0] sm:$0xf]
      %v1260 = vld [vmem:[%s3 + $0x1a4] sm:$0xf]
      %v1261 = vld [vmem:[%s3 + $0x1a8] sm:$0xf]
      %v1262 = vld [vmem:[%s3 + $0x1ac] sm:$0xf]
      %v1263 = vld [vmem:[%s3 + $0x1b0] sm:$0xf]
      %v1264 = vld [vmem:[%s3 + $0x1b4] sm:$0xf]
      %v1265 = vld [vmem:[%s3 + $0x1b8] sm:$0xf]
      %v1266 = vld [vmem:[%s3 + $0x1bc] sm:$0xf]
      %v1267 = vld [vmem:[%s3 + $0x1c0] sm:$0xf]
      %v1268 = vld [vmem:[%s3 + $0x1c4] sm:$0xf]
      %v1269 = vld [vmem:[%s3 + $0x1c8] sm:$0xf]
      %v1270 = vld [vmem:[%s3 + $0x1cc] sm:$0xf]
      %v1271 = vld [vmem:[%s3 + $0x1d0] sm:$0xf]
      %v1272 = vld [vmem:[%s3 + $0x1d4] sm:$0xf]
      %v1273 = vld [vmem:[%s3 + $0x1d8] sm:$0xf]
      %v1274 = vld [vmem:[%s3 + $0x1dc] sm:$0xf]
      %v1275 = vld [vmem:[%s3 + $0x1e0] sm:$0xf]
      %v1276 = vld [vmem:[%s3 + $0x1e4] sm:$0xf]
      %v1277 = vld [vmem:[%s3 + $0x1e8] sm:$0xf]
      %v1278 = vld [vmem:[%s3 + $0x1ec] sm:$0xf]
      %v1279 = vld [vmem:[%s3 + $0x1f0] sm:$0xf]
      %v1280 = vld [vmem:[%s3 + $0x1f4] sm:$0xf]
      %v1281 = vld [vmem:[%s3 + $0x1f8] sm:$0xf]
      %v1282 = vld [vmem:[%s3 + $0x1fc] sm:$0xf]
      %v1283 = vld [vmem:[%s3 + $0x200] sm:$0xf]
      %v1284 = vld [vmem:[%s3 + $0x204] sm:$0xf]
      %v1285 = vld [vmem:[%s3 + $0x208] sm:$0xf]
      %v1286 = vld [vmem:[%s3 + $0x20c] sm:$0xf]
      %v1287 = vld [vmem:[%s3 + $0x210] sm:$0xf]
      %v1288 = vld [vmem:[%s3 + $0x214] sm:$0xf]
      %v1289 = vld [vmem:[%s3 + $0x218] sm:$0xf]
      %v1290 = vld [vmem:[%s3 + $0x21c] sm:$0xf]
      %v1291 = vld [vmem:[%s3 + $0x220] sm:$0xf]
      %v1292 = vld [vmem:[%s3 + $0x224] sm:$0xf]
      %v1293 = vld [vmem:[%s3 + $0x228] sm:$0xf]
      %v1294 = vld [vmem:[%s3 + $0x22c] sm:$0xf]
      %v1295 = vld [vmem:[%s3 + $0x230] sm:$0xf]
      %v1296 = vld [vmem:[%s3 + $0x234] sm:$0xf]
      %v1297 = vld [vmem:[%s3 + $0x238] sm:$0xf]
      %v1298 = vld [vmem:[%s3 + $0x23c] sm:$0xf]
      %vm1299 = vsmask.f32 3328
      %vm1300 = vsmask.f32 7440
      %vm1301 = vmor %vm1299, %vm1300
      %v1303 = vshrl.u32 %v1101, 16
      %v1305 = vrot.slane %v1303, 4
      %v1306 = vshll.u32 %v1101, 16
      %v1308 = vrot.slane %v1306, 5
      %v1309 = vor.u32 %v1305, %v1308
      %v1310 = vrot.slane %v1309, 4
      %v1312 = vshll.u32 %v1102, 16
      %v1314 = vrot.slane %v1312, 5
      %v1315 = vsel %vm1301, %v1310, %v1314
      %v1316 = vshrl.u32 %v1102, 16
      %v1318 = vrot.slane %v1316, 4
      %v1319 = vor.u32 %v1318, %v1314
      %v1320 = vrot.slane %v1319, 4
      %v1322 = vshll.u32 %v1103, 16
      %v1324 = vrot.slane %v1322, 5
      %v1325 = vsel %vm1301, %v1320, %v1324
      %v1327 = vshrl.u32 %v1104, 16
      %v1329 = vrot.slane %v1327, 4
      %v1330 = vshll.u32 %v1104, 16
      %v1332 = vrot.slane %v1330, 5
      %v1333 = vor.u32 %v1329, %v1332
      %v1334 = vrot.slane %v1333, 4
      %v1336 = vshll.u32 %v1105, 16
      %v1338 = vrot.slane %v1336, 5
      %v1339 = vsel %vm1301, %v1334, %v1338
      %v1340 = vshrl.u32 %v1105, 16
      %v1342 = vrot.slane %v1340, 4
      %v1343 = vor.u32 %v1342, %v1338
      %v1344 = vrot.slane %v1343, 4
      %v1346 = vshll.u32 %v1106, 16
      %v1348 = vrot.slane %v1346, 5
      %v1349 = vsel %vm1301, %v1344, %v1348
      %v1351 = vshrl.u32 %v1107, 16
      %v1353 = vrot.slane %v1351, 4
      %v1354 = vshll.u32 %v1107, 16
      %v1356 = vrot.slane %v1354, 5
      %v1357 = vor.u32 %v1353, %v1356
      %v1358 = vrot.slane %v1357, 4
      %v1360 = vshll.u32 %v1108, 16
      %v1362 = vrot.slane %v1360, 5
      %v1363 = vsel %vm1301, %v1358, %v1362
      %v1364 = vshrl.u32 %v1108, 16
      %v1366 = vrot.slane %v1364, 4
      %v1367 = vor.u32 %v1366, %v1362
      %v1368 = vrot.slane %v1367, 4
      %v1370 = vshll.u32 %v1109, 16
      %v1372 = vrot.slane %v1370, 5
      %v1373 = vsel %vm1301, %v1368, %v1372
      %v1375 = vshrl.u32 %v1110, 16
      %v1377 = vrot.slane %v1375, 4
      %v1378 = vshll.u32 %v1110, 16
      %v1380 = vrot.slane %v1378, 5
      %v1381 = vor.u32 %v1377, %v1380
      %v1382 = vrot.slane %v1381, 4
      %v1384 = vshll.u32 %v1111, 16
      %v1386 = vrot.slane %v1384, 5
      %v1387 = vsel %vm1301, %v1382, %v1386
      %v1388 = vshrl.u32 %v1111, 16
      %v1390 = vrot.slane %v1388, 4
      %v1391 = vor.u32 %v1390, %v1386
      %v1392 = vrot.slane %v1391, 4
      %v1394 = vshll.u32 %v1112, 16
      %v1396 = vrot.slane %v1394, 5
      %v1397 = vsel %vm1301, %v1392, %v1396
      %v1399 = vshrl.u32 %v1113, 16
      %v1401 = vrot.slane %v1399, 4
      %v1402 = vshll.u32 %v1113, 16
      %v1404 = vrot.slane %v1402, 5
      %v1405 = vor.u32 %v1401, %v1404
      %v1406 = vrot.slane %v1405, 4
      %v1408 = vshll.u32 %v1114, 16
      %v1410 = vrot.slane %v1408, 5
      %v1411 = vsel %vm1301, %v1406, %v1410
      %v1412 = vshrl.u32 %v1114, 16
      %v1414 = vrot.slane %v1412, 4
      %v1415 = vor.u32 %v1414, %v1410
      %v1416 = vrot.slane %v1415, 4
      %v1418 = vshll.u32 %v1115, 16
      %v1420 = vrot.slane %v1418, 5
      %v1421 = vsel %vm1301, %v1416, %v1420
      %v1423 = vshrl.u32 %v1116, 16
      %v1425 = vrot.slane %v1423, 4
      %v1426 = vshll.u32 %v1116, 16
      %v1428 = vrot.slane %v1426, 5
      %v1429 = vor.u32 %v1425, %v1428
      %v1430 = vrot.slane %v1429, 4
      %v1432 = vshll.u32 %v1117, 16
      %v1434 = vrot.slane %v1432, 5
      %v1435 = vsel %vm1301, %v1430, %v1434
      %v1436 = vshrl.u32 %v1117, 16
      %v1438 = vrot.slane %v1436, 4
      %v1439 = vor.u32 %v1438, %v1434
      %v1440 = vrot.slane %v1439, 4
      %v1442 = vshll.u32 %v1118, 16
      %v1444 = vrot.slane %v1442, 5
      %v1445 = vsel %vm1301, %v1440, %v1444
      %v1447 = vshrl.u32 %v1119, 16
      %v1449 = vrot.slane %v1447, 4
      %v1450 = vshll.u32 %v1119, 16
      %v1452 = vrot.slane %v1450, 5
      %v1453 = vor.u32 %v1449, %v1452
      %v1454 = vrot.slane %v1453, 4
      %v1456 = vshll.u32 %v1120, 16
      %v1458 = vrot.slane %v1456, 5
      %v1459 = vsel %vm1301, %v1454, %v1458
      %v1460 = vshrl.u32 %v1120, 16
      %v1462 = vrot.slane %v1460, 4
      %v1463 = vor.u32 %v1462, %v1458
      %v1464 = vrot.slane %v1463, 4
      %v1466 = vshll.u32 %v1121, 16
      %v1468 = vrot.slane %v1466, 5
      %v1469 = vsel %vm1301, %v1464, %v1468
      %v1471 = vshrl.u32 %v1122, 16
      %v1473 = vrot.slane %v1471, 4
      %v1474 = vshll.u32 %v1122, 16
      %v1476 = vrot.slane %v1474, 5
      %v1477 = vor.u32 %v1473, %v1476
      %v1478 = vrot.slane %v1477, 4
      %v1480 = vshll.u32 %v1123, 16
      %v1482 = vrot.slane %v1480, 5
      %v1483 = vsel %vm1301, %v1478, %v1482
      %v1484 = vshrl.u32 %v1123, 16
      %v1486 = vrot.slane %v1484, 4
      %v1487 = vor.u32 %v1486, %v1482
      %v1488 = vrot.slane %v1487, 4
      %v1490 = vshll.u32 %v1124, 16
      %v1492 = vrot.slane %v1490, 5
      %v1493 = vsel %vm1301, %v1488, %v1492
      %v1495 = vshrl.u32 %v1125, 16
      %v1497 = vrot.slane %v1495, 4
      %v1498 = vshll.u32 %v1125, 16
      %v1500 = vrot.slane %v1498, 5
      %v1501 = vor.u32 %v1497, %v1500
      %v1502 = vrot.slane %v1501, 4
      %v1504 = vshll.u32 %v1126, 16
      %v1506 = vrot.slane %v1504, 5
      %v1507 = vsel %vm1301, %v1502, %v1506
      %v1508 = vshrl.u32 %v1126, 16
      %v1510 = vrot.slane %v1508, 4
      %v1511 = vor.u32 %v1510, %v1506
      %v1512 = vrot.slane %v1511, 4
      %v1514 = vshll.u32 %v1127, 16
      %v1516 = vrot.slane %v1514, 5
      %v1517 = vsel %vm1301, %v1512, %v1516
      %v1519 = vshrl.u32 %v1128, 16
      %v1521 = vrot.slane %v1519, 4
      %v1522 = vshll.u32 %v1128, 16
      %v1524 = vrot.slane %v1522, 5
      %v1525 = vor.u32 %v1521, %v1524
      %v1526 = vrot.slane %v1525, 4
      %v1528 = vshll.u32 %v1129, 16
      %v1530 = vrot.slane %v1528, 5
      %v1531 = vsel %vm1301, %v1526, %v1530
      %v1532 = vshrl.u32 %v1129, 16
      %v1534 = vrot.slane %v1532, 4
      %v1535 = vor.u32 %v1534, %v1530
      %v1536 = vrot.slane %v1535, 4
      %v1538 = vshll.u32 %v1130, 16
      %v1540 = vrot.slane %v1538, 5
      %v1541 = vsel %vm1301, %v1536, %v1540
      %v1543 = vshrl.u32 %v1131, 16
      %v1545 = vrot.slane %v1543, 4
      %v1546 = vshll.u32 %v1131, 16
      %v1548 = vrot.slane %v1546, 5
      %v1549 = vor.u32 %v1545, %v1548
      %v1550 = vrot.slane %v1549, 4
      %v1552 = vshll.u32 %v1132, 16
      %v1554 = vrot.slane %v1552, 5
      %v1555 = vsel %vm1301, %v1550, %v1554
      %v1556 = vshrl.u32 %v1132, 16
      %v1558 = vrot.slane %v1556, 4
      %v1559 = vor.u32 %v1558, %v1554
      %v1560 = vrot.slane %v1559, 4
      %v1562 = vshll.u32 %v1133, 16
      %v1564 = vrot.slane %v1562, 5
      %v1565 = vsel %vm1301, %v1560, %v1564
      %v1567 = vshrl.u32 %v1134, 16
      %v1569 = vrot.slane %v1567, 4
      %v1570 = vshll.u32 %v1134, 16
      %v1572 = vrot.slane %v1570, 5
      %v1573 = vor.u32 %v1569, %v1572
      %v1574 = vrot.slane %v1573, 4
      %v1576 = vshll.u32 %v1135, 16
      %v1578 = vrot.slane %v1576, 5
      %v1579 = vsel %vm1301, %v1574, %v1578
      %v1580 = vshrl.u32 %v1135, 16
      %v1582 = vrot.slane %v1580, 4
      %v1583 = vor.u32 %v1582, %v1578
      %v1584 = vrot.slane %v1583, 4
      %v1586 = vshll.u32 %v1136, 16
      %v1588 = vrot.slane %v1586, 5
      %v1589 = vsel %vm1301, %v1584, %v1588
      %v1591 = vshrl.u32 %v1137, 16
      %v1593 = vrot.slane %v1591, 4
      %v1594 = vshll.u32 %v1137, 16
      %v1596 = vrot.slane %v1594, 5
      %v1597 = vor.u32 %v1593, %v1596
      %v1598 = vrot.slane %v1597, 4
      %v1600 = vshll.u32 %v1138, 16
      %v1602 = vrot.slane %v1600, 5
      %v1603 = vsel %vm1301, %v1598, %v1602
      %v1604 = vshrl.u32 %v1138, 16
      %v1606 = vrot.slane %v1604, 4
      %v1607 = vor.u32 %v1606, %v1602
      %v1608 = vrot.slane %v1607, 4
      %v1610 = vshll.u32 %v1139, 16
      %v1612 = vrot.slane %v1610, 5
      %v1613 = vsel %vm1301, %v1608, %v1612
      %v1615 = vshrl.u32 %v1140, 16
      %v1617 = vrot.slane %v1615, 4
      %v1618 = vshll.u32 %v1140, 16
      %v1620 = vrot.slane %v1618, 5
      %v1621 = vor.u32 %v1617, %v1620
      %v1622 = vrot.slane %v1621, 4
      %v1624 = vshll.u32 %v1141, 16
      %v1626 = vrot.slane %v1624, 5
      %v1627 = vsel %vm1301, %v1622, %v1626
      %v1628 = vshrl.u32 %v1141, 16
      %v1630 = vrot.slane %v1628, 4
      %v1631 = vor.u32 %v1630, %v1626
      %v1632 = vrot.slane %v1631, 4
      %v1634 = vshll.u32 %v1142, 16
      %v1636 = vrot.slane %v1634, 5
      %v1637 = vsel %vm1301, %v1632, %v1636
      %v1639 = vshrl.u32 %v1143, 16
      %v1641 = vrot.slane %v1639, 4
      %v1642 = vshll.u32 %v1143, 16
      %v1644 = vrot.slane %v1642, 5
      %v1645 = vor.u32 %v1641, %v1644
      %v1646 = vrot.slane %v1645, 4
      %v1648 = vshll.u32 %v1144, 16
      %v1650 = vrot.slane %v1648, 5
      %v1651 = vsel %vm1301, %v1646, %v1650
      %v1652 = vshrl.u32 %v1144, 16
      %v1654 = vrot.slane %v1652, 4
      %v1655 = vor.u32 %v1654, %v1650
      %v1656 = vrot.slane %v1655, 4
      %v1658 = vshll.u32 %v1145, 16
      %v1660 = vrot.slane %v1658, 5
      %v1661 = vsel %vm1301, %v1656, %v1660
      %v1663 = vshrl.u32 %v1146, 16
      %v1665 = vrot.slane %v1663, 4
      %v1666 = vshll.u32 %v1146, 16
      %v1668 = vrot.slane %v1666, 5
      %v1669 = vor.u32 %v1665, %v1668
      %v1670 = vrot.slane %v1669, 4
      %v1672 = vshll.u32 %v1147, 16
      %v1674 = vrot.slane %v1672, 5
      %v1675 = vsel %vm1301, %v1670, %v1674
      %v1676 = vshrl.u32 %v1147, 16
      %v1678 = vrot.slane %v1676, 4
      %v1679 = vor.u32 %v1678, %v1674
      %v1680 = vrot.slane %v1679, 4
      %v1682 = vshll.u32 %v1148, 16
      %v1684 = vrot.slane %v1682, 5
      %v1685 = vsel %vm1301, %v1680, %v1684
      %vm1734 = vcmask 1042432
      %vm1735 = vcmask 1046532
      %vm1736 = vmor %vm1734, %vm1735
      %v1737 = vrot.slane %v1101, 5
      %v1738 = vrot.slane %v1737, 4
      %v1739 = vrot.slane %v1102, 5
      %v1740 = vsel %vm1736, %v1738, %v1739
      %v1741 = vrot.slane %v1739, 4
      %v1742 = vrot.slane %v1103, 5
      %v1743 = vsel %vm1736, %v1741, %v1742
      %v1744 = vrot.slane %v1104, 5
      %v1745 = vrot.slane %v1744, 4
      %v1746 = vrot.slane %v1105, 5
      %v1747 = vsel %vm1736, %v1745, %v1746
      %v1748 = vrot.slane %v1746, 4
      %v1749 = vrot.slane %v1106, 5
      %v1750 = vsel %vm1736, %v1748, %v1749
      %v1751 = vrot.slane %v1107, 5
      %v1752 = vrot.slane %v1751, 4
      %v1753 = vrot.slane %v1108, 5
      %v1754 = vsel %vm1736, %v1752, %v1753
      %v1755 = vrot.slane %v1753, 4
      %v1756 = vrot.slane %v1109, 5
      %v1757 = vsel %vm1736, %v1755, %v1756
      %v1758 = vrot.slane %v1110, 5
      %v1759 = vrot.slane %v1758, 4
      %v1760 = vrot.slane %v1111, 5
      %v1761 = vsel %vm1736, %v1759, %v1760
      %v1762 = vrot.slane %v1760, 4
      %v1763 = vrot.slane %v1112, 5
      %v1764 = vsel %vm1736, %v1762, %v1763
      %v1765 = vrot.slane %v1113, 5
      %v1766 = vrot.slane %v1765, 4
      %v1767 = vrot.slane %v1114, 5
      %v1768 = vsel %vm1736, %v1766, %v1767
      %v1769 = vrot.slane %v1767, 4
      %v1770 = vrot.slane %v1115, 5
      %v1771 = vsel %vm1736, %v1769, %v1770
      %v1772 = vrot.slane %v1116, 5
      %v1773 = vrot.slane %v1772, 4
      %v1774 = vrot.slane %v1117, 5
      %v1775 = vsel %vm1736, %v1773, %v1774
      %v1776 = vrot.slane %v1774, 4
      %v1777 = vrot.slane %v1118, 5
      %v1778 = vsel %vm1736, %v1776, %v1777
      %v1779 = vrot.slane %v1119, 5
      %v1780 = vrot.slane %v1779, 4
      %v1781 = vrot.slane %v1120, 5
      %v1782 = vsel %vm1736, %v1780, %v1781
      %v1783 = vrot.slane %v1781, 4
      %v1784 = vrot.slane %v1121, 5
      %v1785 = vsel %vm1736, %v1783, %v1784
      %v1786 = vrot.slane %v1122, 5
      %v1787 = vrot.slane %v1786, 4
      %v1788 = vrot.slane %v1123, 5
      %v1789 = vsel %vm1736, %v1787, %v1788
      %v1790 = vrot.slane %v1788, 4
      %v1791 = vrot.slane %v1124, 5
      %v1792 = vsel %vm1736, %v1790, %v1791
      %v1793 = vrot.slane %v1125, 5
      %v1794 = vrot.slane %v1793, 4
      %v1795 = vrot.slane %v1126, 5
      %v1796 = vsel %vm1736, %v1794, %v1795
      %v1797 = vrot.slane %v1795, 4
      %v1798 = vrot.slane %v1127, 5
      %v1799 = vsel %vm1736, %v1797, %v1798
      %v1800 = vrot.slane %v1128, 5
      %v1801 = vrot.slane %v1800, 4
      %v1802 = vrot.slane %v1129, 5
      %v1803 = vsel %vm1736, %v1801, %v1802
      %v1804 = vrot.slane %v1802, 4
      %v1805 = vrot.slane %v1130, 5
      %v1806 = vsel %vm1736, %v1804, %v1805
      %v1807 = vrot.slane %v1131, 5
      %v1808 = vrot.slane %v1807, 4
      %v1809 = vrot.slane %v1132, 5
      %v1810 = vsel %vm1736, %v1808, %v1809
      %v1811 = vrot.slane %v1809, 4
      %v1812 = vrot.slane %v1133, 5
      %v1813 = vsel %vm1736, %v1811, %v1812
      %v1814 = vrot.slane %v1134, 5
      %v1815 = vrot.slane %v1814, 4
      %v1816 = vrot.slane %v1135, 5
      %v1817 = vsel %vm1736, %v1815, %v1816
      %v1818 = vrot.slane %v1816, 4
      %v1819 = vrot.slane %v1136, 5
      %v1820 = vsel %vm1736, %v1818, %v1819
      %v1821 = vrot.slane %v1137, 5
      %v1822 = vrot.slane %v1821, 4
      %v1823 = vrot.slane %v1138, 5
      %v1824 = vsel %vm1736, %v1822, %v1823
      %v1825 = vrot.slane %v1823, 4
      %v1826 = vrot.slane %v1139, 5
      %v1827 = vsel %vm1736, %v1825, %v1826
      %v1828 = vrot.slane %v1140, 5
      %v1829 = vrot.slane %v1828, 4
      %v1830 = vrot.slane %v1141, 5
      %v1831 = vsel %vm1736, %v1829, %v1830
      %v1832 = vrot.slane %v1830, 4
      %v1833 = vrot.slane %v1142, 5
      %v1834 = vsel %vm1736, %v1832, %v1833
      %v1835 = vrot.slane %v1143, 5
      %v1836 = vrot.slane %v1835, 4
      %v1837 = vrot.slane %v1144, 5
      %v1838 = vsel %vm1736, %v1836, %v1837
      %v1839 = vrot.slane %v1837, 4
      %v1840 = vrot.slane %v1145, 5
      %v1841 = vsel %vm1736, %v1839, %v1840
      %v1842 = vrot.slane %v1146, 5
      %v1843 = vrot.slane %v1842, 4
      %v1844 = vrot.slane %v1147, 5
      %v1845 = vsel %vm1736, %v1843, %v1844
      %v1846 = vrot.slane %v1844, 4
      %v1847 = vrot.slane %v1148, 5
      %v1848 = vsel %vm1736, %v1846, %v1847
      %v1850 = vshrl.u32 %v1149, 16
      %v1852 = vrot.slane %v1850, 4
      %v1853 = vshll.u32 %v1149, 16
      %v1855 = vrot.slane %v1853, 5
      %v1856 = vor.u32 %v1852, %v1855
      %v1857 = vrot.slane %v1856, 4
      %v1859 = vshll.u32 %v1150, 16
      %v1861 = vrot.slane %v1859, 5
      %v1862 = vsel %vm1301, %v1857, %v1861
      %v1863 = vshrl.u32 %v1150, 16
      %v1865 = vrot.slane %v1863, 4
      %v1866 = vor.u32 %v1865, %v1861
      %v1867 = vrot.slane %v1866, 4
      %v1869 = vshll.u32 %v1151, 16
      %v1871 = vrot.slane %v1869, 5
      %v1872 = vsel %vm1301, %v1867, %v1871
      %v1876 = vrot.slane %v1149, 5
      %v1877 = vrot.slane %v1876, 4
      %v1878 = vrot.slane %v1150, 5
      %v1879 = vsel %vm1736, %v1877, %v1878
      %v1880 = vrot.slane %v1878, 4
      %v1881 = vrot.slane %v1151, 5
      %v1882 = vsel %vm1736, %v1880, %v1881
      %v1884 = vshrl.u32 %v1152, 16
      %v1886 = vrot.slane %v1884, 4
      %v1887 = vshll.u32 %v1152, 16
      %v1889 = vrot.slane %v1887, 5
      %v1890 = vor.u32 %v1886, %v1889
      %v1891 = vrot.slane %v1890, 4
      %v1893 = vshll.u32 %v1153, 16
      %v1895 = vrot.slane %v1893, 5
      %v1896 = vsel %vm1301, %v1891, %v1895
      %v1897 = vshrl.u32 %v1153, 16
      %v1899 = vrot.slane %v1897, 4
      %v1900 = vor.u32 %v1899, %v1895
      %v1901 = vrot.slane %v1900, 4
      %v1903 = vshll.u32 %v1154, 16
      %v1905 = vrot.slane %v1903, 5
      %v1906 = vsel %vm1301, %v1901, %v1905
      %v1910 = vrot.slane %v1152, 5
      %v1911 = vrot.slane %v1910, 4
      %v1912 = vrot.slane %v1153, 5
      %v1913 = vsel %vm1736, %v1911, %v1912
      %v1914 = vrot.slane %v1912, 4
      %v1915 = vrot.slane %v1154, 5
      %v1916 = vsel %vm1736, %v1914, %v1915
      %v1917 = vunpack.c.l.b16 %v1101
      %v1918 = vunpack.c.l.b16 %v1102
      %v1919 = vunpack.c.l.b16 %v1104
      %v1920 = vunpack.c.l.b16 %v1105
      %v1921 = vunpack.c.l.b16 %v1107
      %v1922 = vunpack.c.l.b16 %v1108
      %v1923 = vunpack.c.l.b16 %v1110
      %v1924 = vunpack.c.l.b16 %v1111
      %v1925 = vunpack.c.l.b16 %v1113
      %v1926 = vunpack.c.l.b16 %v1114
      %v1927 = vunpack.c.l.b16 %v1116
      %v1928 = vunpack.c.l.b16 %v1117
      %v1929 = vunpack.c.l.b16 %v1119
      %v1930 = vunpack.c.l.b16 %v1120
      %v1931 = vunpack.c.l.b16 %v1122
      %v1932 = vunpack.c.l.b16 %v1123
      %v1933 = vunpack.c.l.b16 %v1125
      %v1934 = vunpack.c.l.b16 %v1126
      %v1935 = vunpack.c.l.b16 %v1128
      %v1936 = vunpack.c.l.b16 %v1129
      %v1937 = vunpack.c.l.b16 %v1131
      %v1938 = vunpack.c.l.b16 %v1132
      %v1939 = vunpack.c.l.b16 %v1134
      %v1940 = vunpack.c.l.b16 %v1135
      %v1941 = vunpack.c.l.b16 %v1137
      %v1942 = vunpack.c.l.b16 %v1138
      %v1943 = vunpack.c.l.b16 %v1140
      %v1944 = vunpack.c.l.b16 %v1141
      %v1945 = vunpack.c.l.b16 %v1143
      %v1946 = vunpack.c.l.b16 %v1144
      %v1947 = vunpack.c.l.b16 %v1146
      %v1948 = vunpack.c.l.b16 %v1147
      %v1949 = vpack.c.b16 %v1918, %v1917
      %v1950 = vpack.c.b16 %v1920, %v1919
      %v1951 = vpack.c.b16 %v1922, %v1921
      %v1952 = vpack.c.b16 %v1924, %v1923
      %v1953 = vpack.c.b16 %v1926, %v1925
      %v1954 = vpack.c.b16 %v1928, %v1927
      %v1955 = vpack.c.b16 %v1930, %v1929
      %v1956 = vpack.c.b16 %v1932, %v1931
      %v1957 = vpack.c.b16 %v1934, %v1933
      %v1958 = vpack.c.b16 %v1936, %v1935
      %v1959 = vpack.c.b16 %v1938, %v1937
      %v1960 = vpack.c.b16 %v1940, %v1939
      %v1961 = vpack.c.b16 %v1942, %v1941
      %v1962 = vpack.c.b16 %v1944, %v1943
      %v1963 = vpack.c.b16 %v1946, %v1945
      %v1964 = vpack.c.b16 %v1948, %v1947
      %v1981 = vunpack.c.l.b16 %v1315
      %v1982 = vunpack.c.l.b16 %v1325
      %v1983 = vunpack.c.l.b16 %v1339
      %v1984 = vunpack.c.l.b16 %v1349
      %v1985 = vunpack.c.l.b16 %v1363
      %v1986 = vunpack.c.l.b16 %v1373
      %v1987 = vunpack.c.l.b16 %v1387
      %v1988 = vunpack.c.l.b16 %v1397
      %v1989 = vunpack.c.l.b16 %v1411
      %v1990 = vunpack.c.l.b16 %v1421
      %v1991 = vunpack.c.l.b16 %v1435
      %v1992 = vunpack.c.l.b16 %v1445
      %v1993 = vunpack.c.l.b16 %v1459
      %v1994 = vunpack.c.l.b16 %v1469
      %v1995 = vunpack.c.l.b16 %v1483
      %v1996 = vunpack.c.l.b16 %v1493
      %v1997 = vunpack.c.l.b16 %v1507
      %v1998 = vunpack.c.l.b16 %v1517
      %v1999 = vunpack.c.l.b16 %v1531
      %v2000 = vunpack.c.l.b16 %v1541
      %v2001 = vunpack.c.l.b16 %v1555
      %v2002 = vunpack.c.l.b16 %v1565
      %v2003 = vunpack.c.l.b16 %v1579
      %v2004 = vunpack.c.l.b16 %v1589
      %v2005 = vunpack.c.l.b16 %v1603
      %v2006 = vunpack.c.l.b16 %v1613
      %v2007 = vunpack.c.l.b16 %v1627
      %v2008 = vunpack.c.l.b16 %v1637
      %v2009 = vunpack.c.l.b16 %v1651
      %v2010 = vunpack.c.l.b16 %v1661
      %v2011 = vunpack.c.l.b16 %v1675
      %v2012 = vunpack.c.l.b16 %v1685
      %v2013 = vpack.c.b16 %v1982, %v1981
      %v2014 = vpack.c.b16 %v1984, %v1983
      %v2015 = vpack.c.b16 %v1986, %v1985
      %v2016 = vpack.c.b16 %v1988, %v1987
      %v2017 = vpack.c.b16 %v1990, %v1989
      %v2018 = vpack.c.b16 %v1992, %v1991
      %v2019 = vpack.c.b16 %v1994, %v1993
      %v2020 = vpack.c.b16 %v1996, %v1995
      %v2021 = vpack.c.b16 %v1998, %v1997
      %v2022 = vpack.c.b16 %v2000, %v1999
      %v2023 = vpack.c.b16 %v2002, %v2001
      %v2024 = vpack.c.b16 %v2004, %v2003
      %v2025 = vpack.c.b16 %v2006, %v2005
      %v2026 = vpack.c.b16 %v2008, %v2007
      %v2027 = vpack.c.b16 %v2010, %v2009
      %v2028 = vpack.c.b16 %v2012, %v2011
      %v2045 = vunpack.c.l.b16 %v1740
      %v2046 = vunpack.c.l.b16 %v1743
      %v2047 = vunpack.c.l.b16 %v1747
      %v2048 = vunpack.c.l.b16 %v1750
      %v2049 = vunpack.c.l.b16 %v1754
      %v2050 = vunpack.c.l.b16 %v1757
      %v2051 = vunpack.c.l.b16 %v1761
      %v2052 = vunpack.c.l.b16 %v1764
      %v2053 = vunpack.c.l.b16 %v1768
      %v2054 = vunpack.c.l.b16 %v1771
      %v2055 = vunpack.c.l.b16 %v1775
      %v2056 = vunpack.c.l.b16 %v1778
      %v2057 = vunpack.c.l.b16 %v1782
      %v2058 = vunpack.c.l.b16 %v1785
      %v2059 = vunpack.c.l.b16 %v1789
      %v2060 = vunpack.c.l.b16 %v1792
      %v2061 = vunpack.c.l.b16 %v1796
      %v2062 = vunpack.c.l.b16 %v1799
      %v2063 = vunpack.c.l.b16 %v1803
      %v2064 = vunpack.c.l.b16 %v1806
      %v2065 = vunpack.c.l.b16 %v1810
      %v2066 = vunpack.c.l.b16 %v1813
      %v2067 = vunpack.c.l.b16 %v1817
      %v2068 = vunpack.c.l.b16 %v1820
      %v2069 = vunpack.c.l.b16 %v1824
      %v2070 = vunpack.c.l.b16 %v1827
      %v2071 = vunpack.c.l.b16 %v1831
      %v2072 = vunpack.c.l.b16 %v1834
      %v2073 = vunpack.c.l.b16 %v1838
      %v2074 = vunpack.c.l.b16 %v1841
      %v2075 = vunpack.c.l.b16 %v1845
      %v2076 = vunpack.c.l.b16 %v1848
      %v2077 = vpack.c.b16 %v2046, %v2045
      %v2078 = vpack.c.b16 %v2048, %v2047
      %v2079 = vpack.c.b16 %v2050, %v2049
      %v2080 = vpack.c.b16 %v2052, %v2051
      %v2081 = vpack.c.b16 %v2054, %v2053
      %v2082 = vpack.c.b16 %v2056, %v2055
      %v2083 = vpack.c.b16 %v2058, %v2057
      %v2084 = vpack.c.b16 %v2060, %v2059
      %v2085 = vpack.c.b16 %v2062, %v2061
      %v2086 = vpack.c.b16 %v2064, %v2063
      %v2087 = vpack.c.b16 %v2066, %v2065
      %v2088 = vpack.c.b16 %v2068, %v2067
      %v2089 = vpack.c.b16 %v2070, %v2069
      %v2090 = vpack.c.b16 %v2072, %v2071
      %v2091 = vpack.c.b16 %v2074, %v2073
      %v2092 = vpack.c.b16 %v2076, %v2075
      %v2109 = vunpack.c.l.b16 %v1149
      %v2110 = vunpack.c.l.b16 %v1150
      %v2111 = vpack.c.b16 %v2110, %v2109
      %v2113 = vunpack.c.l.b16 %v1862
      %v2114 = vunpack.c.l.b16 %v1872
      %v2115 = vpack.c.b16 %v2114, %v2113
      %v2117 = vunpack.c.l.b16 %v1879
      %v2118 = vunpack.c.l.b16 %v1882
      %v2119 = vpack.c.b16 %v2118, %v2117
      %v2121 = vunpack.c.l.b16 %v1152
      %v2122 = vunpack.c.l.b16 %v1153
      %v2123 = vpack.c.b16 %v2122, %v2121
      %v2125 = vunpack.c.l.b16 %v1896
      %v2126 = vunpack.c.l.b16 %v1906
      %v2127 = vpack.c.b16 %v2126, %v2125
      %v2129 = vunpack.c.l.b16 %v1913
      %v2130 = vunpack.c.l.b16 %v1916
      %v2131 = vpack.c.b16 %v2130, %v2129
      %v2277 = vunpack.c.l.b16 %v1155
      %v2278 = vunpack.c.l.b16 %v1156
      %v2279 = vunpack.c.l.b16 %v1157
      %v2280 = vunpack.c.l.b16 %v1158
      %v2281 = vunpack.c.l.b16 %v1159
      %v2282 = vunpack.c.l.b16 %v1160
      %v2283 = vunpack.c.l.b16 %v1161
      %v2284 = vunpack.c.l.b16 %v1162
      %v2285 = vunpack.c.l.b16 %v1163
      %v2286 = vunpack.c.l.b16 %v1164
      %v2287 = vunpack.c.l.b16 %v1165
      %v2288 = vunpack.c.l.b16 %v1166
      %v2289 = vunpack.c.l.b16 %v1167
      %v2290 = vunpack.c.l.b16 %v1168
      %v2291 = vunpack.c.l.b16 %v1169
      %v2292 = vunpack.c.l.b16 %v1170
      %v2293 = vunpack.c.l.b16 %v1171
      %v2294 = vunpack.c.l.b16 %v1172
      %v2295 = vunpack.c.l.b16 %v1173
      %v2296 = vunpack.c.l.b16 %v1174
      %v2297 = vunpack.c.l.b16 %v1175
      %v2298 = vunpack.c.l.b16 %v1176
      %v2299 = vunpack.c.l.b16 %v1177
      %v2300 = vunpack.c.l.b16 %v1178
      %v2301 = vunpack.c.l.b16 %v1179
      %v2302 = vunpack.c.l.b16 %v1180
      %v2303 = vunpack.c.l.b16 %v1181
      %v2304 = vunpack.c.l.b16 %v1182
      %v2305 = vunpack.c.l.b16 %v1183
      %v2306 = vunpack.c.l.b16 %v1184
      %v2307 = vunpack.c.l.b16 %v1185
      %v2308 = vunpack.c.l.b16 %v1186
      %v2309 = vunpack.c.l.b16 %v1187
      %v2310 = vunpack.c.l.b16 %v1188
      %v2311 = vunpack.c.l.b16 %v1189
      %v2312 = vunpack.c.l.b16 %v1190
      %v2313 = vunpack.c.l.b16 %v1191
      %v2314 = vunpack.c.l.b16 %v1192
      %v2315 = vunpack.c.l.b16 %v1193
      %v2316 = vunpack.c.l.b16 %v1194
      %v2317 = vunpack.c.l.b16 %v1195
      %v2318 = vunpack.c.l.b16 %v1196
      %v2319 = vunpack.c.l.b16 %v1197
      %v2320 = vunpack.c.l.b16 %v1198
      %v2321 = vunpack.c.l.b16 %v1199
      %v2322 = vunpack.c.l.b16 %v1200
      %v2323 = vunpack.c.l.b16 %v1201
      %v2324 = vunpack.c.l.b16 %v1202
      %v2325 = vunpack.c.l.b16 %v1203
      %v2326 = vunpack.c.l.b16 %v1204
      %v2327 = vunpack.c.l.b16 %v1205
      %v2328 = vunpack.c.l.b16 %v1206
      %v2329 = vunpack.c.l.b16 %v1207
      %v2330 = vunpack.c.l.b16 %v1208
      %v2331 = vunpack.c.l.b16 %v1209
      %v2332 = vunpack.c.l.b16 %v1210
      %v2333 = vunpack.c.l.b16 %v1211
      %v2334 = vunpack.c.l.b16 %v1212
      %v2335 = vunpack.c.l.b16 %v1213
      %v2336 = vunpack.c.l.b16 %v1214
      %v2337 = vunpack.c.l.b16 %v1215
      %v2338 = vunpack.c.l.b16 %v1216
      %v2339 = vunpack.c.l.b16 %v1217
      %v2340 = vunpack.c.l.b16 %v1218
      %v2341 = vunpack.c.l.b16 %v1219
      %v2342 = vunpack.c.l.b16 %v1220
      %v2343 = vunpack.c.l.b16 %v1221
      %v2344 = vunpack.c.l.b16 %v1222
      %v2345 = vunpack.c.l.b16 %v1223
      %v2346 = vunpack.c.l.b16 %v1224
      %v2347 = vunpack.c.l.b16 %v1225
      %v2348 = vunpack.c.l.b16 %v1226
      %v2349 = vunpack.c.l.b16 %v1227
      %v2350 = vunpack.c.l.b16 %v1228
      %v2351 = vunpack.c.l.b16 %v1229
      %v2352 = vunpack.c.l.b16 %v1230
      %v2353 = vunpack.c.l.b16 %v1231
      %v2354 = vunpack.c.l.b16 %v1232
      %v2355 = vunpack.c.l.b16 %v1233
      %v2356 = vunpack.c.l.b16 %v1234
      %v2357 = vunpack.c.l.b16 %v1235
      %v2358 = vunpack.c.l.b16 %v1236
      %v2359 = vunpack.c.l.b16 %v1237
      %v2360 = vunpack.c.l.b16 %v1238
      %v2361 = vunpack.c.l.b16 %v1239
      %v2362 = vunpack.c.l.b16 %v1240
      %v2363 = vunpack.c.l.b16 %v1241
      %v2364 = vunpack.c.l.b16 %v1242
      %v2365 = vunpack.c.l.b16 %v1243
      %v2366 = vunpack.c.l.b16 %v1244
      %v2367 = vunpack.c.l.b16 %v1245
      %v2368 = vunpack.c.l.b16 %v1246
      %v2369 = vunpack.c.l.b16 %v1247
      %v2370 = vunpack.c.l.b16 %v1248
      %v2371 = vunpack.c.l.b16 %v1249
      %v2372 = vunpack.c.l.b16 %v1250
      %v2373 = vunpack.c.l.b16 %v1251
      %v2374 = vunpack.c.l.b16 %v1252
      %v2375 = vunpack.c.l.b16 %v1253
      %v2376 = vunpack.c.l.b16 %v1254
      %v2377 = vunpack.c.l.b16 %v1255
      %v2378 = vunpack.c.l.b16 %v1256
      %v2379 = vunpack.c.l.b16 %v1257
      %v2380 = vunpack.c.l.b16 %v1258
      %v2381 = vunpack.c.l.b16 %v1259
      %v2382 = vunpack.c.l.b16 %v1260
      %v2383 = vunpack.c.l.b16 %v1261
      %v2384 = vunpack.c.l.b16 %v1262
      %v2385 = vunpack.c.l.b16 %v1263
      %v2386 = vunpack.c.l.b16 %v1264
      %v2387 = vunpack.c.l.b16 %v1265
      %v2388 = vunpack.c.l.b16 %v1266
      %v2389 = vunpack.c.l.b16 %v1267
      %v2390 = vunpack.c.l.b16 %v1268
      %v2391 = vunpack.c.l.b16 %v1269
      %v2392 = vunpack.c.l.b16 %v1270
      %v2393 = vunpack.c.l.b16 %v1271
      %v2394 = vunpack.c.l.b16 %v1272
      %v2395 = vunpack.c.l.b16 %v1273
      %v2396 = vunpack.c.l.b16 %v1274
      %v2397 = vunpack.c.l.b16 %v1275
      %v2398 = vunpack.c.l.b16 %v1276
      %v2399 = vunpack.c.l.b16 %v1277
      %v2400 = vunpack.c.l.b16 %v1278
      %v2401 = vunpack.c.l.b16 %v1279
      %v2402 = vunpack.c.l.b16 %v1280
      %v2403 = vunpack.c.l.b16 %v1281
      %v2404 = vunpack.c.l.b16 %v1282
      %v2405 = vunpack.c.l.b16 %v1283
      %v2406 = vunpack.c.l.b16 %v1284
      %v2407 = vunpack.c.l.b16 %v1285
      %v2408 = vunpack.c.l.b16 %v1286
      %v2409 = vunpack.c.l.b16 %v1287
      %v2410 = vunpack.c.l.b16 %v1288
      %v2411 = vunpack.c.l.b16 %v1289
      %v2412 = vunpack.c.l.b16 %v1290
      %v2413 = vunpack.c.l.b16 %v1291
      %v2414 = vunpack.c.l.b16 %v1292
      %v2415 = vunpack.c.l.b16 %v1293
      %v2416 = vunpack.c.l.b16 %v1294
      %v2417 = vunpack.c.l.b16 %v1295
      %v2418 = vunpack.c.l.b16 %v1296
      %v2419 = vunpack.c.l.b16 %v1297
      %v2420 = vunpack.c.l.b16 %v1298
      %v2421 = vpack.c.b16 %v2278, %v2277
      %v2422 = vpack.c.b16 %v2280, %v2279
      %v2423 = vpack.c.b16 %v2282, %v2281
      %v2424 = vpack.c.b16 %v2284, %v2283
      %v2425 = vpack.c.b16 %v2286, %v2285
      %v2426 = vpack.c.b16 %v2288, %v2287
      %v2427 = vpack.c.b16 %v2290, %v2289
      %v2428 = vpack.c.b16 %v2292, %v2291
      %v2429 = vpack.c.b16 %v2294, %v2293
      %v2430 = vpack.c.b16 %v2296, %v2295
      %v2431 = vpack.c.b16 %v2298, %v2297
      %v2432 = vpack.c.b16 %v2300, %v2299
      %v2433 = vpack.c.b16 %v2302, %v2301
      %v2434 = vpack.c.b16 %v2304, %v2303
      %v2435 = vpack.c.b16 %v2306, %v2305
      %v2436 = vpack.c.b16 %v2308, %v2307
      %v2437 = vpack.c.b16 %v2310, %v2309
      %v2438 = vpack.c.b16 %v2312, %v2311
      %v2439 = vpack.c.b16 %v2314, %v2313
      %v2440 = vpack.c.b16 %v2316, %v2315
      %v2441 = vpack.c.b16 %v2318, %v2317
      %v2442 = vpack.c.b16 %v2320, %v2319
      %v2443 = vpack.c.b16 %v2322, %v2321
      %v2444 = vpack.c.b16 %v2324, %v2323
      %v2445 = vpack.c.b16 %v2326, %v2325
      %v2446 = vpack.c.b16 %v2328, %v2327
      %v2447 = vpack.c.b16 %v2330, %v2329
      %v2448 = vpack.c.b16 %v2332, %v2331
      %v2449 = vpack.c.b16 %v2334, %v2333
      %v2450 = vpack.c.b16 %v2336, %v2335
      %v2451 = vpack.c.b16 %v2338, %v2337
      %v2452 = vpack.c.b16 %v2340, %v2339
      %v2453 = vpack.c.b16 %v2342, %v2341
      %v2454 = vpack.c.b16 %v2344, %v2343
      %v2455 = vpack.c.b16 %v2346, %v2345
      %v2456 = vpack.c.b16 %v2348, %v2347
      %v2457 = vpack.c.b16 %v2350, %v2349
      %v2458 = vpack.c.b16 %v2352, %v2351
      %v2459 = vpack.c.b16 %v2354, %v2353
      %v2460 = vpack.c.b16 %v2356, %v2355
      %v2461 = vpack.c.b16 %v2358, %v2357
      %v2462 = vpack.c.b16 %v2360, %v2359
      %v2463 = vpack.c.b16 %v2362, %v2361
      %v2464 = vpack.c.b16 %v2364, %v2363
      %v2465 = vpack.c.b16 %v2366, %v2365
      %v2466 = vpack.c.b16 %v2368, %v2367
      %v2467 = vpack.c.b16 %v2370, %v2369
      %v2468 = vpack.c.b16 %v2372, %v2371
      %v2469 = vpack.c.b16 %v2374, %v2373
      %v2470 = vpack.c.b16 %v2376, %v2375
      %v2471 = vpack.c.b16 %v2378, %v2377
      %v2472 = vpack.c.b16 %v2380, %v2379
      %v2473 = vpack.c.b16 %v2382, %v2381
      %v2474 = vpack.c.b16 %v2384, %v2383
      %v2475 = vpack.c.b16 %v2386, %v2385
      %v2476 = vpack.c.b16 %v2388, %v2387
      %v2477 = vpack.c.b16 %v2390, %v2389
      %v2478 = vpack.c.b16 %v2392, %v2391
      %v2479 = vpack.c.b16 %v2394, %v2393
      %v2480 = vpack.c.b16 %v2396, %v2395
      %v2481 = vpack.c.b16 %v2398, %v2397
      %v2482 = vpack.c.b16 %v2400, %v2399
      %v2483 = vpack.c.b16 %v2402, %v2401
      %v2484 = vpack.c.b16 %v2404, %v2403
      %v2485 = vpack.c.b16 %v2406, %v2405
      %v2486 = vpack.c.b16 %v2408, %v2407
      %v2487 = vpack.c.b16 %v2410, %v2409
      %v2488 = vpack.c.b16 %v2412, %v2411
      %v2489 = vpack.c.b16 %v2414, %v2413
      %v2490 = vpack.c.b16 %v2416, %v2415
      %v2491 = vpack.c.b16 %v2418, %v2417
      %v2492 = vpack.c.b16 %v2420, %v2419
      %2565 = vmatprep.subr.bf16.mxu0 0
      %2566 = vmatpush1.bf16.msra.mxu0 %v2421
      %2567 = vmatprep.subr.bf16.mxu0 0
      %2568 = vmatpush1.bf16.msra.mxu0 %v2422
      %2569 = vmatprep.subr.bf16.mxu0 0
      %2570 = vmatpush1.bf16.msra.mxu0 %v2423
      %2571 = vmatprep.subr.bf16.mxu0 0
      %2572 = vmatpush1.bf16.msra.mxu0 %v2424
      %2573 = vmatprep.subr.bf16.mxu0 0
      %2574 = vmatpush1.bf16.msra.mxu0 %v2425
      %2575 = vmatprep.subr.bf16.mxu0 0
      %2576 = vmatpush1.bf16.msra.mxu0 %v2426
      %2577 = vmatprep.subr.bf16.mxu0 0
      %2578 = vmatpush1.bf16.msra.mxu0 %v2427
      %2579 = vmatprep.subr.bf16.mxu0 0
      %2580 = vmatpush1.bf16.msra.mxu0 %v2428
      %2581 = vmatprep.subr.bf16.mxu0 0
      %2582 = vmatpush1.bf16.msra.mxu0 %v2429
      %2583 = vmatprep.subr.bf16.mxu0 0
      %2584 = vmatpush1.bf16.msra.mxu0 %v2430
      %2585 = vmatprep.subr.bf16.mxu0 0
      %2586 = vmatpush1.bf16.msra.mxu0 %v2431
      %2587 = vmatprep.subr.bf16.mxu0 0
      %2588 = vmatpush1.bf16.msra.mxu0 %v2432
      %2589 = vmatprep.subr.bf16.mxu0 0
      %2590 = vmatpush1.bf16.msra.mxu0 %v2433
      %2591 = vmatprep.subr.bf16.mxu0 0
      %2592 = vmatpush1.bf16.msra.mxu0 %v2434
      %2593 = vmatprep.subr.bf16.mxu0 0
      %2594 = vmatpush1.bf16.msra.mxu0 %v2435
      %2595 = vmatprep.subr.bf16.mxu0 0
      %2596 = vmatpush1.bf16.msra.mxu0 %v2436
      %2597 = vmatprep.mubr.bf16.mxu0 %v2013
      %2598 = vmatmul.mubr.bf16.gmra.mrb[0].mxu0 %v1949
      %v2599 = vpop.f32.mrb[0].mxu0
      %v2600 = vadd.f32 0.0, %v2599
      %v2601 = vpop.f32.mrb[0].mxu0
      %v2602 = vpop.f32.mrb[0].mxu0
      %v2603 = vadd.f32 0.0, %v2602
      %v2604 = vpop.f32.mrb[0].mxu0
      %2605 = vmatprep.mubr.bf16.mxu0 %v2014
      %2606 = vmatmul.mubr.bf16.gmra.mrb[0].mxu0 %v1950
      %v2607 = vpop.f32.mrb[0].mxu0
      %v2608 = vadd.f32 0.0, %v2607
      %v2609 = vpop.f32.mrb[0].mxu0
      %v2610 = vpop.f32.mrb[0].mxu0
      %v2611 = vadd.f32 0.0, %v2610
      %v2612 = vpop.f32.mrb[0].mxu0
      %2613 = vmatprep.mubr.bf16.mxu0 %v2015
      %2614 = vmatmul.mubr.bf16.gmra.mrb[0].mxu0 %v1951
      %v2615 = vpop.f32.mrb[0].mxu0
      %v2616 = vadd.f32 0.0, %v2615
      %v2617 = vpop.f32.mrb[0].mxu0
      %v2618 = vpop.f32.mrb[0].mxu0
      %v2619 = vadd.f32 0.0, %v2618
      %v2620 = vpop.f32.mrb[0].mxu0
      %2621 = vmatprep.mubr.bf16.mxu0 %v2016
      %2622 = vmatmul.mubr.bf16.gmra.mrb[0].mxu0 %v1952
      %v2623 = vpop.f32.mrb[0].mxu0
      %v2624 = vadd.f32 0.0, %v2623
      %v2625 = vpop.f32.mrb[0].mxu0
      %v2626 = vpop.f32.mrb[0].mxu0
      %v2627 = vadd.f32 0.0, %v2626
      %v2628 = vpop.f32.mrb[0].mxu0
      %2629 = vmatprep.mubr.bf16.mxu0 %v2017
      %2630 = vmatmul.mubr.bf16.gmra.mrb[0].mxu0 %v1953
      %v2631 = vpop.f32.mrb[0].mxu0
      %v2632 = vadd.f32 0.0, %v2631
      %v2633 = vpop.f32.mrb[0].mxu0
      %v2634 = vpop.f32.mrb[0].mxu0
      %v2635 = vadd.f32 0.0, %v2634
      %v2636 = vpop.f32.mrb[0].mxu0
      %2637 = vmatprep.mubr.bf16.mxu0 %v2018
      %2638 = vmatmul.mubr.bf16.gmra.mrb[0].mxu0 %v1954
      %v2639 = vpop.f32.mrb[0].mxu0
      %v2640 = vadd.f32 0.0, %v2639
      %v2641 = vpop.f32.mrb[0].mxu0
      %v2642 = vpop.f32.mrb[0].mxu0
      %v2643 = vadd.f32 0.0, %v2642
      %v2644 = vpop.f32.mrb[0].mxu0
      %2645 = vmatprep.mubr.bf16.mxu0 %v2019
      %2646 = vmatmul.mubr.bf16.gmra.mrb[0].mxu0 %v1955
      %v2647 = vpop.f32.mrb[0].mxu0
      %v2648 = vadd.f32 0.0, %v2647
      %v2649 = vpop.f32.mrb[0].mxu0
      %v2650 = vpop.f32.mrb[0].mxu0
      %v2651 = vadd.f32 0.0, %v2650
      %v2652 = vpop.f32.mrb[0].mxu0
      %2653 = vmatprep.mubr.bf16.mxu0 %v2020
      %2654 = vmatmul.mubr.bf16.gmra.mrb[0].mxu0 %v1956
      %v2655 = vpop.f32.mrb[0].mxu0
      %v2656 = vadd.f32 0.0, %v2655
      %v2657 = vpop.f32.mrb[0].mxu0
      %v2658 = vpop.f32.mrb[0].mxu0
      %v2659 = vadd.f32 0.0, %v2658
      %v2660 = vpop.f32.mrb[0].mxu0
      %2661 = vmatprep.mubr.bf16.mxu0 %v2021
      %2662 = vmatmul.mubr.bf16.gmra.mrb[0].mxu0 %v1957
      %v2663 = vpop.f32.mrb[0].mxu0
      %v2664 = vadd.f32 0.0, %v2663
      %v2665 = vpop.f32.mrb[0].mxu0
      %v2666 = vpop.f32.mrb[0].mxu0
      %v2667 = vadd.f32 0.0, %v2666
      %v2668 = vpop.f32.mrb[0].mxu0
      %2669 = vmatprep.mubr.bf16.mxu0 %v2022
      %2670 = vmatmul.mubr.bf16.gmra.mrb[0].mxu0 %v1958
      %v2671 = vpop.f32.mrb[0].mxu0
      %v2672 = vadd.f32 0.0, %v2671
      %v2673 = vpop.f32.mrb[0].mxu0
      %v2674 = vpop.f32.mrb[0].mxu0
      %v2675 = vadd.f32 0.0, %v2674
      %v2676 = vpop.f32.mrb[0].mxu0
      %2677 = vmatprep.mubr.bf16.mxu0 %v2023
      %2678 = vmatmul.mubr.bf16.gmra.mrb[0].mxu0 %v1959
      %v2679 = vpop.f32.mrb[0].mxu0
      %v2680 = vadd.f32 0.0, %v2679
      %v2681 = vpop.f32.mrb[0].mxu0
      %v2682 = vpop.f32.mrb[0].mxu0
      %v2683 = vadd.f32 0.0, %v2682
      %v2684 = vpop.f32.mrb[0].mxu0
      %2685 = vmatprep.mubr.bf16.mxu0 %v2024
      %2686 = vmatmul.mubr.bf16.gmra.mrb[0].mxu0 %v1960
      %v2687 = vpop.f32.mrb[0].mxu0
      %v2688 = vadd.f32 0.0, %v2687
      %v2689 = vpop.f32.mrb[0].mxu0
      %v2690 = vpop.f32.mrb[0].mxu0
      %v2691 = vadd.f32 0.0, %v2690
      %v2692 = vpop.f32.mrb[0].mxu0
      %2693 = vmatprep.mubr.bf16.mxu0 %v2025
      %2694 = vmatmul.mubr.bf16.gmra.mrb[0].mxu0 %v1961
      %v2695 = vpop.f32.mrb[0].mxu0
      %v2696 = vadd.f32 0.0, %v2695
      %v2697 = vpop.f32.mrb[0].mxu0
      %v2698 = vpop.f32.mrb[0].mxu0
      %v2699 = vadd.f32 0.0, %v2698
      %v2700 = vpop.f32.mrb[0].mxu0
      %2701 = vmatprep.mubr.bf16.mxu0 %v2026
      %2702 = vmatmul.mubr.bf16.gmra.mrb[0].mxu0 %v1962
      %v2703 = vpop.f32.mrb[0].mxu0
      %v2704 = vadd.f32 0.0, %v2703
      %v2705 = vpop.f32.mrb[0].mxu0
      %v2706 = vpop.f32.mrb[0].mxu0
      %v2707 = vadd.f32 0.0, %v2706
      %v2708 = vpop.f32.mrb[0].mxu0
      %2709 = vmatprep.mubr.bf16.mxu0 %v2027
      %2710 = vmatmul.mubr.bf16.gmra.mrb[0].mxu0 %v1963
      %v2711 = vpop.f32.mrb[0].mxu0
      %v2712 = vadd.f32 0.0, %v2711
      %v2713 = vpop.f32.mrb[0].mxu0
      %v2714 = vpop.f32.mrb[0].mxu0
      %v2715 = vadd.f32 0.0, %v2714
      %v2716 = vpop.f32.mrb[0].mxu0
      %2717 = vmatprep.mubr.bf16.mxu0 %v2028
      %2718 = vmatmul.mubr.bf16.gmra.mrb[0].mxu0 %v1964
      %v2719 = vpop.f32.mrb[0].mxu0
      %v2720 = vadd.f32 0.0, %v2719
      %v2721 = vpop.f32.mrb[0].mxu0
      %v2722 = vpop.f32.mrb[0].mxu0
      %v2723 = vadd.f32 0.0, %v2722
      %v2724 = vpop.f32.mrb[0].mxu0
      %2725 = vdwg.mxu0
      %2726 = vmatprep.subr.bf16.mxu0 0
      %2727 = vmatpush1.bf16.msra.mxu0 %v2437
      %2728 = vmatprep.subr.bf16.mxu0 0
      %2729 = vmatpush1.bf16.msra.mxu0 %v2438
      %2730 = vmatprep.subr.bf16.mxu0 0
      %2731 = vmatpush1.bf16.msra.mxu0 %v2439
      %2732 = vmatprep.subr.bf16.mxu0 0
      %2733 = vmatpush1.bf16.msra.mxu0 %v2440
      %2734 = vmatprep.subr.bf16.mxu0 0
      %2735 = vmatpush1.bf16.msra.mxu0 %v2441
      %2736 = vmatprep.subr.bf16.mxu0 0
      %2737 = vmatpush1.bf16.msra.mxu0 %v2442
      %2738 = vmatprep.subr.bf16.mxu0 0
      %2739 = vmatpush1.bf16.msra.mxu0 %v2443
      %2740 = vmatprep.subr.bf16.mxu0 0
      %2741 = vmatpush1.bf16.msra.mxu0 %v2444
      %2742 = vmatprep.subr.bf16.mxu0 0
      %2743 = vmatpush1.bf16.msra.mxu0 %v2445
      %2744 = vmatprep.subr.bf16.mxu0 0
      %2745 = vmatpush1.bf16.msra.mxu0 %v2446
      %2746 = vmatprep.subr.bf16.mxu0 0
      %2747 = vmatpush1.bf16.msra.mxu0 %v2447
      %2748 = vmatprep.subr.bf16.mxu0 0
      %2749 = vmatpush1.bf16.msra.mxu0 %v2448
      %2750 = vmatprep.subr.bf16.mxu0 0
      %2751 = vmatpush1.bf16.msra.mxu0 %v2449
      %2752 = vmatprep.subr.bf16.mxu0 0
      %2753 = vmatpush1.bf16.msra.mxu0 %v2450
      %2754 = vmatprep.subr.bf16.mxu0 0
      %2755 = vmatpush1.bf16.msra.mxu0 %v2451
      %2756 = vmatprep.subr.bf16.mxu0 0
      %2757 = vmatpush1.bf16.msra.mxu0 %v2452
      %2758 = vmatprep.mubr.bf16.mxu0 %v1950
      %2759 = vmatmul.mubr.bf16.gmra.mrb[0].mxu0 %v2077
      %v2760 = vpop.f32.mrb[0].mxu0
      %v2761 = vadd.f32 %v2600, %v2760
      %v2762 = vpop.f32.mrb[0].mxu0
      %v2763 = vpop.f32.mrb[0].mxu0
      %v2764 = vadd.f32 %v2603, %v2763
      %v2765 = vpop.f32.mrb[0].mxu0
      %2766 = vmatprep.mubr.bf16.mxu0 %v1951
      %2767 = vmatmul.mubr.bf16.gmra.mrb[0].mxu0 %v2078
      %v2768 = vpop.f32.mrb[0].mxu0
      %v2769 = vadd.f32 %v2608, %v2768
      %v2770 = vpop.f32.mrb[0].mxu0
      %v2771 = vpop.f32.mrb[0].mxu0
      %v2772 = vadd.f32 %v2611, %v2771
      %v2773 = vpop.f32.mrb[0].mxu0
      %2774 = vmatprep.mubr.bf16.mxu0 %v1952
      %2775 = vmatmul.mubr.bf16.gmra.mrb[0].mxu0 %v2079
      %v2776 = vpop.f32.mrb[0].mxu0
      %v2777 = vadd.f32 %v2616, %v2776
      %v2778 = vpop.f32.mrb[0].mxu0
      %v2779 = vpop.f32.mrb[0].mxu0
      %v2780 = vadd.f32 %v2619, %v2779
      %v2781 = vpop.f32.mrb[0].mxu0
      %2782 = vmatprep.mubr.bf16.mxu0 %v1953
      %2783 = vmatmul.mubr.bf16.gmra.mrb[0].mxu0 %v2080
      %v2784 = vpop.f32.mrb[0].mxu0
      %v2785 = vadd.f32 %v2624, %v2784
      %v2786 = vpop.f32.mrb[0].mxu0
      %v2787 = vpop.f32.mrb[0].mxu0
      %v2788 = vadd.f32 %v2627, %v2787
      %v2789 = vpop.f32.mrb[0].mxu0
      %2790 = vmatprep.mubr.bf16.mxu0 %v1954
      %2791 = vmatmul.mubr.bf16.gmra.mrb[0].mxu0 %v2081
      %v2792 = vpop.f32.mrb[0].mxu0
      %v2793 = vadd.f32 %v2632, %v2792
      %v2794 = vpop.f32.mrb[0].mxu0
      %v2795 = vpop.f32.mrb[0].mxu0
      %v2796 = vadd.f32 %v2635, %v2795
      %v2797 = vpop.f32.mrb[0].mxu0
      %2798 = vmatprep.mubr.bf16.mxu0 %v1955
      %2799 = vmatmul.mubr.bf16.gmra.mrb[0].mxu0 %v2082
      %v2800 = vpop.f32.mrb[0].mxu0
      %v2801 = vadd.f32 %v2640, %v2800
      %v2802 = vpop.f32.mrb[0].mxu0
      %v2803 = vpop.f32.mrb[0].mxu0
      %v2804 = vadd.f32 %v2643, %v2803
      %v2805 = vpop.f32.mrb[0].mxu0
      %2806 = vmatprep.mubr.bf16.mxu0 %v1956
      %2807 = vmatmul.mubr.bf16.gmra.mrb[0].mxu0 %v2083
      %v2808 = vpop.f32.mrb[0].mxu0
      %v2809 = vadd.f32 %v2648, %v2808
      %v2810 = vpop.f32.mrb[0].mxu0
      %v2811 = vpop.f32.mrb[0].mxu0
      %v2812 = vadd.f32 %v2651, %v2811
      %v2813 = vpop.f32.mrb[0].mxu0
      %2814 = vmatprep.mubr.bf16.mxu0 %v1957
      %2815 = vmatmul.mubr.bf16.gmra.mrb[0].mxu0 %v2084
      %v2816 = vpop.f32.mrb[0].mxu0
      %v2817 = vadd.f32 %v2656, %v2816
      %v2818 = vpop.f32.mrb[0].mxu0
      %v2819 = vpop.f32.mrb[0].mxu0
      %v2820 = vadd.f32 %v2659, %v2819
      %v2821 = vpop.f32.mrb[0].mxu0
      %2822 = vmatprep.mubr.bf16.mxu0 %v1958
      %2823 = vmatmul.mubr.bf16.gmra.mrb[0].mxu0 %v2085
      %v2824 = vpop.f32.mrb[0].mxu0
      %v2825 = vadd.f32 %v2664, %v2824
      %v2826 = vpop.f32.mrb[0].mxu0
      %v2827 = vpop.f32.mrb[0].mxu0
      %v2828 = vadd.f32 %v2667, %v2827
      %v2829 = vpop.f32.mrb[0].mxu0
      %2830 = vmatprep.mubr.bf16.mxu0 %v1959
      %2831 = vmatmul.mubr.bf16.gmra.mrb[0].mxu0 %v2086
      %v2832 = vpop.f32.mrb[0].mxu0
      %v2833 = vadd.f32 %v2672, %v2832
      %v2834 = vpop.f32.mrb[0].mxu0
      %v2835 = vpop.f32.mrb[0].mxu0
      %v2836 = vadd.f32 %v2675, %v2835
      %v2837 = vpop.f32.mrb[0].mxu0
      %2838 = vmatprep.mubr.bf16.mxu0 %v1960
      %2839 = vmatmul.mubr.bf16.gmra.mrb[0].mxu0 %v2087
      %v2840 = vpop.f32.mrb[0].mxu0
      %v2841 = vadd.f32 %v2680, %v2840
      %v2842 = vpop.f32.mrb[0].mxu0
      %v2843 = vpop.f32.mrb[0].mxu0
      %v2844 = vadd.f32 %v2683, %v2843
      %v2845 = vpop.f32.mrb[0].mxu0
      %2846 = vmatprep.mubr.bf16.mxu0 %v1961
      %2847 = vmatmul.mubr.bf16.gmra.mrb[0].mxu0 %v2088
      %v2848 = vpop.f32.mrb[0].mxu0
      %v2849 = vadd.f32 %v2688, %v2848
      %v2850 = vpop.f32.mrb[0].mxu0
      %v2851 = vpop.f32.mrb[0].mxu0
      %v2852 = vadd.f32 %v2691, %v2851
      %v2853 = vpop.f32.mrb[0].mxu0
      %2854 = vmatprep.mubr.bf16.mxu0 %v1962
      %2855 = vmatmul.mubr.bf16.gmra.mrb[0].mxu0 %v2089
      %v2856 = vpop.f32.mrb[0].mxu0
      %v2857 = vadd.f32 %v2696, %v2856
      %v2858 = vpop.f32.mrb[0].mxu0
      %v2859 = vpop.f32.mrb[0].mxu0
      %v2860 = vadd.f32 %v2699, %v2859
      %v2861 = vpop.f32.mrb[0].mxu0
      %2862 = vmatprep.mubr.bf16.mxu0 %v1963
      %2863 = vmatmul.mubr.bf16.gmra.mrb[0].mxu0 %v2090
      %v2864 = vpop.f32.mrb[0].mxu0
      %v2865 = vadd.f32 %v2704, %v2864
      %v2866 = vpop.f32.mrb[0].mxu0
      %v2867 = vpop.f32.mrb[0].mxu0
      %v2868 = vadd.f32 %v2707, %v2867
      %v2869 = vpop.f32.mrb[0].mxu0
      %2870 = vmatprep.mubr.bf16.mxu0 %v1964
      %2871 = vmatmul.mubr.bf16.gmra.mrb[0].mxu0 %v2091
      %v2872 = vpop.f32.mrb[0].mxu0
      %v2873 = vadd.f32 %v2712, %v2872
      %v2874 = vpop.f32.mrb[0].mxu0
      %v2875 = vpop.f32.mrb[0].mxu0
      %v2876 = vadd.f32 %v2715, %v2875
      %v2877 = vpop.f32.mrb[0].mxu0
      %2878 = vmatprep.mubr.bf16.mxu0 %v2111
      %2879 = vmatmul.mubr.bf16.gmra.mrb[0].mxu0 %v2092
      %v2880 = vpop.f32.mrb[0].mxu0
      %v2881 = vadd.f32 %v2720, %v2880
      %v2882 = vpop.f32.mrb[0].mxu0
      %v2883 = vpop.f32.mrb[0].mxu0
      %v2884 = vadd.f32 %v2723, %v2883
      %v2885 = vpop.f32.mrb[0].mxu0
      %2886 = vdwg.mxu0
      %2887 = vmatprep.subr.bf16.mxu0 0
      %2888 = vmatpush1.bf16.msra.mxu0 %v2453
      %2889 = vmatprep.subr.bf16.mxu0 0
      %2890 = vmatpush1.bf16.msra.mxu0 %v2454
      %2891 = vmatprep.subr.bf16.mxu0 0
      %2892 = vmatpush1.bf16.msra.mxu0 %v2455
      %2893 = vmatprep.subr.bf16.mxu0 0
      %2894 = vmatpush1.bf16.msra.mxu0 %v2456
      %2895 = vmatprep.subr.bf16.mxu0 0
      %2896 = vmatpush1.bf16.msra.mxu0 %v2457
      %2897 = vmatprep.subr.bf16.mxu0 0
      %2898 = vmatpush1.bf16.msra.mxu0 %v2458
      %2899 = vmatprep.subr.bf16.mxu0 0
      %2900 = vmatpush1.bf16.msra.mxu0 %v2459
      %2901 = vmatprep.subr.bf16.mxu0 0
      %2902 = vmatpush1.bf16.msra.mxu0 %v2460
      %2903 = vmatprep.subr.bf16.mxu0 0
      %2904 = vmatpush1.bf16.msra.mxu0 %v2461
      %2905 = vmatprep.subr.bf16.mxu0 0
      %2906 = vmatpush1.bf16.msra.mxu0 %v2462
      %2907 = vmatprep.subr.bf16.mxu0 0
      %2908 = vmatpush1.bf16.msra.mxu0 %v2463
      %2909 = vmatprep.subr.bf16.mxu0 0
      %2910 = vmatpush1.bf16.msra.mxu0 %v2464
      %2911 = vmatprep.subr.bf16.mxu0 0
      %2912 = vmatpush1.bf16.msra.mxu0 %v2465
      %2913 = vmatprep.subr.bf16.mxu0 0
      %2914 = vmatpush1.bf16.msra.mxu0 %v2466
      %2915 = vmatprep.subr.bf16.mxu0 0
      %2916 = vmatpush1.bf16.msra.mxu0 %v2467
      %2917 = vmatprep.subr.bf16.mxu0 0
      %2918 = vmatpush1.bf16.msra.mxu0 %v2468
      %2919 = vmatprep.mubr.bf16.mxu0 %v2078
      %2920 = vmatmul.mubr.bf16.gmra.mrb[0].mxu0 %v2014
      %v2921 = vpop.f32.mrb[0].mxu0
      %v2922 = vadd.f32 %v2761, %v2921
      %v2923 = vpop.f32.mrb[0].mxu0
      %v2924 = vpop.f32.mrb[0].mxu0
      %v2925 = vadd.f32 %v2764, %v2924
      %v2926 = vpop.f32.mrb[0].mxu0
      %2927 = vmatprep.mubr.bf16.mxu0 %v2079
      %2928 = vmatmul.mubr.bf16.gmra.mrb[0].mxu0 %v2015
      %v2929 = vpop.f32.mrb[0].mxu0
      %v2930 = vadd.f32 %v2769, %v2929
      %v2931 = vpop.f32.mrb[0].mxu0
      %v2932 = vpop.f32.mrb[0].mxu0
      %v2933 = vadd.f32 %v2772, %v2932
      %v2934 = vpop.f32.mrb[0].mxu0
      %2935 = vmatprep.mubr.bf16.mxu0 %v2080
      %2936 = vmatmul.mubr.bf16.gmra.mrb[0].mxu0 %v2016
      %v2937 = vpop.f32.mrb[0].mxu0
      %v2938 = vadd.f32 %v2777, %v2937
      %v2939 = vpop.f32.mrb[0].mxu0
      %v2940 = vpop.f32.mrb[0].mxu0
      %v2941 = vadd.f32 %v2780, %v2940
      %v2942 = vpop.f32.mrb[0].mxu0
      %2943 = vmatprep.mubr.bf16.mxu0 %v2081
      %2944 = vmatmul.mubr.bf16.gmra.mrb[0].mxu0 %v2017
      %v2945 = vpop.f32.mrb[0].mxu0
      %v2946 = vadd.f32 %v2785, %v2945
      %v2947 = vpop.f32.mrb[0].mxu0
      %v2948 = vpop.f32.mrb[0].mxu0
      %v2949 = vadd.f32 %v2788, %v2948
      %v2950 = vpop.f32.mrb[0].mxu0
      %2951 = vmatprep.mubr.bf16.mxu0 %v2082
      %2952 = vmatmul.mubr.bf16.gmra.mrb[0].mxu0 %v2018
      %v2953 = vpop.f32.mrb[0].mxu0
      %v2954 = vadd.f32 %v2793, %v2953
      %v2955 = vpop.f32.mrb[0].mxu0
      %v2956 = vpop.f32.mrb[0].mxu0
      %v2957 = vadd.f32 %v2796, %v2956
      %v2958 = vpop.f32.mrb[0].mxu0
      %2959 = vmatprep.mubr.bf16.mxu0 %v2083
      %2960 = vmatmul.mubr.bf16.gmra.mrb[0].mxu0 %v2019
      %v2961 = vpop.f32.mrb[0].mxu0
      %v2962 = vadd.f32 %v2801, %v2961
      %v2963 = vpop.f32.mrb[0].mxu0
      %v2964 = vpop.f32.mrb[0].mxu0
      %v2965 = vadd.f32 %v2804, %v2964
      %v2966 = vpop.f32.mrb[0].mxu0
      %2967 = vmatprep.mubr.bf16.mxu0 %v2084
      %2968 = vmatmul.mubr.bf16.gmra.mrb[0].mxu0 %v2020
      %v2969 = vpop.f32.mrb[0].mxu0
      %v2970 = vadd.f32 %v2809, %v2969
      %v2971 = vpop.f32.mrb[0].mxu0
      %v2972 = vpop.f32.mrb[0].mxu0
      %v2973 = vadd.f32 %v2812, %v2972
      %v2974 = vpop.f32.mrb[0].mxu0
      %2975 = vmatprep.mubr.bf16.mxu0 %v2085
      %2976 = vmatmul.mubr.bf16.gmra.mrb[0].mxu0 %v2021
      %v2977 = vpop.f32.mrb[0].mxu0
      %v2978 = vadd.f32 %v2817, %v2977
      %v2979 = vpop.f32.mrb[0].mxu0
      %v2980 = vpop.f32.mrb[0].mxu0
      %v2981 = vadd.f32 %v2820, %v2980
      %v2982 = vpop.f32.mrb[0].mxu0
      %2983 = vmatprep.mubr.bf16.mxu0 %v2086
      %2984 = vmatmul.mubr.bf16.gmra.mrb[0].mxu0 %v2022
      %v2985 = vpop.f32.mrb[0].mxu0
      %v2986 = vadd.f32 %v2825, %v2985
      %v2987 = vpop.f32.mrb[0].mxu0
      %v2988 = vpop.f32.mrb[0].mxu0
      %v2989 = vadd.f32 %v2828, %v2988
      %v2990 = vpop.f32.mrb[0].mxu0
      %2991 = vmatprep.mubr.bf16.mxu0 %v2087
      %2992 = vmatmul.mubr.bf16.gmra.mrb[0].mxu0 %v2023
      %v2993 = vpop.f32.mrb[0].mxu0
      %v2994 = vadd.f32 %v2833, %v2993
      %v2995 = vpop.f32.mrb[0].mxu0
      %v2996 = vpop.f32.mrb[0].mxu0
      %v2997 = vadd.f32 %v2836, %v2996
      %v2998 = vpop.f32.mrb[0].mxu0
      %2999 = vmatprep.mubr.bf16.mxu0 %v2088
      %3000 = vmatmul.mubr.bf16.gmra.mrb[0].mxu0 %v2024
      %v3001 = vpop.f32.mrb[0].mxu0
      %v3002 = vadd.f32 %v2841, %v3001
      %v3003 = vpop.f32.mrb[0].mxu0
      %v3004 = vpop.f32.mrb[0].mxu0
      %v3005 = vadd.f32 %v2844, %v3004
      %v3006 = vpop.f32.mrb[0].mxu0
      %3007 = vmatprep.mubr.bf16.mxu0 %v2089
      %3008 = vmatmul.mubr.bf16.gmra.mrb[0].mxu0 %v2025
      %v3009 = vpop.f32.mrb[0].mxu0
      %v3010 = vadd.f32 %v2849, %v3009
      %v3011 = vpop.f32.mrb[0].mxu0
      %v3012 = vpop.f32.mrb[0].mxu0
      %v3013 = vadd.f32 %v2852, %v3012
      %v3014 = vpop.f32.mrb[0].mxu0
      %3015 = vmatprep.mubr.bf16.mxu0 %v2090
      %3016 = vmatmul.mubr.bf16.gmra.mrb[0].mxu0 %v2026
      %v3017 = vpop.f32.mrb[0].mxu0
      %v3018 = vadd.f32 %v2857, %v3017
      %v3019 = vpop.f32.mrb[0].mxu0
      %v3020 = vpop.f32.mrb[0].mxu0
      %v3021 = vadd.f32 %v2860, %v3020
      %v3022 = vpop.f32.mrb[0].mxu0
      %3023 = vmatprep.mubr.bf16.mxu0 %v2091
      %3024 = vmatmul.mubr.bf16.gmra.mrb[0].mxu0 %v2027
      %v3025 = vpop.f32.mrb[0].mxu0
      %v3026 = vadd.f32 %v2865, %v3025
      %v3027 = vpop.f32.mrb[0].mxu0
      %v3028 = vpop.f32.mrb[0].mxu0
      %v3029 = vadd.f32 %v2868, %v3028
      %v3030 = vpop.f32.mrb[0].mxu0
      %3031 = vmatprep.mubr.bf16.mxu0 %v2092
      %3032 = vmatmul.mubr.bf16.gmra.mrb[0].mxu0 %v2028
      %v3033 = vpop.f32.mrb[0].mxu0
      %v3034 = vadd.f32 %v2873, %v3033
      %v3035 = vpop.f32.mrb[0].mxu0
      %v3036 = vpop.f32.mrb[0].mxu0
      %v3037 = vadd.f32 %v2876, %v3036
      %v3038 = vpop.f32.mrb[0].mxu0
      %3039 = vmatprep.mubr.bf16.mxu0 %v2119
      %3040 = vmatmul.mubr.bf16.gmra.mrb[0].mxu0 %v2115
      %v3041 = vpop.f32.mrb[0].mxu0
      %v3042 = vadd.f32 %v2881, %v3041
      %v3043 = vpop.f32.mrb[0].mxu0
      %v3044 = vpop.f32.mrb[0].mxu0
      %v3045 = vadd.f32 %v2884, %v3044
      %v3046 = vpop.f32.mrb[0].mxu0
      %3047 = vdwg.mxu0
      %3048 = vmatprep.subr.bf16.mxu0 0
      %3049 = vmatpush1.bf16.msra.mxu0 %v2469
      %3050 = vmatprep.subr.bf16.mxu0 0
      %3051 = vmatpush1.bf16.msra.mxu0 %v2470
      %3052 = vmatprep.subr.bf16.mxu0 0
      %3053 = vmatpush1.bf16.msra.mxu0 %v2471
      %3054 = vmatprep.subr.bf16.mxu0 0
      %3055 = vmatpush1.bf16.msra.mxu0 %v2472
      %3056 = vmatprep.subr.bf16.mxu0 0
      %3057 = vmatpush1.bf16.msra.mxu0 %v2473
      %3058 = vmatprep.subr.bf16.mxu0 0
      %3059 = vmatpush1.bf16.msra.mxu0 %v2474
      %3060 = vmatprep.subr.bf16.mxu0 0
      %3061 = vmatpush1.bf16.msra.mxu0 %v2475
      %3062 = vmatprep.subr.bf16.mxu0 0
      %3063 = vmatpush1.bf16.msra.mxu0 %v2476
      %3064 = vmatprep.subr.bf16.mxu0 0
      %3065 = vmatpush1.bf16.msra.mxu0 %v2477
      %3066 = vmatprep.subr.bf16.mxu0 0
      %3067 = vmatpush1.bf16.msra.mxu0 %v2478
      %3068 = vmatprep.subr.bf16.mxu0 0
      %3069 = vmatpush1.bf16.msra.mxu0 %v2479
      %3070 = vmatprep.subr.bf16.mxu0 0
      %3071 = vmatpush1.bf16.msra.mxu0 %v2480
      %3072 = vmatprep.subr.bf16.mxu0 0
      %3073 = vmatpush1.bf16.msra.mxu0 %v2481
      %3074 = vmatprep.subr.bf16.mxu0 0
      %3075 = vmatpush1.bf16.msra.mxu0 %v2482
      %3076 = vmatprep.subr.bf16.mxu0 0
      %3077 = vmatpush1.bf16.msra.mxu0 %v2483
      %3078 = vmatprep.subr.bf16.mxu0 0
      %3079 = vmatpush1.bf16.msra.mxu0 %v2484
      %3080 = vmatprep.mubr.bf16.mxu0 %v2015
      %3081 = vmatmul.mubr.bf16.gmra.mrb[0].mxu0 %v1951
      %v3082 = vpop.f32.mrb[0].mxu0
      %v3083 = vadd.f32 %v2922, %v3082
      %v3084 = vpop.f32.mrb[0].mxu0
      %v3085 = vpop.f32.mrb[0].mxu0
      %v3086 = vadd.f32 %v2925, %v3085
      %v3087 = vpop.f32.mrb[0].mxu0
      %3088 = vmatprep.mubr.bf16.mxu0 %v2016
      %3089 = vmatmul.mubr.bf16.gmra.mrb[0].mxu0 %v1952
      %v3090 = vpop.f32.mrb[0].mxu0
      %v3091 = vadd.f32 %v2930, %v3090
      %v3092 = vpop.f32.mrb[0].mxu0
      %v3093 = vpop.f32.mrb[0].mxu0
      %v3094 = vadd.f32 %v2933, %v3093
      %v3095 = vpop.f32.mrb[0].mxu0
      %3096 = vmatprep.mubr.bf16.mxu0 %v2017
      %3097 = vmatmul.mubr.bf16.gmra.mrb[0].mxu0 %v1953
      %v3098 = vpop.f32.mrb[0].mxu0
      %v3099 = vadd.f32 %v2938, %v3098
      %v3100 = vpop.f32.mrb[0].mxu0
      %v3101 = vpop.f32.mrb[0].mxu0
      %v3102 = vadd.f32 %v2941, %v3101
      %v3103 = vpop.f32.mrb[0].mxu0
      %3104 = vmatprep.mubr.bf16.mxu0 %v2018
      %3105 = vmatmul.mubr.bf16.gmra.mrb[0].mxu0 %v1954
      %v3106 = vpop.f32.mrb[0].mxu0
      %v3107 = vadd.f32 %v2946, %v3106
      %v3108 = vpop.f32.mrb[0].mxu0
      %v3109 = vpop.f32.mrb[0].mxu0
      %v3110 = vadd.f32 %v2949, %v3109
      %v3111 = vpop.f32.mrb[0].mxu0
      %3112 = vmatprep.mubr.bf16.mxu0 %v2019
      %3113 = vmatmul.mubr.bf16.gmra.mrb[0].mxu0 %v1955
      %v3114 = vpop.f32.mrb[0].mxu0
      %v3115 = vadd.f32 %v2954, %v3114
      %v3116 = vpop.f32.mrb[0].mxu0
      %v3117 = vpop.f32.mrb[0].mxu0
      %v3118 = vadd.f32 %v2957, %v3117
      %v3119 = vpop.f32.mrb[0].mxu0
      %3120 = vmatprep.mubr.bf16.mxu0 %v2020
      %3121 = vmatmul.mubr.bf16.gmra.mrb[0].mxu0 %v1956
      %v3122 = vpop.f32.mrb[0].mxu0
      %v3123 = vadd.f32 %v2962, %v3122
      %v3124 = vpop.f32.mrb[0].mxu0
      %v3125 = vpop.f32.mrb[0].mxu0
      %v3126 = vadd.f32 %v2965, %v3125
      %v3127 = vpop.f32.mrb[0].mxu0
      %3128 = vmatprep.mubr.bf16.mxu0 %v2021
      %3129 = vmatmul.mubr.bf16.gmra.mrb[0].mxu0 %v1957
      %v3130 = vpop.f32.mrb[0].mxu0
      %v3131 = vadd.f32 %v2970, %v3130
      %v3132 = vpop.f32.mrb[0].mxu0
      %v3133 = vpop.f32.mrb[0].mxu0
      %v3134 = vadd.f32 %v2973, %v3133
      %v3135 = vpop.f32.mrb[0].mxu0
      %3136 = vmatprep.mubr.bf16.mxu0 %v2022
      %3137 = vmatmul.mubr.bf16.gmra.mrb[0].mxu0 %v1958
      %v3138 = vpop.f32.mrb[0].mxu0
      %v3139 = vadd.f32 %v2978, %v3138
      %v3140 = vpop.f32.mrb[0].mxu0
      %v3141 = vpop.f32.mrb[0].mxu0
      %v3142 = vadd.f32 %v2981, %v3141
      %v3143 = vpop.f32.mrb[0].mxu0
      %3144 = vmatprep.mubr.bf16.mxu0 %v2023
      %3145 = vmatmul.mubr.bf16.gmra.mrb[0].mxu0 %v1959
      %v3146 = vpop.f32.mrb[0].mxu0
      %v3147 = vadd.f32 %v2986, %v3146
      %v3148 = vpop.f32.mrb[0].mxu0
      %v3149 = vpop.f32.mrb[0].mxu0
      %v3150 = vadd.f32 %v2989, %v3149
      %v3151 = vpop.f32.mrb[0].mxu0
      %3152 = vmatprep.mubr.bf16.mxu0 %v2024
      %3153 = vmatmul.mubr.bf16.gmra.mrb[0].mxu0 %v1960
      %v3154 = vpop.f32.mrb[0].mxu0
      %v3155 = vadd.f32 %v2994, %v3154
      %v3156 = vpop.f32.mrb[0].mxu0
      %v3157 = vpop.f32.mrb[0].mxu0
      %v3158 = vadd.f32 %v2997, %v3157
      %v3159 = vpop.f32.mrb[0].mxu0
      %3160 = vmatprep.mubr.bf16.mxu0 %v2025
      %3161 = vmatmul.mubr.bf16.gmra.mrb[0].mxu0 %v1961
      %v3162 = vpop.f32.mrb[0].mxu0
      %v3163 = vadd.f32 %v3002, %v3162
      %v3164 = vpop.f32.mrb[0].mxu0
      %v3165 = vpop.f32.mrb[0].mxu0
      %v3166 = vadd.f32 %v3005, %v3165
      %v3167 = vpop.f32.mrb[0].mxu0
      %3168 = vmatprep.mubr.bf16.mxu0 %v2026
      %3169 = vmatmul.mubr.bf16.gmra.mrb[0].mxu0 %v1962
      %v3170 = vpop.f32.mrb[0].mxu0
      %v3171 = vadd.f32 %v3010, %v3170
      %v3172 = vpop.f32.mrb[0].mxu0
      %v3173 = vpop.f32.mrb[0].mxu0
      %v3174 = vadd.f32 %v3013, %v3173
      %v3175 = vpop.f32.mrb[0].mxu0
      %3176 = vmatprep.mubr.bf16.mxu0 %v2027
      %3177 = vmatmul.mubr.bf16.gmra.mrb[0].mxu0 %v1963
      %v3178 = vpop.f32.mrb[0].mxu0
      %v3179 = vadd.f32 %v3018, %v3178
      %v3180 = vpop.f32.mrb[0].mxu0
      %v3181 = vpop.f32.mrb[0].mxu0
      %v3182 = vadd.f32 %v3021, %v3181
      %v3183 = vpop.f32.mrb[0].mxu0
      %3184 = vmatprep.mubr.bf16.mxu0 %v2028
      %3185 = vmatmul.mubr.bf16.gmra.mrb[0].mxu0 %v1964
      %v3186 = vpop.f32.mrb[0].mxu0
      %v3187 = vadd.f32 %v3026, %v3186
      %v3188 = vpop.f32.mrb[0].mxu0
      %v3189 = vpop.f32.mrb[0].mxu0
      %v3190 = vadd.f32 %v3029, %v3189
      %v3191 = vpop.f32.mrb[0].mxu0
      %3192 = vmatprep.mubr.bf16.mxu0 %v2115
      %3193 = vmatmul.mubr.bf16.gmra.mrb[0].mxu0 %v2111
      %v3194 = vpop.f32.mrb[0].mxu0
      %v3195 = vadd.f32 %v3034, %v3194
      %v3196 = vpop.f32.mrb[0].mxu0
      %v3197 = vpop.f32.mrb[0].mxu0
      %v3198 = vadd.f32 %v3037, %v3197
      %v3199 = vpop.f32.mrb[0].mxu0
      %3200 = vmatprep.mubr.bf16.mxu0 %v2127
      %3201 = vmatmul.mubr.bf16.gmra.mrb[0].mxu0 %v2123
      %v3202 = vpop.f32.mrb[0].mxu0
      %v3203 = vadd.f32 %v3042, %v3202
      %v3204 = vpop.f32.mrb[0].mxu0
      %v3205 = vpop.f32.mrb[0].mxu0
      %v3206 = vadd.f32 %v3045, %v3205
      %v3207 = vpop.f32.mrb[0].mxu0
      %3208 = vdwg.mxu0
      %3209 = vmatprep.subr.bf16.mxu0 0
      %3210 = vmatpush1.bf16.msra.mxu0 %v2485
      %3211 = vmatprep.subr.bf16.mxu0 0
      %3212 = vmatpush1.bf16.msra.mxu0 %v2486
      %3213 = vmatprep.subr.bf16.mxu0 0
      %3214 = vmatpush1.bf16.msra.mxu0 %v2487
      %3215 = vmatprep.subr.bf16.mxu0 0
      %3216 = vmatpush1.bf16.msra.mxu0 %v2488
      %3217 = vmatprep.subr.bf16.mxu0 0
      %3218 = vmatpush1.bf16.msra.mxu0 %v2489
      %3219 = vmatprep.subr.bf16.mxu0 0
      %3220 = vmatpush1.bf16.msra.mxu0 %v2490
      %3221 = vmatprep.subr.bf16.mxu0 0
      %3222 = vmatpush1.bf16.msra.mxu0 %v2491
      %3223 = vmatprep.subr.bf16.mxu0 0
      %3224 = vmatpush1.bf16.msra.mxu0 %v2492
      %3225 = vmatprep.subr.bf16.mxu0 0
      %3226 = vmatpush1.bf16.msra.mxu0 0
      %3227 = vmatprep.subr.bf16.mxu0 0
      %3228 = vmatpush1.bf16.msra.mxu0 0
      %3229 = vmatprep.subr.bf16.mxu0 0
      %3230 = vmatpush1.bf16.msra.mxu0 0
      %3231 = vmatprep.subr.bf16.mxu0 0
      %3232 = vmatpush1.bf16.msra.mxu0 0
      %3233 = vmatprep.subr.bf16.mxu0 0
      %3234 = vmatpush1.bf16.msra.mxu0 0
      %3235 = vmatprep.subr.bf16.mxu0 0
      %3236 = vmatpush1.bf16.msra.mxu0 0
      %3237 = vmatprep.subr.bf16.mxu0 0
      %3238 = vmatpush1.bf16.msra.mxu0 0
      %3239 = vmatprep.subr.bf16.mxu0 0
      %3240 = vmatpush1.bf16.msra.mxu0 0
      %3241 = vmatprep.mubr.bf16.mxu0 0
      %3242 = vmatmul.mubr.bf16.gmra.mrb[0].mxu0 %v2079
      %v3243 = vpop.f32.mrb[0].mxu0
      %v3244 = vadd.f32 %v3083, %v3243
      %v3245 = vpop.f32.mrb[0].mxu0
      %v3246 = vpop.f32.mrb[0].mxu0
      %v3247 = vadd.f32 %v3086, %v3246
      %v3248 = vpop.f32.mrb[0].mxu0
      %3249 = vmatprep.mubr.bf16.mxu0 0
      %3250 = vmatmul.mubr.bf16.gmra.mrb[0].mxu0 %v2080
      %v3251 = vpop.f32.mrb[0].mxu0
      %v3252 = vadd.f32 %v3091, %v3251
      %v3253 = vpop.f32.mrb[0].mxu0
      %v3254 = vpop.f32.mrb[0].mxu0
      %v3255 = vadd.f32 %v3094, %v3254
      %v3256 = vpop.f32.mrb[0].mxu0
      %3257 = vmatprep.mubr.bf16.mxu0 0
      %3258 = vmatmul.mubr.bf16.gmra.mrb[0].mxu0 %v2081
      %v3259 = vpop.f32.mrb[0].mxu0
      %v3260 = vadd.f32 %v3099, %v3259
      %v3261 = vpop.f32.mrb[0].mxu0
      %v3262 = vpop.f32.mrb[0].mxu0
      %v3263 = vadd.f32 %v3102, %v3262
      %v3264 = vpop.f32.mrb[0].mxu0
      %3265 = vmatprep.mubr.bf16.mxu0 0
      %3266 = vmatmul.mubr.bf16.gmra.mrb[0].mxu0 %v2082
      %v3267 = vpop.f32.mrb[0].mxu0
      %v3268 = vadd.f32 %v3107, %v3267
      %v3269 = vpop.f32.mrb[0].mxu0
      %v3270 = vpop.f32.mrb[0].mxu0
      %v3271 = vadd.f32 %v3110, %v3270
      %v3272 = vpop.f32.mrb[0].mxu0
      %3273 = vmatprep.mubr.bf16.mxu0 0
      %3274 = vmatmul.mubr.bf16.gmra.mrb[0].mxu0 %v2083
      %v3275 = vpop.f32.mrb[0].mxu0
      %v3276 = vadd.f32 %v3115, %v3275
      %v3277 = vpop.f32.mrb[0].mxu0
      %v3278 = vpop.f32.mrb[0].mxu0
      %v3279 = vadd.f32 %v3118, %v3278
      %v3280 = vpop.f32.mrb[0].mxu0
      %3281 = vmatprep.mubr.bf16.mxu0 0
      %3282 = vmatmul.mubr.bf16.gmra.mrb[0].mxu0 %v2084
      %v3283 = vpop.f32.mrb[0].mxu0
      %v3284 = vadd.f32 %v3123, %v3283
      %v3285 = vpop.f32.mrb[0].mxu0
      %v3286 = vpop.f32.mrb[0].mxu0
      %v3287 = vadd.f32 %v3126, %v3286
      %v3288 = vpop.f32.mrb[0].mxu0
      %3289 = vmatprep.mubr.bf16.mxu0 0
      %3290 = vmatmul.mubr.bf16.gmra.mrb[0].mxu0 %v2085
      %v3291 = vpop.f32.mrb[0].mxu0
      %v3292 = vadd.f32 %v3131, %v3291
      %v3293 = vpop.f32.mrb[0].mxu0
      %v3294 = vpop.f32.mrb[0].mxu0
      %v3295 = vadd.f32 %v3134, %v3294
      %v3296 = vpop.f32.mrb[0].mxu0
      %3297 = vmatprep.mubr.bf16.mxu0 0
      %3298 = vmatmul.mubr.bf16.gmra.mrb[0].mxu0 %v2086
      %v3299 = vpop.f32.mrb[0].mxu0
      %v3300 = vadd.f32 %v3139, %v3299
      %v3301 = vpop.f32.mrb[0].mxu0
      %v3302 = vpop.f32.mrb[0].mxu0
      %v3303 = vadd.f32 %v3142, %v3302
      %v3304 = vpop.f32.mrb[0].mxu0
      %3305 = vmatprep.mubr.bf16.mxu0 0
      %3306 = vmatmul.mubr.bf16.gmra.mrb[0].mxu0 %v2087
      %v3307 = vpop.f32.mrb[0].mxu0
      %v3308 = vadd.f32 %v3147, %v3307
      %v3309 = vpop.f32.mrb[0].mxu0
      %v3310 = vpop.f32.mrb[0].mxu0
      %v3311 = vadd.f32 %v3150, %v3310
      %v3312 = vpop.f32.mrb[0].mxu0
      %3313 = vmatprep.mubr.bf16.mxu0 0
      %3314 = vmatmul.mubr.bf16.gmra.mrb[0].mxu0 %v2088
      %v3315 = vpop.f32.mrb[0].mxu0
      %v3316 = vadd.f32 %v3155, %v3315
      %v3317 = vpop.f32.mrb[0].mxu0
      %v3318 = vpop.f32.mrb[0].mxu0
      %v3319 = vadd.f32 %v3158, %v3318
      %v3320 = vpop.f32.mrb[0].mxu0
      %3321 = vmatprep.mubr.bf16.mxu0 0
      %3322 = vmatmul.mubr.bf16.gmra.mrb[0].mxu0 %v2089
      %v3323 = vpop.f32.mrb[0].mxu0
      %v3324 = vadd.f32 %v3163, %v3323
      %v3325 = vpop.f32.mrb[0].mxu0
      %v3326 = vpop.f32.mrb[0].mxu0
      %v3327 = vadd.f32 %v3166, %v3326
      %v3328 = vpop.f32.mrb[0].mxu0
      %3329 = vmatprep.mubr.bf16.mxu0 0
      %3330 = vmatmul.mubr.bf16.gmra.mrb[0].mxu0 %v2090
      %v3331 = vpop.f32.mrb[0].mxu0
      %v3332 = vadd.f32 %v3171, %v3331
      %v3333 = vpop.f32.mrb[0].mxu0
      %v3334 = vpop.f32.mrb[0].mxu0
      %v3335 = vadd.f32 %v3174, %v3334
      %v3336 = vpop.f32.mrb[0].mxu0
      %3337 = vmatprep.mubr.bf16.mxu0 0
      %3338 = vmatmul.mubr.bf16.gmra.mrb[0].mxu0 %v2091
      %v3339 = vpop.f32.mrb[0].mxu0
      %v3340 = vadd.f32 %v3179, %v3339
      %v3341 = vpop.f32.mrb[0].mxu0
      %v3342 = vpop.f32.mrb[0].mxu0
      %v3343 = vadd.f32 %v3182, %v3342
      %v3344 = vpop.f32.mrb[0].mxu0
      %3345 = vmatprep.mubr.bf16.mxu0 0
      %3346 = vmatmul.mubr.bf16.gmra.mrb[0].mxu0 %v2092
      %v3347 = vpop.f32.mrb[0].mxu0
      %v3348 = vadd.f32 %v3187, %v3347
      %v3349 = vpop.f32.mrb[0].mxu0
      %v3350 = vpop.f32.mrb[0].mxu0
      %v3351 = vadd.f32 %v3190, %v3350
      %v3352 = vpop.f32.mrb[0].mxu0
      %3353 = vmatprep.mubr.bf16.mxu0 0
      %3354 = vmatmul.mubr.bf16.gmra.mrb[0].mxu0 %v2119
      %v3355 = vpop.f32.mrb[0].mxu0
      %v3356 = vadd.f32 %v3195, %v3355
      %v3357 = vpop.f32.mrb[0].mxu0
      %v3358 = vpop.f32.mrb[0].mxu0
      %v3359 = vadd.f32 %v3198, %v3358
      %v3360 = vpop.f32.mrb[0].mxu0
      %3361 = vmatprep.mubr.bf16.mxu0 0
      %3362 = vmatmul.mubr.bf16.gmra.mrb[0].mxu0 %v2131
      %v3363 = vpop.f32.mrb[0].mxu0
      %v3364 = vadd.f32 %v3203, %v3363
      %v3365 = vpop.f32.mrb[0].mxu0
      %v3366 = vpop.f32.mrb[0].mxu0
      %v3367 = vadd.f32 %v3206, %v3366
      %v3368 = vpop.f32.mrb[0].mxu0
      %3369 = vdwg.mxu0
      %v3370 = vpack.c.bf16 %v3247, %v3244
      %v3371 = vpack.c.bf16 %v3255, %v3252
      %v3372 = vpack.c.bf16 %v3263, %v3260
      %v3373 = vpack.c.bf16 %v3271, %v3268
      %v3374 = vpack.c.bf16 %v3279, %v3276
      %v3375 = vpack.c.bf16 %v3287, %v3284
      %v3376 = vpack.c.bf16 %v3295, %v3292
      %v3377 = vpack.c.bf16 %v3303, %v3300
      %v3378 = vpack.c.bf16 %v3311, %v3308
      %v3379 = vpack.c.bf16 %v3319, %v3316
      %v3380 = vpack.c.bf16 %v3327, %v3324
      %v3381 = vpack.c.bf16 %v3335, %v3332
      %v3382 = vpack.c.bf16 %v3343, %v3340
      %v3383 = vpack.c.bf16 %v3351, %v3348
      %v3384 = vpack.c.bf16 %v3359, %v3356
      %v3385 = vpack.c.bf16 %v3367, %v3364
      %v3402 = vunpack.c.l.b16 %v3370
      %v3403 = vunpack.c.h.b16 %v3370
      %v3404 = vunpack.c.l.b16 %v3371
      %v3405 = vunpack.c.h.b16 %v3371
      %v3406 = vunpack.c.l.b16 %v3372
      %v3407 = vunpack.c.h.b16 %v3372
      %v3408 = vunpack.c.l.b16 %v3373
      %v3409 = vunpack.c.h.b16 %v3373
      %v3410 = vunpack.c.l.b16 %v3374
      %v3411 = vunpack.c.h.b16 %v3374
      %v3412 = vunpack.c.l.b16 %v3375
      %v3413 = vunpack.c.h.b16 %v3375
      %v3414 = vunpack.c.l.b16 %v3376
      %v3415 = vunpack.c.h.b16 %v3376
      %v3416 = vunpack.c.l.b16 %v3377
      %v3417 = vunpack.c.h.b16 %v3377
      %v3418 = vunpack.c.l.b16 %v3378
      %v3419 = vunpack.c.h.b16 %v3378
      %v3420 = vunpack.c.l.b16 %v3379
      %v3421 = vunpack.c.h.b16 %v3379
      %v3422 = vunpack.c.l.b16 %v3380
      %v3423 = vunpack.c.h.b16 %v3380
      %v3424 = vunpack.c.l.b16 %v3381
      %v3425 = vunpack.c.h.b16 %v3381
      %v3426 = vunpack.c.l.b16 %v3382
      %v3427 = vunpack.c.h.b16 %v3382
      %v3428 = vunpack.c.l.b16 %v3383
      %v3429 = vunpack.c.h.b16 %v3383
      %v3430 = vunpack.c.l.b16 %v3384
      %v3431 = vunpack.c.h.b16 %v3384
      %v3432 = vunpack.c.l.b16 %v3385
      %v3433 = vunpack.c.h.b16 %v3385
      %v3434 = vpack.c.b16 %v3402, %v3402
      %v3435 = vpack.c.b16 %v3403, %v3403
      %v3436 = vpack.c.b16 %v3404, %v3404
      %v3437 = vpack.c.b16 %v3405, %v3405
      %v3438 = vpack.c.b16 %v3406, %v3406
      %v3439 = vpack.c.b16 %v3407, %v3407
      %v3440 = vpack.c.b16 %v3408, %v3408
      %v3441 = vpack.c.b16 %v3409, %v3409
      %v3442 = vpack.c.b16 %v3410, %v3410
      %v3443 = vpack.c.b16 %v3411, %v3411
      %v3444 = vpack.c.b16 %v3412, %v3412
      %v3445 = vpack.c.b16 %v3413, %v3413
      %v3446 = vpack.c.b16 %v3414, %v3414
      %v3447 = vpack.c.b16 %v3415, %v3415
      %v3448 = vpack.c.b16 %v3416, %v3416
      %v3449 = vpack.c.b16 %v3417, %v3417
      %v3450 = vpack.c.b16 %v3418, %v3418
      %v3451 = vpack.c.b16 %v3419, %v3419
      %v3452 = vpack.c.b16 %v3420, %v3420
      %v3453 = vpack.c.b16 %v3421, %v3421
      %v3454 = vpack.c.b16 %v3422, %v3422
      %v3455 = vpack.c.b16 %v3423, %v3423
      %v3456 = vpack.c.b16 %v3424, %v3424
      %v3457 = vpack.c.b16 %v3425, %v3425
      %v3458 = vpack.c.b16 %v3426, %v3426
      %v3459 = vpack.c.b16 %v3427, %v3427
      %v3460 = vpack.c.b16 %v3428, %v3428
      %v3461 = vpack.c.b16 %v3429, %v3429
      %v3462 = vpack.c.b16 %v3430, %v3430
      %v3463 = vpack.c.b16 %v3431, %v3431
      %v3464 = vpack.c.b16 %v3432, %v3432
      %v3465 = vpack.c.b16 %v3433, %v3433
      %3498 = vst [vmem:[%s264] sm:$0xf] %v3434
      %3499 = vst [vmem:[%s264 + $0x4] sm:$0xf] %v3435
      %3500 = vst [vmem:[%s264 + $0x8] sm:$0xf] %v3436
      %3501 = vst [vmem:[%s264 + $0xc] sm:$0xf] %v3437
      %3502 = vst [vmem:[%s264 + $0x10] sm:$0xf] %v3438
      %3503 = vst [vmem:[%s264 + $0x14] sm:$0xf] %v3439
      %3504 = vst [vmem:[%s264 + $0x18] sm:$0xf] %v3440
      %3505 = vst [vmem:[%s264 + $0x1c] sm:$0xf] %v3441
      %3506 = vst [vmem:[%s264 + $0x20] sm:$0xf] %v3442
      %3507 = vst [vmem:[%s264 + $0x24] sm:$0xf] %v3443
      %3508 = vst [vmem:[%s264 + $0x28] sm:$0xf] %v3444
      %3509 = vst [vmem:[%s264 + $0x2c] sm:$0xf] %v3445
      %3510 = vst [vmem:[%s264 + $0x30] sm:$0xf] %v3446
      %3511 = vst [vmem:[%s264 + $0x34] sm:$0xf] %v3447
      %3512 = vst [vmem:[%s264 + $0x38] sm:$0xf] %v3448
      %3513 = vst [vmem:[%s264 + $0x3c] sm:$0xf] %v3449
      %3514 = vst [vmem:[%s264 + $0x40] sm:$0xf] %v3450
      %3515 = vst [vmem:[%s264 + $0x44] sm:$0xf] %v3451
      %3516 = vst [vmem:[%s264 + $0x48] sm:$0xf] %v3452
      %3517 = vst [vmem:[%s264 + $0x4c] sm:$0xf] %v3453
      %3518 = vst [vmem:[%s264 + $0x50] sm:$0xf] %v3454
      %3519 = vst [vmem:[%s264 + $0x54] sm:$0xf] %v3455
      %3520 = vst [vmem:[%s264 + $0x58] sm:$0xf] %v3456
      %3521 = vst [vmem:[%s264 + $0x5c] sm:$0xf] %v3457
      %3522 = vst [vmem:[%s264 + $0x60] sm:$0xf] %v3458
      %3523 = vst [vmem:[%s264 + $0x64] sm:$0xf] %v3459
      %3524 = vst [vmem:[%s264 + $0x68] sm:$0xf] %v3460
      %3525 = vst [vmem:[%s264 + $0x6c] sm:$0xf] %v3461
      %3526 = vst [vmem:[%s264 + $0x70] sm:$0xf] %v3462
      %3527 = vst [vmem:[%s264 + $0x74] sm:$0xf] %v3463
      %3528 = vst [vmem:[%s264 + $0x78] sm:$0xf] %v3464
      %3529 = vst [vmem:[%s264 + $0x7c] sm:$0xf] %v3465
      %v3530 = vadd.f32 %v3244, %v3247
      %v3531 = vadd.f32 %v3530, %v3252
      %v3532 = vadd.f32 %v3531, %v3255
      %v3533 = vadd.f32 %v3532, %v3260
      %v3534 = vadd.f32 %v3533, %v3263
      %v3535 = vadd.f32 %v3534, %v3268
      %v3536 = vadd.f32 %v3535, %v3271
      %v3537 = vadd.f32 %v3536, %v3276
      %v3538 = vadd.f32 %v3537, %v3279
      %v3539 = vadd.f32 %v3538, %v3284
      %v3540 = vadd.f32 %v3539, %v3287
      %v3541 = vadd.f32 %v3540, %v3292
      %v3542 = vadd.f32 %v3541, %v3295
      %v3543 = vadd.f32 %v3542, %v3300
      %v3544 = vadd.f32 %v3543, %v3303
      %v3545 = vadd.f32 %v3544, %v3308
      %v3546 = vadd.f32 %v3545, %v3311
      %v3547 = vadd.f32 %v3546, %v3316
      %v3548 = vadd.f32 %v3547, %v3319
      %v3549 = vadd.f32 %v3548, %v3324
      %v3550 = vadd.f32 %v3549, %v3327
      %v3551 = vadd.f32 %v3550, %v3332
      %v3552 = vadd.f32 %v3551, %v3335
      %v3553 = vadd.f32 %v3552, %v3340
      %v3554 = vadd.f32 %v3553, %v3343
      %v3555 = vadd.f32 %v3554, %v3348
      %v3556 = vadd.f32 %v3555, %v3351
      %v3557 = vadd.f32 %v3556, %v3356
      %v3558 = vadd.f32 %v3557, %v3359
      %v3559 = vadd.f32 %v3558, %v3364
      %v3560 = vadd.f32 %v3559, %v3367
      %v3561 = vrot.slane %v3560, 4
      %v3562 = vadd.f32 %v3560, %v3561
      %v3563 = vrot.slane %v3562, 2
      %v3564 = vadd.f32 %v3562, %v3563
      %v3565 = vrot.slane %v3564, 1
      %v3566 = vadd.f32 %v3564, %v3565
      %3567 = vst [vmem:[%s268] sm:$0xff] %v3566
      %v3568 = vmul.f32 %v3244, %v3244
      %v3569 = vmul.f32 %v3247, %v3247
      %v3570 = vmul.f32 %v3252, %v3252
      %v3571 = vmul.f32 %v3255, %v3255
      %v3572 = vmul.f32 %v3260, %v3260
      %v3573 = vmul.f32 %v3263, %v3263
      %v3574 = vmul.f32 %v3268, %v3268
      %v3575 = vmul.f32 %v3271, %v3271
      %v3576 = vmul.f32 %v3276, %v3276
      %v3577 = vmul.f32 %v3279, %v3279
      %v3578 = vmul.f32 %v3284, %v3284
      %v3579 = vmul.f32 %v3287, %v3287
      %v3580 = vmul.f32 %v3292, %v3292
      %v3581 = vmul.f32 %v3295, %v3295
      %v3582 = vmul.f32 %v3300, %v3300
      %v3583 = vmul.f32 %v3303, %v3303
      %v3584 = vmul.f32 %v3308, %v3308
      %v3585 = vmul.f32 %v3311, %v3311
      %v3586 = vmul.f32 %v3316, %v3316
      %v3587 = vmul.f32 %v3319, %v3319
      %v3588 = vmul.f32 %v3324, %v3324
      %v3589 = vmul.f32 %v3327, %v3327
      %v3590 = vmul.f32 %v3332, %v3332
      %v3591 = vmul.f32 %v3335, %v3335
      %v3592 = vmul.f32 %v3340, %v3340
      %v3593 = vmul.f32 %v3343, %v3343
      %v3594 = vmul.f32 %v3348, %v3348
      %v3595 = vmul.f32 %v3351, %v3351
      %v3596 = vmul.f32 %v3356, %v3356
      %v3597 = vmul.f32 %v3359, %v3359
      %v3598 = vmul.f32 %v3364, %v3364
      %v3599 = vmul.f32 %v3367, %v3367
      %v3600 = vadd.f32 %v3568, %v3569
      %v3601 = vadd.f32 %v3600, %v3570
      %v3602 = vadd.f32 %v3601, %v3571
      %v3603 = vadd.f32 %v3602, %v3572
      %v3604 = vadd.f32 %v3603, %v3573
      %v3605 = vadd.f32 %v3604, %v3574
      %v3606 = vadd.f32 %v3605, %v3575
      %v3607 = vadd.f32 %v3606, %v3576
      %v3608 = vadd.f32 %v3607, %v3577
      %v3609 = vadd.f32 %v3608, %v3578
      %v3610 = vadd.f32 %v3609, %v3579
      %v3611 = vadd.f32 %v3610, %v3580
      %v3612 = vadd.f32 %v3611, %v3581
      %v3613 = vadd.f32 %v3612, %v3582
      %v3614 = vadd.f32 %v3613, %v3583
      %v3615 = vadd.f32 %v3614, %v3584
      %v3616 = vadd.f32 %v3615, %v3585
      %v3617 = vadd.f32 %v3616, %v3586
      %v3618 = vadd.f32 %v3617, %v3587
      %v3619 = vadd.f32 %v3618, %v3588
      %v3620 = vadd.f32 %v3619, %v3589
      %v3621 = vadd.f32 %v3620, %v3590
      %v3622 = vadd.f32 %v3621, %v3591
      %v3623 = vadd.f32 %v3622, %v3592
      %v3624 = vadd.f32 %v3623, %v3593
      %v3625 = vadd.f32 %v3624, %v3594
      %v3626 = vadd.f32 %v3625, %v3595
      %v3627 = vadd.f32 %v3626, %v3596
      %v3628 = vadd.f32 %v3627, %v3597
      %v3629 = vadd.f32 %v3628, %v3598
      %v3630 = vadd.f32 %v3629, %v3599
      %v3631 = vrot.slane %v3630, 4
      %v3632 = vadd.f32 %v3630, %v3631
      %v3633 = vrot.slane %v3632, 2
      %v3634 = vadd.f32 %v3632, %v3633
      %v3635 = vrot.slane %v3634, 1
      %v3636 = vadd.f32 %v3634, %v3635
      %3637 = vst [vmem:[%s272] sm:$0xff] %v3636
      %p3638 = scmp.lt.s32.totalorder %s18, 1
      %s3639 = scalar_select %p3638, %s18, 1
      %s3640 = smul.addr %s3639, 32
      %s3641 = smul.addr %s3640, 4
      %s3642 = scalar_lea.vmem %s4, %s3641
      %p3643 = scmp.lt.s32.totalorder %s18, 1
      %s3644 = scalar_select %p3643, %s18, 1
      %s3645 = smul.addr %s3644, 8
      %s3646 = scalar_lea.vmem %s5, %s3645
      %p3647 = scmp.lt.s32.totalorder %s18, 1
      %s3648 = scalar_select %p3647, %s18, 1
      %s3649 = smul.addr %s3648, 8
      %s3650 = scalar_lea.vmem %s6, %s3649
      // Predicated region
      $region37: #{residual_block.4} parent=35 // pred_check
        %p3651 = pneg %p125
      $region38: #{residual_block.4} parent=35 // pred_check_branch
        %3653 = sbr.rel (%p3651) target = $region40
      $region39: #{residual_block.4} parent=35 // pred_region
        _
      $region40: #{residual_block.4} parent=35 // pred_fallthru
        _
      // Predicated region
      $region41: #{residual_block.4} parent=35 // pred_check
        %p3654 = pneg %p151
      $region42: #{residual_block.4} parent=35 // pred_check_branch
        %3656 = sbr.rel (%p3654) target = $region44
      $region43: #{residual_block.4} parent=35 // pred_region
        _
      $region44: #{residual_block.4} parent=35 // pred_fallthru
        _
      // Predicated region
      $region45: #{residual_block.4} parent=35 // pred_check
        %p3657 = pneg %p177
      $region46: #{residual_block.4} parent=35 // pred_check_branch
        %3659 = sbr.rel (%p3657) target = $region48
      $region47: #{residual_block.4} parent=35 // pred_region
        _
      $region48: #{residual_block.4} parent=35 // pred_fallthru
        _
    $region36: #{residual_block.4} parent=5 // pred_fallthru
      _
    %p3660 = scmp.le.s32.totalorder 2, %s13
    // Predicated region
    $region49: #{residual_block.4} parent=5 // pred_check
      %p3661 = pneg %p3660
    $region50: #{residual_block.4} parent=5 // pred_check_branch
      %3663 = sbr.rel (%p3661) target = $region52
    $region51: #{residual_block.4} parent=5 // pred_region
      %s3664 = ssub.s32 %s13, 2
      // Predicated region
      $region53: #{residual_block.4} parent=51 // pred_check
        %p3665 = pneg %p131
      $region54: #{residual_block.4} parent=51 // pred_check_branch
        %3667 = sbr.rel (%p3665) target = $region56
      $region55: #{residual_block.4} parent=51 // pred_region
        %p3668 = scmp.lt.s32.totalorder %s19, 1
        %s3669 = scalar_select %p3668, %s19, 1
        %s3670 = smul.addr %s3669, 32
        %s3671 = smul.addr %s3670, 4
        %s3672 = scalar_lea.vmem %s4, %s3671
      $region56: #{residual_block.4} parent=51 // pred_fallthru
        _
      // Predicated region
      $region57: #{residual_block.4} parent=51 // pred_check
        %p3673 = pneg %p157
      $region58: #{residual_block.4} parent=51 // pred_check_branch
        %3675 = sbr.rel (%p3673) target = $region60
      $region59: #{residual_block.4} parent=51 // pred_region
        %p3676 = scmp.lt.s32.totalorder %s19, 1
        %s3677 = scalar_select %p3676, %s19, 1
        %s3678 = smul.addr %s3677, 8
        %s3679 = scalar_lea.vmem %s5, %s3678
      $region60: #{residual_block.4} parent=51 // pred_fallthru
        _
      // Predicated region
      $region61: #{residual_block.4} parent=51 // pred_check
        %p3680 = pneg %p183
      $region62: #{residual_block.4} parent=51 // pred_check_branch
        %3682 = sbr.rel (%p3680) target = $region64
      $region63: #{residual_block.4} parent=51 // pred_region
        %p3683 = scmp.lt.s32.totalorder %s19, 1
        %s3684 = scalar_select %p3683, %s19, 1
        %s3685 = smul.addr %s3684, 8
        %s3686 = scalar_lea.vmem %s6, %s3685
      $region64: #{residual_block.4} parent=51 // pred_fallthru
        _
    $region52: #{residual_block.4} parent=5 // pred_fallthru
      _
  $region6: #{residual_block.4} parent=0 // loop_footer
    %s17 = sadd.s32 1, %s13
  $region7: #{residual_block.4} parent=0 // loop_footer_branch
    %12 = sbr.rel target = $region3
  $region8: #{residual_block.4} parent=0 // loop_exit
    _

</llo_original>
